<compile_context>
chip_gen: v7x
topology: tpu7x:2x2x1
jax: 0.10.0
libtpu: 0.0.40
codegen_flags: <defaults>
</compile_context>

<pallas_src>
import functools

import jax
import jax.numpy as jnp
from jax.experimental import pallas as pl
from jax.experimental.pallas import tpu as pltpu

BN_EPS = 1e-5
_MATMUL_DTYPE = jnp.bfloat16   # MXU operand dtype (accumulation stays f32)
_OFF = 16                      # leading slack rows of the flat padded buffer
# Hard invariant: the dy=0, dx=0 tap reads row _OFF - 1.
assert _OFF >= 1


# --------------------------------------------------------------------------- #
# in-kernel helpers
# --------------------------------------------------------------------------- #
def _pad_rows(HW, W):
    # Rows touched: reads span [_OFF - 1, _OFF + 2W + HW + 1); +8 slack rows.
    return _OFF + HW + 2 * W + 8


def _fill_padded(pad_ref, interior, *, HW, W):
    """Row-padded flat (rows, C) bf16 buffer: two zero strips + interior store.

    Only the (W+1)-row strips reachable by the 3x3 taps are zeroed, and they
    are zeroed every grid step on purpose (megacore-safe: each core has its
    own scratch, so a program_id==0 guard could leave borders uninitialized).
    """
    c = pad_ref.shape[1]
    z = jnp.zeros((W + 1, c), pad_ref.dtype)
    pad_ref[pl.ds(_OFF - 1, W + 1), :] = z            # top border (+1 slack row)
    pad_ref[pl.ds(_OFF + W + HW, W + 1), :] = z       # bottom border (+1 slack row)
    pad_ref[pl.ds(_OFF + W, HW), :] = interior        # image interior (bf16)


def _conv3x3_flat(pad_ref, w_ref, *, H, W):
    """3x3 / stride 1 / pad 1 conv on a flat row-padded (rows, Cin) bf16 buffer.

    Output element o = y*W + x of tap (dy, dx) reads flat index
    _OFF + dy*W + (dx-1) + o.  Row padding handles dy; the left/right column
    wrap (x==0 for dx==0, x==W-1 for dx==2) is zeroed on the bf16 patch with
    iota-derived masks, so the accumulation is a pure sum of MXU dots.
    """
    HW = H * W
    col = jax.lax.broadcasted_iota(jnp.int32, (HW, 1), 0) % W
    not_left = col != 0
    not_right = col != (W - 1)
    acc = None
    for dy in range(3):
        for dx in range(3):
            start = _OFF + dy * W + (dx - 1)                  # static offset
            patch = pad_ref[pl.ds(start, HW), :]              # bf16 (HW, Cin)
            if dx == 0:
                patch = jnp.where(not_left, patch, jnp.zeros_like(patch))
            elif dx == 2:
                patch = jnp.where(not_right, patch, jnp.zeros_like(patch))
            contrib = jnp.dot(patch, w_ref[dy * 3 + dx],
                              preferred_element_type=jnp.float32)
            acc = contrib if acc is None else acc + contrib
    return acc                                               # f32 (HW, Cout)


def _write_stats(st_ref, acc):
    st_ref[0:1, :] = jnp.sum(acc, axis=0, keepdims=True)
    st_ref[1:2, :] = jnp.sum(acc * acc, axis=0, keepdims=True)


# --------------------------------------------------------------------------- #
# kernels
# --------------------------------------------------------------------------- #
def _conv1_kernel(x_ref, w_ref, y_ref, st_ref, pad_ref, *, H, W):
    # x_ref : (H*W, Cin)  bf16     w_ref : (9, Cin, Cmid) bf16
    # y_ref : (H*W, Cmid) bf16     st_ref: (2, Cmid) f32
    # pad_ref: bf16 row-padded flat scratch
    HW = H * W
    _fill_padded(pad_ref, x_ref[...], HW=HW, W=W)
    acc = _conv3x3_flat(pad_ref, w_ref, H=H, W=W)
    y_ref[...] = acc.astype(y_ref.dtype)          # bf16 intermediate to HBM
    _write_stats(st_ref, acc)                     # BN1 stats from f32 acc


def _bn1_relu_conv2_kernel(y1_ref, sc_ref, sh_ref, w_ref,
                           y2_ref, st_ref, pad_ref, *, H, W):
    # Fused BN1 (scale/shift) + ReLU + conv2 + BN2 partial sums.
    HW = H * W
    a = jnp.maximum(y1_ref[...].astype(jnp.float32) * sc_ref[...] + sh_ref[...],
                    0.0)
    _fill_padded(pad_ref, a.astype(pad_ref.dtype), HW=HW, W=W)
    acc = _conv3x3_flat(pad_ref, w_ref, H=H, W=W)
    y2_ref[...] = acc.astype(y2_ref.dtype)        # bf16 intermediate to HBM
    _write_stats(st_ref, acc)                     # BN2 stats from f32 acc


def _bn2_relu_kernel(y_ref, sc_ref, sh_ref, o_ref):
    o_ref[...] = jnp.maximum(
        y_ref[...].astype(jnp.float32) * sc_ref[...] + sh_ref[...], 0.0)


# --------------------------------------------------------------------------- #
# wrapper
# --------------------------------------------------------------------------- #
def _bn_scale_shift(stats, gamma, beta, count):
    """stats: (N, 2, C) per-tile [sum, sumsq] -> BN affine (scale, shift)."""
    # TODO(synk): E[x^2]-mean^2 in f32 is cancellation-prone when |mean|>>std;
    #             use a shifted/two-pass combine for very large N*H*W.
    s = jnp.sum(stats, axis=0)                                  # (2, C)
    mean = s[0] / count
    var = jnp.maximum(s[1] / count - mean * mean, 0.0)          # biased variance
    inv = jax.lax.rsqrt(var + BN_EPS)
    scale = gamma * inv
    shift = beta - mean * scale
    return (scale.reshape(1, -1).astype(jnp.float32),
            shift.reshape(1, -1).astype(jnp.float32))


_VMEM_CAP_CACHE = None


def _vmem_capacity_bytes():
    """Physical per-core VMEM (128 MiB v5e/v6e, 64 MiB v7x); safe fallback."""
    global _VMEM_CAP_CACHE
    if _VMEM_CAP_CACHE is None:
        cap = None
        try:
            info = pltpu.get_tpu_info()
            for attr in ("vmem_capacity_bytes", "vmem_bytes", "vmem_size_bytes"):
                v = getattr(info, attr, None)
                if v:
                    cap = int(v)
                    break
        except Exception:
            cap = None
        _VMEM_CAP_CACHE = cap if cap else (64 << 20)   # conservative fallback
    return _VMEM_CAP_CACHE


def _cparams(block_bytes, scratch_bytes):
    # Generation-aware cap (~85% of physical VMEM); never below what the
    # (double-buffered) blocks + scratch actually need, with a 16 MiB floor.
    cap = int(0.85 * _vmem_capacity_bytes())
    needed = int(2 * block_bytes + scratch_bytes) + (8 << 20)
    limit = min(max(needed, 16 << 20), cap)
    return pltpu.CompilerParams(dimension_semantics=("parallel",),
                                vmem_limit_bytes=limit)


@jax.jit
def double_conv(x_nchw, w1, g1, b1, w2, g2, b2):
    """DoubleConv forward. x_nchw: (N, Cin, H, W). Returns (N, Cout, H, W)."""
    N, Cin, H, W = x_nchw.shape
    Cmid = w1.shape[-1]
    Cout = w2.shape[-1]
    HW = H * W
    pad_rows = _pad_rows(HW, W)
    bsz = jnp.dtype(_MATMUL_DTYPE).itemsize        # bf16 bytes
    count = float(N * HW)

    # NCHW -> flat (N, H*W, C) with channels on the lane dim; bf16 MXU operands.
    x = jnp.transpose(x_nchw, (0, 2, 3, 1)).reshape(N, HW, Cin).astype(_MATMUL_DTYPE)
    w1f = w1.reshape(9, Cin, Cmid).astype(_MATMUL_DTYPE)
    w2f = w2.reshape(9, Cmid, Cout).astype(_MATMUL_DTYPE)

    # ---- pass 1: conv1 (raw, bf16 out) + BN1 partial sums -------------------
    blk1 = (HW * Cin * bsz + 9 * Cin * Cmid * bsz
            + HW * Cmid * bsz + 2 * Cmid * 4)
    y1, st1 = pl.pallas_call(
        functools.partial(_conv1_kernel, H=H, W=W),
        grid=(N,),
        in_specs=[
            pl.BlockSpec((None, HW, Cin), lambda n: (n, 0, 0)),
            pl.BlockSpec((9, Cin, Cmid), lambda n: (0, 0, 0)),
        ],
        out_specs=[
            pl.BlockSpec((None, HW, Cmid), lambda n: (n, 0, 0)),
            pl.BlockSpec((None, 2, Cmid), lambda n: (n, 0, 0)),
        ],
        out_shape=[
            jax.ShapeDtypeStruct((N, HW, Cmid), _MATMUL_DTYPE),
            jax.ShapeDtypeStruct((N, 2, Cmid), jnp.float32),
        ],
        scratch_shapes=[pltpu.VMEM((pad_rows, Cin), _MATMUL_DTYPE)],
        compiler_params=_cparams(blk1, pad_rows * Cin * bsz),
    )(x, w1f)

    scale1, shift1 = _bn_scale_shift(st1, g1, b1, count)

    # ---- pass 2: BN1+ReLU fused with conv2 (raw, bf16 out) + BN2 sums -------
    blk2 = (HW * Cmid * bsz + 2 * Cmid * 4 + 9 * Cmid * Cout * bsz
            + HW * Cout * bsz + 2 * Cout * 4)
    y2, st2 = pl.pallas_call(
        functools.partial(_bn1_relu_conv2_kernel, H=H, W=W),
        grid=(N,),
        in_specs=[
            pl.BlockSpec((None, HW, Cmid), lambda n: (n, 0, 0)),
            pl.BlockSpec((1, Cmid), lambda n: (0, 0)),
            pl.BlockSpec((1, Cmid), lambda n: (0, 0)),
            pl.BlockSpec((9, Cmid, Cout), lambda n: (0, 0, 0)),
        ],
        out_specs=[
            pl.BlockSpec((None, HW, Cout), lambda n: (n, 0, 0)),
            pl.BlockSpec((None, 2, Cout), lambda n: (n, 0, 0)),
        ],
        out_shape=[
            jax.ShapeDtypeStruct((N, HW, Cout), _MATMUL_DTYPE),
            jax.ShapeDtypeStruct((N, 2, Cout), jnp.float32),
        ],
        scratch_shapes=[pltpu.VMEM((pad_rows, Cmid), _MATMUL_DTYPE)],
        compiler_params=_cparams(blk2, pad_rows * Cmid * bsz),
    )(y1, scale1, shift1, w2f)

    scale2, shift2 = _bn_scale_shift(st2, g2, b2, count)

    # ---- pass 3: BN2 + ReLU (bf16 in, f32 out) -------------------------------
    blk3 = HW * Cout * bsz + 2 * Cout * 4 + HW * Cout * 4
    out_flat = pl.pallas_call(
        _bn2_relu_kernel,
        grid=(N,),
        in_specs=[
            pl.BlockSpec((None, HW, Cout), lambda n: (n, 0, 0)),
            pl.BlockSpec((1, Cout), lambda n: (0, 0)),
            pl.BlockSpec((1, Cout), lambda n: (0, 0)),
        ],
        out_specs=pl.BlockSpec((None, HW, Cout), lambda n: (n, 0, 0)),
        out_shape=jax.ShapeDtypeStruct((N, HW, Cout), jnp.float32),
        compiler_params=_cparams(blk3, 0),
    )(y2, scale2, shift2)

    return jnp.transpose(out_flat.reshape(N, H, W, Cout), (0, 3, 1, 2))


# --------------------------------------------------------------------------- #
# pure-JAX references
# --------------------------------------------------------------------------- #
def _conv_same(v, w, matmul_dtype):
    return jax.lax.conv_general_dilated(
        v.astype(matmul_dtype), w.astype(matmul_dtype),
        window_strides=(1, 1), padding="SAME",
        dimension_numbers=("NHWC", "HWIO", "NHWC"),
        preferred_element_type=jnp.float32)


def double_conv_reference(x_nchw, w1, g1, b1, w2, g2, b2,
                          matmul_dtype=jnp.float32):
    """Exact PyTorch-module semantics (training-mode BN, biased variance)."""
    x = jnp.transpose(x_nchw, (0, 2, 3, 1)).astype(jnp.float32)

    def bn_relu(y, g, b):
        mean = jnp.mean(y, axis=(0, 1, 2), keepdims=True)
        var = jnp.mean((y - mean) ** 2, axis=(0, 1, 2), keepdims=True)
        return jnp.maximum((y - mean) * jax.lax.rsqrt(var + BN_EPS) * g + b, 0.0)

    y = bn_relu(_conv_same(x, w1, matmul_dtype), g1, b1)
    y = bn_relu(_conv_same(y, w2, matmul_dtype), g2, b2)
    return jnp.transpose(y, (0, 3, 1, 2))


def double_conv_matched_reference(x_nchw, w1, g1, b1, w2, g2, b2):
    """Mirrors the kernel's arithmetic: bf16 conv operands, f32 accumulation,
    BN stats from the f32 conv output, bf16-rounded inter-pass activations."""
    x = jnp.transpose(x_nchw, (0, 2, 3, 1)).astype(jnp.float32)

    def bn_affine(y_f32, g, b):
        mean = jnp.mean(y_f32, axis=(0, 1, 2))
        var = jnp.maximum(jnp.mean(y_f32 * y_f32, axis=(0, 1, 2)) - mean * mean, 0.0)
        inv = jax.lax.rsqrt(var + BN_EPS)
        scale = g * inv
        shift = b - mean * scale
        return scale, shift

    y1 = _conv_same(x, w1, _MATMUL_DTYPE)                       # f32 accum
    sc1, sh1 = bn_affine(y1, g1, b1)
    y1b = y1.astype(_MATMUL_DTYPE).astype(jnp.float32)          # bf16 intermediate
    a1 = jnp.maximum(y1b * sc1 + sh1, 0.0)
    y2 = _conv_same(a1, w2, _MATMUL_DTYPE)                      # f32 accum
    sc2, sh2 = bn_affine(y2, g2, b2)
    y2b = y2.astype(_MATMUL_DTYPE).astype(jnp.float32)          # bf16 intermediate
    out = jnp.maximum(y2b * sc2 + sh2, 0.0)
    return jnp.transpose(out, (0, 3, 1, 2))


if __name__ == "__main__":
    # Small deterministic setup: batch=2, in_channels=4, out_channels=8, 16x16.
    N, Cin, Cout, H, W = 2, 4, 8, 16, 16

    key = jax.random.PRNGKey(0)
    k_x, k_w1, k_w2, k_g1, k_b1, k_g2, k_b2 = jax.random.split(key, 7)

    x = jax.random.normal(k_x, (N, Cin, H, W), dtype=jnp.float32)
    w1 = jax.random.normal(k_w1, (3, 3, Cin, Cout), dtype=jnp.float32) * 0.1
    w2 = jax.random.normal(k_w2, (3, 3, Cout, Cout), dtype=jnp.float32) * 0.1
    g1 = 1.0 + 0.1 * jax.random.normal(k_g1, (Cout,), dtype=jnp.float32)
    b1 = 0.1 * jax.random.normal(k_b1, (Cout,), dtype=jnp.float32)
    g2 = 1.0 + 0.1 * jax.random.normal(k_g2, (Cout,), dtype=jnp.float32)
    b2 = 0.1 * jax.random.normal(k_b2, (Cout,), dtype=jnp.float32)

    out = jax.block_until_ready(double_conv(x, w1, g1, b1, w2, g2, b2))
    assert out.shape == (N, Cout, H, W)

    # Tight check vs a reference using the same bf16-operand / f32-accum /
    # bf16-intermediate math as the kernel.
    ref_matched = jax.block_until_ready(
        double_conv_matched_reference(x, w1, g1, b1, w2, g2, b2))
    # Loose check vs the exact f32 semantics of the PyTorch module (bf16 MXU
    # operands + bf16 intermediates introduce ~1e-2-level differences).
    ref_f32 = jax.block_until_ready(
        double_conv_reference(x, w1, g1, b1, w2, g2, b2,
                              matmul_dtype=jnp.float32))

    err_matched = float(jnp.max(jnp.abs(out - ref_matched)))
    err_f32 = float(jnp.max(jnp.abs(out - ref_f32)))
    assert jnp.allclose(out, ref_matched, atol=5e-3, rtol=5e-3), err_matched
    assert jnp.allclose(out, ref_f32, atol=3e-2, rtol=3e-2), err_f32

    print("KERNEL_OK")
</pallas_src>

<mosaic_0001>
module attributes {stable_mosaic.version = 11 : i64} {
  func.func @_conv1_kernel(%arg0: i32, %arg1: memref<1x256x4xbf16, #tpu.memory_space<vmem>>, %arg2: memref<9x4x8xbf16, #tpu.memory_space<vmem>>, %arg3: memref<1x256x8xbf16, #tpu.memory_space<vmem>>, %arg4: memref<1x2x8xf32, #tpu.memory_space<vmem>>, %arg5: memref<312x4xbf16, #tpu.memory_space<vmem>>) attributes {dimension_semantics = [#tpu.dimension_semantics<parallel>], iteration_bounds = array<i64: 2>, scalar_prefetch = 0 : i64, scratch_operands = 1 : i64, tpu.core_type = #tpu.core_type<tc>, window_params = [{transform_indices = @transform_0, window_bounds = array<i64: 1, 256, 4>}, {pipeline_mode = #tpu.pipeline_mode<synchronous>, transform_indices = @transform_1, window_bounds = array<i64: 9, 4, 8>}, {transform_indices = @transform_2, window_bounds = array<i64: 1, 256, 8>}, {transform_indices = @transform_3, window_bounds = array<i64: 1, 2, 8>}]} {
    %c0 = arith.constant 0 : index
    %c0_0 = arith.constant 0 : index
    %c0_1 = arith.constant 0 : index
    %0 = vector.load %arg1[%c0, %c0_0, %c0_1] : memref<1x256x4xbf16, #tpu.memory_space<vmem>>, vector<1x256x4xbf16>
    %1 = vector.shape_cast %0 : vector<1x256x4xbf16> to vector<256x4xbf16>
    %cst = arith.constant 0.000000e+00 : bf16
    %2 = vector.broadcast %cst : bf16 to vector<17x4xbf16>
    %c15 = arith.constant 15 : index
    %c0_2 = arith.constant 0 : index
    %3 = vector.load %arg5[%c15, %c0_2] : memref<312x4xbf16, #tpu.memory_space<vmem>>, vector<17x4xbf16>
    tpu.vector_store %arg5[%c15, %c0_2], %2 {strides = array<i32>} : memref<312x4xbf16, #tpu.memory_space<vmem>>, vector<17x4xbf16>,
    %c288 = arith.constant 288 : index
    %c0_3 = arith.constant 0 : index
    %4 = vector.load %arg5[%c288, %c0_3] : memref<312x4xbf16, #tpu.memory_space<vmem>>, vector<17x4xbf16>
    tpu.vector_store %arg5[%c288, %c0_3], %2 {strides = array<i32>} : memref<312x4xbf16, #tpu.memory_space<vmem>>, vector<17x4xbf16>,
    %c32 = arith.constant 32 : index
    %c0_4 = arith.constant 0 : index
    %5 = vector.load %arg5[%c32, %c0_4] : memref<312x4xbf16, #tpu.memory_space<vmem>>, vector<256x4xbf16>
    tpu.vector_store %arg5[%c32, %c0_4], %1 {strides = array<i32>} : memref<312x4xbf16, #tpu.memory_space<vmem>>, vector<256x4xbf16>,
    %6 = tpu.iota {dimensions = array<i32: 0>} : vector<256x1xi32>
    %c16_i32 = arith.constant 16 : i32
    %c0_i32 = arith.constant 0 : i32
    %7 = arith.cmpi eq, %c16_i32, %c0_i32 : i32
    %c1_i32 = arith.constant 1 : i32
    %8 = arith.select %7, %c1_i32, %c16_i32 : i32
    %9 = vector.broadcast %8 : i32 to vector<256x1xi32>
    %10 = arith.remsi %6, %9 : vector<256x1xi32>
    %c0_i32_5 = arith.constant 0 : i32
    %11 = vector.broadcast %c0_i32_5 : i32 to vector<256x1xi32>
    %12 = arith.cmpi ne, %10, %11 : vector<256x1xi32>
    %c0_i32_6 = arith.constant 0 : i32
    %13 = vector.broadcast %c0_i32_6 : i32 to vector<256x1xi32>
    %14 = arith.cmpi slt, %10, %13 : vector<256x1xi32>
    %c0_i32_7 = arith.constant 0 : i32
    %15 = arith.cmpi slt, %8, %c0_i32_7 : i32
    %16 = vector.broadcast %15 : i1 to vector<256x1xi1>
    %17 = vector.broadcast %16 : vector<256x1xi1> to vector<256x1xi1>
    %18 = arith.xori %14, %17 : vector<256x1xi1>
    %19 = arith.andi %18, %12 : vector<256x1xi1>
    %20 = vector.broadcast %8 : i32 to vector<256x1xi32>
    %21 = arith.addi %10, %20 : vector<256x1xi32>
    %22 = arith.select %19, %21, %10 : vector<256x1xi1>, vector<256x1xi32>
    %c0_i32_8 = arith.constant 0 : i32
    %23 = vector.broadcast %c0_i32_8 : i32 to vector<256x1xi32>
    %24 = arith.cmpi ne, %22, %23 : vector<256x1xi32>
    %c15_i32 = arith.constant 15 : i32
    %25 = vector.broadcast %c15_i32 : i32 to vector<256x1xi32>
    %26 = arith.cmpi ne, %22, %25 : vector<256x1xi32>
    %c15_9 = arith.constant 15 : index
    %c0_10 = arith.constant 0 : index
    %27 = vector.load %arg5[%c15_9, %c0_10] : memref<312x4xbf16, #tpu.memory_space<vmem>>, vector<256x4xbf16>
    %cst_11 = arith.constant 0.000000e+00 : bf16
    %28 = vector.broadcast %cst_11 : bf16 to vector<256x4xbf16>
    %29 = vector.shape_cast %24 : vector<256x1xi1> to vector<256x1xi1>
    %30 = vector.broadcast %29 : vector<256x1xi1> to vector<256x4xi1>
    %31 = arith.select %30, %27, %28 : vector<256x4xi1>, vector<256x4xbf16>
    %c0_12 = arith.constant 0 : index
    %c0_13 = arith.constant 0 : index
    %c0_14 = arith.constant 0 : index
    %32 = vector.load %arg2[%c0_12, %c0_13, %c0_14] : memref<9x4x8xbf16, #tpu.memory_space<vmem>>, vector<1x4x8xbf16>
    %33 = vector.shape_cast %32 : vector<1x4x8xbf16> to vector<4x8xbf16>
    %cst_15 = arith.constant dense<0.000000e+00> : vector<256x8xf32>
    %34 = tpu.matmul %31, %33, %cst_15 {dimension_numbers = #tpu.dot_dimension_numbers<[1], [0], [0], [1], [0, 0, 1, 1], [], []>} : vector<256x4xbf16>, vector<4x8xbf16>, vector<256x8xf32> -> vector<256x8xf32>
    %c16 = arith.constant 16 : index
    %c0_16 = arith.constant 0 : index
    %35 = vector.load %arg5[%c16, %c0_16] : memref<312x4xbf16, #tpu.memory_space<vmem>>, vector<256x4xbf16>
    %c1 = arith.constant 1 : index
    %c0_17 = arith.constant 0 : index
    %c0_18 = arith.constant 0 : index
    %36 = vector.load %arg2[%c1, %c0_17, %c0_18] : memref<9x4x8xbf16, #tpu.memory_space<vmem>>, vector<1x4x8xbf16>
    %37 = vector.shape_cast %36 : vector<1x4x8xbf16> to vector<4x8xbf16>
    %cst_19 = arith.constant dense<0.000000e+00> : vector<256x8xf32>
    %38 = tpu.matmul %35, %37, %cst_19 {dimension_numbers = #tpu.dot_dimension_numbers<[1], [0], [0], [1], [0, 0, 1, 1], [], []>} : vector<256x4xbf16>, vector<4x8xbf16>, vector<256x8xf32> -> vector<256x8xf32>
    %39 = arith.addf %34, %38 : vector<256x8xf32>
    %c17 = arith.constant 17 : index
    %c0_20 = arith.constant 0 : index
    %40 = vector.load %arg5[%c17, %c0_20] : memref<312x4xbf16, #tpu.memory_space<vmem>>, vector<256x4xbf16>
    %cst_21 = arith.constant 0.000000e+00 : bf16
    %41 = vector.broadcast %cst_21 : bf16 to vector<256x4xbf16>
    %42 = vector.shape_cast %26 : vector<256x1xi1> to vector<256x1xi1>
    %43 = vector.broadcast %42 : vector<256x1xi1> to vector<256x4xi1>
    %44 = arith.select %43, %40, %41 : vector<256x4xi1>, vector<256x4xbf16>
    %c2 = arith.constant 2 : index
    %c0_22 = arith.constant 0 : index
    %c0_23 = arith.constant 0 : index
    %45 = vector.load %arg2[%c2, %c0_22, %c0_23] : memref<9x4x8xbf16, #tpu.memory_space<vmem>>, vector<1x4x8xbf16>
    %46 = vector.shape_cast %45 : vector<1x4x8xbf16> to vector<4x8xbf16>
    %cst_24 = arith.constant dense<0.000000e+00> : vector<256x8xf32>
    %47 = tpu.matmul %44, %46, %cst_24 {dimension_numbers = #tpu.dot_dimension_numbers<[1], [0], [0], [1], [0, 0, 1, 1], [], []>} : vector<256x4xbf16>, vector<4x8xbf16>, vector<256x8xf32> -> vector<256x8xf32>
    %48 = arith.addf %39, %47 : vector<256x8xf32>
    %c31 = arith.constant 31 : index
    %c0_25 = arith.constant 0 : index
    %49 = vector.load %arg5[%c31, %c0_25] : memref<312x4xbf16, #tpu.memory_space<vmem>>, vector<256x4xbf16>
    %cst_26 = arith.constant 0.000000e+00 : bf16
    %50 = vector.broadcast %cst_26 : bf16 to vector<256x4xbf16>
    %51 = vector.shape_cast %24 : vector<256x1xi1> to vector<256x1xi1>
    %52 = vector.broadcast %51 : vector<256x1xi1> to vector<256x4xi1>
    %53 = arith.select %52, %49, %50 : vector<256x4xi1>, vector<256x4xbf16>
    %c3 = arith.constant 3 : index
    %c0_27 = arith.constant 0 : index
    %c0_28 = arith.constant 0 : index
    %54 = vector.load %arg2[%c3, %c0_27, %c0_28] : memref<9x4x8xbf16, #tpu.memory_space<vmem>>, vector<1x4x8xbf16>
    %55 = vector.shape_cast %54 : vector<1x4x8xbf16> to vector<4x8xbf16>
    %cst_29 = arith.constant dense<0.000000e+00> : vector<256x8xf32>
    %56 = tpu.matmul %53, %55, %cst_29 {dimension_numbers = #tpu.dot_dimension_numbers<[1], [0], [0], [1], [0, 0, 1, 1], [], []>} : vector<256x4xbf16>, vector<4x8xbf16>, vector<256x8xf32> -> vector<256x8xf32>
    %57 = arith.addf %48, %56 : vector<256x8xf32>
    %c32_30 = arith.constant 32 : index
    %c0_31 = arith.constant 0 : index
    %58 = vector.load %arg5[%c32_30, %c0_31] : memref<312x4xbf16, #tpu.memory_space<vmem>>, vector<256x4xbf16>
    %c4 = arith.constant 4 : index
    %c0_32 = arith.constant 0 : index
    %c0_33 = arith.constant 0 : index
    %59 = vector.load %arg2[%c4, %c0_32, %c0_33] : memref<9x4x8xbf16, #tpu.memory_space<vmem>>, vector<1x4x8xbf16>
    %60 = vector.shape_cast %59 : vector<1x4x8xbf16> to vector<4x8xbf16>
    %cst_34 = arith.constant dense<0.000000e+00> : vector<256x8xf32>
    %61 = tpu.matmul %58, %60, %cst_34 {dimension_numbers = #tpu.dot_dimension_numbers<[1], [0], [0], [1], [0, 0, 1, 1], [], []>} : vector<256x4xbf16>, vector<4x8xbf16>, vector<256x8xf32> -> vector<256x8xf32>
    %62 = arith.addf %57, %61 : vector<256x8xf32>
    %c33 = arith.constant 33 : index
    %c0_35 = arith.constant 0 : index
    %63 = vector.load %arg5[%c33, %c0_35] : memref<312x4xbf16, #tpu.memory_space<vmem>>, vector<256x4xbf16>
    %cst_36 = arith.constant 0.000000e+00 : bf16
    %64 = vector.broadcast %cst_36 : bf16 to vector<256x4xbf16>
    %65 = vector.shape_cast %26 : vector<256x1xi1> to vector<256x1xi1>
    %66 = vector.broadcast %65 : vector<256x1xi1> to vector<256x4xi1>
    %67 = arith.select %66, %63, %64 : vector<256x4xi1>, vector<256x4xbf16>
    %c5 = arith.constant 5 : index
    %c0_37 = arith.constant 0 : index
    %c0_38 = arith.constant 0 : index
    %68 = vector.load %arg2[%c5, %c0_37, %c0_38] : memref<9x4x8xbf16, #tpu.memory_space<vmem>>, vector<1x4x8xbf16>
    %69 = vector.shape_cast %68 : vector<1x4x8xbf16> to vector<4x8xbf16>
    %cst_39 = arith.constant dense<0.000000e+00> : vector<256x8xf32>
    %70 = tpu.matmul %67, %69, %cst_39 {dimension_numbers = #tpu.dot_dimension_numbers<[1], [0], [0], [1], [0, 0, 1, 1], [], []>} : vector<256x4xbf16>, vector<4x8xbf16>, vector<256x8xf32> -> vector<256x8xf32>
    %71 = arith.addf %62, %70 : vector<256x8xf32>
    %c47 = arith.constant 47 : index
    %c0_40 = arith.constant 0 : index
    %72 = vector.load %arg5[%c47, %c0_40] : memref<312x4xbf16, #tpu.memory_space<vmem>>, vector<256x4xbf16>
    %cst_41 = arith.constant 0.000000e+00 : bf16
    %73 = vector.broadcast %cst_41 : bf16 to vector<256x4xbf16>
    %74 = vector.shape_cast %24 : vector<256x1xi1> to vector<256x1xi1>
    %75 = vector.broadcast %74 : vector<256x1xi1> to vector<256x4xi1>
    %76 = arith.select %75, %72, %73 : vector<256x4xi1>, vector<256x4xbf16>
    %c6 = arith.constant 6 : index
    %c0_42 = arith.constant 0 : index
    %c0_43 = arith.constant 0 : index
    %77 = vector.load %arg2[%c6, %c0_42, %c0_43] : memref<9x4x8xbf16, #tpu.memory_space<vmem>>, vector<1x4x8xbf16>
    %78 = vector.shape_cast %77 : vector<1x4x8xbf16> to vector<4x8xbf16>
    %cst_44 = arith.constant dense<0.000000e+00> : vector<256x8xf32>
    %79 = tpu.matmul %76, %78, %cst_44 {dimension_numbers = #tpu.dot_dimension_numbers<[1], [0], [0], [1], [0, 0, 1, 1], [], []>} : vector<256x4xbf16>, vector<4x8xbf16>, vector<256x8xf32> -> vector<256x8xf32>
    %80 = arith.addf %71, %79 : vector<256x8xf32>
    %c48 = arith.constant 48 : index
    %c0_45 = arith.constant 0 : index
    %81 = vector.load %arg5[%c48, %c0_45] : memref<312x4xbf16, #tpu.memory_space<vmem>>, vector<256x4xbf16>
    %c7 = arith.constant 7 : index
    %c0_46 = arith.constant 0 : index
    %c0_47 = arith.constant 0 : index
    %82 = vector.load %arg2[%c7, %c0_46, %c0_47] : memref<9x4x8xbf16, #tpu.memory_space<vmem>>, vector<1x4x8xbf16>
    %83 = vector.shape_cast %82 : vector<1x4x8xbf16> to vector<4x8xbf16>
    %cst_48 = arith.constant dense<0.000000e+00> : vector<256x8xf32>
    %84 = tpu.matmul %81, %83, %cst_48 {dimension_numbers = #tpu.dot_dimension_numbers<[1], [0], [0], [1], [0, 0, 1, 1], [], []>} : vector<256x4xbf16>, vector<4x8xbf16>, vector<256x8xf32> -> vector<256x8xf32>
    %85 = arith.addf %80, %84 : vector<256x8xf32>
    %c49 = arith.constant 49 : index
    %c0_49 = arith.constant 0 : index
    %86 = vector.load %arg5[%c49, %c0_49] : memref<312x4xbf16, #tpu.memory_space<vmem>>, vector<256x4xbf16>
    %cst_50 = arith.constant 0.000000e+00 : bf16
    %87 = vector.broadcast %cst_50 : bf16 to vector<256x4xbf16>
    %88 = vector.shape_cast %26 : vector<256x1xi1> to vector<256x1xi1>
    %89 = vector.broadcast %88 : vector<256x1xi1> to vector<256x4xi1>
    %90 = arith.select %89, %86, %87 : vector<256x4xi1>, vector<256x4xbf16>
    %c8 = arith.constant 8 : index
    %c0_51 = arith.constant 0 : index
    %c0_52 = arith.constant 0 : index
    %91 = vector.load %arg2[%c8, %c0_51, %c0_52] : memref<9x4x8xbf16, #tpu.memory_space<vmem>>, vector<1x4x8xbf16>
    %92 = vector.shape_cast %91 : vector<1x4x8xbf16> to vector<4x8xbf16>
    %cst_53 = arith.constant dense<0.000000e+00> : vector<256x8xf32>
    %93 = tpu.matmul %90, %92, %cst_53 {dimension_numbers = #tpu.dot_dimension_numbers<[1], [0], [0], [1], [0, 0, 1, 1], [], []>} : vector<256x4xbf16>, vector<4x8xbf16>, vector<256x8xf32> -> vector<256x8xf32>
    %94 = arith.addf %85, %93 : vector<256x8xf32>
    %95 = arith.truncf %94 : vector<256x8xf32> to vector<256x8xbf16>
    %c0_54 = arith.constant 0 : index
    %c0_55 = arith.constant 0 : index
    %c0_56 = arith.constant 0 : index
    %96 = vector.load %arg3[%c0_54, %c0_55, %c0_56] : memref<1x256x8xbf16, #tpu.memory_space<vmem>>, vector<1x256x8xbf16>
    %97 = vector.shape_cast %96 : vector<1x256x8xbf16> to vector<256x8xbf16>
    %98 = vector.shape_cast %95 : vector<256x8xbf16> to vector<1x256x8xbf16>
    tpu.vector_store %arg3[%c0_54, %c0_55, %c0_56], %98 {strides = array<i32>} : memref<1x256x8xbf16, #tpu.memory_space<vmem>>, vector<1x256x8xbf16>,
    %cst_57 = arith.constant dense<0.000000e+00> : vector<8xf32>
    %99 = vector.multi_reduction <add>, %94, %cst_57 [0] : vector<256x8xf32> to vector<8xf32>
    %100 = vector.shape_cast %99 : vector<8xf32> to vector<1x8xf32>
    %c0_58 = arith.constant 0 : index
    %c0_59 = arith.constant 0 : index
    %c0_60 = arith.constant 0 : index
    %101 = vector.load %arg4[%c0_58, %c0_59, %c0_60] : memref<1x2x8xf32, #tpu.memory_space<vmem>>, vector<1x1x8xf32>
    %102 = vector.shape_cast %101 : vector<1x1x8xf32> to vector<1x8xf32>
    %103 = vector.shape_cast %100 : vector<1x8xf32> to vector<1x1x8xf32>
    tpu.vector_store %arg4[%c0_58, %c0_59, %c0_60], %103 {strides = array<i32>} : memref<1x2x8xf32, #tpu.memory_space<vmem>>, vector<1x1x8xf32>,
    %104 = arith.mulf %94, %94 : vector<256x8xf32>
    %cst_61 = arith.constant dense<0.000000e+00> : vector<8xf32>
    %105 = vector.multi_reduction <add>, %104, %cst_61 [0] : vector<256x8xf32> to vector<8xf32>
    %106 = vector.shape_cast %105 : vector<8xf32> to vector<1x8xf32>
    %c0_62 = arith.constant 0 : index
    %c1_63 = arith.constant 1 : index
    %c0_64 = arith.constant 0 : index
    %107 = vector.load %arg4[%c0_62, %c1_63, %c0_64] : memref<1x2x8xf32, #tpu.memory_space<vmem>>, vector<1x1x8xf32>
    %108 = vector.shape_cast %107 : vector<1x1x8xf32> to vector<1x8xf32>
    %109 = vector.shape_cast %106 : vector<1x8xf32> to vector<1x1x8xf32>
    tpu.vector_store %arg4[%c0_62, %c1_63, %c0_64], %109 {strides = array<i32>} : memref<1x2x8xf32, #tpu.memory_space<vmem>>, vector<1x1x8xf32>,
    return
  }
  func.func @transform_0(%arg0: i32) -> (i32, i32, i32) {
    %c0_i32 = arith.constant 0 : i32
    %c0_i32_0 = arith.constant 0 : i32
    %c0_i32_1 = arith.constant 0 : i32
    return %arg0, %c0_i32, %c0_i32_0 : i32, i32, i32
  }
  func.func @transform_1(%arg0: i32) -> (i32, i32, i32) {
    %c0_i32 = arith.constant 0 : i32
    %c0_i32_0 = arith.constant 0 : i32
    %c0_i32_1 = arith.constant 0 : i32
    %c0_i32_2 = arith.constant 0 : i32
    return %c0_i32, %c0_i32_0, %c0_i32_1 : i32, i32, i32
  }
  func.func @transform_2(%arg0: i32) -> (i32, i32, i32) {
    %c0_i32 = arith.constant 0 : i32
    %c0_i32_0 = arith.constant 0 : i32
    %c0_i32_1 = arith.constant 0 : i32
    return %arg0, %c0_i32, %c0_i32_0 : i32, i32, i32
  }
  func.func @transform_3(%arg0: i32) -> (i32, i32, i32) {
    %c0_i32 = arith.constant 0 : i32
    %c0_i32_0 = arith.constant 0 : i32
    %c0_i32_1 = arith.constant 0 : i32
    return %arg0, %c0_i32, %c0_i32_0 : i32, i32, i32
  }
}

module attributes {stable_mosaic.version = 11 : i64} {
  func.func @_bn2_relu_kernel(%arg0: i32, %arg1: memref<1x256x8xbf16, #tpu.memory_space<vmem>>, %arg2: memref<1x8xf32, #tpu.memory_space<vmem>>, %arg3: memref<1x8xf32, #tpu.memory_space<vmem>>, %arg4: memref<1x256x8xf32, #tpu.memory_space<vmem>>) attributes {dimension_semantics = [#tpu.dimension_semantics<parallel>], iteration_bounds = array<i64: 2>, scalar_prefetch = 0 : i64, scratch_operands = 0 : i64, tpu.core_type = #tpu.core_type<tc>, window_params = [{transform_indices = @transform_0, window_bounds = array<i64: 1, 256, 8>}, {pipeline_mode = #tpu.pipeline_mode<synchronous>, transform_indices = @transform_1, window_bounds = array<i64: 1, 8>}, {pipeline_mode = #tpu.pipeline_mode<synchronous>, transform_indices = @transform_2, window_bounds = array<i64: 1, 8>}, {transform_indices = @transform_3, window_bounds = array<i64: 1, 256, 8>}]} {
    %c0 = arith.constant 0 : index
    %c0_0 = arith.constant 0 : index
    %c0_1 = arith.constant 0 : index
    %0 = vector.load %arg1[%c0, %c0_0, %c0_1] : memref<1x256x8xbf16, #tpu.memory_space<vmem>>, vector<1x256x8xbf16>
    %1 = vector.shape_cast %0 : vector<1x256x8xbf16> to vector<256x8xbf16>
    %2 = arith.extf %1 : vector<256x8xbf16> to vector<256x8xf32>
    %c0_2 = arith.constant 0 : index
    %c0_3 = arith.constant 0 : index
    %3 = vector.load %arg2[%c0_2, %c0_3] : memref<1x8xf32, #tpu.memory_space<vmem>>, vector<1x8xf32>
    %4 = vector.broadcast %3 : vector<1x8xf32> to vector<256x8xf32>
    %5 = arith.mulf %2, %4 : vector<256x8xf32>
    %c0_4 = arith.constant 0 : index
    %c0_5 = arith.constant 0 : index
    %6 = vector.load %arg3[%c0_4, %c0_5] : memref<1x8xf32, #tpu.memory_space<vmem>>, vector<1x8xf32>
    %7 = vector.broadcast %6 : vector<1x8xf32> to vector<256x8xf32>
    %8 = arith.addf %5, %7 : vector<256x8xf32>
    %cst = arith.constant 0.000000e+00 : f32
    %9 = vector.broadcast %cst : f32 to vector<256x8xf32>
    %10 = arith.maximumf %8, %9 : vector<256x8xf32>
    %c0_6 = arith.constant 0 : index
    %c0_7 = arith.constant 0 : index
    %c0_8 = arith.constant 0 : index
    %11 = vector.load %arg4[%c0_6, %c0_7, %c0_8] : memref<1x256x8xf32, #tpu.memory_space<vmem>>, vector<1x256x8xf32>
    %12 = vector.shape_cast %11 : vector<1x256x8xf32> to vector<256x8xf32>
    %13 = vector.shape_cast %10 : vector<256x8xf32> to vector<1x256x8xf32>
    tpu.vector_store %arg4[%c0_6, %c0_7, %c0_8], %13 {strides = array<i32>} : memref<1x256x8xf32, #tpu.memory_space<vmem>>, vector<1x256x8xf32>,
    return
  }
  func.func @transform_0(%arg0: i32) -> (i32, i32, i32) {
    %c0_i32 = arith.constant 0 : i32
    %c0_i32_0 = arith.constant 0 : i32
    %c0_i32_1 = arith.constant 0 : i32
    return %arg0, %c0_i32, %c0_i32_0 : i32, i32, i32
  }
  func.func @transform_1(%arg0: i32) -> (i32, i32) {
    %c0_i32 = arith.constant 0 : i32
    %c0_i32_0 = arith.constant 0 : i32
    %c0_i32_1 = arith.constant 0 : i32
    return %c0_i32, %c0_i32_0 : i32, i32
  }
  func.func @transform_2(%arg0: i32) -> (i32, i32) {
    %c0_i32 = arith.constant 0 : i32
    %c0_i32_0 = arith.constant 0 : i32
    %c0_i32_1 = arith.constant 0 : i32
    return %c0_i32, %c0_i32_0 : i32, i32
  }
  func.func @transform_3(%arg0: i32) -> (i32, i32, i32) {
    %c0_i32 = arith.constant 0 : i32
    %c0_i32_0 = arith.constant 0 : i32
    %c0_i32_1 = arith.constant 0 : i32
    return %arg0, %c0_i32, %c0_i32_0 : i32, i32, i32
  }
}

module attributes {stable_mosaic.version = 11 : i64} {
  func.func @_bn1_relu_conv2_kernel(%arg0: i32, %arg1: memref<1x256x8xbf16, #tpu.memory_space<vmem>>, %arg2: memref<1x8xf32, #tpu.memory_space<vmem>>, %arg3: memref<1x8xf32, #tpu.memory_space<vmem>>, %arg4: memref<9x8x8xbf16, #tpu.memory_space<vmem>>, %arg5: memref<1x256x8xbf16, #tpu.memory_space<vmem>>, %arg6: memref<1x2x8xf32, #tpu.memory_space<vmem>>, %arg7: memref<312x8xbf16, #tpu.memory_space<vmem>>) attributes {dimension_semantics = [#tpu.dimension_semantics<parallel>], iteration_bounds = array<i64: 2>, scalar_prefetch = 0 : i64, scratch_operands = 1 : i64, tpu.core_type = #tpu.core_type<tc>, window_params = [{transform_indices = @transform_0, window_bounds = array<i64: 1, 256, 8>}, {pipeline_mode = #tpu.pipeline_mode<synchronous>, transform_indices = @transform_1, window_bounds = array<i64: 1, 8>}, {pipeline_mode = #tpu.pipeline_mode<synchronous>, transform_indices = @transform_2, window_bounds = array<i64: 1, 8>}, {pipeline_mode = #tpu.pipeline_mode<synchronous>, transform_indices = @transform_3, window_bounds = array<i64: 9, 8, 8>}, {transform_indices = @transform_4, window_bounds = array<i64: 1, 256, 8>}, {transform_indices = @transform_5, window_bounds = array<i64: 1, 2, 8>}]} {
    %c0 = arith.constant 0 : index
    %c0_0 = arith.constant 0 : index
    %c0_1 = arith.constant 0 : index
    %0 = vector.load %arg1[%c0, %c0_0, %c0_1] : memref<1x256x8xbf16, #tpu.memory_space<vmem>>, vector<1x256x8xbf16>
    %1 = vector.shape_cast %0 : vector<1x256x8xbf16> to vector<256x8xbf16>
    %2 = arith.extf %1 : vector<256x8xbf16> to vector<256x8xf32>
    %c0_2 = arith.constant 0 : index
    %c0_3 = arith.constant 0 : index
    %3 = vector.load %arg2[%c0_2, %c0_3] : memref<1x8xf32, #tpu.memory_space<vmem>>, vector<1x8xf32>
    %4 = vector.broadcast %3 : vector<1x8xf32> to vector<256x8xf32>
    %5 = arith.mulf %2, %4 : vector<256x8xf32>
    %c0_4 = arith.constant 0 : index
    %c0_5 = arith.constant 0 : index
    %6 = vector.load %arg3[%c0_4, %c0_5] : memref<1x8xf32, #tpu.memory_space<vmem>>, vector<1x8xf32>
    %7 = vector.broadcast %6 : vector<1x8xf32> to vector<256x8xf32>
    %8 = arith.addf %5, %7 : vector<256x8xf32>
    %cst = arith.constant 0.000000e+00 : f32
    %9 = vector.broadcast %cst : f32 to vector<256x8xf32>
    %10 = arith.maximumf %8, %9 : vector<256x8xf32>
    %11 = arith.truncf %10 : vector<256x8xf32> to vector<256x8xbf16>
    %cst_6 = arith.constant 0.000000e+00 : bf16
    %12 = vector.broadcast %cst_6 : bf16 to vector<17x8xbf16>
    %c15 = arith.constant 15 : index
    %c0_7 = arith.constant 0 : index
    %13 = vector.load %arg7[%c15, %c0_7] : memref<312x8xbf16, #tpu.memory_space<vmem>>, vector<17x8xbf16>
    tpu.vector_store %arg7[%c15, %c0_7], %12 {strides = array<i32>} : memref<312x8xbf16, #tpu.memory_space<vmem>>, vector<17x8xbf16>,
    %c288 = arith.constant 288 : index
    %c0_8 = arith.constant 0 : index
    %14 = vector.load %arg7[%c288, %c0_8] : memref<312x8xbf16, #tpu.memory_space<vmem>>, vector<17x8xbf16>
    tpu.vector_store %arg7[%c288, %c0_8], %12 {strides = array<i32>} : memref<312x8xbf16, #tpu.memory_space<vmem>>, vector<17x8xbf16>,
    %c32 = arith.constant 32 : index
    %c0_9 = arith.constant 0 : index
    %15 = vector.load %arg7[%c32, %c0_9] : memref<312x8xbf16, #tpu.memory_space<vmem>>, vector<256x8xbf16>
    tpu.vector_store %arg7[%c32, %c0_9], %11 {strides = array<i32>} : memref<312x8xbf16, #tpu.memory_space<vmem>>, vector<256x8xbf16>,
    %16 = tpu.iota {dimensions = array<i32: 0>} : vector<256x1xi32>
    %c16_i32 = arith.constant 16 : i32
    %c0_i32 = arith.constant 0 : i32
    %17 = arith.cmpi eq, %c16_i32, %c0_i32 : i32
    %c1_i32 = arith.constant 1 : i32
    %18 = arith.select %17, %c1_i32, %c16_i32 : i32
    %19 = vector.broadcast %18 : i32 to vector<256x1xi32>
    %20 = arith.remsi %16, %19 : vector<256x1xi32>
    %c0_i32_10 = arith.constant 0 : i32
    %21 = vector.broadcast %c0_i32_10 : i32 to vector<256x1xi32>
    %22 = arith.cmpi ne, %20, %21 : vector<256x1xi32>
    %c0_i32_11 = arith.constant 0 : i32
    %23 = vector.broadcast %c0_i32_11 : i32 to vector<256x1xi32>
    %24 = arith.cmpi slt, %20, %23 : vector<256x1xi32>
    %c0_i32_12 = arith.constant 0 : i32
    %25 = arith.cmpi slt, %18, %c0_i32_12 : i32
    %26 = vector.broadcast %25 : i1 to vector<256x1xi1>
    %27 = vector.broadcast %26 : vector<256x1xi1> to vector<256x1xi1>
    %28 = arith.xori %24, %27 : vector<256x1xi1>
    %29 = arith.andi %28, %22 : vector<256x1xi1>
    %30 = vector.broadcast %18 : i32 to vector<256x1xi32>
    %31 = arith.addi %20, %30 : vector<256x1xi32>
    %32 = arith.select %29, %31, %20 : vector<256x1xi1>, vector<256x1xi32>
    %c0_i32_13 = arith.constant 0 : i32
    %33 = vector.broadcast %c0_i32_13 : i32 to vector<256x1xi32>
    %34 = arith.cmpi ne, %32, %33 : vector<256x1xi32>
    %c15_i32 = arith.constant 15 : i32
    %35 = vector.broadcast %c15_i32 : i32 to vector<256x1xi32>
    %36 = arith.cmpi ne, %32, %35 : vector<256x1xi32>
    %c15_14 = arith.constant 15 : index
    %c0_15 = arith.constant 0 : index
    %37 = vector.load %arg7[%c15_14, %c0_15] : memref<312x8xbf16, #tpu.memory_space<vmem>>, vector<256x8xbf16>
    %cst_16 = arith.constant 0.000000e+00 : bf16
    %38 = vector.broadcast %cst_16 : bf16 to vector<256x8xbf16>
    %39 = vector.shape_cast %34 : vector<256x1xi1> to vector<256x1xi1>
    %40 = vector.broadcast %39 : vector<256x1xi1> to vector<256x8xi1>
    %41 = arith.select %40, %37, %38 : vector<256x8xi1>, vector<256x8xbf16>
    %c0_17 = arith.constant 0 : index
    %c0_18 = arith.constant 0 : index
    %c0_19 = arith.constant 0 : index
    %42 = vector.load %arg4[%c0_17, %c0_18, %c0_19] : memref<9x8x8xbf16, #tpu.memory_space<vmem>>, vector<1x8x8xbf16>
    %43 = vector.shape_cast %42 : vector<1x8x8xbf16> to vector<8x8xbf16>
    %cst_20 = arith.constant dense<0.000000e+00> : vector<256x8xf32>
    %44 = tpu.matmul %41, %43, %cst_20 {dimension_numbers = #tpu.dot_dimension_numbers<[1], [0], [0], [1], [0, 0, 1, 1], [], []>} : vector<256x8xbf16>, vector<8x8xbf16>, vector<256x8xf32> -> vector<256x8xf32>
    %c16 = arith.constant 16 : index
    %c0_21 = arith.constant 0 : index
    %45 = vector.load %arg7[%c16, %c0_21] : memref<312x8xbf16, #tpu.memory_space<vmem>>, vector<256x8xbf16>
    %c1 = arith.constant 1 : index
    %c0_22 = arith.constant 0 : index
    %c0_23 = arith.constant 0 : index
    %46 = vector.load %arg4[%c1, %c0_22, %c0_23] : memref<9x8x8xbf16, #tpu.memory_space<vmem>>, vector<1x8x8xbf16>
    %47 = vector.shape_cast %46 : vector<1x8x8xbf16> to vector<8x8xbf16>
    %cst_24 = arith.constant dense<0.000000e+00> : vector<256x8xf32>
    %48 = tpu.matmul %45, %47, %cst_24 {dimension_numbers = #tpu.dot_dimension_numbers<[1], [0], [0], [1], [0, 0, 1, 1], [], []>} : vector<256x8xbf16>, vector<8x8xbf16>, vector<256x8xf32> -> vector<256x8xf32>
    %49 = arith.addf %44, %48 : vector<256x8xf32>
    %c17 = arith.constant 17 : index
    %c0_25 = arith.constant 0 : index
    %50 = vector.load %arg7[%c17, %c0_25] : memref<312x8xbf16, #tpu.memory_space<vmem>>, vector<256x8xbf16>
    %cst_26 = arith.constant 0.000000e+00 : bf16
    %51 = vector.broadcast %cst_26 : bf16 to vector<256x8xbf16>
    %52 = vector.shape_cast %36 : vector<256x1xi1> to vector<256x1xi1>
    %53 = vector.broadcast %52 : vector<256x1xi1> to vector<256x8xi1>
    %54 = arith.select %53, %50, %51 : vector<256x8xi1>, vector<256x8xbf16>
    %c2 = arith.constant 2 : index
    %c0_27 = arith.constant 0 : index
    %c0_28 = arith.constant 0 : index
    %55 = vector.load %arg4[%c2, %c0_27, %c0_28] : memref<9x8x8xbf16, #tpu.memory_space<vmem>>, vector<1x8x8xbf16>
    %56 = vector.shape_cast %55 : vector<1x8x8xbf16> to vector<8x8xbf16>
    %cst_29 = arith.constant dense<0.000000e+00> : vector<256x8xf32>
    %57 = tpu.matmul %54, %56, %cst_29 {dimension_numbers = #tpu.dot_dimension_numbers<[1], [0], [0], [1], [0, 0, 1, 1], [], []>} : vector<256x8xbf16>, vector<8x8xbf16>, vector<256x8xf32> -> vector<256x8xf32>
    %58 = arith.addf %49, %57 : vector<256x8xf32>
    %c31 = arith.constant 31 : index
    %c0_30 = arith.constant 0 : index
    %59 = vector.load %arg7[%c31, %c0_30] : memref<312x8xbf16, #tpu.memory_space<vmem>>, vector<256x8xbf16>
    %cst_31 = arith.constant 0.000000e+00 : bf16
    %60 = vector.broadcast %cst_31 : bf16 to vector<256x8xbf16>
    %61 = vector.shape_cast %34 : vector<256x1xi1> to vector<256x1xi1>
    %62 = vector.broadcast %61 : vector<256x1xi1> to vector<256x8xi1>
    %63 = arith.select %62, %59, %60 : vector<256x8xi1>, vector<256x8xbf16>
    %c3 = arith.constant 3 : index
    %c0_32 = arith.constant 0 : index
    %c0_33 = arith.constant 0 : index
    %64 = vector.load %arg4[%c3, %c0_32, %c0_33] : memref<9x8x8xbf16, #tpu.memory_space<vmem>>, vector<1x8x8xbf16>
    %65 = vector.shape_cast %64 : vector<1x8x8xbf16> to vector<8x8xbf16>
    %cst_34 = arith.constant dense<0.000000e+00> : vector<256x8xf32>
    %66 = tpu.matmul %63, %65, %cst_34 {dimension_numbers = #tpu.dot_dimension_numbers<[1], [0], [0], [1], [0, 0, 1, 1], [], []>} : vector<256x8xbf16>, vector<8x8xbf16>, vector<256x8xf32> -> vector<256x8xf32>
    %67 = arith.addf %58, %66 : vector<256x8xf32>
    %c32_35 = arith.constant 32 : index
    %c0_36 = arith.constant 0 : index
    %68 = vector.load %arg7[%c32_35, %c0_36] : memref<312x8xbf16, #tpu.memory_space<vmem>>, vector<256x8xbf16>
    %c4 = arith.constant 4 : index
    %c0_37 = arith.constant 0 : index
    %c0_38 = arith.constant 0 : index
    %69 = vector.load %arg4[%c4, %c0_37, %c0_38] : memref<9x8x8xbf16, #tpu.memory_space<vmem>>, vector<1x8x8xbf16>
    %70 = vector.shape_cast %69 : vector<1x8x8xbf16> to vector<8x8xbf16>
    %cst_39 = arith.constant dense<0.000000e+00> : vector<256x8xf32>
    %71 = tpu.matmul %68, %70, %cst_39 {dimension_numbers = #tpu.dot_dimension_numbers<[1], [0], [0], [1], [0, 0, 1, 1], [], []>} : vector<256x8xbf16>, vector<8x8xbf16>, vector<256x8xf32> -> vector<256x8xf32>
    %72 = arith.addf %67, %71 : vector<256x8xf32>
    %c33 = arith.constant 33 : index
    %c0_40 = arith.constant 0 : index
    %73 = vector.load %arg7[%c33, %c0_40] : memref<312x8xbf16, #tpu.memory_space<vmem>>, vector<256x8xbf16>
    %cst_41 = arith.constant 0.000000e+00 : bf16
    %74 = vector.broadcast %cst_41 : bf16 to vector<256x8xbf16>
    %75 = vector.shape_cast %36 : vector<256x1xi1> to vector<256x1xi1>
    %76 = vector.broadcast %75 : vector<256x1xi1> to vector<256x8xi1>
    %77 = arith.select %76, %73, %74 : vector<256x8xi1>, vector<256x8xbf16>
    %c5 = arith.constant 5 : index
    %c0_42 = arith.constant 0 : index
    %c0_43 = arith.constant 0 : index
    %78 = vector.load %arg4[%c5, %c0_42, %c0_43] : memref<9x8x8xbf16, #tpu.memory_space<vmem>>, vector<1x8x8xbf16>
    %79 = vector.shape_cast %78 : vector<1x8x8xbf16> to vector<8x8xbf16>
    %cst_44 = arith.constant dense<0.000000e+00> : vector<256x8xf32>
    %80 = tpu.matmul %77, %79, %cst_44 {dimension_numbers = #tpu.dot_dimension_numbers<[1], [0], [0], [1], [0, 0, 1, 1], [], []>} : vector<256x8xbf16>, vector<8x8xbf16>, vector<256x8xf32> -> vector<256x8xf32>
    %81 = arith.addf %72, %80 : vector<256x8xf32>
    %c47 = arith.constant 47 : index
    %c0_45 = arith.constant 0 : index
    %82 = vector.load %arg7[%c47, %c0_45] : memref<312x8xbf16, #tpu.memory_space<vmem>>, vector<256x8xbf16>
    %cst_46 = arith.constant 0.000000e+00 : bf16
    %83 = vector.broadcast %cst_46 : bf16 to vector<256x8xbf16>
    %84 = vector.shape_cast %34 : vector<256x1xi1> to vector<256x1xi1>
    %85 = vector.broadcast %84 : vector<256x1xi1> to vector<256x8xi1>
    %86 = arith.select %85, %82, %83 : vector<256x8xi1>, vector<256x8xbf16>
    %c6 = arith.constant 6 : index
    %c0_47 = arith.constant 0 : index
    %c0_48 = arith.constant 0 : index
    %87 = vector.load %arg4[%c6, %c0_47, %c0_48] : memref<9x8x8xbf16, #tpu.memory_space<vmem>>, vector<1x8x8xbf16>
    %88 = vector.shape_cast %87 : vector<1x8x8xbf16> to vector<8x8xbf16>
    %cst_49 = arith.constant dense<0.000000e+00> : vector<256x8xf32>
    %89 = tpu.matmul %86, %88, %cst_49 {dimension_numbers = #tpu.dot_dimension_numbers<[1], [0], [0], [1], [0, 0, 1, 1], [], []>} : vector<256x8xbf16>, vector<8x8xbf16>, vector<256x8xf32> -> vector<256x8xf32>
    %90 = arith.addf %81, %89 : vector<256x8xf32>
    %c48 = arith.constant 48 : index
    %c0_50 = arith.constant 0 : index
    %91 = vector.load %arg7[%c48, %c0_50] : memref<312x8xbf16, #tpu.memory_space<vmem>>, vector<256x8xbf16>
    %c7 = arith.constant 7 : index
    %c0_51 = arith.constant 0 : index
    %c0_52 = arith.constant 0 : index
    %92 = vector.load %arg4[%c7, %c0_51, %c0_52] : memref<9x8x8xbf16, #tpu.memory_space<vmem>>, vector<1x8x8xbf16>
    %93 = vector.shape_cast %92 : vector<1x8x8xbf16> to vector<8x8xbf16>
    %cst_53 = arith.constant dense<0.000000e+00> : vector<256x8xf32>
    %94 = tpu.matmul %91, %93, %cst_53 {dimension_numbers = #tpu.dot_dimension_numbers<[1], [0], [0], [1], [0, 0, 1, 1], [], []>} : vector<256x8xbf16>, vector<8x8xbf16>, vector<256x8xf32> -> vector<256x8xf32>
    %95 = arith.addf %90, %94 : vector<256x8xf32>
    %c49 = arith.constant 49 : index
    %c0_54 = arith.constant 0 : index
    %96 = vector.load %arg7[%c49, %c0_54] : memref<312x8xbf16, #tpu.memory_space<vmem>>, vector<256x8xbf16>
    %cst_55 = arith.constant 0.000000e+00 : bf16
    %97 = vector.broadcast %cst_55 : bf16 to vector<256x8xbf16>
    %98 = vector.shape_cast %36 : vector<256x1xi1> to vector<256x1xi1>
    %99 = vector.broadcast %98 : vector<256x1xi1> to vector<256x8xi1>
    %100 = arith.select %99, %96, %97 : vector<256x8xi1>, vector<256x8xbf16>
    %c8 = arith.constant 8 : index
    %c0_56 = arith.constant 0 : index
    %c0_57 = arith.constant 0 : index
    %101 = vector.load %arg4[%c8, %c0_56, %c0_57] : memref<9x8x8xbf16, #tpu.memory_space<vmem>>, vector<1x8x8xbf16>
    %102 = vector.shape_cast %101 : vector<1x8x8xbf16> to vector<8x8xbf16>
    %cst_58 = arith.constant dense<0.000000e+00> : vector<256x8xf32>
    %103 = tpu.matmul %100, %102, %cst_58 {dimension_numbers = #tpu.dot_dimension_numbers<[1], [0], [0], [1], [0, 0, 1, 1], [], []>} : vector<256x8xbf16>, vector<8x8xbf16>, vector<256x8xf32> -> vector<256x8xf32>
    %104 = arith.addf %95, %103 : vector<256x8xf32>
    %105 = arith.truncf %104 : vector<256x8xf32> to vector<256x8xbf16>
    %c0_59 = arith.constant 0 : index
    %c0_60 = arith.constant 0 : index
    %c0_61 = arith.constant 0 : index
    %106 = vector.load %arg5[%c0_59, %c0_60, %c0_61] : memref<1x256x8xbf16, #tpu.memory_space<vmem>>, vector<1x256x8xbf16>
    %107 = vector.shape_cast %106 : vector<1x256x8xbf16> to vector<256x8xbf16>
    %108 = vector.shape_cast %105 : vector<256x8xbf16> to vector<1x256x8xbf16>
    tpu.vector_store %arg5[%c0_59, %c0_60, %c0_61], %108 {strides = array<i32>} : memref<1x256x8xbf16, #tpu.memory_space<vmem>>, vector<1x256x8xbf16>,
    %cst_62 = arith.constant dense<0.000000e+00> : vector<8xf32>
    %109 = vector.multi_reduction <add>, %104, %cst_62 [0] : vector<256x8xf32> to vector<8xf32>
    %110 = vector.shape_cast %109 : vector<8xf32> to vector<1x8xf32>
    %c0_63 = arith.constant 0 : index
    %c0_64 = arith.constant 0 : index
    %c0_65 = arith.constant 0 : index
    %111 = vector.load %arg6[%c0_63, %c0_64, %c0_65] : memref<1x2x8xf32, #tpu.memory_space<vmem>>, vector<1x1x8xf32>
    %112 = vector.shape_cast %111 : vector<1x1x8xf32> to vector<1x8xf32>
    %113 = vector.shape_cast %110 : vector<1x8xf32> to vector<1x1x8xf32>
    tpu.vector_store %arg6[%c0_63, %c0_64, %c0_65], %113 {strides = array<i32>} : memref<1x2x8xf32, #tpu.memory_space<vmem>>, vector<1x1x8xf32>,
    %114 = arith.mulf %104, %104 : vector<256x8xf32>
    %cst_66 = arith.constant dense<0.000000e+00> : vector<8xf32>
    %115 = vector.multi_reduction <add>, %114, %cst_66 [0] : vector<256x8xf32> to vector<8xf32>
    %116 = vector.shape_cast %115 : vector<8xf32> to vector<1x8xf32>
    %c0_67 = arith.constant 0 : index
    %c1_68 = arith.constant 1 : index
    %c0_69 = arith.constant 0 : index
    %117 = vector.load %arg6[%c0_67, %c1_68, %c0_69] : memref<1x2x8xf32, #tpu.memory_space<vmem>>, vector<1x1x8xf32>
    %118 = vector.shape_cast %117 : vector<1x1x8xf32> to vector<1x8xf32>
    %119 = vector.shape_cast %116 : vector<1x8xf32> to vector<1x1x8xf32>
    tpu.vector_store %arg6[%c0_67, %c1_68, %c0_69], %119 {strides = array<i32>} : memref<1x2x8xf32, #tpu.memory_space<vmem>>, vector<1x1x8xf32>,
    return
  }
  func.func @transform_0(%arg0: i32) -> (i32, i32, i32) {
    %c0_i32 = arith.constant 0 : i32
    %c0_i32_0 = arith.constant 0 : i32
    %c0_i32_1 = arith.constant 0 : i32
    return %arg0, %c0_i32, %c0_i32_0 : i32, i32, i32
  }
  func.func @transform_1(%arg0: i32) -> (i32, i32) {
    %c0_i32 = arith.constant 0 : i32
    %c0_i32_0 = arith.constant 0 : i32
    %c0_i32_1 = arith.constant 0 : i32
    return %c0_i32, %c0_i32_0 : i32, i32
  }
  func.func @transform_2(%arg0: i32) -> (i32, i32) {
    %c0_i32 = arith.constant 0 : i32
    %c0_i32_0 = arith.constant 0 : i32
    %c0_i32_1 = arith.constant 0 : i32
    return %c0_i32, %c0_i32_0 : i32, i32
  }
  func.func @transform_3(%arg0: i32) -> (i32, i32, i32) {
    %c0_i32 = arith.constant 0 : i32
    %c0_i32_0 = arith.constant 0 : i32
    %c0_i32_1 = arith.constant 0 : i32
    %c0_i32_2 = arith.constant 0 : i32
    return %c0_i32, %c0_i32_0, %c0_i32_1 : i32, i32, i32
  }
  func.func @transform_4(%arg0: i32) -> (i32, i32, i32) {
    %c0_i32 = arith.constant 0 : i32
    %c0_i32_0 = arith.constant 0 : i32
    %c0_i32_1 = arith.constant 0 : i32
    return %arg0, %c0_i32, %c0_i32_0 : i32, i32, i32
  }
  func.func @transform_5(%arg0: i32) -> (i32, i32, i32) {
    %c0_i32 = arith.constant 0 : i32
    %c0_i32_0 = arith.constant 0 : i32
    %c0_i32_1 = arith.constant 0 : i32
    return %arg0, %c0_i32, %c0_i32_0 : i32, i32, i32
  }
}

</mosaic_0001>

<llo_original>
// kernel: double_conv.5
$region0: #{double_conv.5}
  #allocation0 [shape = 'u32[]', space=smem, size = 0x4, offset = 0x4, fixed_abs, tag = 'smem constant byte address 0x4 - core index']
  #allocation1 [shape = 'u32[144,128]{1,0:T(1,128)}', space=vmem, size = 0x12000, scoped, tag = 'internal scratch']
  %s0 = inlined_call_operand.vmem [shape: bf16[2,256,8], index: 0, kind: input, shape index: {}]
  %s1 = inlined_call_operand.vmem [shape: f32[1,8], index: 1, kind: input, shape index: {}]
  %s2 = inlined_call_operand.vmem [shape: f32[1,8], index: 2, kind: input, shape index: {}]
  %s3 = inlined_call_operand.vmem [shape: f32[2,256,8], index: 3, kind: output, shape index: {}]
  %s4 = sld [smem:[#allocation0]]
  $region45: #{double_conv.5} parent=0
    _
  %s6 = ssub.s32 1, %s4
  %s7 = scalar_select 0, %s6, %s4
  loop: start=0, step=1, limit=4
  $region2: #{double_conv.5} parent=0 // loop_pre_header
    _
  $region3: #{double_conv.5} parent=0 // loop_header
    %s9 = sphi 0, %s13
    %p10 = scmp.ge.s32.totalorder %s9, 4
    %s19 = sphi 0, %s21
    %s22 = sphi 0, %s19
    %s23 = sphi 0, %s22
    %s39 = sphi 0, %s23
    %s43 = sphi 0, %s43
    %s45 = sphi 0, %s43
    %s46 = sphi 0, %s45
    %s60 = sphi 0, %s46
    %s64 = sphi 0, %s64
    %s66 = sphi 0, %s64
    %s67 = sphi 0, %s66
    %s81 = sphi 0, %s67
    %s87 = sphi 0, %s89
    %s90 = sphi 0, %s87
    %s91 = sphi 0, %s90
    %s107 = sphi 0, %s91
  $region4: #{double_conv.5} parent=0 // loop_header_branch
    %12 = sbr.rel (%p10) target = $region8
  $region5: #{double_conv.5} parent=0 // loop_body
    %s14 = ssub.s32 %s9, 1
    %s15 = ssub.s32 %s9, 2
    %s16 = sadd.s32 %s9, 1
    %s17 = ssub.s32 %s9, %s16
    %p18 = scmp.eq.s32.totalorder %s17, 0
    %s20 = sadd.s32 %s19, 1
    %s21 = scalar_select %p18, %s19, %s20
    %p24 = pneg %p18
    %p25 = scmp.eq.s32.totalorder %s9, 1
    %p26 = por %p24, %p25
    %p27 = scmp.ne.s32.totalorder %s19, %s22
    %p28 = scmp.eq.s32.totalorder %s9, 0
    %p29 = por %p27, %p28
    %p30 = scmp.ne.s32.totalorder %s19, %s22
    %p31 = scmp.eq.s32.totalorder %s14, 1
    %p32 = por %p30, %p31
    %p33 = scmp.ne.s32.totalorder %s22, %s23
    %p34 = scmp.eq.s32.totalorder %s14, 0
    %p35 = por %p33, %p34
    %p36 = scmp.ne.s32.totalorder %s22, %s23
    %p37 = scmp.eq.s32.totalorder %s15, 1
    %p38 = por %p36, %p37
    %p40 = scmp.ne.s32.totalorder %s23, %s39
    %p41 = scmp.eq.s32.totalorder %s15, 0
    %p42 = por %p40, %p41
    %s44 = sadd.s32 %s43, 1
    %p47 = scmp.eq.s32.totalorder %s9, 1
    %p48 = scmp.ne.s32.totalorder %s43, %s45
    %p49 = scmp.eq.s32.totalorder %s9, 0
    %p50 = por %p48, %p49
    %p51 = scmp.ne.s32.totalorder %s43, %s45
    %p52 = scmp.eq.s32.totalorder %s14, 1
    %p53 = por %p51, %p52
    %p54 = scmp.ne.s32.totalorder %s45, %s46
    %p55 = scmp.eq.s32.totalorder %s14, 0
    %p56 = por %p54, %p55
    %p57 = scmp.ne.s32.totalorder %s45, %s46
    %p58 = scmp.eq.s32.totalorder %s15, 1
    %p59 = por %p57, %p58
    %p61 = scmp.ne.s32.totalorder %s46, %s60
    %p62 = scmp.eq.s32.totalorder %s15, 0
    %p63 = por %p61, %p62
    %s65 = sadd.s32 %s64, 1
    %p68 = scmp.eq.s32.totalorder %s9, 1
    %p69 = scmp.ne.s32.totalorder %s64, %s66
    %p70 = scmp.eq.s32.totalorder %s9, 0
    %p71 = por %p69, %p70
    %p72 = scmp.ne.s32.totalorder %s64, %s66
    %p73 = scmp.eq.s32.totalorder %s14, 1
    %p74 = por %p72, %p73
    %p75 = scmp.ne.s32.totalorder %s66, %s67
    %p76 = scmp.eq.s32.totalorder %s14, 0
    %p77 = por %p75, %p76
    %p78 = scmp.ne.s32.totalorder %s66, %s67
    %p79 = scmp.eq.s32.totalorder %s15, 1
    %p80 = por %p78, %p79
    %p82 = scmp.ne.s32.totalorder %s67, %s81
    %p83 = scmp.eq.s32.totalorder %s15, 0
    %p84 = por %p82, %p83
    %s85 = ssub.s32 %s9, %s16
    %p86 = scmp.eq.s32.totalorder %s85, 0
    %s88 = sadd.s32 %s87, 1
    %s89 = scalar_select %p86, %s87, %s88
    %p92 = pneg %p86
    %p93 = scmp.eq.s32.totalorder %s9, 1
    %p94 = por %p92, %p93
    %p95 = scmp.ne.s32.totalorder %s87, %s90
    %p96 = scmp.eq.s32.totalorder %s9, 0
    %p97 = por %p95, %p96
    %p98 = scmp.ne.s32.totalorder %s87, %s90
    %p99 = scmp.eq.s32.totalorder %s14, 1
    %p100 = por %p98, %p99
    %p101 = scmp.ne.s32.totalorder %s90, %s91
    %p102 = scmp.eq.s32.totalorder %s14, 0
    %p103 = por %p101, %p102
    %p104 = scmp.ne.s32.totalorder %s90, %s91
    %p105 = scmp.eq.s32.totalorder %s15, 1
    %p106 = por %p104, %p105
    %p108 = scmp.ne.s32.totalorder %s91, %s107
    %p109 = scmp.eq.s32.totalorder %s15, 0
    %p110 = por %p108, %p109
    %p111 = scmp.le.s32.totalorder 1, %s9
    %p112 = scmp.lt.s32.totalorder %s9, 3
    %p113 = pnand %p111, %p112
    %p114 = pneg %p113
    // Predicated region
    $region9: #{double_conv.5} parent=5 // pred_check
      _
    $region10: #{double_conv.5} parent=5 // pred_check_branch
      %116 = sbr.rel (%p113) target = $region12
    $region11: #{double_conv.5} parent=5 // pred_region
      %s117 = ssub.s32 %s9, 1
      // Predicated region
      $region13: #{double_conv.5} parent=11 // pred_check
        %p118 = pneg %p56
      $region14: #{double_conv.5} parent=11 // pred_check_branch
        %120 = sbr.rel (%p118) target = $region16
      $region15: #{double_conv.5} parent=11 // pred_region
        _
      $region16: #{double_conv.5} parent=11 // pred_fallthru
        _
      // Predicated region
      $region17: #{double_conv.5} parent=11 // pred_check
        %p121 = pneg %p77
      $region18: #{double_conv.5} parent=11 // pred_check_branch
        %123 = sbr.rel (%p121) target = $region20
      $region19: #{double_conv.5} parent=11 // pred_region
        _
      $region20: #{double_conv.5} parent=11 // pred_fallthru
        _
    $region12: #{double_conv.5} parent=5 // pred_fallthru
      _
    %p124 = scmp.lt.s32.totalorder %s9, 2
    // Predicated region
    $region21: #{double_conv.5} parent=5 // pred_check
      %p125 = pneg %p124
    $region22: #{double_conv.5} parent=5 // pred_check_branch
      %127 = sbr.rel (%p125) target = $region24
    $region23: #{double_conv.5} parent=5 // pred_region
      // Predicated region
      $region25: #{double_conv.5} parent=23 // pred_check
        %p128 = pneg %p29
      $region26: #{double_conv.5} parent=23 // pred_check_branch
        %130 = sbr.rel (%p128) target = $region28
      $region27: #{double_conv.5} parent=23 // pred_region
        %p131 = scmp.lt.s32.totalorder %s9, 1
        %s132 = scalar_select %p131, %s9, 1
        %s133 = smul.addr %s132, 32
        %s134 = smul.addr %s133, 4
        %s135 = scalar_lea.vmem %s0, %s134
      $region28: #{double_conv.5} parent=23 // pred_fallthru
        _
    $region24: #{double_conv.5} parent=5 // pred_fallthru
      _
    %p136 = scmp.le.s32.totalorder 1, %s9
    %p137 = scmp.lt.s32.totalorder %s9, 3
    %p138 = pnand %p136, %p137
    %p139 = pneg %p138
    // Predicated region
    $region29: #{double_conv.5} parent=5 // pred_check
      _
    $region30: #{double_conv.5} parent=5 // pred_check_branch
      %141 = sbr.rel (%p138) target = $region32
    $region31: #{double_conv.5} parent=5 // pred_region
      %s142 = ssub.s32 %s9, 1
      %p143 = scmp.lt.s32.totalorder %s14, 1
      %s144 = scalar_select %p143, %s14, 1
      %s145 = smul.addr %s144, 32
      %s146 = smul.addr %s145, 4
      %s147 = scalar_lea.vmem %s0, %s146
      %p148 = pneg %p35
      %p149 = pneg %p32
      %p150 = pneg %p56
      %p151 = pneg %p53
      %p152 = pneg %p77
      %p153 = pneg %p74
      %p154 = pneg %p103
      %p155 = pneg %p100
      %p156 = scmp.lt.s32.totalorder %s14, 1
      %s157 = scalar_select %p156, %s14, 1
      %s158 = smul.addr %s157, 32
      %s159 = smul.addr %s158, 8
      %s160 = scalar_lea.vmem %s3, %s159
      %p161 = scmp.lt.s32.totalorder %s14, 1
      %s162 = scalar_select %p161, %s14, 1
      %s163 = smul.addr %s162, 32
      %s164 = smul.addr %s163, 4
      %s165 = scalar_lea.vmem %s0, %s164
      %p166 = scmp.lt.s32.totalorder %s14, 1
      %s167 = scalar_select %p166, %s14, 1
      %s168 = smul.addr %s167, 32
      %s169 = smul.addr %s168, 8
      %s170 = scalar_lea.vmem %s3, %s169
      %v171 = vld [vmem:[%s165] sm:$0xf]
      %v172 = vld [vmem:[%s165 + $0x4] sm:$0xf]
      %v173 = vld [vmem:[%s165 + $0x8] sm:$0xf]
      %v174 = vld [vmem:[%s165 + $0xc] sm:$0xf]
      %v175 = vld [vmem:[%s165 + $0x10] sm:$0xf]
      %v176 = vld [vmem:[%s165 + $0x14] sm:$0xf]
      %v177 = vld [vmem:[%s165 + $0x18] sm:$0xf]
      %v178 = vld [vmem:[%s165 + $0x1c] sm:$0xf]
      %v179 = vld [vmem:[%s165 + $0x20] sm:$0xf]
      %v180 = vld [vmem:[%s165 + $0x24] sm:$0xf]
      %v181 = vld [vmem:[%s165 + $0x28] sm:$0xf]
      %v182 = vld [vmem:[%s165 + $0x2c] sm:$0xf]
      %v183 = vld [vmem:[%s165 + $0x30] sm:$0xf]
      %v184 = vld [vmem:[%s165 + $0x34] sm:$0xf]
      %v185 = vld [vmem:[%s165 + $0x38] sm:$0xf]
      %v186 = vld [vmem:[%s165 + $0x3c] sm:$0xf]
      %v187 = vld [vmem:[%s165 + $0x40] sm:$0xf]
      %v188 = vld [vmem:[%s165 + $0x44] sm:$0xf]
      %v189 = vld [vmem:[%s165 + $0x48] sm:$0xf]
      %v190 = vld [vmem:[%s165 + $0x4c] sm:$0xf]
      %v191 = vld [vmem:[%s165 + $0x50] sm:$0xf]
      %v192 = vld [vmem:[%s165 + $0x54] sm:$0xf]
      %v193 = vld [vmem:[%s165 + $0x58] sm:$0xf]
      %v194 = vld [vmem:[%s165 + $0x5c] sm:$0xf]
      %v195 = vld [vmem:[%s165 + $0x60] sm:$0xf]
      %v196 = vld [vmem:[%s165 + $0x64] sm:$0xf]
      %v197 = vld [vmem:[%s165 + $0x68] sm:$0xf]
      %v198 = vld [vmem:[%s165 + $0x6c] sm:$0xf]
      %v199 = vld [vmem:[%s165 + $0x70] sm:$0xf]
      %v200 = vld [vmem:[%s165 + $0x74] sm:$0xf]
      %v201 = vld [vmem:[%s165 + $0x78] sm:$0xf]
      %v202 = vld [vmem:[%s165 + $0x7c] sm:$0xf]
      %v203 = vunpack.c.l.bf16 %v171
      %v204 = vunpack.c.l.bf16 %v172
      %v205 = vunpack.c.l.bf16 %v173
      %v206 = vunpack.c.l.bf16 %v174
      %v207 = vunpack.c.l.bf16 %v175
      %v208 = vunpack.c.l.bf16 %v176
      %v209 = vunpack.c.l.bf16 %v177
      %v210 = vunpack.c.l.bf16 %v178
      %v211 = vunpack.c.l.bf16 %v179
      %v212 = vunpack.c.l.bf16 %v180
      %v213 = vunpack.c.l.bf16 %v181
      %v214 = vunpack.c.l.bf16 %v182
      %v215 = vunpack.c.l.bf16 %v183
      %v216 = vunpack.c.l.bf16 %v184
      %v217 = vunpack.c.l.bf16 %v185
      %v218 = vunpack.c.l.bf16 %v186
      %v219 = vunpack.c.l.bf16 %v187
      %v220 = vunpack.c.l.bf16 %v188
      %v221 = vunpack.c.l.bf16 %v189
      %v222 = vunpack.c.l.bf16 %v190
      %v223 = vunpack.c.l.bf16 %v191
      %v224 = vunpack.c.l.bf16 %v192
      %v225 = vunpack.c.l.bf16 %v193
      %v226 = vunpack.c.l.bf16 %v194
      %v227 = vunpack.c.l.bf16 %v195
      %v228 = vunpack.c.l.bf16 %v196
      %v229 = vunpack.c.l.bf16 %v197
      %v230 = vunpack.c.l.bf16 %v198
      %v231 = vunpack.c.l.bf16 %v199
      %v232 = vunpack.c.l.bf16 %v200
      %v233 = vunpack.c.l.bf16 %v201
      %v234 = vunpack.c.l.bf16 %v202
      %v235 = vld [vmem:[%s1] sm:$0x1]
      %v237 = vlaneseq
      %v238 = vshrl.u32 %v237, 7
      %v239 = vsub.s32 0, %v238
      %v240 = vrot.slane %v235, %v239
      %v242 = vmul.f32 %v203, %v240
      %v243 = vmul.f32 %v204, %v240
      %v244 = vmul.f32 %v205, %v240
      %v245 = vmul.f32 %v206, %v240
      %v246 = vmul.f32 %v207, %v240
      %v247 = vmul.f32 %v208, %v240
      %v248 = vmul.f32 %v209, %v240
      %v249 = vmul.f32 %v210, %v240
      %v250 = vmul.f32 %v211, %v240
      %v251 = vmul.f32 %v212, %v240
      %v252 = vmul.f32 %v213, %v240
      %v253 = vmul.f32 %v214, %v240
      %v254 = vmul.f32 %v215, %v240
      %v255 = vmul.f32 %v216, %v240
      %v256 = vmul.f32 %v217, %v240
      %v257 = vmul.f32 %v218, %v240
      %v258 = vmul.f32 %v219, %v240
      %v259 = vmul.f32 %v220, %v240
      %v260 = vmul.f32 %v221, %v240
      %v261 = vmul.f32 %v222, %v240
      %v262 = vmul.f32 %v223, %v240
      %v263 = vmul.f32 %v224, %v240
      %v264 = vmul.f32 %v225, %v240
      %v265 = vmul.f32 %v226, %v240
      %v266 = vmul.f32 %v227, %v240
      %v267 = vmul.f32 %v228, %v240
      %v268 = vmul.f32 %v229, %v240
      %v269 = vmul.f32 %v230, %v240
      %v270 = vmul.f32 %v231, %v240
      %v271 = vmul.f32 %v232, %v240
      %v272 = vmul.f32 %v233, %v240
      %v273 = vmul.f32 %v234, %v240
      %v274 = vld [vmem:[%s2] sm:$0x1]
      %v276 = vlaneseq
      %v277 = vshrl.u32 %v276, 7
      %v278 = vsub.s32 0, %v277
      %v279 = vrot.slane %v274, %v278
      %v281 = vadd.f32 %v242, %v279
      %v282 = vadd.f32 %v243, %v279
      %v283 = vadd.f32 %v244, %v279
      %v284 = vadd.f32 %v245, %v279
      %v285 = vadd.f32 %v246, %v279
      %v286 = vadd.f32 %v247, %v279
      %v287 = vadd.f32 %v248, %v279
      %v288 = vadd.f32 %v249, %v279
      %v289 = vadd.f32 %v250, %v279
      %v290 = vadd.f32 %v251, %v279
      %v291 = vadd.f32 %v252, %v279
      %v292 = vadd.f32 %v253, %v279
      %v293 = vadd.f32 %v254, %v279
      %v294 = vadd.f32 %v255, %v279
      %v295 = vadd.f32 %v256, %v279
      %v296 = vadd.f32 %v257, %v279
      %v297 = vadd.f32 %v258, %v279
      %v298 = vadd.f32 %v259, %v279
      %v299 = vadd.f32 %v260, %v279
      %v300 = vadd.f32 %v261, %v279
      %v301 = vadd.f32 %v262, %v279
      %v302 = vadd.f32 %v263, %v279
      %v303 = vadd.f32 %v264, %v279
      %v304 = vadd.f32 %v265, %v279
      %v305 = vadd.f32 %v266, %v279
      %v306 = vadd.f32 %v267, %v279
      %v307 = vadd.f32 %v268, %v279
      %v308 = vadd.f32 %v269, %v279
      %v309 = vadd.f32 %v270, %v279
      %v310 = vadd.f32 %v271, %v279
      %v311 = vadd.f32 %v272, %v279
      %v312 = vadd.f32 %v273, %v279
      %v313 = vmax.f32 %v281, 0.0
      %v314 = vmax.f32 %v282, 0.0
      %v315 = vmax.f32 %v283, 0.0
      %v316 = vmax.f32 %v284, 0.0
      %v317 = vmax.f32 %v285, 0.0
      %v318 = vmax.f32 %v286, 0.0
      %v319 = vmax.f32 %v287, 0.0
      %v320 = vmax.f32 %v288, 0.0
      %v321 = vmax.f32 %v289, 0.0
      %v322 = vmax.f32 %v290, 0.0
      %v323 = vmax.f32 %v291, 0.0
      %v324 = vmax.f32 %v292, 0.0
      %v325 = vmax.f32 %v293, 0.0
      %v326 = vmax.f32 %v294, 0.0
      %v327 = vmax.f32 %v295, 0.0
      %v328 = vmax.f32 %v296, 0.0
      %v329 = vmax.f32 %v297, 0.0
      %v330 = vmax.f32 %v298, 0.0
      %v331 = vmax.f32 %v299, 0.0
      %v332 = vmax.f32 %v300, 0.0
      %v333 = vmax.f32 %v301, 0.0
      %v334 = vmax.f32 %v302, 0.0
      %v335 = vmax.f32 %v303, 0.0
      %v336 = vmax.f32 %v304, 0.0
      %v337 = vmax.f32 %v305, 0.0
      %v338 = vmax.f32 %v306, 0.0
      %v339 = vmax.f32 %v307, 0.0
      %v340 = vmax.f32 %v308, 0.0
      %v341 = vmax.f32 %v309, 0.0
      %v342 = vmax.f32 %v310, 0.0
      %v343 = vmax.f32 %v311, 0.0
      %v344 = vmax.f32 %v312, 0.0
      %vm345 = vcmask 64512
      %346 = vst.msk [vmem:[%s170] sm:$0xff] %vm345, %v313
      %347 = vst.msk [vmem:[%s170 + $0x8] sm:$0xff] %vm345, %v314
      %348 = vst.msk [vmem:[%s170 + $0x10] sm:$0xff] %vm345, %v315
      %349 = vst.msk [vmem:[%s170 + $0x18] sm:$0xff] %vm345, %v316
      %350 = vst.msk [vmem:[%s170 + $0x20] sm:$0xff] %vm345, %v317
      %351 = vst.msk [vmem:[%s170 + $0x28] sm:$0xff] %vm345, %v318
      %352 = vst.msk [vmem:[%s170 + $0x30] sm:$0xff] %vm345, %v319
      %353 = vst.msk [vmem:[%s170 + $0x38] sm:$0xff] %vm345, %v320
      %354 = vst.msk [vmem:[%s170 + $0x40] sm:$0xff] %vm345, %v321
      %355 = vst.msk [vmem:[%s170 + $0x48] sm:$0xff] %vm345, %v322
      %356 = vst.msk [vmem:[%s170 + $0x50] sm:$0xff] %vm345, %v323
      %357 = vst.msk [vmem:[%s170 + $0x58] sm:$0xff] %vm345, %v324
      %358 = vst.msk [vmem:[%s170 + $0x60] sm:$0xff] %vm345, %v325
      %359 = vst.msk [vmem:[%s170 + $0x68] sm:$0xff] %vm345, %v326
      %360 = vst.msk [vmem:[%s170 + $0x70] sm:$0xff] %vm345, %v327
      %361 = vst.msk [vmem:[%s170 + $0x78] sm:$0xff] %vm345, %v328
      %362 = vst.msk [vmem:[%s170 + $0x80] sm:$0xff] %vm345, %v329
      %363 = vst.msk [vmem:[%s170 + $0x88] sm:$0xff] %vm345, %v330
      %364 = vst.msk [vmem:[%s170 + $0x90] sm:$0xff] %vm345, %v331
      %365 = vst.msk [vmem:[%s170 + $0x98] sm:$0xff] %vm345, %v332
      %366 = vst.msk [vmem:[%s170 + $0xa0] sm:$0xff] %vm345, %v333
      %367 = vst.msk [vmem:[%s170 + $0xa8] sm:$0xff] %vm345, %v334
      %368 = vst.msk [vmem:[%s170 + $0xb0] sm:$0xff] %vm345, %v335
      %369 = vst.msk [vmem:[%s170 + $0xb8] sm:$0xff] %vm345, %v336
      %370 = vst.msk [vmem:[%s170 + $0xc0] sm:$0xff] %vm345, %v337
      %371 = vst.msk [vmem:[%s170 + $0xc8] sm:$0xff] %vm345, %v338
      %372 = vst.msk [vmem:[%s170 + $0xd0] sm:$0xff] %vm345, %v339
      %373 = vst.msk [vmem:[%s170 + $0xd8] sm:$0xff] %vm345, %v340
      %374 = vst.msk [vmem:[%s170 + $0xe0] sm:$0xff] %vm345, %v341
      %375 = vst.msk [vmem:[%s170 + $0xe8] sm:$0xff] %vm345, %v342
      %376 = vst.msk [vmem:[%s170 + $0xf0] sm:$0xff] %vm345, %v343
      %377 = vst.msk [vmem:[%s170 + $0xf8] sm:$0xff] %vm345, %v344
      %p378 = scmp.lt.s32.totalorder %s14, 1
      %s379 = scalar_select %p378, %s14, 1
      %s380 = smul.addr %s379, 32
      %s381 = smul.addr %s380, 8
      %s382 = scalar_lea.vmem %s3, %s381
      // Predicated region
      $region33: #{double_conv.5} parent=31 // pred_check
        %p383 = pneg %p100
      $region34: #{double_conv.5} parent=31 // pred_check_branch
        %385 = sbr.rel (%p383) target = $region36
      $region35: #{double_conv.5} parent=31 // pred_region
        _
      $region36: #{double_conv.5} parent=31 // pred_fallthru
        _
    $region32: #{double_conv.5} parent=5 // pred_fallthru
      _
    %p386 = scmp.le.s32.totalorder 2, %s9
    // Predicated region
    $region37: #{double_conv.5} parent=5 // pred_check
      %p387 = pneg %p386
    $region38: #{double_conv.5} parent=5 // pred_check_branch
      %389 = sbr.rel (%p387) target = $region40
    $region39: #{double_conv.5} parent=5 // pred_region
      %s390 = ssub.s32 %s9, 2
      // Predicated region
      $region41: #{double_conv.5} parent=39 // pred_check
        %p391 = pneg %p106
      $region42: #{double_conv.5} parent=39 // pred_check_branch
        %393 = sbr.rel (%p391) target = $region44
      $region43: #{double_conv.5} parent=39 // pred_region
        %p394 = scmp.lt.s32.totalorder %s15, 1
        %s395 = scalar_select %p394, %s15, 1
        %s396 = smul.addr %s395, 32
        %s397 = smul.addr %s396, 8
        %s398 = scalar_lea.vmem %s3, %s397
      $region44: #{double_conv.5} parent=39 // pred_fallthru
        _
    $region40: #{double_conv.5} parent=5 // pred_fallthru
      _
  $region6: #{double_conv.5} parent=0 // loop_footer
    %s13 = sadd.s32 1, %s9
  $region7: #{double_conv.5} parent=0 // loop_footer_branch
    %8 = sbr.rel target = $region3
  $region8: #{double_conv.5} parent=0 // loop_exit
    _

// kernel: double_conv.3
$region0: #{double_conv.3}
  #allocation0 [shape = 'u32[]', space=smem, size = 0x4, offset = 0x4, fixed_abs, tag = 'smem constant byte address 0x4 - core index']
  #allocation1 [shape = 'u32[144,128]{1,0:T(1,128)}', space=vmem, size = 0x12000, scoped, tag = 'internal scratch']
  #allocation2 [shape = 'bf16[312,4]{1,0:T(8,128)(2,1)}', space=vmem, size = 0x13800, scoped, tag = 'scratch operand']
  %s0 = inlined_call_operand.vmem [shape: bf16[2,256,4], index: 0, kind: input, shape index: {}]
  %s1 = inlined_call_operand.vmem [shape: bf16[9,4,8], index: 1, kind: input, shape index: {}]
  %s2 = inlined_call_operand.vmem [shape: bf16[2,256,8], index: 2, kind: output, shape index: {0}]
  %s3 = inlined_call_operand.vmem [shape: f32[2,2,8], index: 3, kind: output, shape index: {1}]
  %4 = xla_tuple %s2, %s3
  %s5 = sld [smem:[#allocation0]]
  $region49: #{double_conv.3} parent=0
    _
  %s7 = ssub.s32 1, %s5
  %s8 = scalar_select 0, %s7, %s5
  loop: start=0, step=1, limit=4
  $region2: #{double_conv.3} parent=0 // loop_pre_header
    _
  $region3: #{double_conv.3} parent=0 // loop_header
    %s10 = sphi 0, %s14
    %p11 = scmp.ge.s32.totalorder %s10, 4
    %s20 = sphi 0, %s22
    %s23 = sphi 0, %s20
    %s24 = sphi 0, %s23
    %s40 = sphi 0, %s24
    %s44 = sphi 0, %s44
    %s46 = sphi 0, %s44
    %s47 = sphi 0, %s46
    %s61 = sphi 0, %s47
    %s67 = sphi 0, %s69
    %s70 = sphi 0, %s67
    %s71 = sphi 0, %s70
    %s87 = sphi 0, %s71
    %s93 = sphi 0, %s95
    %s96 = sphi 0, %s93
    %s97 = sphi 0, %s96
    %s113 = sphi 0, %s97
  $region4: #{double_conv.3} parent=0 // loop_header_branch
    %13 = sbr.rel (%p11) target = $region8
  $region5: #{double_conv.3} parent=0 // loop_body
    %s15 = ssub.s32 %s10, 1
    %s16 = ssub.s32 %s10, 2
    %s17 = sadd.s32 %s10, 1
    %s18 = ssub.s32 %s10, %s17
    %p19 = scmp.eq.s32.totalorder %s18, 0
    %s21 = sadd.s32 %s20, 1
    %s22 = scalar_select %p19, %s20, %s21
    %p25 = pneg %p19
    %p26 = scmp.eq.s32.totalorder %s10, 1
    %p27 = por %p25, %p26
    %p28 = scmp.ne.s32.totalorder %s20, %s23
    %p29 = scmp.eq.s32.totalorder %s10, 0
    %p30 = por %p28, %p29
    %p31 = scmp.ne.s32.totalorder %s20, %s23
    %p32 = scmp.eq.s32.totalorder %s15, 1
    %p33 = por %p31, %p32
    %p34 = scmp.ne.s32.totalorder %s23, %s24
    %p35 = scmp.eq.s32.totalorder %s15, 0
    %p36 = por %p34, %p35
    %p37 = scmp.ne.s32.totalorder %s23, %s24
    %p38 = scmp.eq.s32.totalorder %s16, 1
    %p39 = por %p37, %p38
    %p41 = scmp.ne.s32.totalorder %s24, %s40
    %p42 = scmp.eq.s32.totalorder %s16, 0
    %p43 = por %p41, %p42
    %s45 = sadd.s32 %s44, 1
    %p48 = scmp.eq.s32.totalorder %s10, 1
    %p49 = scmp.ne.s32.totalorder %s44, %s46
    %p50 = scmp.eq.s32.totalorder %s10, 0
    %p51 = por %p49, %p50
    %p52 = scmp.ne.s32.totalorder %s44, %s46
    %p53 = scmp.eq.s32.totalorder %s15, 1
    %p54 = por %p52, %p53
    %p55 = scmp.ne.s32.totalorder %s46, %s47
    %p56 = scmp.eq.s32.totalorder %s15, 0
    %p57 = por %p55, %p56
    %p58 = scmp.ne.s32.totalorder %s46, %s47
    %p59 = scmp.eq.s32.totalorder %s16, 1
    %p60 = por %p58, %p59
    %p62 = scmp.ne.s32.totalorder %s47, %s61
    %p63 = scmp.eq.s32.totalorder %s16, 0
    %p64 = por %p62, %p63
    %s65 = ssub.s32 %s10, %s17
    %p66 = scmp.eq.s32.totalorder %s65, 0
    %s68 = sadd.s32 %s67, 1
    %s69 = scalar_select %p66, %s67, %s68
    %p72 = pneg %p66
    %p73 = scmp.eq.s32.totalorder %s10, 1
    %p74 = por %p72, %p73
    %p75 = scmp.ne.s32.totalorder %s67, %s70
    %p76 = scmp.eq.s32.totalorder %s10, 0
    %p77 = por %p75, %p76
    %p78 = scmp.ne.s32.totalorder %s67, %s70
    %p79 = scmp.eq.s32.totalorder %s15, 1
    %p80 = por %p78, %p79
    %p81 = scmp.ne.s32.totalorder %s70, %s71
    %p82 = scmp.eq.s32.totalorder %s15, 0
    %p83 = por %p81, %p82
    %p84 = scmp.ne.s32.totalorder %s70, %s71
    %p85 = scmp.eq.s32.totalorder %s16, 1
    %p86 = por %p84, %p85
    %p88 = scmp.ne.s32.totalorder %s71, %s87
    %p89 = scmp.eq.s32.totalorder %s16, 0
    %p90 = por %p88, %p89
    %s91 = ssub.s32 %s10, %s17
    %p92 = scmp.eq.s32.totalorder %s91, 0
    %s94 = sadd.s32 %s93, 1
    %s95 = scalar_select %p92, %s93, %s94
    %p98 = pneg %p92
    %p99 = scmp.eq.s32.totalorder %s10, 1
    %p100 = por %p98, %p99
    %p101 = scmp.ne.s32.totalorder %s93, %s96
    %p102 = scmp.eq.s32.totalorder %s10, 0
    %p103 = por %p101, %p102
    %p104 = scmp.ne.s32.totalorder %s93, %s96
    %p105 = scmp.eq.s32.totalorder %s15, 1
    %p106 = por %p104, %p105
    %p107 = scmp.ne.s32.totalorder %s96, %s97
    %p108 = scmp.eq.s32.totalorder %s15, 0
    %p109 = por %p107, %p108
    %p110 = scmp.ne.s32.totalorder %s96, %s97
    %p111 = scmp.eq.s32.totalorder %s16, 1
    %p112 = por %p110, %p111
    %p114 = scmp.ne.s32.totalorder %s97, %s113
    %p115 = scmp.eq.s32.totalorder %s16, 0
    %p116 = por %p114, %p115
    %p117 = scmp.le.s32.totalorder 1, %s10
    %p118 = scmp.lt.s32.totalorder %s10, 3
    %p119 = pnand %p117, %p118
    %p120 = pneg %p119
    // Predicated region
    $region9: #{double_conv.3} parent=5 // pred_check
      _
    $region10: #{double_conv.3} parent=5 // pred_check_branch
      %122 = sbr.rel (%p119) target = $region12
    $region11: #{double_conv.3} parent=5 // pred_region
      %s123 = ssub.s32 %s10, 1
      // Predicated region
      $region13: #{double_conv.3} parent=11 // pred_check
        %p124 = pneg %p57
      $region14: #{double_conv.3} parent=11 // pred_check_branch
        %126 = sbr.rel (%p124) target = $region16
      $region15: #{double_conv.3} parent=11 // pred_region
        _
      $region16: #{double_conv.3} parent=11 // pred_fallthru
        _
    $region12: #{double_conv.3} parent=5 // pred_fallthru
      _
    %p127 = scmp.lt.s32.totalorder %s10, 2
    // Predicated region
    $region17: #{double_conv.3} parent=5 // pred_check
      %p128 = pneg %p127
    $region18: #{double_conv.3} parent=5 // pred_check_branch
      %130 = sbr.rel (%p128) target = $region20
    $region19: #{double_conv.3} parent=5 // pred_region
      // Predicated region
      $region21: #{double_conv.3} parent=19 // pred_check
        %p131 = pneg %p30
      $region22: #{double_conv.3} parent=19 // pred_check_branch
        %133 = sbr.rel (%p131) target = $region24
      $region23: #{double_conv.3} parent=19 // pred_region
        %p134 = scmp.lt.s32.totalorder %s10, 1
        %s135 = scalar_select %p134, %s10, 1
        %s136 = smul.addr %s135, 32
        %s137 = smul.addr %s136, 4
        %s138 = scalar_lea.vmem %s0, %s137
      $region24: #{double_conv.3} parent=19 // pred_fallthru
        _
    $region20: #{double_conv.3} parent=5 // pred_fallthru
      _
    %p139 = scmp.le.s32.totalorder 1, %s10
    %p140 = scmp.lt.s32.totalorder %s10, 3
    %p141 = pnand %p139, %p140
    %p142 = pneg %p141
    // Predicated region
    $region25: #{double_conv.3} parent=5 // pred_check
      _
    $region26: #{double_conv.3} parent=5 // pred_check_branch
      %144 = sbr.rel (%p141) target = $region28
    $region27: #{double_conv.3} parent=5 // pred_region
      %s145 = ssub.s32 %s10, 1
      %p146 = scmp.lt.s32.totalorder %s15, 1
      %s147 = scalar_select %p146, %s15, 1
      %s148 = smul.addr %s147, 32
      %s149 = smul.addr %s148, 4
      %s150 = scalar_lea.vmem %s0, %s149
      %p151 = pneg %p36
      %p152 = pneg %p33
      %p153 = pneg %p57
      %p154 = pneg %p54
      %p155 = pneg %p83
      %p156 = pneg %p80
      %p157 = scmp.lt.s32.totalorder %s15, 1
      %s158 = scalar_select %p157, %s15, 1
      %s159 = smul.addr %s158, 32
      %s160 = smul.addr %s159, 4
      %s161 = scalar_lea.vmem %s2, %s160
      %p162 = pneg %p109
      %p163 = pneg %p106
      %p164 = scmp.lt.s32.totalorder %s15, 1
      %s165 = scalar_select %p164, %s15, 1
      %s166 = smul.addr %s165, 2
      %s167 = scalar_lea.vmem %s3, %s166
      %p168 = scmp.lt.s32.totalorder %s15, 1
      %s169 = scalar_select %p168, %s15, 1
      %s170 = smul.addr %s169, 32
      %s171 = smul.addr %s170, 4
      %s172 = scalar_lea.vmem %s0, %s171
      %p173 = scmp.lt.s32.totalorder %s15, 1
      %s174 = scalar_select %p173, %s15, 1
      %s175 = smul.addr %s174, 32
      %s176 = smul.addr %s175, 4
      %s177 = scalar_lea.vmem %s2, %s176
      %p178 = scmp.lt.s32.totalorder %s15, 1
      %s179 = scalar_select %p178, %s15, 1
      %s180 = smul.addr %s179, 2
      %s181 = scalar_lea.vmem %s3, %s180
      %v185 = vld [vmem:[%s172] sm:$0xf]
      %v186 = vld [vmem:[%s172 + $0x4] sm:$0xf]
      %v187 = vld [vmem:[%s172 + $0x8] sm:$0xf]
      %v188 = vld [vmem:[%s172 + $0xc] sm:$0xf]
      %v189 = vld [vmem:[%s172 + $0x10] sm:$0xf]
      %v190 = vld [vmem:[%s172 + $0x14] sm:$0xf]
      %v191 = vld [vmem:[%s172 + $0x18] sm:$0xf]
      %v192 = vld [vmem:[%s172 + $0x1c] sm:$0xf]
      %v193 = vld [vmem:[%s172 + $0x20] sm:$0xf]
      %v194 = vld [vmem:[%s172 + $0x24] sm:$0xf]
      %v195 = vld [vmem:[%s172 + $0x28] sm:$0xf]
      %v196 = vld [vmem:[%s172 + $0x2c] sm:$0xf]
      %v197 = vld [vmem:[%s172 + $0x30] sm:$0xf]
      %v198 = vld [vmem:[%s172 + $0x34] sm:$0xf]
      %v199 = vld [vmem:[%s172 + $0x38] sm:$0xf]
      %v200 = vld [vmem:[%s172 + $0x3c] sm:$0xf]
      %v201 = vld [vmem:[%s172 + $0x40] sm:$0xf]
      %v202 = vld [vmem:[%s172 + $0x44] sm:$0xf]
      %v203 = vld [vmem:[%s172 + $0x48] sm:$0xf]
      %v204 = vld [vmem:[%s172 + $0x4c] sm:$0xf]
      %v205 = vld [vmem:[%s172 + $0x50] sm:$0xf]
      %v206 = vld [vmem:[%s172 + $0x54] sm:$0xf]
      %v207 = vld [vmem:[%s172 + $0x58] sm:$0xf]
      %v208 = vld [vmem:[%s172 + $0x5c] sm:$0xf]
      %v209 = vld [vmem:[%s172 + $0x60] sm:$0xf]
      %v210 = vld [vmem:[%s172 + $0x64] sm:$0xf]
      %v211 = vld [vmem:[%s172 + $0x68] sm:$0xf]
      %v212 = vld [vmem:[%s172 + $0x6c] sm:$0xf]
      %v213 = vld [vmem:[%s172 + $0x70] sm:$0xf]
      %v214 = vld [vmem:[%s172 + $0x74] sm:$0xf]
      %v215 = vld [vmem:[%s172 + $0x78] sm:$0xf]
      %v216 = vld [vmem:[%s172 + $0x7c] sm:$0xf]
      %vm217 = vcmask 27651
      %vm218 = vsmask.f32 7950
      %vm219 = vmand %vm217, %vm218
      %v220 = vld [vmem:[#allocation2 + $0x4] sm:$0x8]
      %v221 = vsel %vm219, 0, %v220
      %222 = vst [vmem:[#allocation2 + $0x4] sm:$0x8] %v221
      %vm223 = vcmask 27648
      %224 = vst.msk [vmem:[#allocation2 + $0x8] sm:$0xf] %vm223, 0
      %225 = vst.msk [vmem:[#allocation2 + $0xc] sm:$0xf] %vm223, 0
      %226 = vst.msk [vmem:[#allocation2 + $0x90] sm:$0xf] %vm223, 0
      %227 = vst.msk [vmem:[#allocation2 + $0x94] sm:$0xf] %vm223, 0
      %vm228 = vcmask 24576
      %vm229 = vsmask.f32 256
      %vm230 = vmand %vm228, %vm229
      %v231 = vld [vmem:[#allocation2 + $0x98] sm:$0x1]
      %v232 = vsel %vm230, 0, %v231
      %233 = vst [vmem:[#allocation2 + $0x98] sm:$0x1] %v232
      %234 = vst.msk [vmem:[#allocation2 + $0x10] sm:$0xf] %vm223, %v185
      %235 = vst.msk [vmem:[#allocation2 + $0x14] sm:$0xf] %vm223, %v186
      %236 = vst.msk [vmem:[#allocation2 + $0x18] sm:$0xf] %vm223, %v187
      %237 = vst.msk [vmem:[#allocation2 + $0x1c] sm:$0xf] %vm223, %v188
      %238 = vst.msk [vmem:[#allocation2 + $0x20] sm:$0xf] %vm223, %v189
      %239 = vst.msk [vmem:[#allocation2 + $0x24] sm:$0xf] %vm223, %v190
      %240 = vst.msk [vmem:[#allocation2 + $0x28] sm:$0xf] %vm223, %v191
      %241 = vst.msk [vmem:[#allocation2 + $0x2c] sm:$0xf] %vm223, %v192
      %242 = vst.msk [vmem:[#allocation2 + $0x30] sm:$0xf] %vm223, %v193
      %243 = vst.msk [vmem:[#allocation2 + $0x34] sm:$0xf] %vm223, %v194
      %244 = vst.msk [vmem:[#allocation2 + $0x38] sm:$0xf] %vm223, %v195
      %245 = vst.msk [vmem:[#allocation2 + $0x3c] sm:$0xf] %vm223, %v196
      %246 = vst.msk [vmem:[#allocation2 + $0x40] sm:$0xf] %vm223, %v197
      %247 = vst.msk [vmem:[#allocation2 + $0x44] sm:$0xf] %vm223, %v198
      %248 = vst.msk [vmem:[#allocation2 + $0x48] sm:$0xf] %vm223, %v199
      %249 = vst.msk [vmem:[#allocation2 + $0x4c] sm:$0xf] %vm223, %v200
      %250 = vst.msk [vmem:[#allocation2 + $0x50] sm:$0xf] %vm223, %v201
      %251 = vst.msk [vmem:[#allocation2 + $0x54] sm:$0xf] %vm223, %v202
      %252 = vst.msk [vmem:[#allocation2 + $0x58] sm:$0xf] %vm223, %v203
      %253 = vst.msk [vmem:[#allocation2 + $0x5c] sm:$0xf] %vm223, %v204
      %254 = vst.msk [vmem:[#allocation2 + $0x60] sm:$0xf] %vm223, %v205
      %255 = vst.msk [vmem:[#allocation2 + $0x64] sm:$0xf] %vm223, %v206
      %256 = vst.msk [vmem:[#allocation2 + $0x68] sm:$0xf] %vm223, %v207
      %257 = vst.msk [vmem:[#allocation2 + $0x6c] sm:$0xf] %vm223, %v208
      %258 = vst.msk [vmem:[#allocation2 + $0x70] sm:$0xf] %vm223, %v209
      %259 = vst.msk [vmem:[#allocation2 + $0x74] sm:$0xf] %vm223, %v210
      %260 = vst.msk [vmem:[#allocation2 + $0x78] sm:$0xf] %vm223, %v211
      %261 = vst.msk [vmem:[#allocation2 + $0x7c] sm:$0xf] %vm223, %v212
      %262 = vst.msk [vmem:[#allocation2 + $0x80] sm:$0xf] %vm223, %v213
      %263 = vst.msk [vmem:[#allocation2 + $0x84] sm:$0xf] %vm223, %v214
      %264 = vst.msk [vmem:[#allocation2 + $0x88] sm:$0xf] %vm223, %v215
      %265 = vst.msk [vmem:[#allocation2 + $0x8c] sm:$0xf] %vm223, %v216
      %v266 = vlaneseq
      %v267 = vshrl.u32 %v266, 7
      %v268 = vadd.s32 %v267, 8
      %v269 = vadd.s32 %v267, 16
      %v270 = vadd.s32 %v267, 24
      %v271 = vadd.s32 %v267, 32
      %v272 = vadd.s32 %v267, 40
      %v273 = vadd.s32 %v267, 48
      %v274 = vadd.s32 %v267, 56
      %v275 = vadd.s32 %v267, 64
      %v276 = vadd.s32 %v267, 72
      %v277 = vadd.s32 %v267, 80
      %v278 = vadd.s32 %v267, 88
      %v279 = vadd.s32 %v267, 96
      %v280 = vadd.s32 %v267, 104
      %v281 = vadd.s32 %v267, 112
      %v282 = vadd.s32 %v267, 120
      %v283 = vadd.s32 %v267, 128
      %v284 = vadd.s32 %v267, 136
      %v285 = vadd.s32 %v267, 144
      %v286 = vadd.s32 %v267, 152
      %v287 = vadd.s32 %v267, 160
      %v288 = vadd.s32 %v267, 168
      %v289 = vadd.s32 %v267, 176
      %v290 = vadd.s32 %v267, 184
      %v291 = vadd.s32 %v267, 192
      %v292 = vadd.s32 %v267, 200
      %v293 = vadd.s32 %v267, 208
      %v294 = vadd.s32 %v267, 216
      %v295 = vadd.s32 %v267, 224
      %v296 = vadd.s32 %v267, 232
      %v297 = vadd.s32 %v267, 240
      %v298 = vadd.s32 %v267, 248
      %vm299 = vcmp.lt.s32.totalorder %v267, 0
      %v300 = vsub.s32 0, %v267
      %v301 = vsel %vm299, %v300, %v267
      %v302 = vshrl.u32 %v301, 4
      %v303 = vand.u32 %v301, 15
      %v304 = vsub.s32 0, %v303
      %v305 = vsel %vm299, %v304, %v303
      %vm306 = vcmp.lt.s32.totalorder %v268, 0
      %v307 = vsub.s32 0, %v268
      %v308 = vsel %vm306, %v307, %v268
      %v309 = vshrl.u32 %v308, 4
      %v310 = vand.u32 %v308, 15
      %v311 = vsub.s32 0, %v310
      %v312 = vsel %vm306, %v311, %v310
      %vm313 = vcmp.lt.s32.totalorder %v269, 0
      %v314 = vsub.s32 0, %v269
      %v315 = vsel %vm313, %v314, %v269
      %v316 = vshrl.u32 %v315, 4
      %v317 = vand.u32 %v315, 15
      %v318 = vsub.s32 0, %v317
      %v319 = vsel %vm313, %v318, %v317
      %vm320 = vcmp.lt.s32.totalorder %v270, 0
      %v321 = vsub.s32 0, %v270
      %v322 = vsel %vm320, %v321, %v270
      %v323 = vshrl.u32 %v322, 4
      %v324 = vand.u32 %v322, 15
      %v325 = vsub.s32 0, %v324
      %v326 = vsel %vm320, %v325, %v324
      %vm327 = vcmp.lt.s32.totalorder %v271, 0
      %v328 = vsub.s32 0, %v271
      %v329 = vsel %vm327, %v328, %v271
      %v330 = vshrl.u32 %v329, 4
      %v331 = vand.u32 %v329, 15
      %v332 = vsub.s32 0, %v331
      %v333 = vsel %vm327, %v332, %v331
      %vm334 = vcmp.lt.s32.totalorder %v272, 0
      %v335 = vsub.s32 0, %v272
      %v336 = vsel %vm334, %v335, %v272
      %v337 = vshrl.u32 %v336, 4
      %v338 = vand.u32 %v336, 15
      %v339 = vsub.s32 0, %v338
      %v340 = vsel %vm334, %v339, %v338
      %vm341 = vcmp.lt.s32.totalorder %v273, 0
      %v342 = vsub.s32 0, %v273
      %v343 = vsel %vm341, %v342, %v273
      %v344 = vshrl.u32 %v343, 4
      %v345 = vand.u32 %v343, 15
      %v346 = vsub.s32 0, %v345
      %v347 = vsel %vm341, %v346, %v345
      %vm348 = vcmp.lt.s32.totalorder %v274, 0
      %v349 = vsub.s32 0, %v274
      %v350 = vsel %vm348, %v349, %v274
      %v351 = vshrl.u32 %v350, 4
      %v352 = vand.u32 %v350, 15
      %v353 = vsub.s32 0, %v352
      %v354 = vsel %vm348, %v353, %v352
      %vm355 = vcmp.lt.s32.totalorder %v275, 0
      %v356 = vsub.s32 0, %v275
      %v357 = vsel %vm355, %v356, %v275
      %v358 = vshrl.u32 %v357, 4
      %v359 = vand.u32 %v357, 15
      %v360 = vsub.s32 0, %v359
      %v361 = vsel %vm355, %v360, %v359
      %vm362 = vcmp.lt.s32.totalorder %v276, 0
      %v363 = vsub.s32 0, %v276
      %v364 = vsel %vm362, %v363, %v276
      %v365 = vshrl.u32 %v364, 4
      %v366 = vand.u32 %v364, 15
      %v367 = vsub.s32 0, %v366
      %v368 = vsel %vm362, %v367, %v366
      %vm369 = vcmp.lt.s32.totalorder %v277, 0
      %v370 = vsub.s32 0, %v277
      %v371 = vsel %vm369, %v370, %v277
      %v372 = vshrl.u32 %v371, 4
      %v373 = vand.u32 %v371, 15
      %v374 = vsub.s32 0, %v373
      %v375 = vsel %vm369, %v374, %v373
      %vm376 = vcmp.lt.s32.totalorder %v278, 0
      %v377 = vsub.s32 0, %v278
      %v378 = vsel %vm376, %v377, %v278
      %v379 = vshrl.u32 %v378, 4
      %v380 = vand.u32 %v378, 15
      %v381 = vsub.s32 0, %v380
      %v382 = vsel %vm376, %v381, %v380
      %vm383 = vcmp.lt.s32.totalorder %v279, 0
      %v384 = vsub.s32 0, %v279
      %v385 = vsel %vm383, %v384, %v279
      %v386 = vshrl.u32 %v385, 4
      %v387 = vand.u32 %v385, 15
      %v388 = vsub.s32 0, %v387
      %v389 = vsel %vm383, %v388, %v387
      %vm390 = vcmp.lt.s32.totalorder %v280, 0
      %v391 = vsub.s32 0, %v280
      %v392 = vsel %vm390, %v391, %v280
      %v393 = vshrl.u32 %v392, 4
      %v394 = vand.u32 %v392, 15
      %v395 = vsub.s32 0, %v394
      %v396 = vsel %vm390, %v395, %v394
      %vm397 = vcmp.lt.s32.totalorder %v281, 0
      %v398 = vsub.s32 0, %v281
      %v399 = vsel %vm397, %v398, %v281
      %v400 = vshrl.u32 %v399, 4
      %v401 = vand.u32 %v399, 15
      %v402 = vsub.s32 0, %v401
      %v403 = vsel %vm397, %v402, %v401
      %vm404 = vcmp.lt.s32.totalorder %v282, 0
      %v405 = vsub.s32 0, %v282
      %v406 = vsel %vm404, %v405, %v282
      %v407 = vshrl.u32 %v406, 4
      %v408 = vand.u32 %v406, 15
      %v409 = vsub.s32 0, %v408
      %v410 = vsel %vm404, %v409, %v408
      %vm411 = vcmp.lt.s32.totalorder %v283, 0
      %v412 = vsub.s32 0, %v283
      %v413 = vsel %vm411, %v412, %v283
      %v414 = vshrl.u32 %v413, 4
      %v415 = vand.u32 %v413, 15
      %v416 = vsub.s32 0, %v415
      %v417 = vsel %vm411, %v416, %v415
      %vm418 = vcmp.lt.s32.totalorder %v284, 0
      %v419 = vsub.s32 0, %v284
      %v420 = vsel %vm418, %v419, %v284
      %v421 = vshrl.u32 %v420, 4
      %v422 = vand.u32 %v420, 15
      %v423 = vsub.s32 0, %v422
      %v424 = vsel %vm418, %v423, %v422
      %vm425 = vcmp.lt.s32.totalorder %v285, 0
      %v426 = vsub.s32 0, %v285
      %v427 = vsel %vm425, %v426, %v285
      %v428 = vshrl.u32 %v427, 4
      %v429 = vand.u32 %v427, 15
      %v430 = vsub.s32 0, %v429
      %v431 = vsel %vm425, %v430, %v429
      %vm432 = vcmp.lt.s32.totalorder %v286, 0
      %v433 = vsub.s32 0, %v286
      %v434 = vsel %vm432, %v433, %v286
      %v435 = vshrl.u32 %v434, 4
      %v436 = vand.u32 %v434, 15
      %v437 = vsub.s32 0, %v436
      %v438 = vsel %vm432, %v437, %v436
      %vm439 = vcmp.lt.s32.totalorder %v287, 0
      %v440 = vsub.s32 0, %v287
      %v441 = vsel %vm439, %v440, %v287
      %v442 = vshrl.u32 %v441, 4
      %v443 = vand.u32 %v441, 15
      %v444 = vsub.s32 0, %v443
      %v445 = vsel %vm439, %v444, %v443
      %vm446 = vcmp.lt.s32.totalorder %v288, 0
      %v447 = vsub.s32 0, %v288
      %v448 = vsel %vm446, %v447, %v288
      %v449 = vshrl.u32 %v448, 4
      %v450 = vand.u32 %v448, 15
      %v451 = vsub.s32 0, %v450
      %v452 = vsel %vm446, %v451, %v450
      %vm453 = vcmp.lt.s32.totalorder %v289, 0
      %v454 = vsub.s32 0, %v289
      %v455 = vsel %vm453, %v454, %v289
      %v456 = vshrl.u32 %v455, 4
      %v457 = vand.u32 %v455, 15
      %v458 = vsub.s32 0, %v457
      %v459 = vsel %vm453, %v458, %v457
      %vm460 = vcmp.lt.s32.totalorder %v290, 0
      %v461 = vsub.s32 0, %v290
      %v462 = vsel %vm460, %v461, %v290
      %v463 = vshrl.u32 %v462, 4
      %v464 = vand.u32 %v462, 15
      %v465 = vsub.s32 0, %v464
      %v466 = vsel %vm460, %v465, %v464
      %vm467 = vcmp.lt.s32.totalorder %v291, 0
      %v468 = vsub.s32 0, %v291
      %v469 = vsel %vm467, %v468, %v291
      %v470 = vshrl.u32 %v469, 4
      %v471 = vand.u32 %v469, 15
      %v472 = vsub.s32 0, %v471
      %v473 = vsel %vm467, %v472, %v471
      %vm474 = vcmp.lt.s32.totalorder %v292, 0
      %v475 = vsub.s32 0, %v292
      %v476 = vsel %vm474, %v475, %v292
      %v477 = vshrl.u32 %v476, 4
      %v478 = vand.u32 %v476, 15
      %v479 = vsub.s32 0, %v478
      %v480 = vsel %vm474, %v479, %v478
      %vm481 = vcmp.lt.s32.totalorder %v293, 0
      %v482 = vsub.s32 0, %v293
      %v483 = vsel %vm481, %v482, %v293
      %v484 = vshrl.u32 %v483, 4
      %v485 = vand.u32 %v483, 15
      %v486 = vsub.s32 0, %v485
      %v487 = vsel %vm481, %v486, %v485
      %vm488 = vcmp.lt.s32.totalorder %v294, 0
      %v489 = vsub.s32 0, %v294
      %v490 = vsel %vm488, %v489, %v294
      %v491 = vshrl.u32 %v490, 4
      %v492 = vand.u32 %v490, 15
      %v493 = vsub.s32 0, %v492
      %v494 = vsel %vm488, %v493, %v492
      %vm495 = vcmp.lt.s32.totalorder %v295, 0
      %v496 = vsub.s32 0, %v295
      %v497 = vsel %vm495, %v496, %v295
      %v498 = vshrl.u32 %v497, 4
      %v499 = vand.u32 %v497, 15
      %v500 = vsub.s32 0, %v499
      %v501 = vsel %vm495, %v500, %v499
      %vm502 = vcmp.lt.s32.totalorder %v296, 0
      %v503 = vsub.s32 0, %v296
      %v504 = vsel %vm502, %v503, %v296
      %v505 = vshrl.u32 %v504, 4
      %v506 = vand.u32 %v504, 15
      %v507 = vsub.s32 0, %v506
      %v508 = vsel %vm502, %v507, %v506
      %vm509 = vcmp.lt.s32.totalorder %v297, 0
      %v510 = vsub.s32 0, %v297
      %v511 = vsel %vm509, %v510, %v297
      %v512 = vshrl.u32 %v511, 4
      %v513 = vand.u32 %v511, 15
      %v514 = vsub.s32 0, %v513
      %v515 = vsel %vm509, %v514, %v513
      %vm516 = vcmp.lt.s32.totalorder %v298, 0
      %v517 = vsub.s32 0, %v298
      %v518 = vsel %vm516, %v517, %v298
      %v519 = vshrl.u32 %v518, 4
      %v520 = vand.u32 %v518, 15
      %v521 = vsub.s32 0, %v520
      %v522 = vsel %vm516, %v521, %v520
      %vm523 = vcmp.ne.s32.totalorder %v305, 0
      %vm524 = vcmp.ne.s32.totalorder %v312, 0
      %vm525 = vcmp.ne.s32.totalorder %v319, 0
      %vm526 = vcmp.ne.s32.totalorder %v326, 0
      %vm527 = vcmp.ne.s32.totalorder %v333, 0
      %vm528 = vcmp.ne.s32.totalorder %v340, 0
      %vm529 = vcmp.ne.s32.totalorder %v347, 0
      %vm530 = vcmp.ne.s32.totalorder %v354, 0
      %vm531 = vcmp.ne.s32.totalorder %v361, 0
      %vm532 = vcmp.ne.s32.totalorder %v368, 0
      %vm533 = vcmp.ne.s32.totalorder %v375, 0
      %vm534 = vcmp.ne.s32.totalorder %v382, 0
      %vm535 = vcmp.ne.s32.totalorder %v389, 0
      %vm536 = vcmp.ne.s32.totalorder %v396, 0
      %vm537 = vcmp.ne.s32.totalorder %v403, 0
      %vm538 = vcmp.ne.s32.totalorder %v410, 0
      %vm539 = vcmp.ne.s32.totalorder %v417, 0
      %vm540 = vcmp.ne.s32.totalorder %v424, 0
      %vm541 = vcmp.ne.s32.totalorder %v431, 0
      %vm542 = vcmp.ne.s32.totalorder %v438, 0
      %vm543 = vcmp.ne.s32.totalorder %v445, 0
      %vm544 = vcmp.ne.s32.totalorder %v452, 0
      %vm545 = vcmp.ne.s32.totalorder %v459, 0
      %vm546 = vcmp.ne.s32.totalorder %v466, 0
      %vm547 = vcmp.ne.s32.totalorder %v473, 0
      %vm548 = vcmp.ne.s32.totalorder %v480, 0
      %vm549 = vcmp.ne.s32.totalorder %v487, 0
      %vm550 = vcmp.ne.s32.totalorder %v494, 0
      %vm551 = vcmp.ne.s32.totalorder %v501, 0
      %vm552 = vcmp.ne.s32.totalorder %v508, 0
      %vm553 = vcmp.ne.s32.totalorder %v515, 0
      %vm554 = vcmp.ne.s32.totalorder %v522, 0
      %vm555 = vcmp.lt.s32.totalorder %v305, 0
      %vm556 = vcmp.lt.s32.totalorder %v312, 0
      %vm557 = vcmp.lt.s32.totalorder %v319, 0
      %vm558 = vcmp.lt.s32.totalorder %v326, 0
      %vm559 = vcmp.lt.s32.totalorder %v333, 0
      %vm560 = vcmp.lt.s32.totalorder %v340, 0
      %vm561 = vcmp.lt.s32.totalorder %v347, 0
      %vm562 = vcmp.lt.s32.totalorder %v354, 0
      %vm563 = vcmp.lt.s32.totalorder %v361, 0
      %vm564 = vcmp.lt.s32.totalorder %v368, 0
      %vm565 = vcmp.lt.s32.totalorder %v375, 0
      %vm566 = vcmp.lt.s32.totalorder %v382, 0
      %vm567 = vcmp.lt.s32.totalorder %v389, 0
      %vm568 = vcmp.lt.s32.totalorder %v396, 0
      %vm569 = vcmp.lt.s32.totalorder %v403, 0
      %vm570 = vcmp.lt.s32.totalorder %v410, 0
      %vm571 = vcmp.lt.s32.totalorder %v417, 0
      %vm572 = vcmp.lt.s32.totalorder %v424, 0
      %vm573 = vcmp.lt.s32.totalorder %v431, 0
      %vm574 = vcmp.lt.s32.totalorder %v438, 0
      %vm575 = vcmp.lt.s32.totalorder %v445, 0
      %vm576 = vcmp.lt.s32.totalorder %v452, 0
      %vm577 = vcmp.lt.s32.totalorder %v459, 0
      %vm578 = vcmp.lt.s32.totalorder %v466, 0
      %vm579 = vcmp.lt.s32.totalorder %v473, 0
      %vm580 = vcmp.lt.s32.totalorder %v480, 0
      %vm581 = vcmp.lt.s32.totalorder %v487, 0
      %vm582 = vcmp.lt.s32.totalorder %v494, 0
      %vm583 = vcmp.lt.s32.totalorder %v501, 0
      %vm584 = vcmp.lt.s32.totalorder %v508, 0
      %vm585 = vcmp.lt.s32.totalorder %v515, 0
      %vm586 = vcmp.lt.s32.totalorder %v522, 0
      %vm587 = vmand %vm555, %vm523
      %vm588 = vmand %vm556, %vm524
      %vm589 = vmand %vm557, %vm525
      %vm590 = vmand %vm558, %vm526
      %vm591 = vmand %vm559, %vm527
      %vm592 = vmand %vm560, %vm528
      %vm593 = vmand %vm561, %vm529
      %vm594 = vmand %vm562, %vm530
      %vm595 = vmand %vm563, %vm531
      %vm596 = vmand %vm564, %vm532
      %vm597 = vmand %vm565, %vm533
      %vm598 = vmand %vm566, %vm534
      %vm599 = vmand %vm567, %vm535
      %vm600 = vmand %vm568, %vm536
      %vm601 = vmand %vm569, %vm537
      %vm602 = vmand %vm570, %vm538
      %vm603 = vmand %vm571, %vm539
      %vm604 = vmand %vm572, %vm540
      %vm605 = vmand %vm573, %vm541
      %vm606 = vmand %vm574, %vm542
      %vm607 = vmand %vm575, %vm543
      %vm608 = vmand %vm576, %vm544
      %vm609 = vmand %vm577, %vm545
      %vm610 = vmand %vm578, %vm546
      %vm611 = vmand %vm579, %vm547
      %vm612 = vmand %vm580, %vm548
      %vm613 = vmand %vm581, %vm549
      %vm614 = vmand %vm582, %vm550
      %vm615 = vmand %vm583, %vm551
      %vm616 = vmand %vm584, %vm552
      %vm617 = vmand %vm585, %vm553
      %vm618 = vmand %vm586, %vm554
      %v619 = vadd.s32 %v305, 16
      %v620 = vadd.s32 %v312, 16
      %v621 = vadd.s32 %v319, 16
      %v622 = vadd.s32 %v326, 16
      %v623 = vadd.s32 %v333, 16
      %v624 = vadd.s32 %v340, 16
      %v625 = vadd.s32 %v347, 16
      %v626 = vadd.s32 %v354, 16
      %v627 = vadd.s32 %v361, 16
      %v628 = vadd.s32 %v368, 16
      %v629 = vadd.s32 %v375, 16
      %v630 = vadd.s32 %v382, 16
      %v631 = vadd.s32 %v389, 16
      %v632 = vadd.s32 %v396, 16
      %v633 = vadd.s32 %v403, 16
      %v634 = vadd.s32 %v410, 16
      %v635 = vadd.s32 %v417, 16
      %v636 = vadd.s32 %v424, 16
      %v637 = vadd.s32 %v431, 16
      %v638 = vadd.s32 %v438, 16
      %v639 = vadd.s32 %v445, 16
      %v640 = vadd.s32 %v452, 16
      %v641 = vadd.s32 %v459, 16
      %v642 = vadd.s32 %v466, 16
      %v643 = vadd.s32 %v473, 16
      %v644 = vadd.s32 %v480, 16
      %v645 = vadd.s32 %v487, 16
      %v646 = vadd.s32 %v494, 16
      %v647 = vadd.s32 %v501, 16
      %v648 = vadd.s32 %v508, 16
      %v649 = vadd.s32 %v515, 16
      %v650 = vadd.s32 %v522, 16
      %v651 = vsel %vm587, %v619, %v305
      %v652 = vsel %vm588, %v620, %v312
      %v653 = vsel %vm589, %v621, %v319
      %v654 = vsel %vm590, %v622, %v326
      %v655 = vsel %vm591, %v623, %v333
      %v656 = vsel %vm592, %v624, %v340
      %v657 = vsel %vm593, %v625, %v347
      %v658 = vsel %vm594, %v626, %v354
      %v659 = vsel %vm595, %v627, %v361
      %v660 = vsel %vm596, %v628, %v368
      %v661 = vsel %vm597, %v629, %v375
      %v662 = vsel %vm598, %v630, %v382
      %v663 = vsel %vm599, %v631, %v389
      %v664 = vsel %vm600, %v632, %v396
      %v665 = vsel %vm601, %v633, %v403
      %v666 = vsel %vm602, %v634, %v410
      %v667 = vsel %vm603, %v635, %v417
      %v668 = vsel %vm604, %v636, %v424
      %v669 = vsel %vm605, %v637, %v431
      %v670 = vsel %vm606, %v638, %v438
      %v671 = vsel %vm607, %v639, %v445
      %v672 = vsel %vm608, %v640, %v452
      %v673 = vsel %vm609, %v641, %v459
      %v674 = vsel %vm610, %v642, %v466
      %v675 = vsel %vm611, %v643, %v473
      %v676 = vsel %vm612, %v644, %v480
      %v677 = vsel %vm613, %v645, %v487
      %v678 = vsel %vm614, %v646, %v494
      %v679 = vsel %vm615, %v647, %v501
      %v680 = vsel %vm616, %v648, %v508
      %v681 = vsel %vm617, %v649, %v515
      %v682 = vsel %vm618, %v650, %v522
      %vm683 = vcmp.ne.s32.totalorder %v651, 0
      %vm684 = vcmp.ne.s32.totalorder %v652, 0
      %vm685 = vcmp.ne.s32.totalorder %v653, 0
      %vm686 = vcmp.ne.s32.totalorder %v654, 0
      %vm687 = vcmp.ne.s32.totalorder %v655, 0
      %vm688 = vcmp.ne.s32.totalorder %v656, 0
      %vm689 = vcmp.ne.s32.totalorder %v657, 0
      %vm690 = vcmp.ne.s32.totalorder %v658, 0
      %vm691 = vcmp.ne.s32.totalorder %v659, 0
      %vm692 = vcmp.ne.s32.totalorder %v660, 0
      %vm693 = vcmp.ne.s32.totalorder %v661, 0
      %vm694 = vcmp.ne.s32.totalorder %v662, 0
      %vm695 = vcmp.ne.s32.totalorder %v663, 0
      %vm696 = vcmp.ne.s32.totalorder %v664, 0
      %vm697 = vcmp.ne.s32.totalorder %v665, 0
      %vm698 = vcmp.ne.s32.totalorder %v666, 0
      %vm699 = vcmp.ne.s32.totalorder %v667, 0
      %vm700 = vcmp.ne.s32.totalorder %v668, 0
      %vm701 = vcmp.ne.s32.totalorder %v669, 0
      %vm702 = vcmp.ne.s32.totalorder %v670, 0
      %vm703 = vcmp.ne.s32.totalorder %v671, 0
      %vm704 = vcmp.ne.s32.totalorder %v672, 0
      %vm705 = vcmp.ne.s32.totalorder %v673, 0
      %vm706 = vcmp.ne.s32.totalorder %v674, 0
      %vm707 = vcmp.ne.s32.totalorder %v675, 0
      %vm708 = vcmp.ne.s32.totalorder %v676, 0
      %vm709 = vcmp.ne.s32.totalorder %v677, 0
      %vm710 = vcmp.ne.s32.totalorder %v678, 0
      %vm711 = vcmp.ne.s32.totalorder %v679, 0
      %vm712 = vcmp.ne.s32.totalorder %v680, 0
      %vm713 = vcmp.ne.s32.totalorder %v681, 0
      %vm714 = vcmp.ne.s32.totalorder %v682, 0
      %vm715 = vcmp.ne.s32.totalorder %v651, 15
      %vm716 = vcmp.ne.s32.totalorder %v652, 15
      %vm717 = vcmp.ne.s32.totalorder %v653, 15
      %vm718 = vcmp.ne.s32.totalorder %v654, 15
      %vm719 = vcmp.ne.s32.totalorder %v655, 15
      %vm720 = vcmp.ne.s32.totalorder %v656, 15
      %vm721 = vcmp.ne.s32.totalorder %v657, 15
      %vm722 = vcmp.ne.s32.totalorder %v658, 15
      %vm723 = vcmp.ne.s32.totalorder %v659, 15
      %vm724 = vcmp.ne.s32.totalorder %v660, 15
      %vm725 = vcmp.ne.s32.totalorder %v661, 15
      %vm726 = vcmp.ne.s32.totalorder %v662, 15
      %vm727 = vcmp.ne.s32.totalorder %v663, 15
      %vm728 = vcmp.ne.s32.totalorder %v664, 15
      %vm729 = vcmp.ne.s32.totalorder %v665, 15
      %vm730 = vcmp.ne.s32.totalorder %v666, 15
      %vm731 = vcmp.ne.s32.totalorder %v667, 15
      %vm732 = vcmp.ne.s32.totalorder %v668, 15
      %vm733 = vcmp.ne.s32.totalorder %v669, 15
      %vm734 = vcmp.ne.s32.totalorder %v670, 15
      %vm735 = vcmp.ne.s32.totalorder %v671, 15
      %vm736 = vcmp.ne.s32.totalorder %v672, 15
      %vm737 = vcmp.ne.s32.totalorder %v673, 15
      %vm738 = vcmp.ne.s32.totalorder %v674, 15
      %vm739 = vcmp.ne.s32.totalorder %v675, 15
      %vm740 = vcmp.ne.s32.totalorder %v676, 15
      %vm741 = vcmp.ne.s32.totalorder %v677, 15
      %vm742 = vcmp.ne.s32.totalorder %v678, 15
      %vm743 = vcmp.ne.s32.totalorder %v679, 15
      %vm744 = vcmp.ne.s32.totalorder %v680, 15
      %vm745 = vcmp.ne.s32.totalorder %v681, 15
      %vm746 = vcmp.ne.s32.totalorder %v682, 15
      %v747 = vld [vmem:[#allocation2 + $0x4] sm:$0x8]
      %v748 = vld [vmem:[#allocation2 + $0x8] sm:$0xf]
      %v749 = vld [vmem:[#allocation2 + $0xc] sm:$0xf]
      %v750 = vld [vmem:[#allocation2 + $0x10] sm:$0xf]
      %v751 = vld [vmem:[#allocation2 + $0x14] sm:$0xf]
      %v752 = vld [vmem:[#allocation2 + $0x18] sm:$0xf]
      %v753 = vld [vmem:[#allocation2 + $0x1c] sm:$0xf]
      %v754 = vld [vmem:[#allocation2 + $0x20] sm:$0xf]
      %v755 = vld [vmem:[#allocation2 + $0x24] sm:$0xf]
      %v756 = vld [vmem:[#allocation2 + $0x28] sm:$0xf]
      %v757 = vld [vmem:[#allocation2 + $0x2c] sm:$0xf]
      %v758 = vld [vmem:[#allocation2 + $0x30] sm:$0xf]
      %v759 = vld [vmem:[#allocation2 + $0x34] sm:$0xf]
      %v760 = vld [vmem:[#allocation2 + $0x38] sm:$0xf]
      %v761 = vld [vmem:[#allocation2 + $0x3c] sm:$0xf]
      %v762 = vld [vmem:[#allocation2 + $0x40] sm:$0xf]
      %v763 = vld [vmem:[#allocation2 + $0x44] sm:$0xf]
      %v764 = vld [vmem:[#allocation2 + $0x48] sm:$0xf]
      %v765 = vld [vmem:[#allocation2 + $0x4c] sm:$0xf]
      %v766 = vld [vmem:[#allocation2 + $0x50] sm:$0xf]
      %v767 = vld [vmem:[#allocation2 + $0x54] sm:$0xf]
      %v768 = vld [vmem:[#allocation2 + $0x58] sm:$0xf]
      %v769 = vld [vmem:[#allocation2 + $0x5c] sm:$0xf]
      %v770 = vld [vmem:[#allocation2 + $0x60] sm:$0xf]
      %v771 = vld [vmem:[#allocation2 + $0x64] sm:$0xf]
      %v772 = vld [vmem:[#allocation2 + $0x68] sm:$0xf]
      %v773 = vld [vmem:[#allocation2 + $0x6c] sm:$0xf]
      %v774 = vld [vmem:[#allocation2 + $0x70] sm:$0xf]
      %v775 = vld [vmem:[#allocation2 + $0x74] sm:$0xf]
      %v776 = vld [vmem:[#allocation2 + $0x78] sm:$0xf]
      %v777 = vld [vmem:[#allocation2 + $0x7c] sm:$0xf]
      %v778 = vld [vmem:[#allocation2 + $0x80] sm:$0xf]
      %v779 = vld [vmem:[#allocation2 + $0x84] sm:$0xf]
      %v780 = vsel %vm683, 1, 0
      %v781 = vsel %vm684, 1, 0
      %v782 = vsel %vm685, 1, 0
      %v783 = vsel %vm686, 1, 0
      %v784 = vsel %vm687, 1, 0
      %v785 = vsel %vm688, 1, 0
      %v786 = vsel %vm689, 1, 0
      %v787 = vsel %vm690, 1, 0
      %v788 = vsel %vm691, 1, 0
      %v789 = vsel %vm692, 1, 0
      %v790 = vsel %vm693, 1, 0
      %v791 = vsel %vm694, 1, 0
      %v792 = vsel %vm695, 1, 0
      %v793 = vsel %vm696, 1, 0
      %v794 = vsel %vm697, 1, 0
      %v795 = vsel %vm698, 1, 0
      %v796 = vsel %vm699, 1, 0
      %v797 = vsel %vm700, 1, 0
      %v798 = vsel %vm701, 1, 0
      %v799 = vsel %vm702, 1, 0
      %v800 = vsel %vm703, 1, 0
      %v801 = vsel %vm704, 1, 0
      %v802 = vsel %vm705, 1, 0
      %v803 = vsel %vm706, 1, 0
      %v804 = vsel %vm707, 1, 0
      %v805 = vsel %vm708, 1, 0
      %v806 = vsel %vm709, 1, 0
      %v807 = vsel %vm710, 1, 0
      %v808 = vsel %vm711, 1, 0
      %v809 = vsel %vm712, 1, 0
      %v810 = vsel %vm713, 1, 0
      %v811 = vsel %vm714, 1, 0
      %vm812 = vcmp.eq.s32.totalorder %v780, 1
      %vm813 = vcmp.eq.s32.totalorder %v781, 1
      %vm814 = vcmp.eq.s32.totalorder %v782, 1
      %vm815 = vcmp.eq.s32.totalorder %v783, 1
      %vm816 = vcmp.eq.s32.totalorder %v784, 1
      %vm817 = vcmp.eq.s32.totalorder %v785, 1
      %vm818 = vcmp.eq.s32.totalorder %v786, 1
      %vm819 = vcmp.eq.s32.totalorder %v787, 1
      %vm820 = vcmp.eq.s32.totalorder %v788, 1
      %vm821 = vcmp.eq.s32.totalorder %v789, 1
      %vm822 = vcmp.eq.s32.totalorder %v790, 1
      %vm823 = vcmp.eq.s32.totalorder %v791, 1
      %vm824 = vcmp.eq.s32.totalorder %v792, 1
      %vm825 = vcmp.eq.s32.totalorder %v793, 1
      %vm826 = vcmp.eq.s32.totalorder %v794, 1
      %vm827 = vcmp.eq.s32.totalorder %v795, 1
      %vm828 = vcmp.eq.s32.totalorder %v796, 1
      %vm829 = vcmp.eq.s32.totalorder %v797, 1
      %vm830 = vcmp.eq.s32.totalorder %v798, 1
      %vm831 = vcmp.eq.s32.totalorder %v799, 1
      %vm832 = vcmp.eq.s32.totalorder %v800, 1
      %vm833 = vcmp.eq.s32.totalorder %v801, 1
      %vm834 = vcmp.eq.s32.totalorder %v802, 1
      %vm835 = vcmp.eq.s32.totalorder %v803, 1
      %vm836 = vcmp.eq.s32.totalorder %v804, 1
      %vm837 = vcmp.eq.s32.totalorder %v805, 1
      %vm838 = vcmp.eq.s32.totalorder %v806, 1
      %vm839 = vcmp.eq.s32.totalorder %v807, 1
      %vm840 = vcmp.eq.s32.totalorder %v808, 1
      %vm841 = vcmp.eq.s32.totalorder %v809, 1
      %vm842 = vcmp.eq.s32.totalorder %v810, 1
      %vm843 = vcmp.eq.s32.totalorder %v811, 1
      %vm844 = vmpackc.low %vm812, %vm812
      %vm845 = vmpackc.low %vm813, %vm813
      %vm846 = vmpackc.low %vm814, %vm814
      %vm847 = vmpackc.low %vm815, %vm815
      %vm848 = vmpackc.low %vm816, %vm816
      %vm849 = vmpackc.low %vm817, %vm817
      %vm850 = vmpackc.low %vm818, %vm818
      %vm851 = vmpackc.low %vm819, %vm819
      %vm852 = vmpackc.low %vm820, %vm820
      %vm853 = vmpackc.low %vm821, %vm821
      %vm854 = vmpackc.low %vm822, %vm822
      %vm855 = vmpackc.low %vm823, %vm823
      %vm856 = vmpackc.low %vm824, %vm824
      %vm857 = vmpackc.low %vm825, %vm825
      %vm858 = vmpackc.low %vm826, %vm826
      %vm859 = vmpackc.low %vm827, %vm827
      %vm860 = vmpackc.low %vm828, %vm828
      %vm861 = vmpackc.low %vm829, %vm829
      %vm862 = vmpackc.low %vm830, %vm830
      %vm863 = vmpackc.low %vm831, %vm831
      %vm864 = vmpackc.low %vm832, %vm832
      %vm865 = vmpackc.low %vm833, %vm833
      %vm866 = vmpackc.low %vm834, %vm834
      %vm867 = vmpackc.low %vm835, %vm835
      %vm868 = vmpackc.low %vm836, %vm836
      %vm869 = vmpackc.low %vm837, %vm837
      %vm870 = vmpackc.low %vm838, %vm838
      %vm871 = vmpackc.low %vm839, %vm839
      %vm872 = vmpackc.low %vm840, %vm840
      %vm873 = vmpackc.low %vm841, %vm841
      %vm874 = vmpackc.low %vm842, %vm842
      %vm875 = vmpackc.low %vm843, %vm843
      %v876 = vsel %vm844, 65537, 0
      %v877 = vsel %vm845, 65537, 0
      %v878 = vsel %vm846, 65537, 0
      %v879 = vsel %vm847, 65537, 0
      %v880 = vsel %vm848, 65537, 0
      %v881 = vsel %vm849, 65537, 0
      %v882 = vsel %vm850, 65537, 0
      %v883 = vsel %vm851, 65537, 0
      %v884 = vsel %vm852, 65537, 0
      %v885 = vsel %vm853, 65537, 0
      %v886 = vsel %vm854, 65537, 0
      %v887 = vsel %vm855, 65537, 0
      %v888 = vsel %vm856, 65537, 0
      %v889 = vsel %vm857, 65537, 0
      %v890 = vsel %vm858, 65537, 0
      %v891 = vsel %vm859, 65537, 0
      %v892 = vsel %vm860, 65537, 0
      %v893 = vsel %vm861, 65537, 0
      %v894 = vsel %vm862, 65537, 0
      %v895 = vsel %vm863, 65537, 0
      %v896 = vsel %vm864, 65537, 0
      %v897 = vsel %vm865, 65537, 0
      %v898 = vsel %vm866, 65537, 0
      %v899 = vsel %vm867, 65537, 0
      %v900 = vsel %vm868, 65537, 0
      %v901 = vsel %vm869, 65537, 0
      %v902 = vsel %vm870, 65537, 0
      %v903 = vsel %vm871, 65537, 0
      %v904 = vsel %vm872, 65537, 0
      %v905 = vsel %vm873, 65537, 0
      %v906 = vsel %vm874, 65537, 0
      %v907 = vsel %vm875, 65537, 0
      %vm908 = vsmask.f32 3328
      %vm909 = vsmask.f32 7440
      %vm910 = vmor %vm908, %vm909
      %v912 = vshll.u32 %v876, 16
      %v914 = vrot.slane %v912, 5
      %v915 = vshrl.u32 %v876, 16
      %v917 = vrot.slane %v915, 4
      %v918 = vor.u32 %v917, %v914
      %v919 = vrot.slane %v918, 4
      %v921 = vshll.u32 %v877, 16
      %v923 = vrot.slane %v921, 5
      %v924 = vsel %vm910, %v919, %v923
      %v925 = vshrl.u32 %v877, 16
      %v927 = vrot.slane %v925, 4
      %v928 = vor.u32 %v927, %v923
      %v929 = vrot.slane %v928, 4
      %v931 = vshll.u32 %v878, 16
      %v933 = vrot.slane %v931, 5
      %v934 = vsel %vm910, %v929, %v933
      %v935 = vshrl.u32 %v878, 16
      %v937 = vrot.slane %v935, 4
      %v938 = vor.u32 %v937, %v933
      %v939 = vrot.slane %v938, 4
      %v941 = vshll.u32 %v879, 16
      %v943 = vrot.slane %v941, 5
      %v944 = vsel %vm910, %v939, %v943
      %v945 = vshrl.u32 %v879, 16
      %v947 = vrot.slane %v945, 4
      %v948 = vor.u32 %v947, %v943
      %v949 = vrot.slane %v948, 4
      %v951 = vshll.u32 %v880, 16
      %v953 = vrot.slane %v951, 5
      %v954 = vsel %vm910, %v949, %v953
      %v955 = vshrl.u32 %v880, 16
      %v957 = vrot.slane %v955, 4
      %v958 = vor.u32 %v957, %v953
      %v959 = vrot.slane %v958, 4
      %v961 = vshll.u32 %v881, 16
      %v963 = vrot.slane %v961, 5
      %v964 = vsel %vm910, %v959, %v963
      %v965 = vshrl.u32 %v881, 16
      %v967 = vrot.slane %v965, 4
      %v968 = vor.u32 %v967, %v963
      %v969 = vrot.slane %v968, 4
      %v971 = vshll.u32 %v882, 16
      %v973 = vrot.slane %v971, 5
      %v974 = vsel %vm910, %v969, %v973
      %v975 = vshrl.u32 %v882, 16
      %v977 = vrot.slane %v975, 4
      %v978 = vor.u32 %v977, %v973
      %v979 = vrot.slane %v978, 4
      %v981 = vshll.u32 %v883, 16
      %v983 = vrot.slane %v981, 5
      %v984 = vsel %vm910, %v979, %v983
      %v985 = vshrl.u32 %v883, 16
      %v987 = vrot.slane %v985, 4
      %v988 = vor.u32 %v987, %v983
      %v989 = vrot.slane %v988, 4
      %v991 = vshll.u32 %v884, 16
      %v993 = vrot.slane %v991, 5
      %v994 = vsel %vm910, %v989, %v993
      %v995 = vshrl.u32 %v884, 16
      %v997 = vrot.slane %v995, 4
      %v998 = vor.u32 %v997, %v993
      %v999 = vrot.slane %v998, 4
      %v1001 = vshll.u32 %v885, 16
      %v1003 = vrot.slane %v1001, 5
      %v1004 = vsel %vm910, %v999, %v1003
      %v1005 = vshrl.u32 %v885, 16
      %v1007 = vrot.slane %v1005, 4
      %v1008 = vor.u32 %v1007, %v1003
      %v1009 = vrot.slane %v1008, 4
      %v1011 = vshll.u32 %v886, 16
      %v1013 = vrot.slane %v1011, 5
      %v1014 = vsel %vm910, %v1009, %v1013
      %v1015 = vshrl.u32 %v886, 16
      %v1017 = vrot.slane %v1015, 4
      %v1018 = vor.u32 %v1017, %v1013
      %v1019 = vrot.slane %v1018, 4
      %v1021 = vshll.u32 %v887, 16
      %v1023 = vrot.slane %v1021, 5
      %v1024 = vsel %vm910, %v1019, %v1023
      %v1025 = vshrl.u32 %v887, 16
      %v1027 = vrot.slane %v1025, 4
      %v1028 = vor.u32 %v1027, %v1023
      %v1029 = vrot.slane %v1028, 4
      %v1031 = vshll.u32 %v888, 16
      %v1033 = vrot.slane %v1031, 5
      %v1034 = vsel %vm910, %v1029, %v1033
      %v1035 = vshrl.u32 %v888, 16
      %v1037 = vrot.slane %v1035, 4
      %v1038 = vor.u32 %v1037, %v1033
      %v1039 = vrot.slane %v1038, 4
      %v1041 = vshll.u32 %v889, 16
      %v1043 = vrot.slane %v1041, 5
      %v1044 = vsel %vm910, %v1039, %v1043
      %v1045 = vshrl.u32 %v889, 16
      %v1047 = vrot.slane %v1045, 4
      %v1048 = vor.u32 %v1047, %v1043
      %v1049 = vrot.slane %v1048, 4
      %v1051 = vshll.u32 %v890, 16
      %v1053 = vrot.slane %v1051, 5
      %v1054 = vsel %vm910, %v1049, %v1053
      %v1055 = vshrl.u32 %v890, 16
      %v1057 = vrot.slane %v1055, 4
      %v1058 = vor.u32 %v1057, %v1053
      %v1059 = vrot.slane %v1058, 4
      %v1061 = vshll.u32 %v891, 16
      %v1063 = vrot.slane %v1061, 5
      %v1064 = vsel %vm910, %v1059, %v1063
      %v1065 = vshrl.u32 %v891, 16
      %v1067 = vrot.slane %v1065, 4
      %v1068 = vor.u32 %v1067, %v1063
      %v1069 = vrot.slane %v1068, 4
      %v1071 = vshll.u32 %v892, 16
      %v1073 = vrot.slane %v1071, 5
      %v1074 = vsel %vm910, %v1069, %v1073
      %v1075 = vshrl.u32 %v892, 16
      %v1077 = vrot.slane %v1075, 4
      %v1078 = vor.u32 %v1077, %v1073
      %v1079 = vrot.slane %v1078, 4
      %v1081 = vshll.u32 %v893, 16
      %v1083 = vrot.slane %v1081, 5
      %v1084 = vsel %vm910, %v1079, %v1083
      %v1085 = vshrl.u32 %v893, 16
      %v1087 = vrot.slane %v1085, 4
      %v1088 = vor.u32 %v1087, %v1083
      %v1089 = vrot.slane %v1088, 4
      %v1091 = vshll.u32 %v894, 16
      %v1093 = vrot.slane %v1091, 5
      %v1094 = vsel %vm910, %v1089, %v1093
      %v1095 = vshrl.u32 %v894, 16
      %v1097 = vrot.slane %v1095, 4
      %v1098 = vor.u32 %v1097, %v1093
      %v1099 = vrot.slane %v1098, 4
      %v1101 = vshll.u32 %v895, 16
      %v1103 = vrot.slane %v1101, 5
      %v1104 = vsel %vm910, %v1099, %v1103
      %v1105 = vshrl.u32 %v895, 16
      %v1107 = vrot.slane %v1105, 4
      %v1108 = vor.u32 %v1107, %v1103
      %v1109 = vrot.slane %v1108, 4
      %v1111 = vshll.u32 %v896, 16
      %v1113 = vrot.slane %v1111, 5
      %v1114 = vsel %vm910, %v1109, %v1113
      %v1115 = vshrl.u32 %v896, 16
      %v1117 = vrot.slane %v1115, 4
      %v1118 = vor.u32 %v1117, %v1113
      %v1119 = vrot.slane %v1118, 4
      %v1121 = vshll.u32 %v897, 16
      %v1123 = vrot.slane %v1121, 5
      %v1124 = vsel %vm910, %v1119, %v1123
      %v1125 = vshrl.u32 %v897, 16
      %v1127 = vrot.slane %v1125, 4
      %v1128 = vor.u32 %v1127, %v1123
      %v1129 = vrot.slane %v1128, 4
      %v1131 = vshll.u32 %v898, 16
      %v1133 = vrot.slane %v1131, 5
      %v1134 = vsel %vm910, %v1129, %v1133
      %v1135 = vshrl.u32 %v898, 16
      %v1137 = vrot.slane %v1135, 4
      %v1138 = vor.u32 %v1137, %v1133
      %v1139 = vrot.slane %v1138, 4
      %v1141 = vshll.u32 %v899, 16
      %v1143 = vrot.slane %v1141, 5
      %v1144 = vsel %vm910, %v1139, %v1143
      %v1145 = vshrl.u32 %v899, 16
      %v1147 = vrot.slane %v1145, 4
      %v1148 = vor.u32 %v1147, %v1143
      %v1149 = vrot.slane %v1148, 4
      %v1151 = vshll.u32 %v900, 16
      %v1153 = vrot.slane %v1151, 5
      %v1154 = vsel %vm910, %v1149, %v1153
      %v1155 = vshrl.u32 %v900, 16
      %v1157 = vrot.slane %v1155, 4
      %v1158 = vor.u32 %v1157, %v1153
      %v1159 = vrot.slane %v1158, 4
      %v1161 = vshll.u32 %v901, 16
      %v1163 = vrot.slane %v1161, 5
      %v1164 = vsel %vm910, %v1159, %v1163
      %v1165 = vshrl.u32 %v901, 16
      %v1167 = vrot.slane %v1165, 4
      %v1168 = vor.u32 %v1167, %v1163
      %v1169 = vrot.slane %v1168, 4
      %v1171 = vshll.u32 %v902, 16
      %v1173 = vrot.slane %v1171, 5
      %v1174 = vsel %vm910, %v1169, %v1173
      %v1175 = vshrl.u32 %v902, 16
      %v1177 = vrot.slane %v1175, 4
      %v1178 = vor.u32 %v1177, %v1173
      %v1179 = vrot.slane %v1178, 4
      %v1181 = vshll.u32 %v903, 16
      %v1183 = vrot.slane %v1181, 5
      %v1184 = vsel %vm910, %v1179, %v1183
      %v1185 = vshrl.u32 %v903, 16
      %v1187 = vrot.slane %v1185, 4
      %v1188 = vor.u32 %v1187, %v1183
      %v1189 = vrot.slane %v1188, 4
      %v1191 = vshll.u32 %v904, 16
      %v1193 = vrot.slane %v1191, 5
      %v1194 = vsel %vm910, %v1189, %v1193
      %v1195 = vshrl.u32 %v904, 16
      %v1197 = vrot.slane %v1195, 4
      %v1198 = vor.u32 %v1197, %v1193
      %v1199 = vrot.slane %v1198, 4
      %v1201 = vshll.u32 %v905, 16
      %v1203 = vrot.slane %v1201, 5
      %v1204 = vsel %vm910, %v1199, %v1203
      %v1205 = vshrl.u32 %v905, 16
      %v1207 = vrot.slane %v1205, 4
      %v1208 = vor.u32 %v1207, %v1203
      %v1209 = vrot.slane %v1208, 4
      %v1211 = vshll.u32 %v906, 16
      %v1213 = vrot.slane %v1211, 5
      %v1214 = vsel %vm910, %v1209, %v1213
      %v1215 = vshrl.u32 %v906, 16
      %v1217 = vrot.slane %v1215, 4
      %v1218 = vor.u32 %v1217, %v1213
      %v1219 = vrot.slane %v1218, 4
      %v1221 = vshll.u32 %v907, 16
      %v1223 = vrot.slane %v1221, 5
      %v1224 = vsel %vm910, %v1219, %v1223
      %v1225 = vshrl.u32 %v907, 16
      %v1227 = vrot.slane %v1225, 4
      %v1228 = vor.u32 %v1227, %v1223
      %v1229 = vrot.slane %v1228, 4
      %vm1230 = vcmp.ne.s16.totalorder %v914, 0
      %vm1231 = vcmp.ne.s16.totalorder %v924, 0
      %vm1232 = vcmp.ne.s16.totalorder %v934, 0
      %vm1233 = vcmp.ne.s16.totalorder %v944, 0
      %vm1234 = vcmp.ne.s16.totalorder %v954, 0
      %vm1235 = vcmp.ne.s16.totalorder %v964, 0
      %vm1236 = vcmp.ne.s16.totalorder %v974, 0
      %vm1237 = vcmp.ne.s16.totalorder %v984, 0
      %vm1238 = vcmp.ne.s16.totalorder %v994, 0
      %vm1239 = vcmp.ne.s16.totalorder %v1004, 0
      %vm1240 = vcmp.ne.s16.totalorder %v1014, 0
      %vm1241 = vcmp.ne.s16.totalorder %v1024, 0
      %vm1242 = vcmp.ne.s16.totalorder %v1034, 0
      %vm1243 = vcmp.ne.s16.totalorder %v1044, 0
      %vm1244 = vcmp.ne.s16.totalorder %v1054, 0
      %vm1245 = vcmp.ne.s16.totalorder %v1064, 0
      %vm1246 = vcmp.ne.s16.totalorder %v1074, 0
      %vm1247 = vcmp.ne.s16.totalorder %v1084, 0
      %vm1248 = vcmp.ne.s16.totalorder %v1094, 0
      %vm1249 = vcmp.ne.s16.totalorder %v1104, 0
      %vm1250 = vcmp.ne.s16.totalorder %v1114, 0
      %vm1251 = vcmp.ne.s16.totalorder %v1124, 0
      %vm1252 = vcmp.ne.s16.totalorder %v1134, 0
      %vm1253 = vcmp.ne.s16.totalorder %v1144, 0
      %vm1254 = vcmp.ne.s16.totalorder %v1154, 0
      %vm1255 = vcmp.ne.s16.totalorder %v1164, 0
      %vm1256 = vcmp.ne.s16.totalorder %v1174, 0
      %vm1257 = vcmp.ne.s16.totalorder %v1184, 0
      %vm1258 = vcmp.ne.s16.totalorder %v1194, 0
      %vm1259 = vcmp.ne.s16.totalorder %v1204, 0
      %vm1260 = vcmp.ne.s16.totalorder %v1214, 0
      %vm1261 = vcmp.ne.s16.totalorder %v1224, 0
      %vm1262 = vcmp.ne.s16.totalorder %v1229, 0
      %v1263 = vsel %vm1230, %v747, 0
      %v1264 = vsel %vm1231, %v748, 0
      %v1265 = vsel %vm1232, %v749, 0
      %v1266 = vsel %vm1233, %v750, 0
      %v1267 = vsel %vm1234, %v751, 0
      %v1268 = vsel %vm1235, %v752, 0
      %v1269 = vsel %vm1236, %v753, 0
      %v1270 = vsel %vm1237, %v754, 0
      %v1271 = vsel %vm1238, %v755, 0
      %v1272 = vsel %vm1239, %v756, 0
      %v1273 = vsel %vm1240, %v757, 0
      %v1274 = vsel %vm1241, %v758, 0
      %v1275 = vsel %vm1242, %v759, 0
      %v1276 = vsel %vm1243, %v760, 0
      %v1277 = vsel %vm1244, %v761, 0
      %v1278 = vsel %vm1245, %v762, 0
      %v1279 = vsel %vm1246, %v763, 0
      %v1280 = vsel %vm1247, %v764, 0
      %v1281 = vsel %vm1248, %v765, 0
      %v1282 = vsel %vm1249, %v766, 0
      %v1283 = vsel %vm1250, %v767, 0
      %v1284 = vsel %vm1251, %v768, 0
      %v1285 = vsel %vm1252, %v769, 0
      %v1286 = vsel %vm1253, %v770, 0
      %v1287 = vsel %vm1254, %v771, 0
      %v1288 = vsel %vm1255, %v772, 0
      %v1289 = vsel %vm1256, %v773, 0
      %v1290 = vsel %vm1257, %v774, 0
      %v1291 = vsel %vm1258, %v775, 0
      %v1292 = vsel %vm1259, %v776, 0
      %v1293 = vsel %vm1260, %v777, 0
      %v1294 = vsel %vm1261, %v778, 0
      %v1295 = vsel %vm1262, %v779, 0
      %v1296 = vld [vmem:[%s1] sm:$0x3]
      %s1297 = scalar_lea.vmem %s1, 2
      %v1298 = vld [vmem:[%s1297] sm:$0x3]
      %v1331 = vunpack.c.l.b16 %v748
      %v1332 = vunpack.c.l.b16 %v749
      %v1333 = vunpack.c.l.b16 %v750
      %v1334 = vunpack.c.l.b16 %v751
      %v1335 = vunpack.c.l.b16 %v752
      %v1336 = vunpack.c.l.b16 %v753
      %v1337 = vunpack.c.l.b16 %v754
      %v1338 = vunpack.c.l.b16 %v755
      %v1339 = vunpack.c.l.b16 %v756
      %v1340 = vunpack.c.l.b16 %v757
      %v1341 = vunpack.c.l.b16 %v758
      %v1342 = vunpack.c.l.b16 %v759
      %v1343 = vunpack.c.l.b16 %v760
      %v1344 = vunpack.c.l.b16 %v761
      %v1345 = vunpack.c.l.b16 %v762
      %v1346 = vunpack.c.l.b16 %v763
      %v1347 = vunpack.c.l.b16 %v764
      %v1348 = vunpack.c.l.b16 %v765
      %v1349 = vunpack.c.l.b16 %v766
      %v1350 = vunpack.c.l.b16 %v767
      %v1351 = vunpack.c.l.b16 %v768
      %v1352 = vunpack.c.l.b16 %v769
      %v1353 = vunpack.c.l.b16 %v770
      %v1354 = vunpack.c.l.b16 %v771
      %v1355 = vunpack.c.l.b16 %v772
      %v1356 = vunpack.c.l.b16 %v773
      %v1357 = vunpack.c.l.b16 %v774
      %v1358 = vunpack.c.l.b16 %v775
      %v1359 = vunpack.c.l.b16 %v776
      %v1360 = vunpack.c.l.b16 %v777
      %v1361 = vunpack.c.l.b16 %v778
      %v1362 = vunpack.c.l.b16 %v779
      %v1363 = vpack.c.b16 %v1332, %v1331
      %v1364 = vpack.c.b16 %v1334, %v1333
      %v1365 = vpack.c.b16 %v1336, %v1335
      %v1366 = vpack.c.b16 %v1338, %v1337
      %v1367 = vpack.c.b16 %v1340, %v1339
      %v1368 = vpack.c.b16 %v1342, %v1341
      %v1369 = vpack.c.b16 %v1344, %v1343
      %v1370 = vpack.c.b16 %v1346, %v1345
      %v1371 = vpack.c.b16 %v1348, %v1347
      %v1372 = vpack.c.b16 %v1350, %v1349
      %v1373 = vpack.c.b16 %v1352, %v1351
      %v1374 = vpack.c.b16 %v1354, %v1353
      %v1375 = vpack.c.b16 %v1356, %v1355
      %v1376 = vpack.c.b16 %v1358, %v1357
      %v1377 = vpack.c.b16 %v1360, %v1359
      %v1378 = vpack.c.b16 %v1362, %v1361
      %vm1379 = vcmask 31744
      %v1381 = vsel %vm1379, %v1363, 0
      %v1384 = vsel %vm1379, %v1364, 0
      %v1387 = vsel %vm1379, %v1365, 0
      %v1390 = vsel %vm1379, %v1366, 0
      %v1393 = vsel %vm1379, %v1367, 0
      %v1396 = vsel %vm1379, %v1368, 0
      %v1399 = vsel %vm1379, %v1369, 0
      %v1402 = vsel %vm1379, %v1370, 0
      %v1405 = vsel %vm1379, %v1371, 0
      %v1408 = vsel %vm1379, %v1372, 0
      %v1411 = vsel %vm1379, %v1373, 0
      %v1414 = vsel %vm1379, %v1374, 0
      %v1417 = vsel %vm1379, %v1375, 0
      %v1420 = vsel %vm1379, %v1376, 0
      %v1423 = vsel %vm1379, %v1377, 0
      %v1426 = vsel %vm1379, %v1378, 0
      %vm1428 = vcmask 1041408
      %v1430 = vsel %vm1428, %v1298, 0
      %1432 = vmatprep.subr.bf16.mxu0 0
      %1433 = vmatpush1.bf16.msra.mxu0 %v1430
      %1434 = vmatprep.subr.bf16.mxu0 0
      %1435 = vmatpush1.bf16.msra.mxu0 0
      %1436 = vmatprep.subr.bf16.mxu0 0
      %1437 = vmatpush1.bf16.msra.mxu0 0
      %1438 = vmatprep.subr.bf16.mxu0 0
      %1439 = vmatpush1.bf16.msra.mxu0 0
      %1440 = vmatprep.subr.bf16.mxu0 0
      %1441 = vmatpush1.bf16.msra.mxu0 0
      %1442 = vmatprep.subr.bf16.mxu0 0
      %1443 = vmatpush1.bf16.msra.mxu0 0
      %1444 = vmatprep.subr.bf16.mxu0 0
      %1445 = vmatpush1.bf16.msra.mxu0 0
      %1446 = vmatprep.subr.bf16.mxu0 0
      %1447 = vmatpush1.bf16.msra.mxu0 0
      %1448 = vmatprep.subr.bf16.mxu0 0
      %1449 = vmatpush1.bf16.msra.mxu0 0
      %1450 = vmatprep.subr.bf16.mxu0 0
      %1451 = vmatpush1.bf16.msra.mxu0 0
      %1452 = vmatprep.subr.bf16.mxu0 0
      %1453 = vmatpush1.bf16.msra.mxu0 0
      %1454 = vmatprep.subr.bf16.mxu0 0
      %1455 = vmatpush1.bf16.msra.mxu0 0
      %1456 = vmatprep.subr.bf16.mxu0 0
      %1457 = vmatpush1.bf16.msra.mxu0 0
      %1458 = vmatprep.subr.bf16.mxu0 0
      %1459 = vmatpush1.bf16.msra.mxu0 0
      %1460 = vmatprep.subr.bf16.mxu0 0
      %1461 = vmatpush1.bf16.msra.mxu0 0
      %1462 = vmatprep.subr.bf16.mxu0 0
      %1463 = vmatpush1.bf16.msra.mxu0 0
      %1464 = vmatprep.mubr.bf16.mxu0 0
      %1465 = vmatmul.mubr.bf16.gmra.mrb[0].mxu0 %v1381
      %v1466 = vpop.f32.mrb[0].mxu0
      %v1467 = vadd.f32 0.0, %v1466
      %v1468 = vpop.f32.mrb[0].mxu0
      %v1469 = vpop.f32.mrb[0].mxu0
      %v1470 = vadd.f32 0.0, %v1469
      %v1471 = vpop.f32.mrb[0].mxu0
      %1472 = vmatprep.mubr.bf16.mxu0 0
      %1473 = vmatmul.mubr.bf16.gmra.mrb[0].mxu0 %v1384
      %v1474 = vpop.f32.mrb[0].mxu0
      %v1475 = vadd.f32 0.0, %v1474
      %v1476 = vpop.f32.mrb[0].mxu0
      %v1477 = vpop.f32.mrb[0].mxu0
      %v1478 = vadd.f32 0.0, %v1477
      %v1479 = vpop.f32.mrb[0].mxu0
      %1480 = vmatprep.mubr.bf16.mxu0 0
      %1481 = vmatmul.mubr.bf16.gmra.mrb[0].mxu0 %v1387
      %v1482 = vpop.f32.mrb[0].mxu0
      %v1483 = vadd.f32 0.0, %v1482
      %v1484 = vpop.f32.mrb[0].mxu0
      %v1485 = vpop.f32.mrb[0].mxu0
      %v1486 = vadd.f32 0.0, %v1485
      %v1487 = vpop.f32.mrb[0].mxu0
      %1488 = vmatprep.mubr.bf16.mxu0 0
      %1489 = vmatmul.mubr.bf16.gmra.mrb[0].mxu0 %v1390
      %v1490 = vpop.f32.mrb[0].mxu0
      %v1491 = vadd.f32 0.0, %v1490
      %v1492 = vpop.f32.mrb[0].mxu0
      %v1493 = vpop.f32.mrb[0].mxu0
      %v1494 = vadd.f32 0.0, %v1493
      %v1495 = vpop.f32.mrb[0].mxu0
      %1496 = vmatprep.mubr.bf16.mxu0 0
      %1497 = vmatmul.mubr.bf16.gmra.mrb[0].mxu0 %v1393
      %v1498 = vpop.f32.mrb[0].mxu0
      %v1499 = vadd.f32 0.0, %v1498
      %v1500 = vpop.f32.mrb[0].mxu0
      %v1501 = vpop.f32.mrb[0].mxu0
      %v1502 = vadd.f32 0.0, %v1501
      %v1503 = vpop.f32.mrb[0].mxu0
      %1504 = vmatprep.mubr.bf16.mxu0 0
      %1505 = vmatmul.mubr.bf16.gmra.mrb[0].mxu0 %v1396
      %v1506 = vpop.f32.mrb[0].mxu0
      %v1507 = vadd.f32 0.0, %v1506
      %v1508 = vpop.f32.mrb[0].mxu0
      %v1509 = vpop.f32.mrb[0].mxu0
      %v1510 = vadd.f32 0.0, %v1509
      %v1511 = vpop.f32.mrb[0].mxu0
      %1512 = vmatprep.mubr.bf16.mxu0 0
      %1513 = vmatmul.mubr.bf16.gmra.mrb[0].mxu0 %v1399
      %v1514 = vpop.f32.mrb[0].mxu0
      %v1515 = vadd.f32 0.0, %v1514
      %v1516 = vpop.f32.mrb[0].mxu0
      %v1517 = vpop.f32.mrb[0].mxu0
      %v1518 = vadd.f32 0.0, %v1517
      %v1519 = vpop.f32.mrb[0].mxu0
      %1520 = vmatprep.mubr.bf16.mxu0 0
      %1521 = vmatmul.mubr.bf16.gmra.mrb[0].mxu0 %v1402
      %v1522 = vpop.f32.mrb[0].mxu0
      %v1523 = vadd.f32 0.0, %v1522
      %v1524 = vpop.f32.mrb[0].mxu0
      %v1525 = vpop.f32.mrb[0].mxu0
      %v1526 = vadd.f32 0.0, %v1525
      %v1527 = vpop.f32.mrb[0].mxu0
      %1528 = vmatprep.mubr.bf16.mxu0 0
      %1529 = vmatmul.mubr.bf16.gmra.mrb[0].mxu0 %v1405
      %v1530 = vpop.f32.mrb[0].mxu0
      %v1531 = vadd.f32 0.0, %v1530
      %v1532 = vpop.f32.mrb[0].mxu0
      %v1533 = vpop.f32.mrb[0].mxu0
      %v1534 = vadd.f32 0.0, %v1533
      %v1535 = vpop.f32.mrb[0].mxu0
      %1536 = vmatprep.mubr.bf16.mxu0 0
      %1537 = vmatmul.mubr.bf16.gmra.mrb[0].mxu0 %v1408
      %v1538 = vpop.f32.mrb[0].mxu0
      %v1539 = vadd.f32 0.0, %v1538
      %v1540 = vpop.f32.mrb[0].mxu0
      %v1541 = vpop.f32.mrb[0].mxu0
      %v1542 = vadd.f32 0.0, %v1541
      %v1543 = vpop.f32.mrb[0].mxu0
      %1544 = vmatprep.mubr.bf16.mxu0 0
      %1545 = vmatmul.mubr.bf16.gmra.mrb[0].mxu0 %v1411
      %v1546 = vpop.f32.mrb[0].mxu0
      %v1547 = vadd.f32 0.0, %v1546
      %v1548 = vpop.f32.mrb[0].mxu0
      %v1549 = vpop.f32.mrb[0].mxu0
      %v1550 = vadd.f32 0.0, %v1549
      %v1551 = vpop.f32.mrb[0].mxu0
      %1552 = vmatprep.mubr.bf16.mxu0 0
      %1553 = vmatmul.mubr.bf16.gmra.mrb[0].mxu0 %v1414
      %v1554 = vpop.f32.mrb[0].mxu0
      %v1555 = vadd.f32 0.0, %v1554
      %v1556 = vpop.f32.mrb[0].mxu0
      %v1557 = vpop.f32.mrb[0].mxu0
      %v1558 = vadd.f32 0.0, %v1557
      %v1559 = vpop.f32.mrb[0].mxu0
      %1560 = vmatprep.mubr.bf16.mxu0 0
      %1561 = vmatmul.mubr.bf16.gmra.mrb[0].mxu0 %v1417
      %v1562 = vpop.f32.mrb[0].mxu0
      %v1563 = vadd.f32 0.0, %v1562
      %v1564 = vpop.f32.mrb[0].mxu0
      %v1565 = vpop.f32.mrb[0].mxu0
      %v1566 = vadd.f32 0.0, %v1565
      %v1567 = vpop.f32.mrb[0].mxu0
      %1568 = vmatprep.mubr.bf16.mxu0 0
      %1569 = vmatmul.mubr.bf16.gmra.mrb[0].mxu0 %v1420
      %v1570 = vpop.f32.mrb[0].mxu0
      %v1571 = vadd.f32 0.0, %v1570
      %v1572 = vpop.f32.mrb[0].mxu0
      %v1573 = vpop.f32.mrb[0].mxu0
      %v1574 = vadd.f32 0.0, %v1573
      %v1575 = vpop.f32.mrb[0].mxu0
      %1576 = vmatprep.mubr.bf16.mxu0 0
      %1577 = vmatmul.mubr.bf16.gmra.mrb[0].mxu0 %v1423
      %v1578 = vpop.f32.mrb[0].mxu0
      %v1579 = vadd.f32 0.0, %v1578
      %v1580 = vpop.f32.mrb[0].mxu0
      %v1581 = vpop.f32.mrb[0].mxu0
      %v1582 = vadd.f32 0.0, %v1581
      %v1583 = vpop.f32.mrb[0].mxu0
      %1584 = vmatprep.mubr.bf16.mxu0 0
      %1585 = vmatmul.mubr.bf16.gmra.mrb[0].mxu0 %v1426
      %v1586 = vpop.f32.mrb[0].mxu0
      %v1587 = vadd.f32 0.0, %v1586
      %v1588 = vpop.f32.mrb[0].mxu0
      %v1589 = vpop.f32.mrb[0].mxu0
      %v1590 = vadd.f32 0.0, %v1589
      %v1591 = vpop.f32.mrb[0].mxu0
      %1592 = vdwg.mxu0
      %v1626 = vunpack.c.l.b16 %v1263
      %v1627 = vunpack.c.l.b16 %v1264
      %v1628 = vunpack.c.l.b16 %v1265
      %v1629 = vunpack.c.l.b16 %v1266
      %v1630 = vunpack.c.l.b16 %v1267
      %v1631 = vunpack.c.l.b16 %v1268
      %v1632 = vunpack.c.l.b16 %v1269
      %v1633 = vunpack.c.l.b16 %v1270
      %v1634 = vunpack.c.l.b16 %v1271
      %v1635 = vunpack.c.l.b16 %v1272
      %v1636 = vunpack.c.l.b16 %v1273
      %v1637 = vunpack.c.l.b16 %v1274
      %v1638 = vunpack.c.l.b16 %v1275
      %v1639 = vunpack.c.l.b16 %v1276
      %v1640 = vunpack.c.l.b16 %v1277
      %v1641 = vunpack.c.l.b16 %v1278
      %v1642 = vunpack.c.l.b16 %v1279
      %v1643 = vunpack.c.l.b16 %v1280
      %v1644 = vunpack.c.l.b16 %v1281
      %v1645 = vunpack.c.l.b16 %v1282
      %v1646 = vunpack.c.l.b16 %v1283
      %v1647 = vunpack.c.l.b16 %v1284
      %v1648 = vunpack.c.l.b16 %v1285
      %v1649 = vunpack.c.l.b16 %v1286
      %v1650 = vunpack.c.l.b16 %v1287
      %v1651 = vunpack.c.l.b16 %v1288
      %v1652 = vunpack.c.l.b16 %v1289
      %v1653 = vunpack.c.l.b16 %v1290
      %v1654 = vunpack.c.l.b16 %v1291
      %v1655 = vunpack.c.l.b16 %v1292
      %v1656 = vunpack.c.l.b16 %v1293
      %v1657 = vunpack.c.l.b16 %v1294
      %v1658 = vunpack.c.l.b16 %v1295
      %v1659 = vpack.c.b16 %v1627, %v1626
      %v1660 = vpack.c.b16 %v1629, %v1628
      %v1661 = vpack.c.b16 %v1631, %v1630
      %v1662 = vpack.c.b16 %v1633, %v1632
      %v1663 = vpack.c.b16 %v1635, %v1634
      %v1664 = vpack.c.b16 %v1637, %v1636
      %v1665 = vpack.c.b16 %v1639, %v1638
      %v1666 = vpack.c.b16 %v1641, %v1640
      %v1667 = vpack.c.b16 %v1643, %v1642
      %v1668 = vpack.c.b16 %v1645, %v1644
      %v1669 = vpack.c.b16 %v1647, %v1646
      %v1670 = vpack.c.b16 %v1649, %v1648
      %v1671 = vpack.c.b16 %v1651, %v1650
      %v1672 = vpack.c.b16 %v1653, %v1652
      %v1673 = vpack.c.b16 %v1655, %v1654
      %v1674 = vpack.c.b16 %v1657, %v1656
      %v1675 = vpack.c.b16 %v1658, %v1658
      %vm1676 = vsmask.f32 4352
      %v1678 = vshrl.u32 %v1659, 16
      %v1680 = vrot.slane %v1678, 3
      %v1681 = vshll.u32 %v1659, 16
      %v1683 = vrot.slane %v1681, 4
      %v1684 = vor.u32 %v1680, %v1683
      %v1686 = vshrl.u32 %v1660, 16
      %v1688 = vrot.slane %v1686, 3
      %v1689 = vshll.u32 %v1660, 16
      %v1691 = vrot.slane %v1689, 4
      %v1692 = vor.u32 %v1688, %v1691
      %v1693 = vsel %vm1676, %v1684, %v1692
      %v1695 = vshrl.u32 %v1661, 16
      %v1697 = vrot.slane %v1695, 3
      %v1698 = vshll.u32 %v1661, 16
      %v1700 = vrot.slane %v1698, 4
      %v1701 = vor.u32 %v1697, %v1700
      %v1702 = vsel %vm1676, %v1692, %v1701
      %v1704 = vshrl.u32 %v1662, 16
      %v1706 = vrot.slane %v1704, 3
      %v1707 = vshll.u32 %v1662, 16
      %v1709 = vrot.slane %v1707, 4
      %v1710 = vor.u32 %v1706, %v1709
      %v1711 = vsel %vm1676, %v1701, %v1710
      %v1713 = vshrl.u32 %v1663, 16
      %v1715 = vrot.slane %v1713, 3
      %v1716 = vshll.u32 %v1663, 16
      %v1718 = vrot.slane %v1716, 4
      %v1719 = vor.u32 %v1715, %v1718
      %v1720 = vsel %vm1676, %v1710, %v1719
      %v1722 = vshrl.u32 %v1664, 16
      %v1724 = vrot.slane %v1722, 3
      %v1725 = vshll.u32 %v1664, 16
      %v1727 = vrot.slane %v1725, 4
      %v1728 = vor.u32 %v1724, %v1727
      %v1729 = vsel %vm1676, %v1719, %v1728
      %v1731 = vshrl.u32 %v1665, 16
      %v1733 = vrot.slane %v1731, 3
      %v1734 = vshll.u32 %v1665, 16
      %v1736 = vrot.slane %v1734, 4
      %v1737 = vor.u32 %v1733, %v1736
      %v1738 = vsel %vm1676, %v1728, %v1737
      %v1740 = vshrl.u32 %v1666, 16
      %v1742 = vrot.slane %v1740, 3
      %v1743 = vshll.u32 %v1666, 16
      %v1745 = vrot.slane %v1743, 4
      %v1746 = vor.u32 %v1742, %v1745
      %v1747 = vsel %vm1676, %v1737, %v1746
      %v1749 = vshrl.u32 %v1667, 16
      %v1751 = vrot.slane %v1749, 3
      %v1752 = vshll.u32 %v1667, 16
      %v1754 = vrot.slane %v1752, 4
      %v1755 = vor.u32 %v1751, %v1754
      %v1756 = vsel %vm1676, %v1746, %v1755
      %v1758 = vshrl.u32 %v1668, 16
      %v1760 = vrot.slane %v1758, 3
      %v1761 = vshll.u32 %v1668, 16
      %v1763 = vrot.slane %v1761, 4
      %v1764 = vor.u32 %v1760, %v1763
      %v1765 = vsel %vm1676, %v1755, %v1764
      %v1767 = vshrl.u32 %v1669, 16
      %v1769 = vrot.slane %v1767, 3
      %v1770 = vshll.u32 %v1669, 16
      %v1772 = vrot.slane %v1770, 4
      %v1773 = vor.u32 %v1769, %v1772
      %v1774 = vsel %vm1676, %v1764, %v1773
      %v1776 = vshrl.u32 %v1670, 16
      %v1778 = vrot.slane %v1776, 3
      %v1779 = vshll.u32 %v1670, 16
      %v1781 = vrot.slane %v1779, 4
      %v1782 = vor.u32 %v1778, %v1781
      %v1783 = vsel %vm1676, %v1773, %v1782
      %v1785 = vshrl.u32 %v1671, 16
      %v1787 = vrot.slane %v1785, 3
      %v1788 = vshll.u32 %v1671, 16
      %v1790 = vrot.slane %v1788, 4
      %v1791 = vor.u32 %v1787, %v1790
      %v1792 = vsel %vm1676, %v1782, %v1791
      %v1794 = vshrl.u32 %v1672, 16
      %v1796 = vrot.slane %v1794, 3
      %v1797 = vshll.u32 %v1672, 16
      %v1799 = vrot.slane %v1797, 4
      %v1800 = vor.u32 %v1796, %v1799
      %v1801 = vsel %vm1676, %v1791, %v1800
      %v1803 = vshrl.u32 %v1673, 16
      %v1805 = vrot.slane %v1803, 3
      %v1806 = vshll.u32 %v1673, 16
      %v1808 = vrot.slane %v1806, 4
      %v1809 = vor.u32 %v1805, %v1808
      %v1810 = vsel %vm1676, %v1800, %v1809
      %v1812 = vshrl.u32 %v1674, 16
      %v1814 = vrot.slane %v1812, 3
      %v1815 = vshll.u32 %v1674, 16
      %v1817 = vrot.slane %v1815, 4
      %v1818 = vor.u32 %v1814, %v1817
      %v1819 = vsel %vm1676, %v1809, %v1818
      %v1821 = vshrl.u32 %v1675, 16
      %v1823 = vrot.slane %v1821, 3
      %v1824 = vshll.u32 %v1675, 16
      %v1826 = vrot.slane %v1824, 4
      %v1827 = vor.u32 %v1823, %v1826
      %v1828 = vsel %vm1676, %v1818, %v1827
      %v1830 = vsel %vm1379, %v1693, 0
      %v1833 = vsel %vm1379, %v1702, 0
      %v1836 = vsel %vm1379, %v1711, 0
      %v1839 = vsel %vm1379, %v1720, 0
      %v1842 = vsel %vm1379, %v1729, 0
      %v1845 = vsel %vm1379, %v1738, 0
      %v1848 = vsel %vm1379, %v1747, 0
      %v1851 = vsel %vm1379, %v1756, 0
      %v1854 = vsel %vm1379, %v1765, 0
      %v1857 = vsel %vm1379, %v1774, 0
      %v1860 = vsel %vm1379, %v1783, 0
      %v1863 = vsel %vm1379, %v1792, 0
      %v1866 = vsel %vm1379, %v1801, 0
      %v1869 = vsel %vm1379, %v1810, 0
      %v1872 = vsel %vm1379, %v1819, 0
      %v1875 = vsel %vm1379, %v1828, 0
      %v1878 = vsel %vm1428, %v1296, 0
      %1880 = vmatprep.subr.bf16.mxu0 0
      %1881 = vmatpush1.bf16.msra.mxu0 %v1878
      %1882 = vmatprep.subr.bf16.mxu0 0
      %1883 = vmatpush1.bf16.msra.mxu0 0
      %1884 = vmatprep.subr.bf16.mxu0 0
      %1885 = vmatpush1.bf16.msra.mxu0 0
      %1886 = vmatprep.subr.bf16.mxu0 0
      %1887 = vmatpush1.bf16.msra.mxu0 0
      %1888 = vmatprep.subr.bf16.mxu0 0
      %1889 = vmatpush1.bf16.msra.mxu0 0
      %1890 = vmatprep.subr.bf16.mxu0 0
      %1891 = vmatpush1.bf16.msra.mxu0 0
      %1892 = vmatprep.subr.bf16.mxu0 0
      %1893 = vmatpush1.bf16.msra.mxu0 0
      %1894 = vmatprep.subr.bf16.mxu0 0
      %1895 = vmatpush1.bf16.msra.mxu0 0
      %1896 = vmatprep.subr.bf16.mxu0 0
      %1897 = vmatpush1.bf16.msra.mxu0 0
      %1898 = vmatprep.subr.bf16.mxu0 0
      %1899 = vmatpush1.bf16.msra.mxu0 0
      %1900 = vmatprep.subr.bf16.mxu0 0
      %1901 = vmatpush1.bf16.msra.mxu0 0
      %1902 = vmatprep.subr.bf16.mxu0 0
      %1903 = vmatpush1.bf16.msra.mxu0 0
      %1904 = vmatprep.subr.bf16.mxu0 0
      %1905 = vmatpush1.bf16.msra.mxu0 0
      %1906 = vmatprep.subr.bf16.mxu0 0
      %1907 = vmatpush1.bf16.msra.mxu0 0
      %1908 = vmatprep.subr.bf16.mxu0 0
      %1909 = vmatpush1.bf16.msra.mxu0 0
      %1910 = vmatprep.subr.bf16.mxu0 0
      %1911 = vmatpush1.bf16.msra.mxu0 0
      %1912 = vmatprep.mubr.bf16.mxu0 0
      %1913 = vmatmul.mubr.bf16.gmra.mrb[0].mxu0 %v1830
      %v1914 = vpop.f32.mrb[0].mxu0
      %v1915 = vadd.f32 %v1467, %v1914
      %v1916 = vpop.f32.mrb[0].mxu0
      %v1917 = vpop.f32.mrb[0].mxu0
      %v1918 = vadd.f32 %v1470, %v1917
      %v1919 = vpop.f32.mrb[0].mxu0
      %1920 = vmatprep.mubr.bf16.mxu0 0
      %1921 = vmatmul.mubr.bf16.gmra.mrb[0].mxu0 %v1833
      %v1922 = vpop.f32.mrb[0].mxu0
      %v1923 = vadd.f32 %v1475, %v1922
      %v1924 = vpop.f32.mrb[0].mxu0
      %v1925 = vpop.f32.mrb[0].mxu0
      %v1926 = vadd.f32 %v1478, %v1925
      %v1927 = vpop.f32.mrb[0].mxu0
      %1928 = vmatprep.mubr.bf16.mxu0 0
      %1929 = vmatmul.mubr.bf16.gmra.mrb[0].mxu0 %v1836
      %v1930 = vpop.f32.mrb[0].mxu0
      %v1931 = vadd.f32 %v1483, %v1930
      %v1932 = vpop.f32.mrb[0].mxu0
      %v1933 = vpop.f32.mrb[0].mxu0
      %v1934 = vadd.f32 %v1486, %v1933
      %v1935 = vpop.f32.mrb[0].mxu0
      %1936 = vmatprep.mubr.bf16.mxu0 0
      %1937 = vmatmul.mubr.bf16.gmra.mrb[0].mxu0 %v1839
      %v1938 = vpop.f32.mrb[0].mxu0
      %v1939 = vadd.f32 %v1491, %v1938
      %v1940 = vpop.f32.mrb[0].mxu0
      %v1941 = vpop.f32.mrb[0].mxu0
      %v1942 = vadd.f32 %v1494, %v1941
      %v1943 = vpop.f32.mrb[0].mxu0
      %1944 = vmatprep.mubr.bf16.mxu0 0
      %1945 = vmatmul.mubr.bf16.gmra.mrb[0].mxu0 %v1842
      %v1946 = vpop.f32.mrb[0].mxu0
      %v1947 = vadd.f32 %v1499, %v1946
      %v1948 = vpop.f32.mrb[0].mxu0
      %v1949 = vpop.f32.mrb[0].mxu0
      %v1950 = vadd.f32 %v1502, %v1949
      %v1951 = vpop.f32.mrb[0].mxu0
      %1952 = vmatprep.mubr.bf16.mxu0 0
      %1953 = vmatmul.mubr.bf16.gmra.mrb[0].mxu0 %v1845
      %v1954 = vpop.f32.mrb[0].mxu0
      %v1955 = vadd.f32 %v1507, %v1954
      %v1956 = vpop.f32.mrb[0].mxu0
      %v1957 = vpop.f32.mrb[0].mxu0
      %v1958 = vadd.f32 %v1510, %v1957
      %v1959 = vpop.f32.mrb[0].mxu0
      %1960 = vmatprep.mubr.bf16.mxu0 0
      %1961 = vmatmul.mubr.bf16.gmra.mrb[0].mxu0 %v1848
      %v1962 = vpop.f32.mrb[0].mxu0
      %v1963 = vadd.f32 %v1515, %v1962
      %v1964 = vpop.f32.mrb[0].mxu0
      %v1965 = vpop.f32.mrb[0].mxu0
      %v1966 = vadd.f32 %v1518, %v1965
      %v1967 = vpop.f32.mrb[0].mxu0
      %1968 = vmatprep.mubr.bf16.mxu0 0
      %1969 = vmatmul.mubr.bf16.gmra.mrb[0].mxu0 %v1851
      %v1970 = vpop.f32.mrb[0].mxu0
      %v1971 = vadd.f32 %v1523, %v1970
      %v1972 = vpop.f32.mrb[0].mxu0
      %v1973 = vpop.f32.mrb[0].mxu0
      %v1974 = vadd.f32 %v1526, %v1973
      %v1975 = vpop.f32.mrb[0].mxu0
      %1976 = vmatprep.mubr.bf16.mxu0 0
      %1977 = vmatmul.mubr.bf16.gmra.mrb[0].mxu0 %v1854
      %v1978 = vpop.f32.mrb[0].mxu0
      %v1979 = vadd.f32 %v1531, %v1978
      %v1980 = vpop.f32.mrb[0].mxu0
      %v1981 = vpop.f32.mrb[0].mxu0
      %v1982 = vadd.f32 %v1534, %v1981
      %v1983 = vpop.f32.mrb[0].mxu0
      %1984 = vmatprep.mubr.bf16.mxu0 0
      %1985 = vmatmul.mubr.bf16.gmra.mrb[0].mxu0 %v1857
      %v1986 = vpop.f32.mrb[0].mxu0
      %v1987 = vadd.f32 %v1539, %v1986
      %v1988 = vpop.f32.mrb[0].mxu0
      %v1989 = vpop.f32.mrb[0].mxu0
      %v1990 = vadd.f32 %v1542, %v1989
      %v1991 = vpop.f32.mrb[0].mxu0
      %1992 = vmatprep.mubr.bf16.mxu0 0
      %1993 = vmatmul.mubr.bf16.gmra.mrb[0].mxu0 %v1860
      %v1994 = vpop.f32.mrb[0].mxu0
      %v1995 = vadd.f32 %v1547, %v1994
      %v1996 = vpop.f32.mrb[0].mxu0
      %v1997 = vpop.f32.mrb[0].mxu0
      %v1998 = vadd.f32 %v1550, %v1997
      %v1999 = vpop.f32.mrb[0].mxu0
      %2000 = vmatprep.mubr.bf16.mxu0 0
      %2001 = vmatmul.mubr.bf16.gmra.mrb[0].mxu0 %v1863
      %v2002 = vpop.f32.mrb[0].mxu0
      %v2003 = vadd.f32 %v1555, %v2002
      %v2004 = vpop.f32.mrb[0].mxu0
      %v2005 = vpop.f32.mrb[0].mxu0
      %v2006 = vadd.f32 %v1558, %v2005
      %v2007 = vpop.f32.mrb[0].mxu0
      %2008 = vmatprep.mubr.bf16.mxu0 0
      %2009 = vmatmul.mubr.bf16.gmra.mrb[0].mxu0 %v1866
      %v2010 = vpop.f32.mrb[0].mxu0
      %v2011 = vadd.f32 %v1563, %v2010
      %v2012 = vpop.f32.mrb[0].mxu0
      %v2013 = vpop.f32.mrb[0].mxu0
      %v2014 = vadd.f32 %v1566, %v2013
      %v2015 = vpop.f32.mrb[0].mxu0
      %2016 = vmatprep.mubr.bf16.mxu0 0
      %2017 = vmatmul.mubr.bf16.gmra.mrb[0].mxu0 %v1869
      %v2018 = vpop.f32.mrb[0].mxu0
      %v2019 = vadd.f32 %v1571, %v2018
      %v2020 = vpop.f32.mrb[0].mxu0
      %v2021 = vpop.f32.mrb[0].mxu0
      %v2022 = vadd.f32 %v1574, %v2021
      %v2023 = vpop.f32.mrb[0].mxu0
      %2024 = vmatprep.mubr.bf16.mxu0 0
      %2025 = vmatmul.mubr.bf16.gmra.mrb[0].mxu0 %v1872
      %v2026 = vpop.f32.mrb[0].mxu0
      %v2027 = vadd.f32 %v1579, %v2026
      %v2028 = vpop.f32.mrb[0].mxu0
      %v2029 = vpop.f32.mrb[0].mxu0
      %v2030 = vadd.f32 %v1582, %v2029
      %v2031 = vpop.f32.mrb[0].mxu0
      %2032 = vmatprep.mubr.bf16.mxu0 0
      %2033 = vmatmul.mubr.bf16.gmra.mrb[0].mxu0 %v1875
      %v2034 = vpop.f32.mrb[0].mxu0
      %v2035 = vadd.f32 %v1587, %v2034
      %v2036 = vpop.f32.mrb[0].mxu0
      %v2037 = vpop.f32.mrb[0].mxu0
      %v2038 = vadd.f32 %v1590, %v2037
      %v2039 = vpop.f32.mrb[0].mxu0
      %2040 = vdwg.mxu0
      %v2041 = vld [vmem:[#allocation2 + $0x8] sm:$0xf]
      %v2042 = vld [vmem:[#allocation2 + $0xc] sm:$0xf]
      %v2043 = vld [vmem:[#allocation2 + $0x10] sm:$0xf]
      %v2044 = vld [vmem:[#allocation2 + $0x14] sm:$0xf]
      %v2045 = vld [vmem:[#allocation2 + $0x18] sm:$0xf]
      %v2046 = vld [vmem:[#allocation2 + $0x1c] sm:$0xf]
      %v2047 = vld [vmem:[#allocation2 + $0x20] sm:$0xf]
      %v2048 = vld [vmem:[#allocation2 + $0x24] sm:$0xf]
      %v2049 = vld [vmem:[#allocation2 + $0x28] sm:$0xf]
      %v2050 = vld [vmem:[#allocation2 + $0x2c] sm:$0xf]
      %v2051 = vld [vmem:[#allocation2 + $0x30] sm:$0xf]
      %v2052 = vld [vmem:[#allocation2 + $0x34] sm:$0xf]
      %v2053 = vld [vmem:[#allocation2 + $0x38] sm:$0xf]
      %v2054 = vld [vmem:[#allocation2 + $0x3c] sm:$0xf]
      %v2055 = vld [vmem:[#allocation2 + $0x40] sm:$0xf]
      %v2056 = vld [vmem:[#allocation2 + $0x44] sm:$0xf]
      %v2057 = vld [vmem:[#allocation2 + $0x48] sm:$0xf]
      %v2058 = vld [vmem:[#allocation2 + $0x4c] sm:$0xf]
      %v2059 = vld [vmem:[#allocation2 + $0x50] sm:$0xf]
      %v2060 = vld [vmem:[#allocation2 + $0x54] sm:$0xf]
      %v2061 = vld [vmem:[#allocation2 + $0x58] sm:$0xf]
      %v2062 = vld [vmem:[#allocation2 + $0x5c] sm:$0xf]
      %v2063 = vld [vmem:[#allocation2 + $0x60] sm:$0xf]
      %v2064 = vld [vmem:[#allocation2 + $0x64] sm:$0xf]
      %v2065 = vld [vmem:[#allocation2 + $0x68] sm:$0xf]
      %v2066 = vld [vmem:[#allocation2 + $0x6c] sm:$0xf]
      %v2067 = vld [vmem:[#allocation2 + $0x70] sm:$0xf]
      %v2068 = vld [vmem:[#allocation2 + $0x74] sm:$0xf]
      %v2069 = vld [vmem:[#allocation2 + $0x78] sm:$0xf]
      %v2070 = vld [vmem:[#allocation2 + $0x7c] sm:$0xf]
      %v2071 = vld [vmem:[#allocation2 + $0x80] sm:$0xf]
      %v2072 = vld [vmem:[#allocation2 + $0x84] sm:$0xf]
      %v2073 = vld [vmem:[#allocation2 + $0x88] sm:$0x1]
      %v2074 = vsel %vm715, 1, 0
      %v2075 = vsel %vm716, 1, 0
      %v2076 = vsel %vm717, 1, 0
      %v2077 = vsel %vm718, 1, 0
      %v2078 = vsel %vm719, 1, 0
      %v2079 = vsel %vm720, 1, 0
      %v2080 = vsel %vm721, 1, 0
      %v2081 = vsel %vm722, 1, 0
      %v2082 = vsel %vm723, 1, 0
      %v2083 = vsel %vm724, 1, 0
      %v2084 = vsel %vm725, 1, 0
      %v2085 = vsel %vm726, 1, 0
      %v2086 = vsel %vm727, 1, 0
      %v2087 = vsel %vm728, 1, 0
      %v2088 = vsel %vm729, 1, 0
      %v2089 = vsel %vm730, 1, 0
      %v2090 = vsel %vm731, 1, 0
      %v2091 = vsel %vm732, 1, 0
      %v2092 = vsel %vm733, 1, 0
      %v2093 = vsel %vm734, 1, 0
      %v2094 = vsel %vm735, 1, 0
      %v2095 = vsel %vm736, 1, 0
      %v2096 = vsel %vm737, 1, 0
      %v2097 = vsel %vm738, 1, 0
      %v2098 = vsel %vm739, 1, 0
      %v2099 = vsel %vm740, 1, 0
      %v2100 = vsel %vm741, 1, 0
      %v2101 = vsel %vm742, 1, 0
      %v2102 = vsel %vm743, 1, 0
      %v2103 = vsel %vm744, 1, 0
      %v2104 = vsel %vm745, 1, 0
      %v2105 = vsel %vm746, 1, 0
      %vm2106 = vcmp.eq.s32.totalorder %v2074, 1
      %vm2107 = vcmp.eq.s32.totalorder %v2075, 1
      %vm2108 = vcmp.eq.s32.totalorder %v2076, 1
      %vm2109 = vcmp.eq.s32.totalorder %v2077, 1
      %vm2110 = vcmp.eq.s32.totalorder %v2078, 1
      %vm2111 = vcmp.eq.s32.totalorder %v2079, 1
      %vm2112 = vcmp.eq.s32.totalorder %v2080, 1
      %vm2113 = vcmp.eq.s32.totalorder %v2081, 1
      %vm2114 = vcmp.eq.s32.totalorder %v2082, 1
      %vm2115 = vcmp.eq.s32.totalorder %v2083, 1
      %vm2116 = vcmp.eq.s32.totalorder %v2084, 1
      %vm2117 = vcmp.eq.s32.totalorder %v2085, 1
      %vm2118 = vcmp.eq.s32.totalorder %v2086, 1
      %vm2119 = vcmp.eq.s32.totalorder %v2087, 1
      %vm2120 = vcmp.eq.s32.totalorder %v2088, 1
      %vm2121 = vcmp.eq.s32.totalorder %v2089, 1
      %vm2122 = vcmp.eq.s32.totalorder %v2090, 1
      %vm2123 = vcmp.eq.s32.totalorder %v2091, 1
      %vm2124 = vcmp.eq.s32.totalorder %v2092, 1
      %vm2125 = vcmp.eq.s32.totalorder %v2093, 1
      %vm2126 = vcmp.eq.s32.totalorder %v2094, 1
      %vm2127 = vcmp.eq.s32.totalorder %v2095, 1
      %vm2128 = vcmp.eq.s32.totalorder %v2096, 1
      %vm2129 = vcmp.eq.s32.totalorder %v2097, 1
      %vm2130 = vcmp.eq.s32.totalorder %v2098, 1
      %vm2131 = vcmp.eq.s32.totalorder %v2099, 1
      %vm2132 = vcmp.eq.s32.totalorder %v2100, 1
      %vm2133 = vcmp.eq.s32.totalorder %v2101, 1
      %vm2134 = vcmp.eq.s32.totalorder %v2102, 1
      %vm2135 = vcmp.eq.s32.totalorder %v2103, 1
      %vm2136 = vcmp.eq.s32.totalorder %v2104, 1
      %vm2137 = vcmp.eq.s32.totalorder %v2105, 1
      %vm2138 = vmpackc.low %vm2106, %vm2106
      %vm2139 = vmpackc.low %vm2107, %vm2107
      %vm2140 = vmpackc.low %vm2108, %vm2108
      %vm2141 = vmpackc.low %vm2109, %vm2109
      %vm2142 = vmpackc.low %vm2110, %vm2110
      %vm2143 = vmpackc.low %vm2111, %vm2111
      %vm2144 = vmpackc.low %vm2112, %vm2112
      %vm2145 = vmpackc.low %vm2113, %vm2113
      %vm2146 = vmpackc.low %vm2114, %vm2114
      %vm2147 = vmpackc.low %vm2115, %vm2115
      %vm2148 = vmpackc.low %vm2116, %vm2116
      %vm2149 = vmpackc.low %vm2117, %vm2117
      %vm2150 = vmpackc.low %vm2118, %vm2118
      %vm2151 = vmpackc.low %vm2119, %vm2119
      %vm2152 = vmpackc.low %vm2120, %vm2120
      %vm2153 = vmpackc.low %vm2121, %vm2121
      %vm2154 = vmpackc.low %vm2122, %vm2122
      %vm2155 = vmpackc.low %vm2123, %vm2123
      %vm2156 = vmpackc.low %vm2124, %vm2124
      %vm2157 = vmpackc.low %vm2125, %vm2125
      %vm2158 = vmpackc.low %vm2126, %vm2126
      %vm2159 = vmpackc.low %vm2127, %vm2127
      %vm2160 = vmpackc.low %vm2128, %vm2128
      %vm2161 = vmpackc.low %vm2129, %vm2129
      %vm2162 = vmpackc.low %vm2130, %vm2130
      %vm2163 = vmpackc.low %vm2131, %vm2131
      %vm2164 = vmpackc.low %vm2132, %vm2132
      %vm2165 = vmpackc.low %vm2133, %vm2133
      %vm2166 = vmpackc.low %vm2134, %vm2134
      %vm2167 = vmpackc.low %vm2135, %vm2135
      %vm2168 = vmpackc.low %vm2136, %vm2136
      %vm2169 = vmpackc.low %vm2137, %vm2137
      %v2170 = vsel %vm2138, 65537, 0
      %v2171 = vsel %vm2139, 65537, 0
      %v2172 = vsel %vm2140, 65537, 0
      %v2173 = vsel %vm2141, 65537, 0
      %v2174 = vsel %vm2142, 65537, 0
      %v2175 = vsel %vm2143, 65537, 0
      %v2176 = vsel %vm2144, 65537, 0
      %v2177 = vsel %vm2145, 65537, 0
      %v2178 = vsel %vm2146, 65537, 0
      %v2179 = vsel %vm2147, 65537, 0
      %v2180 = vsel %vm2148, 65537, 0
      %v2181 = vsel %vm2149, 65537, 0
      %v2182 = vsel %vm2150, 65537, 0
      %v2183 = vsel %vm2151, 65537, 0
      %v2184 = vsel %vm2152, 65537, 0
      %v2185 = vsel %vm2153, 65537, 0
      %v2186 = vsel %vm2154, 65537, 0
      %v2187 = vsel %vm2155, 65537, 0
      %v2188 = vsel %vm2156, 65537, 0
      %v2189 = vsel %vm2157, 65537, 0
      %v2190 = vsel %vm2158, 65537, 0
      %v2191 = vsel %vm2159, 65537, 0
      %v2192 = vsel %vm2160, 65537, 0
      %v2193 = vsel %vm2161, 65537, 0
      %v2194 = vsel %vm2162, 65537, 0
      %v2195 = vsel %vm2163, 65537, 0
      %v2196 = vsel %vm2164, 65537, 0
      %v2197 = vsel %vm2165, 65537, 0
      %v2198 = vsel %vm2166, 65537, 0
      %v2199 = vsel %vm2167, 65537, 0
      %v2200 = vsel %vm2168, 65537, 0
      %v2201 = vsel %vm2169, 65537, 0
      %vm2202 = vsmask.f32 4368
      %vm2203 = vmor %vm229, %vm2202
      %v2205 = vshrl.u32 %v2170, 16
      %v2207 = vrot.slane %v2205, 7
      %v2208 = vshll.u32 %v2170, 16
      %v2210 = vor.u32 %v2207, %v2208
      %v2211 = vrot.slane %v2207, 4
      %v2213 = vshrl.u32 %v2171, 16
      %v2215 = vrot.slane %v2213, 7
      %v2216 = vshll.u32 %v2171, 16
      %v2218 = vor.u32 %v2215, %v2216
      %v2219 = vsel %vm2203, %v2211, %v2218
      %v2220 = vrot.slane %v2215, 4
      %v2222 = vshrl.u32 %v2172, 16
      %v2224 = vrot.slane %v2222, 7
      %v2225 = vshll.u32 %v2172, 16
      %v2227 = vor.u32 %v2224, %v2225
      %v2228 = vsel %vm2203, %v2220, %v2227
      %v2229 = vrot.slane %v2224, 4
      %v2231 = vshrl.u32 %v2173, 16
      %v2233 = vrot.slane %v2231, 7
      %v2234 = vshll.u32 %v2173, 16
      %v2236 = vor.u32 %v2233, %v2234
      %v2237 = vsel %vm2203, %v2229, %v2236
      %v2238 = vrot.slane %v2233, 4
      %v2240 = vshrl.u32 %v2174, 16
      %v2242 = vrot.slane %v2240, 7
      %v2243 = vshll.u32 %v2174, 16
      %v2245 = vor.u32 %v2242, %v2243
      %v2246 = vsel %vm2203, %v2238, %v2245
      %v2247 = vrot.slane %v2242, 4
      %v2249 = vshrl.u32 %v2175, 16
      %v2251 = vrot.slane %v2249, 7
      %v2252 = vshll.u32 %v2175, 16
      %v2254 = vor.u32 %v2251, %v2252
      %v2255 = vsel %vm2203, %v2247, %v2254
      %v2256 = vrot.slane %v2251, 4
      %v2258 = vshrl.u32 %v2176, 16
      %v2260 = vrot.slane %v2258, 7
      %v2261 = vshll.u32 %v2176, 16
      %v2263 = vor.u32 %v2260, %v2261
      %v2264 = vsel %vm2203, %v2256, %v2263
      %v2265 = vrot.slane %v2260, 4
      %v2267 = vshrl.u32 %v2177, 16
      %v2269 = vrot.slane %v2267, 7
      %v2270 = vshll.u32 %v2177, 16
      %v2272 = vor.u32 %v2269, %v2270
      %v2273 = vsel %vm2203, %v2265, %v2272
      %v2274 = vrot.slane %v2269, 4
      %v2276 = vshrl.u32 %v2178, 16
      %v2278 = vrot.slane %v2276, 7
      %v2279 = vshll.u32 %v2178, 16
      %v2281 = vor.u32 %v2278, %v2279
      %v2282 = vsel %vm2203, %v2274, %v2281
      %v2283 = vrot.slane %v2278, 4
      %v2285 = vshrl.u32 %v2179, 16
      %v2287 = vrot.slane %v2285, 7
      %v2288 = vshll.u32 %v2179, 16
      %v2290 = vor.u32 %v2287, %v2288
      %v2291 = vsel %vm2203, %v2283, %v2290
      %v2292 = vrot.slane %v2287, 4
      %v2294 = vshrl.u32 %v2180, 16
      %v2296 = vrot.slane %v2294, 7
      %v2297 = vshll.u32 %v2180, 16
      %v2299 = vor.u32 %v2296, %v2297
      %v2300 = vsel %vm2203, %v2292, %v2299
      %v2301 = vrot.slane %v2296, 4
      %v2303 = vshrl.u32 %v2181, 16
      %v2305 = vrot.slane %v2303, 7
      %v2306 = vshll.u32 %v2181, 16
      %v2308 = vor.u32 %v2305, %v2306
      %v2309 = vsel %vm2203, %v2301, %v2308
      %v2310 = vrot.slane %v2305, 4
      %v2312 = vshrl.u32 %v2182, 16
      %v2314 = vrot.slane %v2312, 7
      %v2315 = vshll.u32 %v2182, 16
      %v2317 = vor.u32 %v2314, %v2315
      %v2318 = vsel %vm2203, %v2310, %v2317
      %v2319 = vrot.slane %v2314, 4
      %v2321 = vshrl.u32 %v2183, 16
      %v2323 = vrot.slane %v2321, 7
      %v2324 = vshll.u32 %v2183, 16
      %v2326 = vor.u32 %v2323, %v2324
      %v2327 = vsel %vm2203, %v2319, %v2326
      %v2328 = vrot.slane %v2323, 4
      %v2330 = vshrl.u32 %v2184, 16
      %v2332 = vrot.slane %v2330, 7
      %v2333 = vshll.u32 %v2184, 16
      %v2335 = vor.u32 %v2332, %v2333
      %v2336 = vsel %vm2203, %v2328, %v2335
      %v2337 = vrot.slane %v2332, 4
      %v2339 = vshrl.u32 %v2185, 16
      %v2341 = vrot.slane %v2339, 7
      %v2342 = vshll.u32 %v2185, 16
      %v2344 = vor.u32 %v2341, %v2342
      %v2345 = vsel %vm2203, %v2337, %v2344
      %v2346 = vrot.slane %v2341, 4
      %v2348 = vshrl.u32 %v2186, 16
      %v2350 = vrot.slane %v2348, 7
      %v2351 = vshll.u32 %v2186, 16
      %v2353 = vor.u32 %v2350, %v2351
      %v2354 = vsel %vm2203, %v2346, %v2353
      %v2355 = vrot.slane %v2350, 4
      %v2357 = vshrl.u32 %v2187, 16
      %v2359 = vrot.slane %v2357, 7
      %v2360 = vshll.u32 %v2187, 16
      %v2362 = vor.u32 %v2359, %v2360
      %v2363 = vsel %vm2203, %v2355, %v2362
      %v2364 = vrot.slane %v2359, 4
      %v2366 = vshrl.u32 %v2188, 16
      %v2368 = vrot.slane %v2366, 7
      %v2369 = vshll.u32 %v2188, 16
      %v2371 = vor.u32 %v2368, %v2369
      %v2372 = vsel %vm2203, %v2364, %v2371
      %v2373 = vrot.slane %v2368, 4
      %v2375 = vshrl.u32 %v2189, 16
      %v2377 = vrot.slane %v2375, 7
      %v2378 = vshll.u32 %v2189, 16
      %v2380 = vor.u32 %v2377, %v2378
      %v2381 = vsel %vm2203, %v2373, %v2380
      %v2382 = vrot.slane %v2377, 4
      %v2384 = vshrl.u32 %v2190, 16
      %v2386 = vrot.slane %v2384, 7
      %v2387 = vshll.u32 %v2190, 16
      %v2389 = vor.u32 %v2386, %v2387
      %v2390 = vsel %vm2203, %v2382, %v2389
      %v2391 = vrot.slane %v2386, 4
      %v2393 = vshrl.u32 %v2191, 16
      %v2395 = vrot.slane %v2393, 7
      %v2396 = vshll.u32 %v2191, 16
      %v2398 = vor.u32 %v2395, %v2396
      %v2399 = vsel %vm2203, %v2391, %v2398
      %v2400 = vrot.slane %v2395, 4
      %v2402 = vshrl.u32 %v2192, 16
      %v2404 = vrot.slane %v2402, 7
      %v2405 = vshll.u32 %v2192, 16
      %v2407 = vor.u32 %v2404, %v2405
      %v2408 = vsel %vm2203, %v2400, %v2407
      %v2409 = vrot.slane %v2404, 4
      %v2411 = vshrl.u32 %v2193, 16
      %v2413 = vrot.slane %v2411, 7
      %v2414 = vshll.u32 %v2193, 16
      %v2416 = vor.u32 %v2413, %v2414
      %v2417 = vsel %vm2203, %v2409, %v2416
      %v2418 = vrot.slane %v2413, 4
      %v2420 = vshrl.u32 %v2194, 16
      %v2422 = vrot.slane %v2420, 7
      %v2423 = vshll.u32 %v2194, 16
      %v2425 = vor.u32 %v2422, %v2423
      %v2426 = vsel %vm2203, %v2418, %v2425
      %v2427 = vrot.slane %v2422, 4
      %v2429 = vshrl.u32 %v2195, 16
      %v2431 = vrot.slane %v2429, 7
      %v2432 = vshll.u32 %v2195, 16
      %v2434 = vor.u32 %v2431, %v2432
      %v2435 = vsel %vm2203, %v2427, %v2434
      %v2436 = vrot.slane %v2431, 4
      %v2438 = vshrl.u32 %v2196, 16
      %v2440 = vrot.slane %v2438, 7
      %v2441 = vshll.u32 %v2196, 16
      %v2443 = vor.u32 %v2440, %v2441
      %v2444 = vsel %vm2203, %v2436, %v2443
      %v2445 = vrot.slane %v2440, 4
      %v2447 = vshrl.u32 %v2197, 16
      %v2449 = vrot.slane %v2447, 7
      %v2450 = vshll.u32 %v2197, 16
      %v2452 = vor.u32 %v2449, %v2450
      %v2453 = vsel %vm2203, %v2445, %v2452
      %v2454 = vrot.slane %v2449, 4
      %v2456 = vshrl.u32 %v2198, 16
      %v2458 = vrot.slane %v2456, 7
      %v2459 = vshll.u32 %v2198, 16
      %v2461 = vor.u32 %v2458, %v2459
      %v2462 = vsel %vm2203, %v2454, %v2461
      %v2463 = vrot.slane %v2458, 4
      %v2465 = vshrl.u32 %v2199, 16
      %v2467 = vrot.slane %v2465, 7
      %v2468 = vshll.u32 %v2199, 16
      %v2470 = vor.u32 %v2467, %v2468
      %v2471 = vsel %vm2203, %v2463, %v2470
      %v2472 = vrot.slane %v2467, 4
      %v2474 = vshrl.u32 %v2200, 16
      %v2476 = vrot.slane %v2474, 7
      %v2477 = vshll.u32 %v2200, 16
      %v2479 = vor.u32 %v2476, %v2477
      %v2480 = vsel %vm2203, %v2472, %v2479
      %v2481 = vrot.slane %v2476, 4
      %v2483 = vshrl.u32 %v2201, 16
      %v2485 = vrot.slane %v2483, 7
      %v2486 = vshll.u32 %v2201, 16
      %v2488 = vor.u32 %v2485, %v2486
      %v2489 = vsel %vm2203, %v2481, %v2488
      %v2490 = vrot.slane %v2485, 4
      %vm2491 = vcmp.ne.s16.totalorder %v2210, 0
      %vm2492 = vcmp.ne.s16.totalorder %v2219, 0
      %vm2493 = vcmp.ne.s16.totalorder %v2228, 0
      %vm2494 = vcmp.ne.s16.totalorder %v2237, 0
      %vm2495 = vcmp.ne.s16.totalorder %v2246, 0
      %vm2496 = vcmp.ne.s16.totalorder %v2255, 0
      %vm2497 = vcmp.ne.s16.totalorder %v2264, 0
      %vm2498 = vcmp.ne.s16.totalorder %v2273, 0
      %vm2499 = vcmp.ne.s16.totalorder %v2282, 0
      %vm2500 = vcmp.ne.s16.totalorder %v2291, 0
      %vm2501 = vcmp.ne.s16.totalorder %v2300, 0
      %vm2502 = vcmp.ne.s16.totalorder %v2309, 0
      %vm2503 = vcmp.ne.s16.totalorder %v2318, 0
      %vm2504 = vcmp.ne.s16.totalorder %v2327, 0
      %vm2505 = vcmp.ne.s16.totalorder %v2336, 0
      %vm2506 = vcmp.ne.s16.totalorder %v2345, 0
      %vm2507 = vcmp.ne.s16.totalorder %v2354, 0
      %vm2508 = vcmp.ne.s16.totalorder %v2363, 0
      %vm2509 = vcmp.ne.s16.totalorder %v2372, 0
      %vm2510 = vcmp.ne.s16.totalorder %v2381, 0
      %vm2511 = vcmp.ne.s16.totalorder %v2390, 0
      %vm2512 = vcmp.ne.s16.totalorder %v2399, 0
      %vm2513 = vcmp.ne.s16.totalorder %v2408, 0
      %vm2514 = vcmp.ne.s16.totalorder %v2417, 0
      %vm2515 = vcmp.ne.s16.totalorder %v2426, 0
      %vm2516 = vcmp.ne.s16.totalorder %v2435, 0
      %vm2517 = vcmp.ne.s16.totalorder %v2444, 0
      %vm2518 = vcmp.ne.s16.totalorder %v2453, 0
      %vm2519 = vcmp.ne.s16.totalorder %v2462, 0
      %vm2520 = vcmp.ne.s16.totalorder %v2471, 0
      %vm2521 = vcmp.ne.s16.totalorder %v2480, 0
      %vm2522 = vcmp.ne.s16.totalorder %v2489, 0
      %vm2523 = vcmp.ne.s16.totalorder %v2490, 0
      %v2524 = vsel %vm2491, %v2041, 0
      %v2525 = vsel %vm2492, %v2042, 0
      %v2526 = vsel %vm2493, %v2043, 0
      %v2527 = vsel %vm2494, %v2044, 0
      %v2528 = vsel %vm2495, %v2045, 0
      %v2529 = vsel %vm2496, %v2046, 0
      %v2530 = vsel %vm2497, %v2047, 0
      %v2531 = vsel %vm2498, %v2048, 0
      %v2532 = vsel %vm2499, %v2049, 0
      %v2533 = vsel %vm2500, %v2050, 0
      %v2534 = vsel %vm2501, %v2051, 0
      %v2535 = vsel %vm2502, %v2052, 0
      %v2536 = vsel %vm2503, %v2053, 0
      %v2537 = vsel %vm2504, %v2054, 0
      %v2538 = vsel %vm2505, %v2055, 0
      %v2539 = vsel %vm2506, %v2056, 0
      %v2540 = vsel %vm2507, %v2057, 0
      %v2541 = vsel %vm2508, %v2058, 0
      %v2542 = vsel %vm2509, %v2059, 0
      %v2543 = vsel %vm2510, %v2060, 0
      %v2544 = vsel %vm2511, %v2061, 0
      %v2545 = vsel %vm2512, %v2062, 0
      %v2546 = vsel %vm2513, %v2063, 0
      %v2547 = vsel %vm2514, %v2064, 0
      %v2548 = vsel %vm2515, %v2065, 0
      %v2549 = vsel %vm2516, %v2066, 0
      %v2550 = vsel %vm2517, %v2067, 0
      %v2551 = vsel %vm2518, %v2068, 0
      %v2552 = vsel %vm2519, %v2069, 0
      %v2553 = vsel %vm2520, %v2070, 0
      %v2554 = vsel %vm2521, %v2071, 0
      %v2555 = vsel %vm2522, %v2072, 0
      %v2556 = vsel %vm2523, %v2073, 0
      %s2557 = scalar_lea.vmem %s1, 4
      %v2558 = vld [vmem:[%s2557] sm:$0x3]
      %v2592 = vunpack.c.l.b16 %v2524
      %v2593 = vunpack.c.l.b16 %v2525
      %v2594 = vunpack.c.l.b16 %v2526
      %v2595 = vunpack.c.l.b16 %v2527
      %v2596 = vunpack.c.l.b16 %v2528
      %v2597 = vunpack.c.l.b16 %v2529
      %v2598 = vunpack.c.l.b16 %v2530
      %v2599 = vunpack.c.l.b16 %v2531
      %v2600 = vunpack.c.l.b16 %v2532
      %v2601 = vunpack.c.l.b16 %v2533
      %v2602 = vunpack.c.l.b16 %v2534
      %v2603 = vunpack.c.l.b16 %v2535
      %v2604 = vunpack.c.l.b16 %v2536
      %v2605 = vunpack.c.l.b16 %v2537
      %v2606 = vunpack.c.l.b16 %v2538
      %v2607 = vunpack.c.l.b16 %v2539
      %v2608 = vunpack.c.l.b16 %v2540
      %v2609 = vunpack.c.l.b16 %v2541
      %v2610 = vunpack.c.l.b16 %v2542
      %v2611 = vunpack.c.l.b16 %v2543
      %v2612 = vunpack.c.l.b16 %v2544
      %v2613 = vunpack.c.l.b16 %v2545
      %v2614 = vunpack.c.l.b16 %v2546
      %v2615 = vunpack.c.l.b16 %v2547
      %v2616 = vunpack.c.l.b16 %v2548
      %v2617 = vunpack.c.l.b16 %v2549
      %v2618 = vunpack.c.l.b16 %v2550
      %v2619 = vunpack.c.l.b16 %v2551
      %v2620 = vunpack.c.l.b16 %v2552
      %v2621 = vunpack.c.l.b16 %v2553
      %v2622 = vunpack.c.l.b16 %v2554
      %v2623 = vunpack.c.l.b16 %v2555
      %v2624 = vunpack.c.l.b16 %v2556
      %v2625 = vpack.c.b16 %v2593, %v2592
      %v2626 = vpack.c.b16 %v2595, %v2594
      %v2627 = vpack.c.b16 %v2597, %v2596
      %v2628 = vpack.c.b16 %v2599, %v2598
      %v2629 = vpack.c.b16 %v2601, %v2600
      %v2630 = vpack.c.b16 %v2603, %v2602
      %v2631 = vpack.c.b16 %v2605, %v2604
      %v2632 = vpack.c.b16 %v2607, %v2606
      %v2633 = vpack.c.b16 %v2609, %v2608
      %v2634 = vpack.c.b16 %v2611, %v2610
      %v2635 = vpack.c.b16 %v2613, %v2612
      %v2636 = vpack.c.b16 %v2615, %v2614
      %v2637 = vpack.c.b16 %v2617, %v2616
      %v2638 = vpack.c.b16 %v2619, %v2618
      %v2639 = vpack.c.b16 %v2621, %v2620
      %v2640 = vpack.c.b16 %v2623, %v2622
      %v2641 = vpack.c.b16 %v2624, %v2624
      %vm2642 = vsmask.f32 7424
      %v2644 = vshrl.u32 %v2625, 16
      %v2646 = vshll.u32 %v2625, 16
      %v2648 = vrot.slane %v2646, 1
      %v2649 = vor.u32 %v2644, %v2648
      %v2651 = vshll.u32 %v2626, 16
      %v2653 = vrot.slane %v2651, 1
      %v2654 = vsel %vm2642, %v2649, %v2653
      %v2655 = vshrl.u32 %v2626, 16
      %v2657 = vor.u32 %v2655, %v2653
      %v2659 = vshll.u32 %v2627, 16
      %v2661 = vrot.slane %v2659, 1
      %v2662 = vsel %vm2642, %v2657, %v2661
      %v2663 = vshrl.u32 %v2627, 16
      %v2665 = vor.u32 %v2663, %v2661
      %v2667 = vshll.u32 %v2628, 16
      %v2669 = vrot.slane %v2667, 1
      %v2670 = vsel %vm2642, %v2665, %v2669
      %v2671 = vshrl.u32 %v2628, 16
      %v2673 = vor.u32 %v2671, %v2669
      %v2675 = vshll.u32 %v2629, 16
      %v2677 = vrot.slane %v2675, 1
      %v2678 = vsel %vm2642, %v2673, %v2677
      %v2679 = vshrl.u32 %v2629, 16
      %v2681 = vor.u32 %v2679, %v2677
      %v2683 = vshll.u32 %v2630, 16
      %v2685 = vrot.slane %v2683, 1
      %v2686 = vsel %vm2642, %v2681, %v2685
      %v2687 = vshrl.u32 %v2630, 16
      %v2689 = vor.u32 %v2687, %v2685
      %v2691 = vshll.u32 %v2631, 16
      %v2693 = vrot.slane %v2691, 1
      %v2694 = vsel %vm2642, %v2689, %v2693
      %v2695 = vshrl.u32 %v2631, 16
      %v2697 = vor.u32 %v2695, %v2693
      %v2699 = vshll.u32 %v2632, 16
      %v2701 = vrot.slane %v2699, 1
      %v2702 = vsel %vm2642, %v2697, %v2701
      %v2703 = vshrl.u32 %v2632, 16
      %v2705 = vor.u32 %v2703, %v2701
      %v2707 = vshll.u32 %v2633, 16
      %v2709 = vrot.slane %v2707, 1
      %v2710 = vsel %vm2642, %v2705, %v2709
      %v2711 = vshrl.u32 %v2633, 16
      %v2713 = vor.u32 %v2711, %v2709
      %v2715 = vshll.u32 %v2634, 16
      %v2717 = vrot.slane %v2715, 1
      %v2718 = vsel %vm2642, %v2713, %v2717
      %v2719 = vshrl.u32 %v2634, 16
      %v2721 = vor.u32 %v2719, %v2717
      %v2723 = vshll.u32 %v2635, 16
      %v2725 = vrot.slane %v2723, 1
      %v2726 = vsel %vm2642, %v2721, %v2725
      %v2727 = vshrl.u32 %v2635, 16
      %v2729 = vor.u32 %v2727, %v2725
      %v2731 = vshll.u32 %v2636, 16
      %v2733 = vrot.slane %v2731, 1
      %v2734 = vsel %vm2642, %v2729, %v2733
      %v2735 = vshrl.u32 %v2636, 16
      %v2737 = vor.u32 %v2735, %v2733
      %v2739 = vshll.u32 %v2637, 16
      %v2741 = vrot.slane %v2739, 1
      %v2742 = vsel %vm2642, %v2737, %v2741
      %v2743 = vshrl.u32 %v2637, 16
      %v2745 = vor.u32 %v2743, %v2741
      %v2747 = vshll.u32 %v2638, 16
      %v2749 = vrot.slane %v2747, 1
      %v2750 = vsel %vm2642, %v2745, %v2749
      %v2751 = vshrl.u32 %v2638, 16
      %v2753 = vor.u32 %v2751, %v2749
      %v2755 = vshll.u32 %v2639, 16
      %v2757 = vrot.slane %v2755, 1
      %v2758 = vsel %vm2642, %v2753, %v2757
      %v2759 = vshrl.u32 %v2639, 16
      %v2761 = vor.u32 %v2759, %v2757
      %v2763 = vshll.u32 %v2640, 16
      %v2765 = vrot.slane %v2763, 1
      %v2766 = vsel %vm2642, %v2761, %v2765
      %v2767 = vshrl.u32 %v2640, 16
      %v2769 = vor.u32 %v2767, %v2765
      %v2771 = vshll.u32 %v2641, 16
      %v2773 = vrot.slane %v2771, 1
      %v2774 = vsel %vm2642, %v2769, %v2773
      %v2776 = vsel %vm1379, %v2654, 0
      %v2779 = vsel %vm1379, %v2662, 0
      %v2782 = vsel %vm1379, %v2670, 0
      %v2785 = vsel %vm1379, %v2678, 0
      %v2788 = vsel %vm1379, %v2686, 0
      %v2791 = vsel %vm1379, %v2694, 0
      %v2794 = vsel %vm1379, %v2702, 0
      %v2797 = vsel %vm1379, %v2710, 0
      %v2800 = vsel %vm1379, %v2718, 0
      %v2803 = vsel %vm1379, %v2726, 0
      %v2806 = vsel %vm1379, %v2734, 0
      %v2809 = vsel %vm1379, %v2742, 0
      %v2812 = vsel %vm1379, %v2750, 0
      %v2815 = vsel %vm1379, %v2758, 0
      %v2818 = vsel %vm1379, %v2766, 0
      %v2821 = vsel %vm1379, %v2774, 0
      %v2824 = vsel %vm1428, %v2558, 0
      %2826 = vmatprep.subr.bf16.mxu0 0
      %2827 = vmatpush1.bf16.msra.mxu0 %v2824
      %2828 = vmatprep.subr.bf16.mxu0 0
      %2829 = vmatpush1.bf16.msra.mxu0 0
      %2830 = vmatprep.subr.bf16.mxu0 0
      %2831 = vmatpush1.bf16.msra.mxu0 0
      %2832 = vmatprep.subr.bf16.mxu0 0
      %2833 = vmatpush1.bf16.msra.mxu0 0
      %2834 = vmatprep.subr.bf16.mxu0 0
      %2835 = vmatpush1.bf16.msra.mxu0 0
      %2836 = vmatprep.subr.bf16.mxu0 0
      %2837 = vmatpush1.bf16.msra.mxu0 0
      %2838 = vmatprep.subr.bf16.mxu0 0
      %2839 = vmatpush1.bf16.msra.mxu0 0
      %2840 = vmatprep.subr.bf16.mxu0 0
      %2841 = vmatpush1.bf16.msra.mxu0 0
      %2842 = vmatprep.subr.bf16.mxu0 0
      %2843 = vmatpush1.bf16.msra.mxu0 0
      %2844 = vmatprep.subr.bf16.mxu0 0
      %2845 = vmatpush1.bf16.msra.mxu0 0
      %2846 = vmatprep.subr.bf16.mxu0 0
      %2847 = vmatpush1.bf16.msra.mxu0 0
      %2848 = vmatprep.subr.bf16.mxu0 0
      %2849 = vmatpush1.bf16.msra.mxu0 0
      %2850 = vmatprep.subr.bf16.mxu0 0
      %2851 = vmatpush1.bf16.msra.mxu0 0
      %2852 = vmatprep.subr.bf16.mxu0 0
      %2853 = vmatpush1.bf16.msra.mxu0 0
      %2854 = vmatprep.subr.bf16.mxu0 0
      %2855 = vmatpush1.bf16.msra.mxu0 0
      %2856 = vmatprep.subr.bf16.mxu0 0
      %2857 = vmatpush1.bf16.msra.mxu0 0
      %2858 = vmatprep.mubr.bf16.mxu0 0
      %2859 = vmatmul.mubr.bf16.gmra.mrb[0].mxu0 %v2776
      %v2860 = vpop.f32.mrb[0].mxu0
      %v2861 = vadd.f32 0.0, %v2860
      %v2862 = vpop.f32.mrb[0].mxu0
      %v2863 = vpop.f32.mrb[0].mxu0
      %v2864 = vadd.f32 0.0, %v2863
      %v2865 = vpop.f32.mrb[0].mxu0
      %2866 = vmatprep.mubr.bf16.mxu0 0
      %2867 = vmatmul.mubr.bf16.gmra.mrb[0].mxu0 %v2779
      %v2868 = vpop.f32.mrb[0].mxu0
      %v2869 = vadd.f32 0.0, %v2868
      %v2870 = vpop.f32.mrb[0].mxu0
      %v2871 = vpop.f32.mrb[0].mxu0
      %v2872 = vadd.f32 0.0, %v2871
      %v2873 = vpop.f32.mrb[0].mxu0
      %2874 = vmatprep.mubr.bf16.mxu0 0
      %2875 = vmatmul.mubr.bf16.gmra.mrb[0].mxu0 %v2782
      %v2876 = vpop.f32.mrb[0].mxu0
      %v2877 = vadd.f32 0.0, %v2876
      %v2878 = vpop.f32.mrb[0].mxu0
      %v2879 = vpop.f32.mrb[0].mxu0
      %v2880 = vadd.f32 0.0, %v2879
      %v2881 = vpop.f32.mrb[0].mxu0
      %2882 = vmatprep.mubr.bf16.mxu0 0
      %2883 = vmatmul.mubr.bf16.gmra.mrb[0].mxu0 %v2785
      %v2884 = vpop.f32.mrb[0].mxu0
      %v2885 = vadd.f32 0.0, %v2884
      %v2886 = vpop.f32.mrb[0].mxu0
      %v2887 = vpop.f32.mrb[0].mxu0
      %v2888 = vadd.f32 0.0, %v2887
      %v2889 = vpop.f32.mrb[0].mxu0
      %2890 = vmatprep.mubr.bf16.mxu0 0
      %2891 = vmatmul.mubr.bf16.gmra.mrb[0].mxu0 %v2788
      %v2892 = vpop.f32.mrb[0].mxu0
      %v2893 = vadd.f32 0.0, %v2892
      %v2894 = vpop.f32.mrb[0].mxu0
      %v2895 = vpop.f32.mrb[0].mxu0
      %v2896 = vadd.f32 0.0, %v2895
      %v2897 = vpop.f32.mrb[0].mxu0
      %2898 = vmatprep.mubr.bf16.mxu0 0
      %2899 = vmatmul.mubr.bf16.gmra.mrb[0].mxu0 %v2791
      %v2900 = vpop.f32.mrb[0].mxu0
      %v2901 = vadd.f32 0.0, %v2900
      %v2902 = vpop.f32.mrb[0].mxu0
      %v2903 = vpop.f32.mrb[0].mxu0
      %v2904 = vadd.f32 0.0, %v2903
      %v2905 = vpop.f32.mrb[0].mxu0
      %2906 = vmatprep.mubr.bf16.mxu0 0
      %2907 = vmatmul.mubr.bf16.gmra.mrb[0].mxu0 %v2794
      %v2908 = vpop.f32.mrb[0].mxu0
      %v2909 = vadd.f32 0.0, %v2908
      %v2910 = vpop.f32.mrb[0].mxu0
      %v2911 = vpop.f32.mrb[0].mxu0
      %v2912 = vadd.f32 0.0, %v2911
      %v2913 = vpop.f32.mrb[0].mxu0
      %2914 = vmatprep.mubr.bf16.mxu0 0
      %2915 = vmatmul.mubr.bf16.gmra.mrb[0].mxu0 %v2797
      %v2916 = vpop.f32.mrb[0].mxu0
      %v2917 = vadd.f32 0.0, %v2916
      %v2918 = vpop.f32.mrb[0].mxu0
      %v2919 = vpop.f32.mrb[0].mxu0
      %v2920 = vadd.f32 0.0, %v2919
      %v2921 = vpop.f32.mrb[0].mxu0
      %2922 = vmatprep.mubr.bf16.mxu0 0
      %2923 = vmatmul.mubr.bf16.gmra.mrb[0].mxu0 %v2800
      %v2924 = vpop.f32.mrb[0].mxu0
      %v2925 = vadd.f32 0.0, %v2924
      %v2926 = vpop.f32.mrb[0].mxu0
      %v2927 = vpop.f32.mrb[0].mxu0
      %v2928 = vadd.f32 0.0, %v2927
      %v2929 = vpop.f32.mrb[0].mxu0
      %2930 = vmatprep.mubr.bf16.mxu0 0
      %2931 = vmatmul.mubr.bf16.gmra.mrb[0].mxu0 %v2803
      %v2932 = vpop.f32.mrb[0].mxu0
      %v2933 = vadd.f32 0.0, %v2932
      %v2934 = vpop.f32.mrb[0].mxu0
      %v2935 = vpop.f32.mrb[0].mxu0
      %v2936 = vadd.f32 0.0, %v2935
      %v2937 = vpop.f32.mrb[0].mxu0
      %2938 = vmatprep.mubr.bf16.mxu0 0
      %2939 = vmatmul.mubr.bf16.gmra.mrb[0].mxu0 %v2806
      %v2940 = vpop.f32.mrb[0].mxu0
      %v2941 = vadd.f32 0.0, %v2940
      %v2942 = vpop.f32.mrb[0].mxu0
      %v2943 = vpop.f32.mrb[0].mxu0
      %v2944 = vadd.f32 0.0, %v2943
      %v2945 = vpop.f32.mrb[0].mxu0
      %2946 = vmatprep.mubr.bf16.mxu0 0
      %2947 = vmatmul.mubr.bf16.gmra.mrb[0].mxu0 %v2809
      %v2948 = vpop.f32.mrb[0].mxu0
      %v2949 = vadd.f32 0.0, %v2948
      %v2950 = vpop.f32.mrb[0].mxu0
      %v2951 = vpop.f32.mrb[0].mxu0
      %v2952 = vadd.f32 0.0, %v2951
      %v2953 = vpop.f32.mrb[0].mxu0
      %2954 = vmatprep.mubr.bf16.mxu0 0
      %2955 = vmatmul.mubr.bf16.gmra.mrb[0].mxu0 %v2812
      %v2956 = vpop.f32.mrb[0].mxu0
      %v2957 = vadd.f32 0.0, %v2956
      %v2958 = vpop.f32.mrb[0].mxu0
      %v2959 = vpop.f32.mrb[0].mxu0
      %v2960 = vadd.f32 0.0, %v2959
      %v2961 = vpop.f32.mrb[0].mxu0
      %2962 = vmatprep.mubr.bf16.mxu0 0
      %2963 = vmatmul.mubr.bf16.gmra.mrb[0].mxu0 %v2815
      %v2964 = vpop.f32.mrb[0].mxu0
      %v2965 = vadd.f32 0.0, %v2964
      %v2966 = vpop.f32.mrb[0].mxu0
      %v2967 = vpop.f32.mrb[0].mxu0
      %v2968 = vadd.f32 0.0, %v2967
      %v2969 = vpop.f32.mrb[0].mxu0
      %2970 = vmatprep.mubr.bf16.mxu0 0
      %2971 = vmatmul.mubr.bf16.gmra.mrb[0].mxu0 %v2818
      %v2972 = vpop.f32.mrb[0].mxu0
      %v2973 = vadd.f32 0.0, %v2972
      %v2974 = vpop.f32.mrb[0].mxu0
      %v2975 = vpop.f32.mrb[0].mxu0
      %v2976 = vadd.f32 0.0, %v2975
      %v2977 = vpop.f32.mrb[0].mxu0
      %2978 = vmatprep.mubr.bf16.mxu0 0
      %2979 = vmatmul.mubr.bf16.gmra.mrb[0].mxu0 %v2821
      %v2980 = vpop.f32.mrb[0].mxu0
      %v2981 = vadd.f32 0.0, %v2980
      %v2982 = vpop.f32.mrb[0].mxu0
      %v2983 = vpop.f32.mrb[0].mxu0
      %v2984 = vadd.f32 0.0, %v2983
      %v2985 = vpop.f32.mrb[0].mxu0
      %2986 = vdwg.mxu0
      %v2987 = vadd.f32 %v1915, %v2861
      %v2988 = vadd.f32 %v1918, %v2864
      %v2989 = vadd.f32 %v1923, %v2869
      %v2990 = vadd.f32 %v1926, %v2872
      %v2991 = vadd.f32 %v1931, %v2877
      %v2992 = vadd.f32 %v1934, %v2880
      %v2993 = vadd.f32 %v1939, %v2885
      %v2994 = vadd.f32 %v1942, %v2888
      %v2995 = vadd.f32 %v1947, %v2893
      %v2996 = vadd.f32 %v1950, %v2896
      %v2997 = vadd.f32 %v1955, %v2901
      %v2998 = vadd.f32 %v1958, %v2904
      %v2999 = vadd.f32 %v1963, %v2909
      %v3000 = vadd.f32 %v1966, %v2912
      %v3001 = vadd.f32 %v1971, %v2917
      %v3002 = vadd.f32 %v1974, %v2920
      %v3003 = vadd.f32 %v1979, %v2925
      %v3004 = vadd.f32 %v1982, %v2928
      %v3005 = vadd.f32 %v1987, %v2933
      %v3006 = vadd.f32 %v1990, %v2936
      %v3007 = vadd.f32 %v1995, %v2941
      %v3008 = vadd.f32 %v1998, %v2944
      %v3009 = vadd.f32 %v2003, %v2949
      %v3010 = vadd.f32 %v2006, %v2952
      %v3011 = vadd.f32 %v2011, %v2957
      %v3012 = vadd.f32 %v2014, %v2960
      %v3013 = vadd.f32 %v2019, %v2965
      %v3014 = vadd.f32 %v2022, %v2968
      %v3015 = vadd.f32 %v2027, %v2973
      %v3016 = vadd.f32 %v2030, %v2976
      %v3017 = vadd.f32 %v2035, %v2981
      %v3018 = vadd.f32 %v2038, %v2984
      %v3019 = vld [vmem:[#allocation2 + $0xc] sm:$0x8]
      %v3020 = vld [vmem:[#allocation2 + $0x10] sm:$0xf]
      %v3021 = vld [vmem:[#allocation2 + $0x14] sm:$0xf]
      %v3022 = vld [vmem:[#allocation2 + $0x18] sm:$0xf]
      %v3023 = vld [vmem:[#allocation2 + $0x1c] sm:$0xf]
      %v3024 = vld [vmem:[#allocation2 + $0x20] sm:$0xf]
      %v3025 = vld [vmem:[#allocation2 + $0x24] sm:$0xf]
      %v3026 = vld [vmem:[#allocation2 + $0x28] sm:$0xf]
      %v3027 = vld [vmem:[#allocation2 + $0x2c] sm:$0xf]
      %v3028 = vld [vmem:[#allocation2 + $0x30] sm:$0xf]
      %v3029 = vld [vmem:[#allocation2 + $0x34] sm:$0xf]
      %v3030 = vld [vmem:[#allocation2 + $0x38] sm:$0xf]
      %v3031 = vld [vmem:[#allocation2 + $0x3c] sm:$0xf]
      %v3032 = vld [vmem:[#allocation2 + $0x40] sm:$0xf]
      %v3033 = vld [vmem:[#allocation2 + $0x44] sm:$0xf]
      %v3034 = vld [vmem:[#allocation2 + $0x48] sm:$0xf]
      %v3035 = vld [vmem:[#allocation2 + $0x4c] sm:$0xf]
      %v3036 = vld [vmem:[#allocation2 + $0x50] sm:$0xf]
      %v3037 = vld [vmem:[#allocation2 + $0x54] sm:$0xf]
      %v3038 = vld [vmem:[#allocation2 + $0x58] sm:$0xf]
      %v3039 = vld [vmem:[#allocation2 + $0x5c] sm:$0xf]
      %v3040 = vld [vmem:[#allocation2 + $0x60] sm:$0xf]
      %v3041 = vld [vmem:[#allocation2 + $0x64] sm:$0xf]
      %v3042 = vld [vmem:[#allocation2 + $0x68] sm:$0xf]
      %v3043 = vld [vmem:[#allocation2 + $0x6c] sm:$0xf]
      %v3044 = vld [vmem:[#allocation2 + $0x70] sm:$0xf]
      %v3045 = vld [vmem:[#allocation2 + $0x74] sm:$0xf]
      %v3046 = vld [vmem:[#allocation2 + $0x78] sm:$0xf]
      %v3047 = vld [vmem:[#allocation2 + $0x7c] sm:$0xf]
      %v3048 = vld [vmem:[#allocation2 + $0x80] sm:$0xf]
      %v3049 = vld [vmem:[#allocation2 + $0x84] sm:$0xf]
      %v3050 = vld [vmem:[#allocation2 + $0x88] sm:$0xf]
      %v3051 = vld [vmem:[#allocation2 + $0x8c] sm:$0xf]
      %v3052 = vsel %vm1230, %v3019, 0
      %v3053 = vsel %vm1231, %v3020, 0
      %v3054 = vsel %vm1232, %v3021, 0
      %v3055 = vsel %vm1233, %v3022, 0
      %v3056 = vsel %vm1234, %v3023, 0
      %v3057 = vsel %vm1235, %v3024, 0
      %v3058 = vsel %vm1236, %v3025, 0
      %v3059 = vsel %vm1237, %v3026, 0
      %v3060 = vsel %vm1238, %v3027, 0
      %v3061 = vsel %vm1239, %v3028, 0
      %v3062 = vsel %vm1240, %v3029, 0
      %v3063 = vsel %vm1241, %v3030, 0
      %v3064 = vsel %vm1242, %v3031, 0
      %v3065 = vsel %vm1243, %v3032, 0
      %v3066 = vsel %vm1244, %v3033, 0
      %v3067 = vsel %vm1245, %v3034, 0
      %v3068 = vsel %vm1246, %v3035, 0
      %v3069 = vsel %vm1247, %v3036, 0
      %v3070 = vsel %vm1248, %v3037, 0
      %v3071 = vsel %vm1249, %v3038, 0
      %v3072 = vsel %vm1250, %v3039, 0
      %v3073 = vsel %vm1251, %v3040, 0
      %v3074 = vsel %vm1252, %v3041, 0
      %v3075 = vsel %vm1253, %v3042, 0
      %v3076 = vsel %vm1254, %v3043, 0
      %v3077 = vsel %vm1255, %v3044, 0
      %v3078 = vsel %vm1256, %v3045, 0
      %v3079 = vsel %vm1257, %v3046, 0
      %v3080 = vsel %vm1258, %v3047, 0
      %v3081 = vsel %vm1259, %v3048, 0
      %v3082 = vsel %vm1260, %v3049, 0
      %v3083 = vsel %vm1261, %v3050, 0
      %v3084 = vsel %vm1262, %v3051, 0
      %s3085 = scalar_lea.vmem %s1, 6
      %v3086 = vld [vmem:[%s3085] sm:$0x3]
      %v3120 = vunpack.c.l.b16 %v3052
      %v3121 = vunpack.c.l.b16 %v3053
      %v3122 = vunpack.c.l.b16 %v3054
      %v3123 = vunpack.c.l.b16 %v3055
      %v3124 = vunpack.c.l.b16 %v3056
      %v3125 = vunpack.c.l.b16 %v3057
      %v3126 = vunpack.c.l.b16 %v3058
      %v3127 = vunpack.c.l.b16 %v3059
      %v3128 = vunpack.c.l.b16 %v3060
      %v3129 = vunpack.c.l.b16 %v3061
      %v3130 = vunpack.c.l.b16 %v3062
      %v3131 = vunpack.c.l.b16 %v3063
      %v3132 = vunpack.c.l.b16 %v3064
      %v3133 = vunpack.c.l.b16 %v3065
      %v3134 = vunpack.c.l.b16 %v3066
      %v3135 = vunpack.c.l.b16 %v3067
      %v3136 = vunpack.c.l.b16 %v3068
      %v3137 = vunpack.c.l.b16 %v3069
      %v3138 = vunpack.c.l.b16 %v3070
      %v3139 = vunpack.c.l.b16 %v3071
      %v3140 = vunpack.c.l.b16 %v3072
      %v3141 = vunpack.c.l.b16 %v3073
      %v3142 = vunpack.c.l.b16 %v3074
      %v3143 = vunpack.c.l.b16 %v3075
      %v3144 = vunpack.c.l.b16 %v3076
      %v3145 = vunpack.c.l.b16 %v3077
      %v3146 = vunpack.c.l.b16 %v3078
      %v3147 = vunpack.c.l.b16 %v3079
      %v3148 = vunpack.c.l.b16 %v3080
      %v3149 = vunpack.c.l.b16 %v3081
      %v3150 = vunpack.c.l.b16 %v3082
      %v3151 = vunpack.c.l.b16 %v3083
      %v3152 = vunpack.c.l.b16 %v3084
      %v3153 = vpack.c.b16 %v3121, %v3120
      %v3154 = vpack.c.b16 %v3123, %v3122
      %v3155 = vpack.c.b16 %v3125, %v3124
      %v3156 = vpack.c.b16 %v3127, %v3126
      %v3157 = vpack.c.b16 %v3129, %v3128
      %v3158 = vpack.c.b16 %v3131, %v3130
      %v3159 = vpack.c.b16 %v3133, %v3132
      %v3160 = vpack.c.b16 %v3135, %v3134
      %v3161 = vpack.c.b16 %v3137, %v3136
      %v3162 = vpack.c.b16 %v3139, %v3138
      %v3163 = vpack.c.b16 %v3141, %v3140
      %v3164 = vpack.c.b16 %v3143, %v3142
      %v3165 = vpack.c.b16 %v3145, %v3144
      %v3166 = vpack.c.b16 %v3147, %v3146
      %v3167 = vpack.c.b16 %v3149, %v3148
      %v3168 = vpack.c.b16 %v3151, %v3150
      %v3169 = vpack.c.b16 %v3152, %v3152
      %v3171 = vshrl.u32 %v3153, 16
      %v3173 = vrot.slane %v3171, 3
      %v3174 = vshll.u32 %v3153, 16
      %v3176 = vrot.slane %v3174, 4
      %v3177 = vor.u32 %v3173, %v3176
      %v3179 = vshrl.u32 %v3154, 16
      %v3181 = vrot.slane %v3179, 3
      %v3182 = vshll.u32 %v3154, 16
      %v3184 = vrot.slane %v3182, 4
      %v3185 = vor.u32 %v3181, %v3184
      %v3186 = vsel %vm1676, %v3177, %v3185
      %v3188 = vshrl.u32 %v3155, 16
      %v3190 = vrot.slane %v3188, 3
      %v3191 = vshll.u32 %v3155, 16
      %v3193 = vrot.slane %v3191, 4
      %v3194 = vor.u32 %v3190, %v3193
      %v3195 = vsel %vm1676, %v3185, %v3194
      %v3197 = vshrl.u32 %v3156, 16
      %v3199 = vrot.slane %v3197, 3
      %v3200 = vshll.u32 %v3156, 16
      %v3202 = vrot.slane %v3200, 4
      %v3203 = vor.u32 %v3199, %v3202
      %v3204 = vsel %vm1676, %v3194, %v3203
      %v3206 = vshrl.u32 %v3157, 16
      %v3208 = vrot.slane %v3206, 3
      %v3209 = vshll.u32 %v3157, 16
      %v3211 = vrot.slane %v3209, 4
      %v3212 = vor.u32 %v3208, %v3211
      %v3213 = vsel %vm1676, %v3203, %v3212
      %v3215 = vshrl.u32 %v3158, 16
      %v3217 = vrot.slane %v3215, 3
      %v3218 = vshll.u32 %v3158, 16
      %v3220 = vrot.slane %v3218, 4
      %v3221 = vor.u32 %v3217, %v3220
      %v3222 = vsel %vm1676, %v3212, %v3221
      %v3224 = vshrl.u32 %v3159, 16
      %v3226 = vrot.slane %v3224, 3
      %v3227 = vshll.u32 %v3159, 16
      %v3229 = vrot.slane %v3227, 4
      %v3230 = vor.u32 %v3226, %v3229
      %v3231 = vsel %vm1676, %v3221, %v3230
      %v3233 = vshrl.u32 %v3160, 16
      %v3235 = vrot.slane %v3233, 3
      %v3236 = vshll.u32 %v3160, 16
      %v3238 = vrot.slane %v3236, 4
      %v3239 = vor.u32 %v3235, %v3238
      %v3240 = vsel %vm1676, %v3230, %v3239
      %v3242 = vshrl.u32 %v3161, 16
      %v3244 = vrot.slane %v3242, 3
      %v3245 = vshll.u32 %v3161, 16
      %v3247 = vrot.slane %v3245, 4
      %v3248 = vor.u32 %v3244, %v3247
      %v3249 = vsel %vm1676, %v3239, %v3248
      %v3251 = vshrl.u32 %v3162, 16
      %v3253 = vrot.slane %v3251, 3
      %v3254 = vshll.u32 %v3162, 16
      %v3256 = vrot.slane %v3254, 4
      %v3257 = vor.u32 %v3253, %v3256
      %v3258 = vsel %vm1676, %v3248, %v3257
      %v3260 = vshrl.u32 %v3163, 16
      %v3262 = vrot.slane %v3260, 3
      %v3263 = vshll.u32 %v3163, 16
      %v3265 = vrot.slane %v3263, 4
      %v3266 = vor.u32 %v3262, %v3265
      %v3267 = vsel %vm1676, %v3257, %v3266
      %v3269 = vshrl.u32 %v3164, 16
      %v3271 = vrot.slane %v3269, 3
      %v3272 = vshll.u32 %v3164, 16
      %v3274 = vrot.slane %v3272, 4
      %v3275 = vor.u32 %v3271, %v3274
      %v3276 = vsel %vm1676, %v3266, %v3275
      %v3278 = vshrl.u32 %v3165, 16
      %v3280 = vrot.slane %v3278, 3
      %v3281 = vshll.u32 %v3165, 16
      %v3283 = vrot.slane %v3281, 4
      %v3284 = vor.u32 %v3280, %v3283
      %v3285 = vsel %vm1676, %v3275, %v3284
      %v3287 = vshrl.u32 %v3166, 16
      %v3289 = vrot.slane %v3287, 3
      %v3290 = vshll.u32 %v3166, 16
      %v3292 = vrot.slane %v3290, 4
      %v3293 = vor.u32 %v3289, %v3292
      %v3294 = vsel %vm1676, %v3284, %v3293
      %v3296 = vshrl.u32 %v3167, 16
      %v3298 = vrot.slane %v3296, 3
      %v3299 = vshll.u32 %v3167, 16
      %v3301 = vrot.slane %v3299, 4
      %v3302 = vor.u32 %v3298, %v3301
      %v3303 = vsel %vm1676, %v3293, %v3302
      %v3305 = vshrl.u32 %v3168, 16
      %v3307 = vrot.slane %v3305, 3
      %v3308 = vshll.u32 %v3168, 16
      %v3310 = vrot.slane %v3308, 4
      %v3311 = vor.u32 %v3307, %v3310
      %v3312 = vsel %vm1676, %v3302, %v3311
      %v3314 = vshrl.u32 %v3169, 16
      %v3316 = vrot.slane %v3314, 3
      %v3317 = vshll.u32 %v3169, 16
      %v3319 = vrot.slane %v3317, 4
      %v3320 = vor.u32 %v3316, %v3319
      %v3321 = vsel %vm1676, %v3311, %v3320
      %v3323 = vsel %vm1379, %v3186, 0
      %v3326 = vsel %vm1379, %v3195, 0
      %v3329 = vsel %vm1379, %v3204, 0
      %v3332 = vsel %vm1379, %v3213, 0
      %v3335 = vsel %vm1379, %v3222, 0
      %v3338 = vsel %vm1379, %v3231, 0
      %v3341 = vsel %vm1379, %v3240, 0
      %v3344 = vsel %vm1379, %v3249, 0
      %v3347 = vsel %vm1379, %v3258, 0
      %v3350 = vsel %vm1379, %v3267, 0
      %v3353 = vsel %vm1379, %v3276, 0
      %v3356 = vsel %vm1379, %v3285, 0
      %v3359 = vsel %vm1379, %v3294, 0
      %v3362 = vsel %vm1379, %v3303, 0
      %v3365 = vsel %vm1379, %v3312, 0
      %v3368 = vsel %vm1379, %v3321, 0
      %v3371 = vsel %vm1428, %v3086, 0
      %3373 = vmatprep.subr.bf16.mxu0 0
      %3374 = vmatpush1.bf16.msra.mxu0 %v3371
      %3375 = vmatprep.subr.bf16.mxu0 0
      %3376 = vmatpush1.bf16.msra.mxu0 0
      %3377 = vmatprep.subr.bf16.mxu0 0
      %3378 = vmatpush1.bf16.msra.mxu0 0
      %3379 = vmatprep.subr.bf16.mxu0 0
      %3380 = vmatpush1.bf16.msra.mxu0 0
      %3381 = vmatprep.subr.bf16.mxu0 0
      %3382 = vmatpush1.bf16.msra.mxu0 0
      %3383 = vmatprep.subr.bf16.mxu0 0
      %3384 = vmatpush1.bf16.msra.mxu0 0
      %3385 = vmatprep.subr.bf16.mxu0 0
      %3386 = vmatpush1.bf16.msra.mxu0 0
      %3387 = vmatprep.subr.bf16.mxu0 0
      %3388 = vmatpush1.bf16.msra.mxu0 0
      %3389 = vmatprep.subr.bf16.mxu0 0
      %3390 = vmatpush1.bf16.msra.mxu0 0
      %3391 = vmatprep.subr.bf16.mxu0 0
      %3392 = vmatpush1.bf16.msra.mxu0 0
      %3393 = vmatprep.subr.bf16.mxu0 0
      %3394 = vmatpush1.bf16.msra.mxu0 0
      %3395 = vmatprep.subr.bf16.mxu0 0
      %3396 = vmatpush1.bf16.msra.mxu0 0
      %3397 = vmatprep.subr.bf16.mxu0 0
      %3398 = vmatpush1.bf16.msra.mxu0 0
      %3399 = vmatprep.subr.bf16.mxu0 0
      %3400 = vmatpush1.bf16.msra.mxu0 0
      %3401 = vmatprep.subr.bf16.mxu0 0
      %3402 = vmatpush1.bf16.msra.mxu0 0
      %3403 = vmatprep.subr.bf16.mxu0 0
      %3404 = vmatpush1.bf16.msra.mxu0 0
      %3405 = vmatprep.mubr.bf16.mxu0 0
      %3406 = vmatmul.mubr.bf16.gmra.mrb[0].mxu0 %v3323
      %v3407 = vpop.f32.mrb[0].mxu0
      %v3408 = vadd.f32 0.0, %v3407
      %v3409 = vpop.f32.mrb[0].mxu0
      %v3410 = vpop.f32.mrb[0].mxu0
      %v3411 = vadd.f32 0.0, %v3410
      %v3412 = vpop.f32.mrb[0].mxu0
      %3413 = vmatprep.mubr.bf16.mxu0 0
      %3414 = vmatmul.mubr.bf16.gmra.mrb[0].mxu0 %v3326
      %v3415 = vpop.f32.mrb[0].mxu0
      %v3416 = vadd.f32 0.0, %v3415
      %v3417 = vpop.f32.mrb[0].mxu0
      %v3418 = vpop.f32.mrb[0].mxu0
      %v3419 = vadd.f32 0.0, %v3418
      %v3420 = vpop.f32.mrb[0].mxu0
      %3421 = vmatprep.mubr.bf16.mxu0 0
      %3422 = vmatmul.mubr.bf16.gmra.mrb[0].mxu0 %v3329
      %v3423 = vpop.f32.mrb[0].mxu0
      %v3424 = vadd.f32 0.0, %v3423
      %v3425 = vpop.f32.mrb[0].mxu0
      %v3426 = vpop.f32.mrb[0].mxu0
      %v3427 = vadd.f32 0.0, %v3426
      %v3428 = vpop.f32.mrb[0].mxu0
      %3429 = vmatprep.mubr.bf16.mxu0 0
      %3430 = vmatmul.mubr.bf16.gmra.mrb[0].mxu0 %v3332
      %v3431 = vpop.f32.mrb[0].mxu0
      %v3432 = vadd.f32 0.0, %v3431
      %v3433 = vpop.f32.mrb[0].mxu0
      %v3434 = vpop.f32.mrb[0].mxu0
      %v3435 = vadd.f32 0.0, %v3434
      %v3436 = vpop.f32.mrb[0].mxu0
      %3437 = vmatprep.mubr.bf16.mxu0 0
      %3438 = vmatmul.mubr.bf16.gmra.mrb[0].mxu0 %v3335
      %v3439 = vpop.f32.mrb[0].mxu0
      %v3440 = vadd.f32 0.0, %v3439
      %v3441 = vpop.f32.mrb[0].mxu0
      %v3442 = vpop.f32.mrb[0].mxu0
      %v3443 = vadd.f32 0.0, %v3442
      %v3444 = vpop.f32.mrb[0].mxu0
      %3445 = vmatprep.mubr.bf16.mxu0 0
      %3446 = vmatmul.mubr.bf16.gmra.mrb[0].mxu0 %v3338
      %v3447 = vpop.f32.mrb[0].mxu0
      %v3448 = vadd.f32 0.0, %v3447
      %v3449 = vpop.f32.mrb[0].mxu0
      %v3450 = vpop.f32.mrb[0].mxu0
      %v3451 = vadd.f32 0.0, %v3450
      %v3452 = vpop.f32.mrb[0].mxu0
      %3453 = vmatprep.mubr.bf16.mxu0 0
      %3454 = vmatmul.mubr.bf16.gmra.mrb[0].mxu0 %v3341
      %v3455 = vpop.f32.mrb[0].mxu0
      %v3456 = vadd.f32 0.0, %v3455
      %v3457 = vpop.f32.mrb[0].mxu0
      %v3458 = vpop.f32.mrb[0].mxu0
      %v3459 = vadd.f32 0.0, %v3458
      %v3460 = vpop.f32.mrb[0].mxu0
      %3461 = vmatprep.mubr.bf16.mxu0 0
      %3462 = vmatmul.mubr.bf16.gmra.mrb[0].mxu0 %v3344
      %v3463 = vpop.f32.mrb[0].mxu0
      %v3464 = vadd.f32 0.0, %v3463
      %v3465 = vpop.f32.mrb[0].mxu0
      %v3466 = vpop.f32.mrb[0].mxu0
      %v3467 = vadd.f32 0.0, %v3466
      %v3468 = vpop.f32.mrb[0].mxu0
      %3469 = vmatprep.mubr.bf16.mxu0 0
      %3470 = vmatmul.mubr.bf16.gmra.mrb[0].mxu0 %v3347
      %v3471 = vpop.f32.mrb[0].mxu0
      %v3472 = vadd.f32 0.0, %v3471
      %v3473 = vpop.f32.mrb[0].mxu0
      %v3474 = vpop.f32.mrb[0].mxu0
      %v3475 = vadd.f32 0.0, %v3474
      %v3476 = vpop.f32.mrb[0].mxu0
      %3477 = vmatprep.mubr.bf16.mxu0 0
      %3478 = vmatmul.mubr.bf16.gmra.mrb[0].mxu0 %v3350
      %v3479 = vpop.f32.mrb[0].mxu0
      %v3480 = vadd.f32 0.0, %v3479
      %v3481 = vpop.f32.mrb[0].mxu0
      %v3482 = vpop.f32.mrb[0].mxu0
      %v3483 = vadd.f32 0.0, %v3482
      %v3484 = vpop.f32.mrb[0].mxu0
      %3485 = vmatprep.mubr.bf16.mxu0 0
      %3486 = vmatmul.mubr.bf16.gmra.mrb[0].mxu0 %v3353
      %v3487 = vpop.f32.mrb[0].mxu0
      %v3488 = vadd.f32 0.0, %v3487
      %v3489 = vpop.f32.mrb[0].mxu0
      %v3490 = vpop.f32.mrb[0].mxu0
      %v3491 = vadd.f32 0.0, %v3490
      %v3492 = vpop.f32.mrb[0].mxu0
      %3493 = vmatprep.mubr.bf16.mxu0 0
      %3494 = vmatmul.mubr.bf16.gmra.mrb[0].mxu0 %v3356
      %v3495 = vpop.f32.mrb[0].mxu0
      %v3496 = vadd.f32 0.0, %v3495
      %v3497 = vpop.f32.mrb[0].mxu0
      %v3498 = vpop.f32.mrb[0].mxu0
      %v3499 = vadd.f32 0.0, %v3498
      %v3500 = vpop.f32.mrb[0].mxu0
      %3501 = vmatprep.mubr.bf16.mxu0 0
      %3502 = vmatmul.mubr.bf16.gmra.mrb[0].mxu0 %v3359
      %v3503 = vpop.f32.mrb[0].mxu0
      %v3504 = vadd.f32 0.0, %v3503
      %v3505 = vpop.f32.mrb[0].mxu0
      %v3506 = vpop.f32.mrb[0].mxu0
      %v3507 = vadd.f32 0.0, %v3506
      %v3508 = vpop.f32.mrb[0].mxu0
      %3509 = vmatprep.mubr.bf16.mxu0 0
      %3510 = vmatmul.mubr.bf16.gmra.mrb[0].mxu0 %v3362
      %v3511 = vpop.f32.mrb[0].mxu0
      %v3512 = vadd.f32 0.0, %v3511
      %v3513 = vpop.f32.mrb[0].mxu0
      %v3514 = vpop.f32.mrb[0].mxu0
      %v3515 = vadd.f32 0.0, %v3514
      %v3516 = vpop.f32.mrb[0].mxu0
      %3517 = vmatprep.mubr.bf16.mxu0 0
      %3518 = vmatmul.mubr.bf16.gmra.mrb[0].mxu0 %v3365
      %v3519 = vpop.f32.mrb[0].mxu0
      %v3520 = vadd.f32 0.0, %v3519
      %v3521 = vpop.f32.mrb[0].mxu0
      %v3522 = vpop.f32.mrb[0].mxu0
      %v3523 = vadd.f32 0.0, %v3522
      %v3524 = vpop.f32.mrb[0].mxu0
      %3525 = vmatprep.mubr.bf16.mxu0 0
      %3526 = vmatmul.mubr.bf16.gmra.mrb[0].mxu0 %v3368
      %v3527 = vpop.f32.mrb[0].mxu0
      %v3528 = vadd.f32 0.0, %v3527
      %v3529 = vpop.f32.mrb[0].mxu0
      %v3530 = vpop.f32.mrb[0].mxu0
      %v3531 = vadd.f32 0.0, %v3530
      %v3532 = vpop.f32.mrb[0].mxu0
      %3533 = vdwg.mxu0
      %v3534 = vadd.f32 %v2987, %v3408
      %v3535 = vadd.f32 %v2988, %v3411
      %v3536 = vadd.f32 %v2989, %v3416
      %v3537 = vadd.f32 %v2990, %v3419
      %v3538 = vadd.f32 %v2991, %v3424
      %v3539 = vadd.f32 %v2992, %v3427
      %v3540 = vadd.f32 %v2993, %v3432
      %v3541 = vadd.f32 %v2994, %v3435
      %v3542 = vadd.f32 %v2995, %v3440
      %v3543 = vadd.f32 %v2996, %v3443
      %v3544 = vadd.f32 %v2997, %v3448
      %v3545 = vadd.f32 %v2998, %v3451
      %v3546 = vadd.f32 %v2999, %v3456
      %v3547 = vadd.f32 %v3000, %v3459
      %v3548 = vadd.f32 %v3001, %v3464
      %v3549 = vadd.f32 %v3002, %v3467
      %v3550 = vadd.f32 %v3003, %v3472
      %v3551 = vadd.f32 %v3004, %v3475
      %v3552 = vadd.f32 %v3005, %v3480
      %v3553 = vadd.f32 %v3006, %v3483
      %v3554 = vadd.f32 %v3007, %v3488
      %v3555 = vadd.f32 %v3008, %v3491
      %v3556 = vadd.f32 %v3009, %v3496
      %v3557 = vadd.f32 %v3010, %v3499
      %v3558 = vadd.f32 %v3011, %v3504
      %v3559 = vadd.f32 %v3012, %v3507
      %v3560 = vadd.f32 %v3013, %v3512
      %v3561 = vadd.f32 %v3014, %v3515
      %v3562 = vadd.f32 %v3015, %v3520
      %v3563 = vadd.f32 %v3016, %v3523
      %v3564 = vadd.f32 %v3017, %v3528
      %v3565 = vadd.f32 %v3018, %v3531
      %s3566 = scalar_lea.vmem %s1, 8
      %v3567 = vld [vmem:[%s3566] sm:$0x3]
      %v3600 = vunpack.c.l.b16 %v3020
      %v3601 = vunpack.c.l.b16 %v3021
      %v3602 = vunpack.c.l.b16 %v3022
      %v3603 = vunpack.c.l.b16 %v3023
      %v3604 = vunpack.c.l.b16 %v3024
      %v3605 = vunpack.c.l.b16 %v3025
      %v3606 = vunpack.c.l.b16 %v3026
      %v3607 = vunpack.c.l.b16 %v3027
      %v3608 = vunpack.c.l.b16 %v3028
      %v3609 = vunpack.c.l.b16 %v3029
      %v3610 = vunpack.c.l.b16 %v3030
      %v3611 = vunpack.c.l.b16 %v3031
      %v3612 = vunpack.c.l.b16 %v3032
      %v3613 = vunpack.c.l.b16 %v3033
      %v3614 = vunpack.c.l.b16 %v3034
      %v3615 = vunpack.c.l.b16 %v3035
      %v3616 = vunpack.c.l.b16 %v3036
      %v3617 = vunpack.c.l.b16 %v3037
      %v3618 = vunpack.c.l.b16 %v3038
      %v3619 = vunpack.c.l.b16 %v3039
      %v3620 = vunpack.c.l.b16 %v3040
      %v3621 = vunpack.c.l.b16 %v3041
      %v3622 = vunpack.c.l.b16 %v3042
      %v3623 = vunpack.c.l.b16 %v3043
      %v3624 = vunpack.c.l.b16 %v3044
      %v3625 = vunpack.c.l.b16 %v3045
      %v3626 = vunpack.c.l.b16 %v3046
      %v3627 = vunpack.c.l.b16 %v3047
      %v3628 = vunpack.c.l.b16 %v3048
      %v3629 = vunpack.c.l.b16 %v3049
      %v3630 = vunpack.c.l.b16 %v3050
      %v3631 = vunpack.c.l.b16 %v3051
      %v3632 = vpack.c.b16 %v3601, %v3600
      %v3633 = vpack.c.b16 %v3603, %v3602
      %v3634 = vpack.c.b16 %v3605, %v3604
      %v3635 = vpack.c.b16 %v3607, %v3606
      %v3636 = vpack.c.b16 %v3609, %v3608
      %v3637 = vpack.c.b16 %v3611, %v3610
      %v3638 = vpack.c.b16 %v3613, %v3612
      %v3639 = vpack.c.b16 %v3615, %v3614
      %v3640 = vpack.c.b16 %v3617, %v3616
      %v3641 = vpack.c.b16 %v3619, %v3618
      %v3642 = vpack.c.b16 %v3621, %v3620
      %v3643 = vpack.c.b16 %v3623, %v3622
      %v3644 = vpack.c.b16 %v3625, %v3624
      %v3645 = vpack.c.b16 %v3627, %v3626
      %v3646 = vpack.c.b16 %v3629, %v3628
      %v3647 = vpack.c.b16 %v3631, %v3630
      %v3649 = vsel %vm1379, %v3632, 0
      %v3652 = vsel %vm1379, %v3633, 0
      %v3655 = vsel %vm1379, %v3634, 0
      %v3658 = vsel %vm1379, %v3635, 0
      %v3661 = vsel %vm1379, %v3636, 0
      %v3664 = vsel %vm1379, %v3637, 0
      %v3667 = vsel %vm1379, %v3638, 0
      %v3670 = vsel %vm1379, %v3639, 0
      %v3673 = vsel %vm1379, %v3640, 0
      %v3676 = vsel %vm1379, %v3641, 0
      %v3679 = vsel %vm1379, %v3642, 0
      %v3682 = vsel %vm1379, %v3643, 0
      %v3685 = vsel %vm1379, %v3644, 0
      %v3688 = vsel %vm1379, %v3645, 0
      %v3691 = vsel %vm1379, %v3646, 0
      %v3694 = vsel %vm1379, %v3647, 0
      %v3697 = vsel %vm1428, %v3567, 0
      %3699 = vmatprep.subr.bf16.mxu0 0
      %3700 = vmatpush1.bf16.msra.mxu0 %v3697
      %3701 = vmatprep.subr.bf16.mxu0 0
      %3702 = vmatpush1.bf16.msra.mxu0 0
      %3703 = vmatprep.subr.bf16.mxu0 0
      %3704 = vmatpush1.bf16.msra.mxu0 0
      %3705 = vmatprep.subr.bf16.mxu0 0
      %3706 = vmatpush1.bf16.msra.mxu0 0
      %3707 = vmatprep.subr.bf16.mxu0 0
      %3708 = vmatpush1.bf16.msra.mxu0 0
      %3709 = vmatprep.subr.bf16.mxu0 0
      %3710 = vmatpush1.bf16.msra.mxu0 0
      %3711 = vmatprep.subr.bf16.mxu0 0
      %3712 = vmatpush1.bf16.msra.mxu0 0
      %3713 = vmatprep.subr.bf16.mxu0 0
      %3714 = vmatpush1.bf16.msra.mxu0 0
      %3715 = vmatprep.subr.bf16.mxu0 0
      %3716 = vmatpush1.bf16.msra.mxu0 0
      %3717 = vmatprep.subr.bf16.mxu0 0
      %3718 = vmatpush1.bf16.msra.mxu0 0
      %3719 = vmatprep.subr.bf16.mxu0 0
      %3720 = vmatpush1.bf16.msra.mxu0 0
      %3721 = vmatprep.subr.bf16.mxu0 0
      %3722 = vmatpush1.bf16.msra.mxu0 0
      %3723 = vmatprep.subr.bf16.mxu0 0
      %3724 = vmatpush1.bf16.msra.mxu0 0
      %3725 = vmatprep.subr.bf16.mxu0 0
      %3726 = vmatpush1.bf16.msra.mxu0 0
      %3727 = vmatprep.subr.bf16.mxu0 0
      %3728 = vmatpush1.bf16.msra.mxu0 0
      %3729 = vmatprep.subr.bf16.mxu0 0
      %3730 = vmatpush1.bf16.msra.mxu0 0
      %3731 = vmatprep.mubr.bf16.mxu0 0
      %3732 = vmatmul.mubr.bf16.gmra.mrb[0].mxu0 %v3649
      %v3733 = vpop.f32.mrb[0].mxu0
      %v3734 = vadd.f32 0.0, %v3733
      %v3735 = vpop.f32.mrb[0].mxu0
      %v3736 = vpop.f32.mrb[0].mxu0
      %v3737 = vadd.f32 0.0, %v3736
      %v3738 = vpop.f32.mrb[0].mxu0
      %3739 = vmatprep.mubr.bf16.mxu0 0
      %3740 = vmatmul.mubr.bf16.gmra.mrb[0].mxu0 %v3652
      %v3741 = vpop.f32.mrb[0].mxu0
      %v3742 = vadd.f32 0.0, %v3741
      %v3743 = vpop.f32.mrb[0].mxu0
      %v3744 = vpop.f32.mrb[0].mxu0
      %v3745 = vadd.f32 0.0, %v3744
      %v3746 = vpop.f32.mrb[0].mxu0
      %3747 = vmatprep.mubr.bf16.mxu0 0
      %3748 = vmatmul.mubr.bf16.gmra.mrb[0].mxu0 %v3655
      %v3749 = vpop.f32.mrb[0].mxu0
      %v3750 = vadd.f32 0.0, %v3749
      %v3751 = vpop.f32.mrb[0].mxu0
      %v3752 = vpop.f32.mrb[0].mxu0
      %v3753 = vadd.f32 0.0, %v3752
      %v3754 = vpop.f32.mrb[0].mxu0
      %3755 = vmatprep.mubr.bf16.mxu0 0
      %3756 = vmatmul.mubr.bf16.gmra.mrb[0].mxu0 %v3658
      %v3757 = vpop.f32.mrb[0].mxu0
      %v3758 = vadd.f32 0.0, %v3757
      %v3759 = vpop.f32.mrb[0].mxu0
      %v3760 = vpop.f32.mrb[0].mxu0
      %v3761 = vadd.f32 0.0, %v3760
      %v3762 = vpop.f32.mrb[0].mxu0
      %3763 = vmatprep.mubr.bf16.mxu0 0
      %3764 = vmatmul.mubr.bf16.gmra.mrb[0].mxu0 %v3661
      %v3765 = vpop.f32.mrb[0].mxu0
      %v3766 = vadd.f32 0.0, %v3765
      %v3767 = vpop.f32.mrb[0].mxu0
      %v3768 = vpop.f32.mrb[0].mxu0
      %v3769 = vadd.f32 0.0, %v3768
      %v3770 = vpop.f32.mrb[0].mxu0
      %3771 = vmatprep.mubr.bf16.mxu0 0
      %3772 = vmatmul.mubr.bf16.gmra.mrb[0].mxu0 %v3664
      %v3773 = vpop.f32.mrb[0].mxu0
      %v3774 = vadd.f32 0.0, %v3773
      %v3775 = vpop.f32.mrb[0].mxu0
      %v3776 = vpop.f32.mrb[0].mxu0
      %v3777 = vadd.f32 0.0, %v3776
      %v3778 = vpop.f32.mrb[0].mxu0
      %3779 = vmatprep.mubr.bf16.mxu0 0
      %3780 = vmatmul.mubr.bf16.gmra.mrb[0].mxu0 %v3667
      %v3781 = vpop.f32.mrb[0].mxu0
      %v3782 = vadd.f32 0.0, %v3781
      %v3783 = vpop.f32.mrb[0].mxu0
      %v3784 = vpop.f32.mrb[0].mxu0
      %v3785 = vadd.f32 0.0, %v3784
      %v3786 = vpop.f32.mrb[0].mxu0
      %3787 = vmatprep.mubr.bf16.mxu0 0
      %3788 = vmatmul.mubr.bf16.gmra.mrb[0].mxu0 %v3670
      %v3789 = vpop.f32.mrb[0].mxu0
      %v3790 = vadd.f32 0.0, %v3789
      %v3791 = vpop.f32.mrb[0].mxu0
      %v3792 = vpop.f32.mrb[0].mxu0
      %v3793 = vadd.f32 0.0, %v3792
      %v3794 = vpop.f32.mrb[0].mxu0
      %3795 = vmatprep.mubr.bf16.mxu0 0
      %3796 = vmatmul.mubr.bf16.gmra.mrb[0].mxu0 %v3673
      %v3797 = vpop.f32.mrb[0].mxu0
      %v3798 = vadd.f32 0.0, %v3797
      %v3799 = vpop.f32.mrb[0].mxu0
      %v3800 = vpop.f32.mrb[0].mxu0
      %v3801 = vadd.f32 0.0, %v3800
      %v3802 = vpop.f32.mrb[0].mxu0
      %3803 = vmatprep.mubr.bf16.mxu0 0
      %3804 = vmatmul.mubr.bf16.gmra.mrb[0].mxu0 %v3676
      %v3805 = vpop.f32.mrb[0].mxu0
      %v3806 = vadd.f32 0.0, %v3805
      %v3807 = vpop.f32.mrb[0].mxu0
      %v3808 = vpop.f32.mrb[0].mxu0
      %v3809 = vadd.f32 0.0, %v3808
      %v3810 = vpop.f32.mrb[0].mxu0
      %3811 = vmatprep.mubr.bf16.mxu0 0
      %3812 = vmatmul.mubr.bf16.gmra.mrb[0].mxu0 %v3679
      %v3813 = vpop.f32.mrb[0].mxu0
      %v3814 = vadd.f32 0.0, %v3813
      %v3815 = vpop.f32.mrb[0].mxu0
      %v3816 = vpop.f32.mrb[0].mxu0
      %v3817 = vadd.f32 0.0, %v3816
      %v3818 = vpop.f32.mrb[0].mxu0
      %3819 = vmatprep.mubr.bf16.mxu0 0
      %3820 = vmatmul.mubr.bf16.gmra.mrb[0].mxu0 %v3682
      %v3821 = vpop.f32.mrb[0].mxu0
      %v3822 = vadd.f32 0.0, %v3821
      %v3823 = vpop.f32.mrb[0].mxu0
      %v3824 = vpop.f32.mrb[0].mxu0
      %v3825 = vadd.f32 0.0, %v3824
      %v3826 = vpop.f32.mrb[0].mxu0
      %3827 = vmatprep.mubr.bf16.mxu0 0
      %3828 = vmatmul.mubr.bf16.gmra.mrb[0].mxu0 %v3685
      %v3829 = vpop.f32.mrb[0].mxu0
      %v3830 = vadd.f32 0.0, %v3829
      %v3831 = vpop.f32.mrb[0].mxu0
      %v3832 = vpop.f32.mrb[0].mxu0
      %v3833 = vadd.f32 0.0, %v3832
      %v3834 = vpop.f32.mrb[0].mxu0
      %3835 = vmatprep.mubr.bf16.mxu0 0
      %3836 = vmatmul.mubr.bf16.gmra.mrb[0].mxu0 %v3688
      %v3837 = vpop.f32.mrb[0].mxu0
      %v3838 = vadd.f32 0.0, %v3837
      %v3839 = vpop.f32.mrb[0].mxu0
      %v3840 = vpop.f32.mrb[0].mxu0
      %v3841 = vadd.f32 0.0, %v3840
      %v3842 = vpop.f32.mrb[0].mxu0
      %3843 = vmatprep.mubr.bf16.mxu0 0
      %3844 = vmatmul.mubr.bf16.gmra.mrb[0].mxu0 %v3691
      %v3845 = vpop.f32.mrb[0].mxu0
      %v3846 = vadd.f32 0.0, %v3845
      %v3847 = vpop.f32.mrb[0].mxu0
      %v3848 = vpop.f32.mrb[0].mxu0
      %v3849 = vadd.f32 0.0, %v3848
      %v3850 = vpop.f32.mrb[0].mxu0
      %3851 = vmatprep.mubr.bf16.mxu0 0
      %3852 = vmatmul.mubr.bf16.gmra.mrb[0].mxu0 %v3694
      %v3853 = vpop.f32.mrb[0].mxu0
      %v3854 = vadd.f32 0.0, %v3853
      %v3855 = vpop.f32.mrb[0].mxu0
      %v3856 = vpop.f32.mrb[0].mxu0
      %v3857 = vadd.f32 0.0, %v3856
      %v3858 = vpop.f32.mrb[0].mxu0
      %3859 = vdwg.mxu0
      %v3860 = vadd.f32 %v3534, %v3734
      %v3861 = vadd.f32 %v3535, %v3737
      %v3862 = vadd.f32 %v3536, %v3742
      %v3863 = vadd.f32 %v3537, %v3745
      %v3864 = vadd.f32 %v3538, %v3750
      %v3865 = vadd.f32 %v3539, %v3753
      %v3866 = vadd.f32 %v3540, %v3758
      %v3867 = vadd.f32 %v3541, %v3761
      %v3868 = vadd.f32 %v3542, %v3766
      %v3869 = vadd.f32 %v3543, %v3769
      %v3870 = vadd.f32 %v3544, %v3774
      %v3871 = vadd.f32 %v3545, %v3777
      %v3872 = vadd.f32 %v3546, %v3782
      %v3873 = vadd.f32 %v3547, %v3785
      %v3874 = vadd.f32 %v3548, %v3790
      %v3875 = vadd.f32 %v3549, %v3793
      %v3876 = vadd.f32 %v3550, %v3798
      %v3877 = vadd.f32 %v3551, %v3801
      %v3878 = vadd.f32 %v3552, %v3806
      %v3879 = vadd.f32 %v3553, %v3809
      %v3880 = vadd.f32 %v3554, %v3814
      %v3881 = vadd.f32 %v3555, %v3817
      %v3882 = vadd.f32 %v3556, %v3822
      %v3883 = vadd.f32 %v3557, %v3825
      %v3884 = vadd.f32 %v3558, %v3830
      %v3885 = vadd.f32 %v3559, %v3833
      %v3886 = vadd.f32 %v3560, %v3838
      %v3887 = vadd.f32 %v3561, %v3841
      %v3888 = vadd.f32 %v3562, %v3846
      %v3889 = vadd.f32 %v3563, %v3849
      %v3890 = vadd.f32 %v3564, %v3854
      %v3891 = vadd.f32 %v3565, %v3857
      %v3892 = vld [vmem:[#allocation2 + $0x10] sm:$0xf]
      %v3893 = vld [vmem:[#allocation2 + $0x14] sm:$0xf]
      %v3894 = vld [vmem:[#allocation2 + $0x18] sm:$0xf]
      %v3895 = vld [vmem:[#allocation2 + $0x1c] sm:$0xf]
      %v3896 = vld [vmem:[#allocation2 + $0x20] sm:$0xf]
      %v3897 = vld [vmem:[#allocation2 + $0x24] sm:$0xf]
      %v3898 = vld [vmem:[#allocation2 + $0x28] sm:$0xf]
      %v3899 = vld [vmem:[#allocation2 + $0x2c] sm:$0xf]
      %v3900 = vld [vmem:[#allocation2 + $0x30] sm:$0xf]
      %v3901 = vld [vmem:[#allocation2 + $0x34] sm:$0xf]
      %v3902 = vld [vmem:[#allocation2 + $0x38] sm:$0xf]
      %v3903 = vld [vmem:[#allocation2 + $0x3c] sm:$0xf]
      %v3904 = vld [vmem:[#allocation2 + $0x40] sm:$0xf]
      %v3905 = vld [vmem:[#allocation2 + $0x44] sm:$0xf]
      %v3906 = vld [vmem:[#allocation2 + $0x48] sm:$0xf]
      %v3907 = vld [vmem:[#allocation2 + $0x4c] sm:$0xf]
      %v3908 = vld [vmem:[#allocation2 + $0x50] sm:$0xf]
      %v3909 = vld [vmem:[#allocation2 + $0x54] sm:$0xf]
      %v3910 = vld [vmem:[#allocation2 + $0x58] sm:$0xf]
      %v3911 = vld [vmem:[#allocation2 + $0x5c] sm:$0xf]
      %v3912 = vld [vmem:[#allocation2 + $0x60] sm:$0xf]
      %v3913 = vld [vmem:[#allocation2 + $0x64] sm:$0xf]
      %v3914 = vld [vmem:[#allocation2 + $0x68] sm:$0xf]
      %v3915 = vld [vmem:[#allocation2 + $0x6c] sm:$0xf]
      %v3916 = vld [vmem:[#allocation2 + $0x70] sm:$0xf]
      %v3917 = vld [vmem:[#allocation2 + $0x74] sm:$0xf]
      %v3918 = vld [vmem:[#allocation2 + $0x78] sm:$0xf]
      %v3919 = vld [vmem:[#allocation2 + $0x7c] sm:$0xf]
      %v3920 = vld [vmem:[#allocation2 + $0x80] sm:$0xf]
      %v3921 = vld [vmem:[#allocation2 + $0x84] sm:$0xf]
      %v3922 = vld [vmem:[#allocation2 + $0x88] sm:$0xf]
      %v3923 = vld [vmem:[#allocation2 + $0x8c] sm:$0xf]
      %v3924 = vld [vmem:[#allocation2 + $0x90] sm:$0x1]
      %v3925 = vsel %vm2491, %v3892, 0
      %v3926 = vsel %vm2492, %v3893, 0
      %v3927 = vsel %vm2493, %v3894, 0
      %v3928 = vsel %vm2494, %v3895, 0
      %v3929 = vsel %vm2495, %v3896, 0
      %v3930 = vsel %vm2496, %v3897, 0
      %v3931 = vsel %vm2497, %v3898, 0
      %v3932 = vsel %vm2498, %v3899, 0
      %v3933 = vsel %vm2499, %v3900, 0
      %v3934 = vsel %vm2500, %v3901, 0
      %v3935 = vsel %vm2501, %v3902, 0
      %v3936 = vsel %vm2502, %v3903, 0
      %v3937 = vsel %vm2503, %v3904, 0
      %v3938 = vsel %vm2504, %v3905, 0
      %v3939 = vsel %vm2505, %v3906, 0
      %v3940 = vsel %vm2506, %v3907, 0
      %v3941 = vsel %vm2507, %v3908, 0
      %v3942 = vsel %vm2508, %v3909, 0
      %v3943 = vsel %vm2509, %v3910, 0
      %v3944 = vsel %vm2510, %v3911, 0
      %v3945 = vsel %vm2511, %v3912, 0
      %v3946 = vsel %vm2512, %v3913, 0
      %v3947 = vsel %vm2513, %v3914, 0
      %v3948 = vsel %vm2514, %v3915, 0
      %v3949 = vsel %vm2515, %v3916, 0
      %v3950 = vsel %vm2516, %v3917, 0
      %v3951 = vsel %vm2517, %v3918, 0
      %v3952 = vsel %vm2518, %v3919, 0
      %v3953 = vsel %vm2519, %v3920, 0
      %v3954 = vsel %vm2520, %v3921, 0
      %v3955 = vsel %vm2521, %v3922, 0
      %v3956 = vsel %vm2522, %v3923, 0
      %v3957 = vsel %vm2523, %v3924, 0
      %s3958 = scalar_lea.vmem %s1, 10
      %v3959 = vld [vmem:[%s3958] sm:$0x3]
      %v3993 = vunpack.c.l.b16 %v3925
      %v3994 = vunpack.c.l.b16 %v3926
      %v3995 = vunpack.c.l.b16 %v3927
      %v3996 = vunpack.c.l.b16 %v3928
      %v3997 = vunpack.c.l.b16 %v3929
      %v3998 = vunpack.c.l.b16 %v3930
      %v3999 = vunpack.c.l.b16 %v3931
      %v4000 = vunpack.c.l.b16 %v3932
      %v4001 = vunpack.c.l.b16 %v3933
      %v4002 = vunpack.c.l.b16 %v3934
      %v4003 = vunpack.c.l.b16 %v3935
      %v4004 = vunpack.c.l.b16 %v3936
      %v4005 = vunpack.c.l.b16 %v3937
      %v4006 = vunpack.c.l.b16 %v3938
      %v4007 = vunpack.c.l.b16 %v3939
      %v4008 = vunpack.c.l.b16 %v3940
      %v4009 = vunpack.c.l.b16 %v3941
      %v4010 = vunpack.c.l.b16 %v3942
      %v4011 = vunpack.c.l.b16 %v3943
      %v4012 = vunpack.c.l.b16 %v3944
      %v4013 = vunpack.c.l.b16 %v3945
      %v4014 = vunpack.c.l.b16 %v3946
      %v4015 = vunpack.c.l.b16 %v3947
      %v4016 = vunpack.c.l.b16 %v3948
      %v4017 = vunpack.c.l.b16 %v3949
      %v4018 = vunpack.c.l.b16 %v3950
      %v4019 = vunpack.c.l.b16 %v3951
      %v4020 = vunpack.c.l.b16 %v3952
      %v4021 = vunpack.c.l.b16 %v3953
      %v4022 = vunpack.c.l.b16 %v3954
      %v4023 = vunpack.c.l.b16 %v3955
      %v4024 = vunpack.c.l.b16 %v3956
      %v4025 = vunpack.c.l.b16 %v3957
      %v4026 = vpack.c.b16 %v3994, %v3993
      %v4027 = vpack.c.b16 %v3996, %v3995
      %v4028 = vpack.c.b16 %v3998, %v3997
      %v4029 = vpack.c.b16 %v4000, %v3999
      %v4030 = vpack.c.b16 %v4002, %v4001
      %v4031 = vpack.c.b16 %v4004, %v4003
      %v4032 = vpack.c.b16 %v4006, %v4005
      %v4033 = vpack.c.b16 %v4008, %v4007
      %v4034 = vpack.c.b16 %v4010, %v4009
      %v4035 = vpack.c.b16 %v4012, %v4011
      %v4036 = vpack.c.b16 %v4014, %v4013
      %v4037 = vpack.c.b16 %v4016, %v4015
      %v4038 = vpack.c.b16 %v4018, %v4017
      %v4039 = vpack.c.b16 %v4020, %v4019
      %v4040 = vpack.c.b16 %v4022, %v4021
      %v4041 = vpack.c.b16 %v4024, %v4023
      %v4042 = vpack.c.b16 %v4025, %v4025
      %v4044 = vshrl.u32 %v4026, 16
      %v4046 = vshll.u32 %v4026, 16
      %v4048 = vrot.slane %v4046, 1
      %v4049 = vor.u32 %v4044, %v4048
      %v4051 = vshll.u32 %v4027, 16
      %v4053 = vrot.slane %v4051, 1
      %v4054 = vsel %vm2642, %v4049, %v4053
      %v4055 = vshrl.u32 %v4027, 16
      %v4057 = vor.u32 %v4055, %v4053
      %v4059 = vshll.u32 %v4028, 16
      %v4061 = vrot.slane %v4059, 1
      %v4062 = vsel %vm2642, %v4057, %v4061
      %v4063 = vshrl.u32 %v4028, 16
      %v4065 = vor.u32 %v4063, %v4061
      %v4067 = vshll.u32 %v4029, 16
      %v4069 = vrot.slane %v4067, 1
      %v4070 = vsel %vm2642, %v4065, %v4069
      %v4071 = vshrl.u32 %v4029, 16
      %v4073 = vor.u32 %v4071, %v4069
      %v4075 = vshll.u32 %v4030, 16
      %v4077 = vrot.slane %v4075, 1
      %v4078 = vsel %vm2642, %v4073, %v4077
      %v4079 = vshrl.u32 %v4030, 16
      %v4081 = vor.u32 %v4079, %v4077
      %v4083 = vshll.u32 %v4031, 16
      %v4085 = vrot.slane %v4083, 1
      %v4086 = vsel %vm2642, %v4081, %v4085
      %v4087 = vshrl.u32 %v4031, 16
      %v4089 = vor.u32 %v4087, %v4085
      %v4091 = vshll.u32 %v4032, 16
      %v4093 = vrot.slane %v4091, 1
      %v4094 = vsel %vm2642, %v4089, %v4093
      %v4095 = vshrl.u32 %v4032, 16
      %v4097 = vor.u32 %v4095, %v4093
      %v4099 = vshll.u32 %v4033, 16
      %v4101 = vrot.slane %v4099, 1
      %v4102 = vsel %vm2642, %v4097, %v4101
      %v4103 = vshrl.u32 %v4033, 16
      %v4105 = vor.u32 %v4103, %v4101
      %v4107 = vshll.u32 %v4034, 16
      %v4109 = vrot.slane %v4107, 1
      %v4110 = vsel %vm2642, %v4105, %v4109
      %v4111 = vshrl.u32 %v4034, 16
      %v4113 = vor.u32 %v4111, %v4109
      %v4115 = vshll.u32 %v4035, 16
      %v4117 = vrot.slane %v4115, 1
      %v4118 = vsel %vm2642, %v4113, %v4117
      %v4119 = vshrl.u32 %v4035, 16
      %v4121 = vor.u32 %v4119, %v4117
      %v4123 = vshll.u32 %v4036, 16
      %v4125 = vrot.slane %v4123, 1
      %v4126 = vsel %vm2642, %v4121, %v4125
      %v4127 = vshrl.u32 %v4036, 16
      %v4129 = vor.u32 %v4127, %v4125
      %v4131 = vshll.u32 %v4037, 16
      %v4133 = vrot.slane %v4131, 1
      %v4134 = vsel %vm2642, %v4129, %v4133
      %v4135 = vshrl.u32 %v4037, 16
      %v4137 = vor.u32 %v4135, %v4133
      %v4139 = vshll.u32 %v4038, 16
      %v4141 = vrot.slane %v4139, 1
      %v4142 = vsel %vm2642, %v4137, %v4141
      %v4143 = vshrl.u32 %v4038, 16
      %v4145 = vor.u32 %v4143, %v4141
      %v4147 = vshll.u32 %v4039, 16
      %v4149 = vrot.slane %v4147, 1
      %v4150 = vsel %vm2642, %v4145, %v4149
      %v4151 = vshrl.u32 %v4039, 16
      %v4153 = vor.u32 %v4151, %v4149
      %v4155 = vshll.u32 %v4040, 16
      %v4157 = vrot.slane %v4155, 1
      %v4158 = vsel %vm2642, %v4153, %v4157
      %v4159 = vshrl.u32 %v4040, 16
      %v4161 = vor.u32 %v4159, %v4157
      %v4163 = vshll.u32 %v4041, 16
      %v4165 = vrot.slane %v4163, 1
      %v4166 = vsel %vm2642, %v4161, %v4165
      %v4167 = vshrl.u32 %v4041, 16
      %v4169 = vor.u32 %v4167, %v4165
      %v4171 = vshll.u32 %v4042, 16
      %v4173 = vrot.slane %v4171, 1
      %v4174 = vsel %vm2642, %v4169, %v4173
      %v4176 = vsel %vm1379, %v4054, 0
      %v4179 = vsel %vm1379, %v4062, 0
      %v4182 = vsel %vm1379, %v4070, 0
      %v4185 = vsel %vm1379, %v4078, 0
      %v4188 = vsel %vm1379, %v4086, 0
      %v4191 = vsel %vm1379, %v4094, 0
      %v4194 = vsel %vm1379, %v4102, 0
      %v4197 = vsel %vm1379, %v4110, 0
      %v4200 = vsel %vm1379, %v4118, 0
      %v4203 = vsel %vm1379, %v4126, 0
      %v4206 = vsel %vm1379, %v4134, 0
      %v4209 = vsel %vm1379, %v4142, 0
      %v4212 = vsel %vm1379, %v4150, 0
      %v4215 = vsel %vm1379, %v4158, 0
      %v4218 = vsel %vm1379, %v4166, 0
      %v4221 = vsel %vm1379, %v4174, 0
      %v4224 = vsel %vm1428, %v3959, 0
      %4226 = vmatprep.subr.bf16.mxu0 0
      %4227 = vmatpush1.bf16.msra.mxu0 %v4224
      %4228 = vmatprep.subr.bf16.mxu0 0
      %4229 = vmatpush1.bf16.msra.mxu0 0
      %4230 = vmatprep.subr.bf16.mxu0 0
      %4231 = vmatpush1.bf16.msra.mxu0 0
      %4232 = vmatprep.subr.bf16.mxu0 0
      %4233 = vmatpush1.bf16.msra.mxu0 0
      %4234 = vmatprep.subr.bf16.mxu0 0
      %4235 = vmatpush1.bf16.msra.mxu0 0
      %4236 = vmatprep.subr.bf16.mxu0 0
      %4237 = vmatpush1.bf16.msra.mxu0 0
      %4238 = vmatprep.subr.bf16.mxu0 0
      %4239 = vmatpush1.bf16.msra.mxu0 0
      %4240 = vmatprep.subr.bf16.mxu0 0
      %4241 = vmatpush1.bf16.msra.mxu0 0
      %4242 = vmatprep.subr.bf16.mxu0 0
      %4243 = vmatpush1.bf16.msra.mxu0 0
      %4244 = vmatprep.subr.bf16.mxu0 0
      %4245 = vmatpush1.bf16.msra.mxu0 0
      %4246 = vmatprep.subr.bf16.mxu0 0
      %4247 = vmatpush1.bf16.msra.mxu0 0
      %4248 = vmatprep.subr.bf16.mxu0 0
      %4249 = vmatpush1.bf16.msra.mxu0 0
      %4250 = vmatprep.subr.bf16.mxu0 0
      %4251 = vmatpush1.bf16.msra.mxu0 0
      %4252 = vmatprep.subr.bf16.mxu0 0
      %4253 = vmatpush1.bf16.msra.mxu0 0
      %4254 = vmatprep.subr.bf16.mxu0 0
      %4255 = vmatpush1.bf16.msra.mxu0 0
      %4256 = vmatprep.subr.bf16.mxu0 0
      %4257 = vmatpush1.bf16.msra.mxu0 0
      %4258 = vmatprep.mubr.bf16.mxu0 0
      %4259 = vmatmul.mubr.bf16.gmra.mrb[0].mxu0 %v4176
      %v4260 = vpop.f32.mrb[0].mxu0
      %v4261 = vadd.f32 0.0, %v4260
      %v4262 = vpop.f32.mrb[0].mxu0
      %v4263 = vpop.f32.mrb[0].mxu0
      %v4264 = vadd.f32 0.0, %v4263
      %v4265 = vpop.f32.mrb[0].mxu0
      %4266 = vmatprep.mubr.bf16.mxu0 0
      %4267 = vmatmul.mubr.bf16.gmra.mrb[0].mxu0 %v4179
      %v4268 = vpop.f32.mrb[0].mxu0
      %v4269 = vadd.f32 0.0, %v4268
      %v4270 = vpop.f32.mrb[0].mxu0
      %v4271 = vpop.f32.mrb[0].mxu0
      %v4272 = vadd.f32 0.0, %v4271
      %v4273 = vpop.f32.mrb[0].mxu0
      %4274 = vmatprep.mubr.bf16.mxu0 0
      %4275 = vmatmul.mubr.bf16.gmra.mrb[0].mxu0 %v4182
      %v4276 = vpop.f32.mrb[0].mxu0
      %v4277 = vadd.f32 0.0, %v4276
      %v4278 = vpop.f32.mrb[0].mxu0
      %v4279 = vpop.f32.mrb[0].mxu0
      %v4280 = vadd.f32 0.0, %v4279
      %v4281 = vpop.f32.mrb[0].mxu0
      %4282 = vmatprep.mubr.bf16.mxu0 0
      %4283 = vmatmul.mubr.bf16.gmra.mrb[0].mxu0 %v4185
      %v4284 = vpop.f32.mrb[0].mxu0
      %v4285 = vadd.f32 0.0, %v4284
      %v4286 = vpop.f32.mrb[0].mxu0
      %v4287 = vpop.f32.mrb[0].mxu0
      %v4288 = vadd.f32 0.0, %v4287
      %v4289 = vpop.f32.mrb[0].mxu0
      %4290 = vmatprep.mubr.bf16.mxu0 0
      %4291 = vmatmul.mubr.bf16.gmra.mrb[0].mxu0 %v4188
      %v4292 = vpop.f32.mrb[0].mxu0
      %v4293 = vadd.f32 0.0, %v4292
      %v4294 = vpop.f32.mrb[0].mxu0
      %v4295 = vpop.f32.mrb[0].mxu0
      %v4296 = vadd.f32 0.0, %v4295
      %v4297 = vpop.f32.mrb[0].mxu0
      %4298 = vmatprep.mubr.bf16.mxu0 0
      %4299 = vmatmul.mubr.bf16.gmra.mrb[0].mxu0 %v4191
      %v4300 = vpop.f32.mrb[0].mxu0
      %v4301 = vadd.f32 0.0, %v4300
      %v4302 = vpop.f32.mrb[0].mxu0
      %v4303 = vpop.f32.mrb[0].mxu0
      %v4304 = vadd.f32 0.0, %v4303
      %v4305 = vpop.f32.mrb[0].mxu0
      %4306 = vmatprep.mubr.bf16.mxu0 0
      %4307 = vmatmul.mubr.bf16.gmra.mrb[0].mxu0 %v4194
      %v4308 = vpop.f32.mrb[0].mxu0
      %v4309 = vadd.f32 0.0, %v4308
      %v4310 = vpop.f32.mrb[0].mxu0
      %v4311 = vpop.f32.mrb[0].mxu0
      %v4312 = vadd.f32 0.0, %v4311
      %v4313 = vpop.f32.mrb[0].mxu0
      %4314 = vmatprep.mubr.bf16.mxu0 0
      %4315 = vmatmul.mubr.bf16.gmra.mrb[0].mxu0 %v4197
      %v4316 = vpop.f32.mrb[0].mxu0
      %v4317 = vadd.f32 0.0, %v4316
      %v4318 = vpop.f32.mrb[0].mxu0
      %v4319 = vpop.f32.mrb[0].mxu0
      %v4320 = vadd.f32 0.0, %v4319
      %v4321 = vpop.f32.mrb[0].mxu0
      %4322 = vmatprep.mubr.bf16.mxu0 0
      %4323 = vmatmul.mubr.bf16.gmra.mrb[0].mxu0 %v4200
      %v4324 = vpop.f32.mrb[0].mxu0
      %v4325 = vadd.f32 0.0, %v4324
      %v4326 = vpop.f32.mrb[0].mxu0
      %v4327 = vpop.f32.mrb[0].mxu0
      %v4328 = vadd.f32 0.0, %v4327
      %v4329 = vpop.f32.mrb[0].mxu0
      %4330 = vmatprep.mubr.bf16.mxu0 0
      %4331 = vmatmul.mubr.bf16.gmra.mrb[0].mxu0 %v4203
      %v4332 = vpop.f32.mrb[0].mxu0
      %v4333 = vadd.f32 0.0, %v4332
      %v4334 = vpop.f32.mrb[0].mxu0
      %v4335 = vpop.f32.mrb[0].mxu0
      %v4336 = vadd.f32 0.0, %v4335
      %v4337 = vpop.f32.mrb[0].mxu0
      %4338 = vmatprep.mubr.bf16.mxu0 0
      %4339 = vmatmul.mubr.bf16.gmra.mrb[0].mxu0 %v4206
      %v4340 = vpop.f32.mrb[0].mxu0
      %v4341 = vadd.f32 0.0, %v4340
      %v4342 = vpop.f32.mrb[0].mxu0
      %v4343 = vpop.f32.mrb[0].mxu0
      %v4344 = vadd.f32 0.0, %v4343
      %v4345 = vpop.f32.mrb[0].mxu0
      %4346 = vmatprep.mubr.bf16.mxu0 0
      %4347 = vmatmul.mubr.bf16.gmra.mrb[0].mxu0 %v4209
      %v4348 = vpop.f32.mrb[0].mxu0
      %v4349 = vadd.f32 0.0, %v4348
      %v4350 = vpop.f32.mrb[0].mxu0
      %v4351 = vpop.f32.mrb[0].mxu0
      %v4352 = vadd.f32 0.0, %v4351
      %v4353 = vpop.f32.mrb[0].mxu0
      %4354 = vmatprep.mubr.bf16.mxu0 0
      %4355 = vmatmul.mubr.bf16.gmra.mrb[0].mxu0 %v4212
      %v4356 = vpop.f32.mrb[0].mxu0
      %v4357 = vadd.f32 0.0, %v4356
      %v4358 = vpop.f32.mrb[0].mxu0
      %v4359 = vpop.f32.mrb[0].mxu0
      %v4360 = vadd.f32 0.0, %v4359
      %v4361 = vpop.f32.mrb[0].mxu0
      %4362 = vmatprep.mubr.bf16.mxu0 0
      %4363 = vmatmul.mubr.bf16.gmra.mrb[0].mxu0 %v4215
      %v4364 = vpop.f32.mrb[0].mxu0
      %v4365 = vadd.f32 0.0, %v4364
      %v4366 = vpop.f32.mrb[0].mxu0
      %v4367 = vpop.f32.mrb[0].mxu0
      %v4368 = vadd.f32 0.0, %v4367
      %v4369 = vpop.f32.mrb[0].mxu0
      %4370 = vmatprep.mubr.bf16.mxu0 0
      %4371 = vmatmul.mubr.bf16.gmra.mrb[0].mxu0 %v4218
      %v4372 = vpop.f32.mrb[0].mxu0
      %v4373 = vadd.f32 0.0, %v4372
      %v4374 = vpop.f32.mrb[0].mxu0
      %v4375 = vpop.f32.mrb[0].mxu0
      %v4376 = vadd.f32 0.0, %v4375
      %v4377 = vpop.f32.mrb[0].mxu0
      %4378 = vmatprep.mubr.bf16.mxu0 0
      %4379 = vmatmul.mubr.bf16.gmra.mrb[0].mxu0 %v4221
      %v4380 = vpop.f32.mrb[0].mxu0
      %v4381 = vadd.f32 0.0, %v4380
      %v4382 = vpop.f32.mrb[0].mxu0
      %v4383 = vpop.f32.mrb[0].mxu0
      %v4384 = vadd.f32 0.0, %v4383
      %v4385 = vpop.f32.mrb[0].mxu0
      %4386 = vdwg.mxu0
      %v4387 = vadd.f32 %v3860, %v4261
      %v4388 = vadd.f32 %v3861, %v4264
      %v4389 = vadd.f32 %v3862, %v4269
      %v4390 = vadd.f32 %v3863, %v4272
      %v4391 = vadd.f32 %v3864, %v4277
      %v4392 = vadd.f32 %v3865, %v4280
      %v4393 = vadd.f32 %v3866, %v4285
      %v4394 = vadd.f32 %v3867, %v4288
      %v4395 = vadd.f32 %v3868, %v4293
      %v4396 = vadd.f32 %v3869, %v4296
      %v4397 = vadd.f32 %v3870, %v4301
      %v4398 = vadd.f32 %v3871, %v4304
      %v4399 = vadd.f32 %v3872, %v4309
      %v4400 = vadd.f32 %v3873, %v4312
      %v4401 = vadd.f32 %v3874, %v4317
      %v4402 = vadd.f32 %v3875, %v4320
      %v4403 = vadd.f32 %v3876, %v4325
      %v4404 = vadd.f32 %v3877, %v4328
      %v4405 = vadd.f32 %v3878, %v4333
      %v4406 = vadd.f32 %v3879, %v4336
      %v4407 = vadd.f32 %v3880, %v4341
      %v4408 = vadd.f32 %v3881, %v4344
      %v4409 = vadd.f32 %v3882, %v4349
      %v4410 = vadd.f32 %v3883, %v4352
      %v4411 = vadd.f32 %v3884, %v4357
      %v4412 = vadd.f32 %v3885, %v4360
      %v4413 = vadd.f32 %v3886, %v4365
      %v4414 = vadd.f32 %v3887, %v4368
      %v4415 = vadd.f32 %v3888, %v4373
      %v4416 = vadd.f32 %v3889, %v4376
      %v4417 = vadd.f32 %v3890, %v4381
      %v4418 = vadd.f32 %v3891, %v4384
      %v4419 = vld [vmem:[#allocation2 + $0x14] sm:$0x8]
      %v4420 = vld [vmem:[#allocation2 + $0x18] sm:$0xf]
      %v4421 = vld [vmem:[#allocation2 + $0x1c] sm:$0xf]
      %v4422 = vld [vmem:[#allocation2 + $0x20] sm:$0xf]
      %v4423 = vld [vmem:[#allocation2 + $0x24] sm:$0xf]
      %v4424 = vld [vmem:[#allocation2 + $0x28] sm:$0xf]
      %v4425 = vld [vmem:[#allocation2 + $0x2c] sm:$0xf]
      %v4426 = vld [vmem:[#allocation2 + $0x30] sm:$0xf]
      %v4427 = vld [vmem:[#allocation2 + $0x34] sm:$0xf]
      %v4428 = vld [vmem:[#allocation2 + $0x38] sm:$0xf]
      %v4429 = vld [vmem:[#allocation2 + $0x3c] sm:$0xf]
      %v4430 = vld [vmem:[#allocation2 + $0x40] sm:$0xf]
      %v4431 = vld [vmem:[#allocation2 + $0x44] sm:$0xf]
      %v4432 = vld [vmem:[#allocation2 + $0x48] sm:$0xf]
      %v4433 = vld [vmem:[#allocation2 + $0x4c] sm:$0xf]
      %v4434 = vld [vmem:[#allocation2 + $0x50] sm:$0xf]
      %v4435 = vld [vmem:[#allocation2 + $0x54] sm:$0xf]
      %v4436 = vld [vmem:[#allocation2 + $0x58] sm:$0xf]
      %v4437 = vld [vmem:[#allocation2 + $0x5c] sm:$0xf]
      %v4438 = vld [vmem:[#allocation2 + $0x60] sm:$0xf]
      %v4439 = vld [vmem:[#allocation2 + $0x64] sm:$0xf]
      %v4440 = vld [vmem:[#allocation2 + $0x68] sm:$0xf]
      %v4441 = vld [vmem:[#allocation2 + $0x6c] sm:$0xf]
      %v4442 = vld [vmem:[#allocation2 + $0x70] sm:$0xf]
      %v4443 = vld [vmem:[#allocation2 + $0x74] sm:$0xf]
      %v4444 = vld [vmem:[#allocation2 + $0x78] sm:$0xf]
      %v4445 = vld [vmem:[#allocation2 + $0x7c] sm:$0xf]
      %v4446 = vld [vmem:[#allocation2 + $0x80] sm:$0xf]
      %v4447 = vld [vmem:[#allocation2 + $0x84] sm:$0xf]
      %v4448 = vld [vmem:[#allocation2 + $0x88] sm:$0xf]
      %v4449 = vld [vmem:[#allocation2 + $0x8c] sm:$0xf]
      %v4450 = vld [vmem:[#allocation2 + $0x90] sm:$0xf]
      %v4451 = vld [vmem:[#allocation2 + $0x94] sm:$0xf]
      %v4452 = vsel %vm1230, %v4419, 0
      %v4453 = vsel %vm1231, %v4420, 0
      %v4454 = vsel %vm1232, %v4421, 0
      %v4455 = vsel %vm1233, %v4422, 0
      %v4456 = vsel %vm1234, %v4423, 0
      %v4457 = vsel %vm1235, %v4424, 0
      %v4458 = vsel %vm1236, %v4425, 0
      %v4459 = vsel %vm1237, %v4426, 0
      %v4460 = vsel %vm1238, %v4427, 0
      %v4461 = vsel %vm1239, %v4428, 0
      %v4462 = vsel %vm1240, %v4429, 0
      %v4463 = vsel %vm1241, %v4430, 0
      %v4464 = vsel %vm1242, %v4431, 0
      %v4465 = vsel %vm1243, %v4432, 0
      %v4466 = vsel %vm1244, %v4433, 0
      %v4467 = vsel %vm1245, %v4434, 0
      %v4468 = vsel %vm1246, %v4435, 0
      %v4469 = vsel %vm1247, %v4436, 0
      %v4470 = vsel %vm1248, %v4437, 0
      %v4471 = vsel %vm1249, %v4438, 0
      %v4472 = vsel %vm1250, %v4439, 0
      %v4473 = vsel %vm1251, %v4440, 0
      %v4474 = vsel %vm1252, %v4441, 0
      %v4475 = vsel %vm1253, %v4442, 0
      %v4476 = vsel %vm1254, %v4443, 0
      %v4477 = vsel %vm1255, %v4444, 0
      %v4478 = vsel %vm1256, %v4445, 0
      %v4479 = vsel %vm1257, %v4446, 0
      %v4480 = vsel %vm1258, %v4447, 0
      %v4481 = vsel %vm1259, %v4448, 0
      %v4482 = vsel %vm1260, %v4449, 0
      %v4483 = vsel %vm1261, %v4450, 0
      %v4484 = vsel %vm1262, %v4451, 0
      %s4485 = scalar_lea.vmem %s1, 12
      %v4486 = vld [vmem:[%s4485] sm:$0x3]
      %v4520 = vunpack.c.l.b16 %v4452
      %v4521 = vunpack.c.l.b16 %v4453
      %v4522 = vunpack.c.l.b16 %v4454
      %v4523 = vunpack.c.l.b16 %v4455
      %v4524 = vunpack.c.l.b16 %v4456
      %v4525 = vunpack.c.l.b16 %v4457
      %v4526 = vunpack.c.l.b16 %v4458
      %v4527 = vunpack.c.l.b16 %v4459
      %v4528 = vunpack.c.l.b16 %v4460
      %v4529 = vunpack.c.l.b16 %v4461
      %v4530 = vunpack.c.l.b16 %v4462
      %v4531 = vunpack.c.l.b16 %v4463
      %v4532 = vunpack.c.l.b16 %v4464
      %v4533 = vunpack.c.l.b16 %v4465
      %v4534 = vunpack.c.l.b16 %v4466
      %v4535 = vunpack.c.l.b16 %v4467
      %v4536 = vunpack.c.l.b16 %v4468
      %v4537 = vunpack.c.l.b16 %v4469
      %v4538 = vunpack.c.l.b16 %v4470
      %v4539 = vunpack.c.l.b16 %v4471
      %v4540 = vunpack.c.l.b16 %v4472
      %v4541 = vunpack.c.l.b16 %v4473
      %v4542 = vunpack.c.l.b16 %v4474
      %v4543 = vunpack.c.l.b16 %v4475
      %v4544 = vunpack.c.l.b16 %v4476
      %v4545 = vunpack.c.l.b16 %v4477
      %v4546 = vunpack.c.l.b16 %v4478
      %v4547 = vunpack.c.l.b16 %v4479
      %v4548 = vunpack.c.l.b16 %v4480
      %v4549 = vunpack.c.l.b16 %v4481
      %v4550 = vunpack.c.l.b16 %v4482
      %v4551 = vunpack.c.l.b16 %v4483
      %v4552 = vunpack.c.l.b16 %v4484
      %v4553 = vpack.c.b16 %v4521, %v4520
      %v4554 = vpack.c.b16 %v4523, %v4522
      %v4555 = vpack.c.b16 %v4525, %v4524
      %v4556 = vpack.c.b16 %v4527, %v4526
      %v4557 = vpack.c.b16 %v4529, %v4528
      %v4558 = vpack.c.b16 %v4531, %v4530
      %v4559 = vpack.c.b16 %v4533, %v4532
      %v4560 = vpack.c.b16 %v4535, %v4534
      %v4561 = vpack.c.b16 %v4537, %v4536
      %v4562 = vpack.c.b16 %v4539, %v4538
      %v4563 = vpack.c.b16 %v4541, %v4540
      %v4564 = vpack.c.b16 %v4543, %v4542
      %v4565 = vpack.c.b16 %v4545, %v4544
      %v4566 = vpack.c.b16 %v4547, %v4546
      %v4567 = vpack.c.b16 %v4549, %v4548
      %v4568 = vpack.c.b16 %v4551, %v4550
      %v4569 = vpack.c.b16 %v4552, %v4552
      %v4571 = vshrl.u32 %v4553, 16
      %v4573 = vrot.slane %v4571, 3
      %v4574 = vshll.u32 %v4553, 16
      %v4576 = vrot.slane %v4574, 4
      %v4577 = vor.u32 %v4573, %v4576
      %v4579 = vshrl.u32 %v4554, 16
      %v4581 = vrot.slane %v4579, 3
      %v4582 = vshll.u32 %v4554, 16
      %v4584 = vrot.slane %v4582, 4
      %v4585 = vor.u32 %v4581, %v4584
      %v4586 = vsel %vm1676, %v4577, %v4585
      %v4588 = vshrl.u32 %v4555, 16
      %v4590 = vrot.slane %v4588, 3
      %v4591 = vshll.u32 %v4555, 16
      %v4593 = vrot.slane %v4591, 4
      %v4594 = vor.u32 %v4590, %v4593
      %v4595 = vsel %vm1676, %v4585, %v4594
      %v4597 = vshrl.u32 %v4556, 16
      %v4599 = vrot.slane %v4597, 3
      %v4600 = vshll.u32 %v4556, 16
      %v4602 = vrot.slane %v4600, 4
      %v4603 = vor.u32 %v4599, %v4602
      %v4604 = vsel %vm1676, %v4594, %v4603
      %v4606 = vshrl.u32 %v4557, 16
      %v4608 = vrot.slane %v4606, 3
      %v4609 = vshll.u32 %v4557, 16
      %v4611 = vrot.slane %v4609, 4
      %v4612 = vor.u32 %v4608, %v4611
      %v4613 = vsel %vm1676, %v4603, %v4612
      %v4615 = vshrl.u32 %v4558, 16
      %v4617 = vrot.slane %v4615, 3
      %v4618 = vshll.u32 %v4558, 16
      %v4620 = vrot.slane %v4618, 4
      %v4621 = vor.u32 %v4617, %v4620
      %v4622 = vsel %vm1676, %v4612, %v4621
      %v4624 = vshrl.u32 %v4559, 16
      %v4626 = vrot.slane %v4624, 3
      %v4627 = vshll.u32 %v4559, 16
      %v4629 = vrot.slane %v4627, 4
      %v4630 = vor.u32 %v4626, %v4629
      %v4631 = vsel %vm1676, %v4621, %v4630
      %v4633 = vshrl.u32 %v4560, 16
      %v4635 = vrot.slane %v4633, 3
      %v4636 = vshll.u32 %v4560, 16
      %v4638 = vrot.slane %v4636, 4
      %v4639 = vor.u32 %v4635, %v4638
      %v4640 = vsel %vm1676, %v4630, %v4639
      %v4642 = vshrl.u32 %v4561, 16
      %v4644 = vrot.slane %v4642, 3
      %v4645 = vshll.u32 %v4561, 16
      %v4647 = vrot.slane %v4645, 4
      %v4648 = vor.u32 %v4644, %v4647
      %v4649 = vsel %vm1676, %v4639, %v4648
      %v4651 = vshrl.u32 %v4562, 16
      %v4653 = vrot.slane %v4651, 3
      %v4654 = vshll.u32 %v4562, 16
      %v4656 = vrot.slane %v4654, 4
      %v4657 = vor.u32 %v4653, %v4656
      %v4658 = vsel %vm1676, %v4648, %v4657
      %v4660 = vshrl.u32 %v4563, 16
      %v4662 = vrot.slane %v4660, 3
      %v4663 = vshll.u32 %v4563, 16
      %v4665 = vrot.slane %v4663, 4
      %v4666 = vor.u32 %v4662, %v4665
      %v4667 = vsel %vm1676, %v4657, %v4666
      %v4669 = vshrl.u32 %v4564, 16
      %v4671 = vrot.slane %v4669, 3
      %v4672 = vshll.u32 %v4564, 16
      %v4674 = vrot.slane %v4672, 4
      %v4675 = vor.u32 %v4671, %v4674
      %v4676 = vsel %vm1676, %v4666, %v4675
      %v4678 = vshrl.u32 %v4565, 16
      %v4680 = vrot.slane %v4678, 3
      %v4681 = vshll.u32 %v4565, 16
      %v4683 = vrot.slane %v4681, 4
      %v4684 = vor.u32 %v4680, %v4683
      %v4685 = vsel %vm1676, %v4675, %v4684
      %v4687 = vshrl.u32 %v4566, 16
      %v4689 = vrot.slane %v4687, 3
      %v4690 = vshll.u32 %v4566, 16
      %v4692 = vrot.slane %v4690, 4
      %v4693 = vor.u32 %v4689, %v4692
      %v4694 = vsel %vm1676, %v4684, %v4693
      %v4696 = vshrl.u32 %v4567, 16
      %v4698 = vrot.slane %v4696, 3
      %v4699 = vshll.u32 %v4567, 16
      %v4701 = vrot.slane %v4699, 4
      %v4702 = vor.u32 %v4698, %v4701
      %v4703 = vsel %vm1676, %v4693, %v4702
      %v4705 = vshrl.u32 %v4568, 16
      %v4707 = vrot.slane %v4705, 3
      %v4708 = vshll.u32 %v4568, 16
      %v4710 = vrot.slane %v4708, 4
      %v4711 = vor.u32 %v4707, %v4710
      %v4712 = vsel %vm1676, %v4702, %v4711
      %v4714 = vshrl.u32 %v4569, 16
      %v4716 = vrot.slane %v4714, 3
      %v4717 = vshll.u32 %v4569, 16
      %v4719 = vrot.slane %v4717, 4
      %v4720 = vor.u32 %v4716, %v4719
      %v4721 = vsel %vm1676, %v4711, %v4720
      %v4723 = vsel %vm1379, %v4586, 0
      %v4726 = vsel %vm1379, %v4595, 0
      %v4729 = vsel %vm1379, %v4604, 0
      %v4732 = vsel %vm1379, %v4613, 0
      %v4735 = vsel %vm1379, %v4622, 0
      %v4738 = vsel %vm1379, %v4631, 0
      %v4741 = vsel %vm1379, %v4640, 0
      %v4744 = vsel %vm1379, %v4649, 0
      %v4747 = vsel %vm1379, %v4658, 0
      %v4750 = vsel %vm1379, %v4667, 0
      %v4753 = vsel %vm1379, %v4676, 0
      %v4756 = vsel %vm1379, %v4685, 0
      %v4759 = vsel %vm1379, %v4694, 0
      %v4762 = vsel %vm1379, %v4703, 0
      %v4765 = vsel %vm1379, %v4712, 0
      %v4768 = vsel %vm1379, %v4721, 0
      %v4771 = vsel %vm1428, %v4486, 0
      %4773 = vmatprep.subr.bf16.mxu0 0
      %4774 = vmatpush1.bf16.msra.mxu0 %v4771
      %4775 = vmatprep.subr.bf16.mxu0 0
      %4776 = vmatpush1.bf16.msra.mxu0 0
      %4777 = vmatprep.subr.bf16.mxu0 0
      %4778 = vmatpush1.bf16.msra.mxu0 0
      %4779 = vmatprep.subr.bf16.mxu0 0
      %4780 = vmatpush1.bf16.msra.mxu0 0
      %4781 = vmatprep.subr.bf16.mxu0 0
      %4782 = vmatpush1.bf16.msra.mxu0 0
      %4783 = vmatprep.subr.bf16.mxu0 0
      %4784 = vmatpush1.bf16.msra.mxu0 0
      %4785 = vmatprep.subr.bf16.mxu0 0
      %4786 = vmatpush1.bf16.msra.mxu0 0
      %4787 = vmatprep.subr.bf16.mxu0 0
      %4788 = vmatpush1.bf16.msra.mxu0 0
      %4789 = vmatprep.subr.bf16.mxu0 0
      %4790 = vmatpush1.bf16.msra.mxu0 0
      %4791 = vmatprep.subr.bf16.mxu0 0
      %4792 = vmatpush1.bf16.msra.mxu0 0
      %4793 = vmatprep.subr.bf16.mxu0 0
      %4794 = vmatpush1.bf16.msra.mxu0 0
      %4795 = vmatprep.subr.bf16.mxu0 0
      %4796 = vmatpush1.bf16.msra.mxu0 0
      %4797 = vmatprep.subr.bf16.mxu0 0
      %4798 = vmatpush1.bf16.msra.mxu0 0
      %4799 = vmatprep.subr.bf16.mxu0 0
      %4800 = vmatpush1.bf16.msra.mxu0 0
      %4801 = vmatprep.subr.bf16.mxu0 0
      %4802 = vmatpush1.bf16.msra.mxu0 0
      %4803 = vmatprep.subr.bf16.mxu0 0
      %4804 = vmatpush1.bf16.msra.mxu0 0
      %4805 = vmatprep.mubr.bf16.mxu0 0
      %4806 = vmatmul.mubr.bf16.gmra.mrb[0].mxu0 %v4723
      %v4807 = vpop.f32.mrb[0].mxu0
      %v4808 = vadd.f32 0.0, %v4807
      %v4809 = vpop.f32.mrb[0].mxu0
      %v4810 = vpop.f32.mrb[0].mxu0
      %v4811 = vadd.f32 0.0, %v4810
      %v4812 = vpop.f32.mrb[0].mxu0
      %4813 = vmatprep.mubr.bf16.mxu0 0
      %4814 = vmatmul.mubr.bf16.gmra.mrb[0].mxu0 %v4726
      %v4815 = vpop.f32.mrb[0].mxu0
      %v4816 = vadd.f32 0.0, %v4815
      %v4817 = vpop.f32.mrb[0].mxu0
      %v4818 = vpop.f32.mrb[0].mxu0
      %v4819 = vadd.f32 0.0, %v4818
      %v4820 = vpop.f32.mrb[0].mxu0
      %4821 = vmatprep.mubr.bf16.mxu0 0
      %4822 = vmatmul.mubr.bf16.gmra.mrb[0].mxu0 %v4729
      %v4823 = vpop.f32.mrb[0].mxu0
      %v4824 = vadd.f32 0.0, %v4823
      %v4825 = vpop.f32.mrb[0].mxu0
      %v4826 = vpop.f32.mrb[0].mxu0
      %v4827 = vadd.f32 0.0, %v4826
      %v4828 = vpop.f32.mrb[0].mxu0
      %4829 = vmatprep.mubr.bf16.mxu0 0
      %4830 = vmatmul.mubr.bf16.gmra.mrb[0].mxu0 %v4732
      %v4831 = vpop.f32.mrb[0].mxu0
      %v4832 = vadd.f32 0.0, %v4831
      %v4833 = vpop.f32.mrb[0].mxu0
      %v4834 = vpop.f32.mrb[0].mxu0
      %v4835 = vadd.f32 0.0, %v4834
      %v4836 = vpop.f32.mrb[0].mxu0
      %4837 = vmatprep.mubr.bf16.mxu0 0
      %4838 = vmatmul.mubr.bf16.gmra.mrb[0].mxu0 %v4735
      %v4839 = vpop.f32.mrb[0].mxu0
      %v4840 = vadd.f32 0.0, %v4839
      %v4841 = vpop.f32.mrb[0].mxu0
      %v4842 = vpop.f32.mrb[0].mxu0
      %v4843 = vadd.f32 0.0, %v4842
      %v4844 = vpop.f32.mrb[0].mxu0
      %4845 = vmatprep.mubr.bf16.mxu0 0
      %4846 = vmatmul.mubr.bf16.gmra.mrb[0].mxu0 %v4738
      %v4847 = vpop.f32.mrb[0].mxu0
      %v4848 = vadd.f32 0.0, %v4847
      %v4849 = vpop.f32.mrb[0].mxu0
      %v4850 = vpop.f32.mrb[0].mxu0
      %v4851 = vadd.f32 0.0, %v4850
      %v4852 = vpop.f32.mrb[0].mxu0
      %4853 = vmatprep.mubr.bf16.mxu0 0
      %4854 = vmatmul.mubr.bf16.gmra.mrb[0].mxu0 %v4741
      %v4855 = vpop.f32.mrb[0].mxu0
      %v4856 = vadd.f32 0.0, %v4855
      %v4857 = vpop.f32.mrb[0].mxu0
      %v4858 = vpop.f32.mrb[0].mxu0
      %v4859 = vadd.f32 0.0, %v4858
      %v4860 = vpop.f32.mrb[0].mxu0
      %4861 = vmatprep.mubr.bf16.mxu0 0
      %4862 = vmatmul.mubr.bf16.gmra.mrb[0].mxu0 %v4744
      %v4863 = vpop.f32.mrb[0].mxu0
      %v4864 = vadd.f32 0.0, %v4863
      %v4865 = vpop.f32.mrb[0].mxu0
      %v4866 = vpop.f32.mrb[0].mxu0
      %v4867 = vadd.f32 0.0, %v4866
      %v4868 = vpop.f32.mrb[0].mxu0
      %4869 = vmatprep.mubr.bf16.mxu0 0
      %4870 = vmatmul.mubr.bf16.gmra.mrb[0].mxu0 %v4747
      %v4871 = vpop.f32.mrb[0].mxu0
      %v4872 = vadd.f32 0.0, %v4871
      %v4873 = vpop.f32.mrb[0].mxu0
      %v4874 = vpop.f32.mrb[0].mxu0
      %v4875 = vadd.f32 0.0, %v4874
      %v4876 = vpop.f32.mrb[0].mxu0
      %4877 = vmatprep.mubr.bf16.mxu0 0
      %4878 = vmatmul.mubr.bf16.gmra.mrb[0].mxu0 %v4750
      %v4879 = vpop.f32.mrb[0].mxu0
      %v4880 = vadd.f32 0.0, %v4879
      %v4881 = vpop.f32.mrb[0].mxu0
      %v4882 = vpop.f32.mrb[0].mxu0
      %v4883 = vadd.f32 0.0, %v4882
      %v4884 = vpop.f32.mrb[0].mxu0
      %4885 = vmatprep.mubr.bf16.mxu0 0
      %4886 = vmatmul.mubr.bf16.gmra.mrb[0].mxu0 %v4753
      %v4887 = vpop.f32.mrb[0].mxu0
      %v4888 = vadd.f32 0.0, %v4887
      %v4889 = vpop.f32.mrb[0].mxu0
      %v4890 = vpop.f32.mrb[0].mxu0
      %v4891 = vadd.f32 0.0, %v4890
      %v4892 = vpop.f32.mrb[0].mxu0
      %4893 = vmatprep.mubr.bf16.mxu0 0
      %4894 = vmatmul.mubr.bf16.gmra.mrb[0].mxu0 %v4756
      %v4895 = vpop.f32.mrb[0].mxu0
      %v4896 = vadd.f32 0.0, %v4895
      %v4897 = vpop.f32.mrb[0].mxu0
      %v4898 = vpop.f32.mrb[0].mxu0
      %v4899 = vadd.f32 0.0, %v4898
      %v4900 = vpop.f32.mrb[0].mxu0
      %4901 = vmatprep.mubr.bf16.mxu0 0
      %4902 = vmatmul.mubr.bf16.gmra.mrb[0].mxu0 %v4759
      %v4903 = vpop.f32.mrb[0].mxu0
      %v4904 = vadd.f32 0.0, %v4903
      %v4905 = vpop.f32.mrb[0].mxu0
      %v4906 = vpop.f32.mrb[0].mxu0
      %v4907 = vadd.f32 0.0, %v4906
      %v4908 = vpop.f32.mrb[0].mxu0
      %4909 = vmatprep.mubr.bf16.mxu0 0
      %4910 = vmatmul.mubr.bf16.gmra.mrb[0].mxu0 %v4762
      %v4911 = vpop.f32.mrb[0].mxu0
      %v4912 = vadd.f32 0.0, %v4911
      %v4913 = vpop.f32.mrb[0].mxu0
      %v4914 = vpop.f32.mrb[0].mxu0
      %v4915 = vadd.f32 0.0, %v4914
      %v4916 = vpop.f32.mrb[0].mxu0
      %4917 = vmatprep.mubr.bf16.mxu0 0
      %4918 = vmatmul.mubr.bf16.gmra.mrb[0].mxu0 %v4765
      %v4919 = vpop.f32.mrb[0].mxu0
      %v4920 = vadd.f32 0.0, %v4919
      %v4921 = vpop.f32.mrb[0].mxu0
      %v4922 = vpop.f32.mrb[0].mxu0
      %v4923 = vadd.f32 0.0, %v4922
      %v4924 = vpop.f32.mrb[0].mxu0
      %4925 = vmatprep.mubr.bf16.mxu0 0
      %4926 = vmatmul.mubr.bf16.gmra.mrb[0].mxu0 %v4768
      %v4927 = vpop.f32.mrb[0].mxu0
      %v4928 = vadd.f32 0.0, %v4927
      %v4929 = vpop.f32.mrb[0].mxu0
      %v4930 = vpop.f32.mrb[0].mxu0
      %v4931 = vadd.f32 0.0, %v4930
      %v4932 = vpop.f32.mrb[0].mxu0
      %4933 = vdwg.mxu0
      %v4934 = vadd.f32 %v4387, %v4808
      %v4935 = vadd.f32 %v4388, %v4811
      %v4936 = vadd.f32 %v4389, %v4816
      %v4937 = vadd.f32 %v4390, %v4819
      %v4938 = vadd.f32 %v4391, %v4824
      %v4939 = vadd.f32 %v4392, %v4827
      %v4940 = vadd.f32 %v4393, %v4832
      %v4941 = vadd.f32 %v4394, %v4835
      %v4942 = vadd.f32 %v4395, %v4840
      %v4943 = vadd.f32 %v4396, %v4843
      %v4944 = vadd.f32 %v4397, %v4848
      %v4945 = vadd.f32 %v4398, %v4851
      %v4946 = vadd.f32 %v4399, %v4856
      %v4947 = vadd.f32 %v4400, %v4859
      %v4948 = vadd.f32 %v4401, %v4864
      %v4949 = vadd.f32 %v4402, %v4867
      %v4950 = vadd.f32 %v4403, %v4872
      %v4951 = vadd.f32 %v4404, %v4875
      %v4952 = vadd.f32 %v4405, %v4880
      %v4953 = vadd.f32 %v4406, %v4883
      %v4954 = vadd.f32 %v4407, %v4888
      %v4955 = vadd.f32 %v4408, %v4891
      %v4956 = vadd.f32 %v4409, %v4896
      %v4957 = vadd.f32 %v4410, %v4899
      %v4958 = vadd.f32 %v4411, %v4904
      %v4959 = vadd.f32 %v4412, %v4907
      %v4960 = vadd.f32 %v4413, %v4912
      %v4961 = vadd.f32 %v4414, %v4915
      %v4962 = vadd.f32 %v4415, %v4920
      %v4963 = vadd.f32 %v4416, %v4923
      %v4964 = vadd.f32 %v4417, %v4928
      %v4965 = vadd.f32 %v4418, %v4931
      %s4966 = scalar_lea.vmem %s1, 14
      %v4967 = vld [vmem:[%s4966] sm:$0x3]
      %v5000 = vunpack.c.l.b16 %v4420
      %v5001 = vunpack.c.l.b16 %v4421
      %v5002 = vunpack.c.l.b16 %v4422
      %v5003 = vunpack.c.l.b16 %v4423
      %v5004 = vunpack.c.l.b16 %v4424
      %v5005 = vunpack.c.l.b16 %v4425
      %v5006 = vunpack.c.l.b16 %v4426
      %v5007 = vunpack.c.l.b16 %v4427
      %v5008 = vunpack.c.l.b16 %v4428
      %v5009 = vunpack.c.l.b16 %v4429
      %v5010 = vunpack.c.l.b16 %v4430
      %v5011 = vunpack.c.l.b16 %v4431
      %v5012 = vunpack.c.l.b16 %v4432
      %v5013 = vunpack.c.l.b16 %v4433
      %v5014 = vunpack.c.l.b16 %v4434
      %v5015 = vunpack.c.l.b16 %v4435
      %v5016 = vunpack.c.l.b16 %v4436
      %v5017 = vunpack.c.l.b16 %v4437
      %v5018 = vunpack.c.l.b16 %v4438
      %v5019 = vunpack.c.l.b16 %v4439
      %v5020 = vunpack.c.l.b16 %v4440
      %v5021 = vunpack.c.l.b16 %v4441
      %v5022 = vunpack.c.l.b16 %v4442
      %v5023 = vunpack.c.l.b16 %v4443
      %v5024 = vunpack.c.l.b16 %v4444
      %v5025 = vunpack.c.l.b16 %v4445
      %v5026 = vunpack.c.l.b16 %v4446
      %v5027 = vunpack.c.l.b16 %v4447
      %v5028 = vunpack.c.l.b16 %v4448
      %v5029 = vunpack.c.l.b16 %v4449
      %v5030 = vunpack.c.l.b16 %v4450
      %v5031 = vunpack.c.l.b16 %v4451
      %v5032 = vpack.c.b16 %v5001, %v5000
      %v5033 = vpack.c.b16 %v5003, %v5002
      %v5034 = vpack.c.b16 %v5005, %v5004
      %v5035 = vpack.c.b16 %v5007, %v5006
      %v5036 = vpack.c.b16 %v5009, %v5008
      %v5037 = vpack.c.b16 %v5011, %v5010
      %v5038 = vpack.c.b16 %v5013, %v5012
      %v5039 = vpack.c.b16 %v5015, %v5014
      %v5040 = vpack.c.b16 %v5017, %v5016
      %v5041 = vpack.c.b16 %v5019, %v5018
      %v5042 = vpack.c.b16 %v5021, %v5020
      %v5043 = vpack.c.b16 %v5023, %v5022
      %v5044 = vpack.c.b16 %v5025, %v5024
      %v5045 = vpack.c.b16 %v5027, %v5026
      %v5046 = vpack.c.b16 %v5029, %v5028
      %v5047 = vpack.c.b16 %v5031, %v5030
      %v5049 = vsel %vm1379, %v5032, 0
      %v5052 = vsel %vm1379, %v5033, 0
      %v5055 = vsel %vm1379, %v5034, 0
      %v5058 = vsel %vm1379, %v5035, 0
      %v5061 = vsel %vm1379, %v5036, 0
      %v5064 = vsel %vm1379, %v5037, 0
      %v5067 = vsel %vm1379, %v5038, 0
      %v5070 = vsel %vm1379, %v5039, 0
      %v5073 = vsel %vm1379, %v5040, 0
      %v5076 = vsel %vm1379, %v5041, 0
      %v5079 = vsel %vm1379, %v5042, 0
      %v5082 = vsel %vm1379, %v5043, 0
      %v5085 = vsel %vm1379, %v5044, 0
      %v5088 = vsel %vm1379, %v5045, 0
      %v5091 = vsel %vm1379, %v5046, 0
      %v5094 = vsel %vm1379, %v5047, 0
      %v5097 = vsel %vm1428, %v4967, 0
      %5099 = vmatprep.subr.bf16.mxu0 0
      %5100 = vmatpush1.bf16.msra.mxu0 %v5097
      %5101 = vmatprep.subr.bf16.mxu0 0
      %5102 = vmatpush1.bf16.msra.mxu0 0
      %5103 = vmatprep.subr.bf16.mxu0 0
      %5104 = vmatpush1.bf16.msra.mxu0 0
      %5105 = vmatprep.subr.bf16.mxu0 0
      %5106 = vmatpush1.bf16.msra.mxu0 0
      %5107 = vmatprep.subr.bf16.mxu0 0
      %5108 = vmatpush1.bf16.msra.mxu0 0
      %5109 = vmatprep.subr.bf16.mxu0 0
      %5110 = vmatpush1.bf16.msra.mxu0 0
      %5111 = vmatprep.subr.bf16.mxu0 0
      %5112 = vmatpush1.bf16.msra.mxu0 0
      %5113 = vmatprep.subr.bf16.mxu0 0
      %5114 = vmatpush1.bf16.msra.mxu0 0
      %5115 = vmatprep.subr.bf16.mxu0 0
      %5116 = vmatpush1.bf16.msra.mxu0 0
      %5117 = vmatprep.subr.bf16.mxu0 0
      %5118 = vmatpush1.bf16.msra.mxu0 0
      %5119 = vmatprep.subr.bf16.mxu0 0
      %5120 = vmatpush1.bf16.msra.mxu0 0
      %5121 = vmatprep.subr.bf16.mxu0 0
      %5122 = vmatpush1.bf16.msra.mxu0 0
      %5123 = vmatprep.subr.bf16.mxu0 0
      %5124 = vmatpush1.bf16.msra.mxu0 0
      %5125 = vmatprep.subr.bf16.mxu0 0
      %5126 = vmatpush1.bf16.msra.mxu0 0
      %5127 = vmatprep.subr.bf16.mxu0 0
      %5128 = vmatpush1.bf16.msra.mxu0 0
      %5129 = vmatprep.subr.bf16.mxu0 0
      %5130 = vmatpush1.bf16.msra.mxu0 0
      %5131 = vmatprep.mubr.bf16.mxu0 0
      %5132 = vmatmul.mubr.bf16.gmra.mrb[0].mxu0 %v5049
      %v5133 = vpop.f32.mrb[0].mxu0
      %v5134 = vadd.f32 0.0, %v5133
      %v5135 = vpop.f32.mrb[0].mxu0
      %v5136 = vpop.f32.mrb[0].mxu0
      %v5137 = vadd.f32 0.0, %v5136
      %v5138 = vpop.f32.mrb[0].mxu0
      %5139 = vmatprep.mubr.bf16.mxu0 0
      %5140 = vmatmul.mubr.bf16.gmra.mrb[0].mxu0 %v5052
      %v5141 = vpop.f32.mrb[0].mxu0
      %v5142 = vadd.f32 0.0, %v5141
      %v5143 = vpop.f32.mrb[0].mxu0
      %v5144 = vpop.f32.mrb[0].mxu0
      %v5145 = vadd.f32 0.0, %v5144
      %v5146 = vpop.f32.mrb[0].mxu0
      %5147 = vmatprep.mubr.bf16.mxu0 0
      %5148 = vmatmul.mubr.bf16.gmra.mrb[0].mxu0 %v5055
      %v5149 = vpop.f32.mrb[0].mxu0
      %v5150 = vadd.f32 0.0, %v5149
      %v5151 = vpop.f32.mrb[0].mxu0
      %v5152 = vpop.f32.mrb[0].mxu0
      %v5153 = vadd.f32 0.0, %v5152
      %v5154 = vpop.f32.mrb[0].mxu0
      %5155 = vmatprep.mubr.bf16.mxu0 0
      %5156 = vmatmul.mubr.bf16.gmra.mrb[0].mxu0 %v5058
      %v5157 = vpop.f32.mrb[0].mxu0
      %v5158 = vadd.f32 0.0, %v5157
      %v5159 = vpop.f32.mrb[0].mxu0
      %v5160 = vpop.f32.mrb[0].mxu0
      %v5161 = vadd.f32 0.0, %v5160
      %v5162 = vpop.f32.mrb[0].mxu0
      %5163 = vmatprep.mubr.bf16.mxu0 0
      %5164 = vmatmul.mubr.bf16.gmra.mrb[0].mxu0 %v5061
      %v5165 = vpop.f32.mrb[0].mxu0
      %v5166 = vadd.f32 0.0, %v5165
      %v5167 = vpop.f32.mrb[0].mxu0
      %v5168 = vpop.f32.mrb[0].mxu0
      %v5169 = vadd.f32 0.0, %v5168
      %v5170 = vpop.f32.mrb[0].mxu0
      %5171 = vmatprep.mubr.bf16.mxu0 0
      %5172 = vmatmul.mubr.bf16.gmra.mrb[0].mxu0 %v5064
      %v5173 = vpop.f32.mrb[0].mxu0
      %v5174 = vadd.f32 0.0, %v5173
      %v5175 = vpop.f32.mrb[0].mxu0
      %v5176 = vpop.f32.mrb[0].mxu0
      %v5177 = vadd.f32 0.0, %v5176
      %v5178 = vpop.f32.mrb[0].mxu0
      %5179 = vmatprep.mubr.bf16.mxu0 0
      %5180 = vmatmul.mubr.bf16.gmra.mrb[0].mxu0 %v5067
      %v5181 = vpop.f32.mrb[0].mxu0
      %v5182 = vadd.f32 0.0, %v5181
      %v5183 = vpop.f32.mrb[0].mxu0
      %v5184 = vpop.f32.mrb[0].mxu0
      %v5185 = vadd.f32 0.0, %v5184
      %v5186 = vpop.f32.mrb[0].mxu0
      %5187 = vmatprep.mubr.bf16.mxu0 0
      %5188 = vmatmul.mubr.bf16.gmra.mrb[0].mxu0 %v5070
      %v5189 = vpop.f32.mrb[0].mxu0
      %v5190 = vadd.f32 0.0, %v5189
      %v5191 = vpop.f32.mrb[0].mxu0
      %v5192 = vpop.f32.mrb[0].mxu0
      %v5193 = vadd.f32 0.0, %v5192
      %v5194 = vpop.f32.mrb[0].mxu0
      %5195 = vmatprep.mubr.bf16.mxu0 0
      %5196 = vmatmul.mubr.bf16.gmra.mrb[0].mxu0 %v5073
      %v5197 = vpop.f32.mrb[0].mxu0
      %v5198 = vadd.f32 0.0, %v5197
      %v5199 = vpop.f32.mrb[0].mxu0
      %v5200 = vpop.f32.mrb[0].mxu0
      %v5201 = vadd.f32 0.0, %v5200
      %v5202 = vpop.f32.mrb[0].mxu0
      %5203 = vmatprep.mubr.bf16.mxu0 0
      %5204 = vmatmul.mubr.bf16.gmra.mrb[0].mxu0 %v5076
      %v5205 = vpop.f32.mrb[0].mxu0
      %v5206 = vadd.f32 0.0, %v5205
      %v5207 = vpop.f32.mrb[0].mxu0
      %v5208 = vpop.f32.mrb[0].mxu0
      %v5209 = vadd.f32 0.0, %v5208
      %v5210 = vpop.f32.mrb[0].mxu0
      %5211 = vmatprep.mubr.bf16.mxu0 0
      %5212 = vmatmul.mubr.bf16.gmra.mrb[0].mxu0 %v5079
      %v5213 = vpop.f32.mrb[0].mxu0
      %v5214 = vadd.f32 0.0, %v5213
      %v5215 = vpop.f32.mrb[0].mxu0
      %v5216 = vpop.f32.mrb[0].mxu0
      %v5217 = vadd.f32 0.0, %v5216
      %v5218 = vpop.f32.mrb[0].mxu0
      %5219 = vmatprep.mubr.bf16.mxu0 0
      %5220 = vmatmul.mubr.bf16.gmra.mrb[0].mxu0 %v5082
      %v5221 = vpop.f32.mrb[0].mxu0
      %v5222 = vadd.f32 0.0, %v5221
      %v5223 = vpop.f32.mrb[0].mxu0
      %v5224 = vpop.f32.mrb[0].mxu0
      %v5225 = vadd.f32 0.0, %v5224
      %v5226 = vpop.f32.mrb[0].mxu0
      %5227 = vmatprep.mubr.bf16.mxu0 0
      %5228 = vmatmul.mubr.bf16.gmra.mrb[0].mxu0 %v5085
      %v5229 = vpop.f32.mrb[0].mxu0
      %v5230 = vadd.f32 0.0, %v5229
      %v5231 = vpop.f32.mrb[0].mxu0
      %v5232 = vpop.f32.mrb[0].mxu0
      %v5233 = vadd.f32 0.0, %v5232
      %v5234 = vpop.f32.mrb[0].mxu0
      %5235 = vmatprep.mubr.bf16.mxu0 0
      %5236 = vmatmul.mubr.bf16.gmra.mrb[0].mxu0 %v5088
      %v5237 = vpop.f32.mrb[0].mxu0
      %v5238 = vadd.f32 0.0, %v5237
      %v5239 = vpop.f32.mrb[0].mxu0
      %v5240 = vpop.f32.mrb[0].mxu0
      %v5241 = vadd.f32 0.0, %v5240
      %v5242 = vpop.f32.mrb[0].mxu0
      %5243 = vmatprep.mubr.bf16.mxu0 0
      %5244 = vmatmul.mubr.bf16.gmra.mrb[0].mxu0 %v5091
      %v5245 = vpop.f32.mrb[0].mxu0
      %v5246 = vadd.f32 0.0, %v5245
      %v5247 = vpop.f32.mrb[0].mxu0
      %v5248 = vpop.f32.mrb[0].mxu0
      %v5249 = vadd.f32 0.0, %v5248
      %v5250 = vpop.f32.mrb[0].mxu0
      %5251 = vmatprep.mubr.bf16.mxu0 0
      %5252 = vmatmul.mubr.bf16.gmra.mrb[0].mxu0 %v5094
      %v5253 = vpop.f32.mrb[0].mxu0
      %v5254 = vadd.f32 0.0, %v5253
      %v5255 = vpop.f32.mrb[0].mxu0
      %v5256 = vpop.f32.mrb[0].mxu0
      %v5257 = vadd.f32 0.0, %v5256
      %v5258 = vpop.f32.mrb[0].mxu0
      %5259 = vdwg.mxu0
      %v5260 = vadd.f32 %v4934, %v5134
      %v5261 = vadd.f32 %v4935, %v5137
      %v5262 = vadd.f32 %v4936, %v5142
      %v5263 = vadd.f32 %v4937, %v5145
      %v5264 = vadd.f32 %v4938, %v5150
      %v5265 = vadd.f32 %v4939, %v5153
      %v5266 = vadd.f32 %v4940, %v5158
      %v5267 = vadd.f32 %v4941, %v5161
      %v5268 = vadd.f32 %v4942, %v5166
      %v5269 = vadd.f32 %v4943, %v5169
      %v5270 = vadd.f32 %v4944, %v5174
      %v5271 = vadd.f32 %v4945, %v5177
      %v5272 = vadd.f32 %v4946, %v5182
      %v5273 = vadd.f32 %v4947, %v5185
      %v5274 = vadd.f32 %v4948, %v5190
      %v5275 = vadd.f32 %v4949, %v5193
      %v5276 = vadd.f32 %v4950, %v5198
      %v5277 = vadd.f32 %v4951, %v5201
      %v5278 = vadd.f32 %v4952, %v5206
      %v5279 = vadd.f32 %v4953, %v5209
      %v5280 = vadd.f32 %v4954, %v5214
      %v5281 = vadd.f32 %v4955, %v5217
      %v5282 = vadd.f32 %v4956, %v5222
      %v5283 = vadd.f32 %v4957, %v5225
      %v5284 = vadd.f32 %v4958, %v5230
      %v5285 = vadd.f32 %v4959, %v5233
      %v5286 = vadd.f32 %v4960, %v5238
      %v5287 = vadd.f32 %v4961, %v5241
      %v5288 = vadd.f32 %v4962, %v5246
      %v5289 = vadd.f32 %v4963, %v5249
      %v5290 = vadd.f32 %v4964, %v5254
      %v5291 = vadd.f32 %v4965, %v5257
      %v5292 = vld [vmem:[#allocation2 + $0x18] sm:$0xf]
      %v5293 = vld [vmem:[#allocation2 + $0x1c] sm:$0xf]
      %v5294 = vld [vmem:[#allocation2 + $0x20] sm:$0xf]
      %v5295 = vld [vmem:[#allocation2 + $0x24] sm:$0xf]
      %v5296 = vld [vmem:[#allocation2 + $0x28] sm:$0xf]
      %v5297 = vld [vmem:[#allocation2 + $0x2c] sm:$0xf]
      %v5298 = vld [vmem:[#allocation2 + $0x30] sm:$0xf]
      %v5299 = vld [vmem:[#allocation2 + $0x34] sm:$0xf]
      %v5300 = vld [vmem:[#allocation2 + $0x38] sm:$0xf]
      %v5301 = vld [vmem:[#allocation2 + $0x3c] sm:$0xf]
      %v5302 = vld [vmem:[#allocation2 + $0x40] sm:$0xf]
      %v5303 = vld [vmem:[#allocation2 + $0x44] sm:$0xf]
      %v5304 = vld [vmem:[#allocation2 + $0x48] sm:$0xf]
      %v5305 = vld [vmem:[#allocation2 + $0x4c] sm:$0xf]
      %v5306 = vld [vmem:[#allocation2 + $0x50] sm:$0xf]
      %v5307 = vld [vmem:[#allocation2 + $0x54] sm:$0xf]
      %v5308 = vld [vmem:[#allocation2 + $0x58] sm:$0xf]
      %v5309 = vld [vmem:[#allocation2 + $0x5c] sm:$0xf]
      %v5310 = vld [vmem:[#allocation2 + $0x60] sm:$0xf]
      %v5311 = vld [vmem:[#allocation2 + $0x64] sm:$0xf]
      %v5312 = vld [vmem:[#allocation2 + $0x68] sm:$0xf]
      %v5313 = vld [vmem:[#allocation2 + $0x6c] sm:$0xf]
      %v5314 = vld [vmem:[#allocation2 + $0x70] sm:$0xf]
      %v5315 = vld [vmem:[#allocation2 + $0x74] sm:$0xf]
      %v5316 = vld [vmem:[#allocation2 + $0x78] sm:$0xf]
      %v5317 = vld [vmem:[#allocation2 + $0x7c] sm:$0xf]
      %v5318 = vld [vmem:[#allocation2 + $0x80] sm:$0xf]
      %v5319 = vld [vmem:[#allocation2 + $0x84] sm:$0xf]
      %v5320 = vld [vmem:[#allocation2 + $0x88] sm:$0xf]
      %v5321 = vld [vmem:[#allocation2 + $0x8c] sm:$0xf]
      %v5322 = vld [vmem:[#allocation2 + $0x90] sm:$0xf]
      %v5323 = vld [vmem:[#allocation2 + $0x94] sm:$0xf]
      %v5324 = vld [vmem:[#allocation2 + $0x98] sm:$0x1]
      %v5325 = vsel %vm2491, %v5292, 0
      %v5326 = vsel %vm2492, %v5293, 0
      %v5327 = vsel %vm2493, %v5294, 0
      %v5328 = vsel %vm2494, %v5295, 0
      %v5329 = vsel %vm2495, %v5296, 0
      %v5330 = vsel %vm2496, %v5297, 0
      %v5331 = vsel %vm2497, %v5298, 0
      %v5332 = vsel %vm2498, %v5299, 0
      %v5333 = vsel %vm2499, %v5300, 0
      %v5334 = vsel %vm2500, %v5301, 0
      %v5335 = vsel %vm2501, %v5302, 0
      %v5336 = vsel %vm2502, %v5303, 0
      %v5337 = vsel %vm2503, %v5304, 0
      %v5338 = vsel %vm2504, %v5305, 0
      %v5339 = vsel %vm2505, %v5306, 0
      %v5340 = vsel %vm2506, %v5307, 0
      %v5341 = vsel %vm2507, %v5308, 0
      %v5342 = vsel %vm2508, %v5309, 0
      %v5343 = vsel %vm2509, %v5310, 0
      %v5344 = vsel %vm2510, %v5311, 0
      %v5345 = vsel %vm2511, %v5312, 0
      %v5346 = vsel %vm2512, %v5313, 0
      %v5347 = vsel %vm2513, %v5314, 0
      %v5348 = vsel %vm2514, %v5315, 0
      %v5349 = vsel %vm2515, %v5316, 0
      %v5350 = vsel %vm2516, %v5317, 0
      %v5351 = vsel %vm2517, %v5318, 0
      %v5352 = vsel %vm2518, %v5319, 0
      %v5353 = vsel %vm2519, %v5320, 0
      %v5354 = vsel %vm2520, %v5321, 0
      %v5355 = vsel %vm2521, %v5322, 0
      %v5356 = vsel %vm2522, %v5323, 0
      %v5357 = vsel %vm2523, %v5324, 0
      %s5358 = scalar_lea.vmem %s1, 16
      %v5359 = vld [vmem:[%s5358] sm:$0x3]
      %v5393 = vunpack.c.l.b16 %v5325
      %v5394 = vunpack.c.l.b16 %v5326
      %v5395 = vunpack.c.l.b16 %v5327
      %v5396 = vunpack.c.l.b16 %v5328
      %v5397 = vunpack.c.l.b16 %v5329
      %v5398 = vunpack.c.l.b16 %v5330
      %v5399 = vunpack.c.l.b16 %v5331
      %v5400 = vunpack.c.l.b16 %v5332
      %v5401 = vunpack.c.l.b16 %v5333
      %v5402 = vunpack.c.l.b16 %v5334
      %v5403 = vunpack.c.l.b16 %v5335
      %v5404 = vunpack.c.l.b16 %v5336
      %v5405 = vunpack.c.l.b16 %v5337
      %v5406 = vunpack.c.l.b16 %v5338
      %v5407 = vunpack.c.l.b16 %v5339
      %v5408 = vunpack.c.l.b16 %v5340
      %v5409 = vunpack.c.l.b16 %v5341
      %v5410 = vunpack.c.l.b16 %v5342
      %v5411 = vunpack.c.l.b16 %v5343
      %v5412 = vunpack.c.l.b16 %v5344
      %v5413 = vunpack.c.l.b16 %v5345
      %v5414 = vunpack.c.l.b16 %v5346
      %v5415 = vunpack.c.l.b16 %v5347
      %v5416 = vunpack.c.l.b16 %v5348
      %v5417 = vunpack.c.l.b16 %v5349
      %v5418 = vunpack.c.l.b16 %v5350
      %v5419 = vunpack.c.l.b16 %v5351
      %v5420 = vunpack.c.l.b16 %v5352
      %v5421 = vunpack.c.l.b16 %v5353
      %v5422 = vunpack.c.l.b16 %v5354
      %v5423 = vunpack.c.l.b16 %v5355
      %v5424 = vunpack.c.l.b16 %v5356
      %v5425 = vunpack.c.l.b16 %v5357
      %v5426 = vpack.c.b16 %v5394, %v5393
      %v5427 = vpack.c.b16 %v5396, %v5395
      %v5428 = vpack.c.b16 %v5398, %v5397
      %v5429 = vpack.c.b16 %v5400, %v5399
      %v5430 = vpack.c.b16 %v5402, %v5401
      %v5431 = vpack.c.b16 %v5404, %v5403
      %v5432 = vpack.c.b16 %v5406, %v5405
      %v5433 = vpack.c.b16 %v5408, %v5407
      %v5434 = vpack.c.b16 %v5410, %v5409
      %v5435 = vpack.c.b16 %v5412, %v5411
      %v5436 = vpack.c.b16 %v5414, %v5413
      %v5437 = vpack.c.b16 %v5416, %v5415
      %v5438 = vpack.c.b16 %v5418, %v5417
      %v5439 = vpack.c.b16 %v5420, %v5419
      %v5440 = vpack.c.b16 %v5422, %v5421
      %v5441 = vpack.c.b16 %v5424, %v5423
      %v5442 = vpack.c.b16 %v5425, %v5425
      %v5444 = vshrl.u32 %v5426, 16
      %v5446 = vshll.u32 %v5426, 16
      %v5448 = vrot.slane %v5446, 1
      %v5449 = vor.u32 %v5444, %v5448
      %v5451 = vshll.u32 %v5427, 16
      %v5453 = vrot.slane %v5451, 1
      %v5454 = vsel %vm2642, %v5449, %v5453
      %v5455 = vshrl.u32 %v5427, 16
      %v5457 = vor.u32 %v5455, %v5453
      %v5459 = vshll.u32 %v5428, 16
      %v5461 = vrot.slane %v5459, 1
      %v5462 = vsel %vm2642, %v5457, %v5461
      %v5463 = vshrl.u32 %v5428, 16
      %v5465 = vor.u32 %v5463, %v5461
      %v5467 = vshll.u32 %v5429, 16
      %v5469 = vrot.slane %v5467, 1
      %v5470 = vsel %vm2642, %v5465, %v5469
      %v5471 = vshrl.u32 %v5429, 16
      %v5473 = vor.u32 %v5471, %v5469
      %v5475 = vshll.u32 %v5430, 16
      %v5477 = vrot.slane %v5475, 1
      %v5478 = vsel %vm2642, %v5473, %v5477
      %v5479 = vshrl.u32 %v5430, 16
      %v5481 = vor.u32 %v5479, %v5477
      %v5483 = vshll.u32 %v5431, 16
      %v5485 = vrot.slane %v5483, 1
      %v5486 = vsel %vm2642, %v5481, %v5485
      %v5487 = vshrl.u32 %v5431, 16
      %v5489 = vor.u32 %v5487, %v5485
      %v5491 = vshll.u32 %v5432, 16
      %v5493 = vrot.slane %v5491, 1
      %v5494 = vsel %vm2642, %v5489, %v5493
      %v5495 = vshrl.u32 %v5432, 16
      %v5497 = vor.u32 %v5495, %v5493
      %v5499 = vshll.u32 %v5433, 16
      %v5501 = vrot.slane %v5499, 1
      %v5502 = vsel %vm2642, %v5497, %v5501
      %v5503 = vshrl.u32 %v5433, 16
      %v5505 = vor.u32 %v5503, %v5501
      %v5507 = vshll.u32 %v5434, 16
      %v5509 = vrot.slane %v5507, 1
      %v5510 = vsel %vm2642, %v5505, %v5509
      %v5511 = vshrl.u32 %v5434, 16
      %v5513 = vor.u32 %v5511, %v5509
      %v5515 = vshll.u32 %v5435, 16
      %v5517 = vrot.slane %v5515, 1
      %v5518 = vsel %vm2642, %v5513, %v5517
      %v5519 = vshrl.u32 %v5435, 16
      %v5521 = vor.u32 %v5519, %v5517
      %v5523 = vshll.u32 %v5436, 16
      %v5525 = vrot.slane %v5523, 1
      %v5526 = vsel %vm2642, %v5521, %v5525
      %v5527 = vshrl.u32 %v5436, 16
      %v5529 = vor.u32 %v5527, %v5525
      %v5531 = vshll.u32 %v5437, 16
      %v5533 = vrot.slane %v5531, 1
      %v5534 = vsel %vm2642, %v5529, %v5533
      %v5535 = vshrl.u32 %v5437, 16
      %v5537 = vor.u32 %v5535, %v5533
      %v5539 = vshll.u32 %v5438, 16
      %v5541 = vrot.slane %v5539, 1
      %v5542 = vsel %vm2642, %v5537, %v5541
      %v5543 = vshrl.u32 %v5438, 16
      %v5545 = vor.u32 %v5543, %v5541
      %v5547 = vshll.u32 %v5439, 16
      %v5549 = vrot.slane %v5547, 1
      %v5550 = vsel %vm2642, %v5545, %v5549
      %v5551 = vshrl.u32 %v5439, 16
      %v5553 = vor.u32 %v5551, %v5549
      %v5555 = vshll.u32 %v5440, 16
      %v5557 = vrot.slane %v5555, 1
      %v5558 = vsel %vm2642, %v5553, %v5557
      %v5559 = vshrl.u32 %v5440, 16
      %v5561 = vor.u32 %v5559, %v5557
      %v5563 = vshll.u32 %v5441, 16
      %v5565 = vrot.slane %v5563, 1
      %v5566 = vsel %vm2642, %v5561, %v5565
      %v5567 = vshrl.u32 %v5441, 16
      %v5569 = vor.u32 %v5567, %v5565
      %v5571 = vshll.u32 %v5442, 16
      %v5573 = vrot.slane %v5571, 1
      %v5574 = vsel %vm2642, %v5569, %v5573
      %v5576 = vsel %vm1379, %v5454, 0
      %v5579 = vsel %vm1379, %v5462, 0
      %v5582 = vsel %vm1379, %v5470, 0
      %v5585 = vsel %vm1379, %v5478, 0
      %v5588 = vsel %vm1379, %v5486, 0
      %v5591 = vsel %vm1379, %v5494, 0
      %v5594 = vsel %vm1379, %v5502, 0
      %v5597 = vsel %vm1379, %v5510, 0
      %v5600 = vsel %vm1379, %v5518, 0
      %v5603 = vsel %vm1379, %v5526, 0
      %v5606 = vsel %vm1379, %v5534, 0
      %v5609 = vsel %vm1379, %v5542, 0
      %v5612 = vsel %vm1379, %v5550, 0
      %v5615 = vsel %vm1379, %v5558, 0
      %v5618 = vsel %vm1379, %v5566, 0
      %v5621 = vsel %vm1379, %v5574, 0
      %v5624 = vsel %vm1428, %v5359, 0
      %5626 = vmatprep.subr.bf16.mxu0 0
      %5627 = vmatpush1.bf16.msra.mxu0 %v5624
      %5628 = vmatprep.subr.bf16.mxu0 0
      %5629 = vmatpush1.bf16.msra.mxu0 0
      %5630 = vmatprep.subr.bf16.mxu0 0
      %5631 = vmatpush1.bf16.msra.mxu0 0
      %5632 = vmatprep.subr.bf16.mxu0 0
      %5633 = vmatpush1.bf16.msra.mxu0 0
      %5634 = vmatprep.subr.bf16.mxu0 0
      %5635 = vmatpush1.bf16.msra.mxu0 0
      %5636 = vmatprep.subr.bf16.mxu0 0
      %5637 = vmatpush1.bf16.msra.mxu0 0
      %5638 = vmatprep.subr.bf16.mxu0 0
      %5639 = vmatpush1.bf16.msra.mxu0 0
      %5640 = vmatprep.subr.bf16.mxu0 0
      %5641 = vmatpush1.bf16.msra.mxu0 0
      %5642 = vmatprep.subr.bf16.mxu0 0
      %5643 = vmatpush1.bf16.msra.mxu0 0
      %5644 = vmatprep.subr.bf16.mxu0 0
      %5645 = vmatpush1.bf16.msra.mxu0 0
      %5646 = vmatprep.subr.bf16.mxu0 0
      %5647 = vmatpush1.bf16.msra.mxu0 0
      %5648 = vmatprep.subr.bf16.mxu0 0
      %5649 = vmatpush1.bf16.msra.mxu0 0
      %5650 = vmatprep.subr.bf16.mxu0 0
      %5651 = vmatpush1.bf16.msra.mxu0 0
      %5652 = vmatprep.subr.bf16.mxu0 0
      %5653 = vmatpush1.bf16.msra.mxu0 0
      %5654 = vmatprep.subr.bf16.mxu0 0
      %5655 = vmatpush1.bf16.msra.mxu0 0
      %5656 = vmatprep.subr.bf16.mxu0 0
      %5657 = vmatpush1.bf16.msra.mxu0 0
      %5658 = vmatprep.mubr.bf16.mxu0 0
      %5659 = vmatmul.mubr.bf16.gmra.mrb[0].mxu0 %v5576
      %v5660 = vpop.f32.mrb[0].mxu0
      %v5661 = vadd.f32 0.0, %v5660
      %v5662 = vpop.f32.mrb[0].mxu0
      %v5663 = vpop.f32.mrb[0].mxu0
      %v5664 = vadd.f32 0.0, %v5663
      %v5665 = vpop.f32.mrb[0].mxu0
      %5666 = vmatprep.mubr.bf16.mxu0 0
      %5667 = vmatmul.mubr.bf16.gmra.mrb[0].mxu0 %v5579
      %v5668 = vpop.f32.mrb[0].mxu0
      %v5669 = vadd.f32 0.0, %v5668
      %v5670 = vpop.f32.mrb[0].mxu0
      %v5671 = vpop.f32.mrb[0].mxu0
      %v5672 = vadd.f32 0.0, %v5671
      %v5673 = vpop.f32.mrb[0].mxu0
      %5674 = vmatprep.mubr.bf16.mxu0 0
      %5675 = vmatmul.mubr.bf16.gmra.mrb[0].mxu0 %v5582
      %v5676 = vpop.f32.mrb[0].mxu0
      %v5677 = vadd.f32 0.0, %v5676
      %v5678 = vpop.f32.mrb[0].mxu0
      %v5679 = vpop.f32.mrb[0].mxu0
      %v5680 = vadd.f32 0.0, %v5679
      %v5681 = vpop.f32.mrb[0].mxu0
      %5682 = vmatprep.mubr.bf16.mxu0 0
      %5683 = vmatmul.mubr.bf16.gmra.mrb[0].mxu0 %v5585
      %v5684 = vpop.f32.mrb[0].mxu0
      %v5685 = vadd.f32 0.0, %v5684
      %v5686 = vpop.f32.mrb[0].mxu0
      %v5687 = vpop.f32.mrb[0].mxu0
      %v5688 = vadd.f32 0.0, %v5687
      %v5689 = vpop.f32.mrb[0].mxu0
      %5690 = vmatprep.mubr.bf16.mxu0 0
      %5691 = vmatmul.mubr.bf16.gmra.mrb[0].mxu0 %v5588
      %v5692 = vpop.f32.mrb[0].mxu0
      %v5693 = vadd.f32 0.0, %v5692
      %v5694 = vpop.f32.mrb[0].mxu0
      %v5695 = vpop.f32.mrb[0].mxu0
      %v5696 = vadd.f32 0.0, %v5695
      %v5697 = vpop.f32.mrb[0].mxu0
      %5698 = vmatprep.mubr.bf16.mxu0 0
      %5699 = vmatmul.mubr.bf16.gmra.mrb[0].mxu0 %v5591
      %v5700 = vpop.f32.mrb[0].mxu0
      %v5701 = vadd.f32 0.0, %v5700
      %v5702 = vpop.f32.mrb[0].mxu0
      %v5703 = vpop.f32.mrb[0].mxu0
      %v5704 = vadd.f32 0.0, %v5703
      %v5705 = vpop.f32.mrb[0].mxu0
      %5706 = vmatprep.mubr.bf16.mxu0 0
      %5707 = vmatmul.mubr.bf16.gmra.mrb[0].mxu0 %v5594
      %v5708 = vpop.f32.mrb[0].mxu0
      %v5709 = vadd.f32 0.0, %v5708
      %v5710 = vpop.f32.mrb[0].mxu0
      %v5711 = vpop.f32.mrb[0].mxu0
      %v5712 = vadd.f32 0.0, %v5711
      %v5713 = vpop.f32.mrb[0].mxu0
      %5714 = vmatprep.mubr.bf16.mxu0 0
      %5715 = vmatmul.mubr.bf16.gmra.mrb[0].mxu0 %v5597
      %v5716 = vpop.f32.mrb[0].mxu0
      %v5717 = vadd.f32 0.0, %v5716
      %v5718 = vpop.f32.mrb[0].mxu0
      %v5719 = vpop.f32.mrb[0].mxu0
      %v5720 = vadd.f32 0.0, %v5719
      %v5721 = vpop.f32.mrb[0].mxu0
      %5722 = vmatprep.mubr.bf16.mxu0 0
      %5723 = vmatmul.mubr.bf16.gmra.mrb[0].mxu0 %v5600
      %v5724 = vpop.f32.mrb[0].mxu0
      %v5725 = vadd.f32 0.0, %v5724
      %v5726 = vpop.f32.mrb[0].mxu0
      %v5727 = vpop.f32.mrb[0].mxu0
      %v5728 = vadd.f32 0.0, %v5727
      %v5729 = vpop.f32.mrb[0].mxu0
      %5730 = vmatprep.mubr.bf16.mxu0 0
      %5731 = vmatmul.mubr.bf16.gmra.mrb[0].mxu0 %v5603
      %v5732 = vpop.f32.mrb[0].mxu0
      %v5733 = vadd.f32 0.0, %v5732
      %v5734 = vpop.f32.mrb[0].mxu0
      %v5735 = vpop.f32.mrb[0].mxu0
      %v5736 = vadd.f32 0.0, %v5735
      %v5737 = vpop.f32.mrb[0].mxu0
      %5738 = vmatprep.mubr.bf16.mxu0 0
      %5739 = vmatmul.mubr.bf16.gmra.mrb[0].mxu0 %v5606
      %v5740 = vpop.f32.mrb[0].mxu0
      %v5741 = vadd.f32 0.0, %v5740
      %v5742 = vpop.f32.mrb[0].mxu0
      %v5743 = vpop.f32.mrb[0].mxu0
      %v5744 = vadd.f32 0.0, %v5743
      %v5745 = vpop.f32.mrb[0].mxu0
      %5746 = vmatprep.mubr.bf16.mxu0 0
      %5747 = vmatmul.mubr.bf16.gmra.mrb[0].mxu0 %v5609
      %v5748 = vpop.f32.mrb[0].mxu0
      %v5749 = vadd.f32 0.0, %v5748
      %v5750 = vpop.f32.mrb[0].mxu0
      %v5751 = vpop.f32.mrb[0].mxu0
      %v5752 = vadd.f32 0.0, %v5751
      %v5753 = vpop.f32.mrb[0].mxu0
      %5754 = vmatprep.mubr.bf16.mxu0 0
      %5755 = vmatmul.mubr.bf16.gmra.mrb[0].mxu0 %v5612
      %v5756 = vpop.f32.mrb[0].mxu0
      %v5757 = vadd.f32 0.0, %v5756
      %v5758 = vpop.f32.mrb[0].mxu0
      %v5759 = vpop.f32.mrb[0].mxu0
      %v5760 = vadd.f32 0.0, %v5759
      %v5761 = vpop.f32.mrb[0].mxu0
      %5762 = vmatprep.mubr.bf16.mxu0 0
      %5763 = vmatmul.mubr.bf16.gmra.mrb[0].mxu0 %v5615
      %v5764 = vpop.f32.mrb[0].mxu0
      %v5765 = vadd.f32 0.0, %v5764
      %v5766 = vpop.f32.mrb[0].mxu0
      %v5767 = vpop.f32.mrb[0].mxu0
      %v5768 = vadd.f32 0.0, %v5767
      %v5769 = vpop.f32.mrb[0].mxu0
      %5770 = vmatprep.mubr.bf16.mxu0 0
      %5771 = vmatmul.mubr.bf16.gmra.mrb[0].mxu0 %v5618
      %v5772 = vpop.f32.mrb[0].mxu0
      %v5773 = vadd.f32 0.0, %v5772
      %v5774 = vpop.f32.mrb[0].mxu0
      %v5775 = vpop.f32.mrb[0].mxu0
      %v5776 = vadd.f32 0.0, %v5775
      %v5777 = vpop.f32.mrb[0].mxu0
      %5778 = vmatprep.mubr.bf16.mxu0 0
      %5779 = vmatmul.mubr.bf16.gmra.mrb[0].mxu0 %v5621
      %v5780 = vpop.f32.mrb[0].mxu0
      %v5781 = vadd.f32 0.0, %v5780
      %v5782 = vpop.f32.mrb[0].mxu0
      %v5783 = vpop.f32.mrb[0].mxu0
      %v5784 = vadd.f32 0.0, %v5783
      %v5785 = vpop.f32.mrb[0].mxu0
      %5786 = vdwg.mxu0
      %v5787 = vadd.f32 %v5260, %v5661
      %v5788 = vadd.f32 %v5261, %v5664
      %v5789 = vadd.f32 %v5262, %v5669
      %v5790 = vadd.f32 %v5263, %v5672
      %v5791 = vadd.f32 %v5264, %v5677
      %v5792 = vadd.f32 %v5265, %v5680
      %v5793 = vadd.f32 %v5266, %v5685
      %v5794 = vadd.f32 %v5267, %v5688
      %v5795 = vadd.f32 %v5268, %v5693
      %v5796 = vadd.f32 %v5269, %v5696
      %v5797 = vadd.f32 %v5270, %v5701
      %v5798 = vadd.f32 %v5271, %v5704
      %v5799 = vadd.f32 %v5272, %v5709
      %v5800 = vadd.f32 %v5273, %v5712
      %v5801 = vadd.f32 %v5274, %v5717
      %v5802 = vadd.f32 %v5275, %v5720
      %v5803 = vadd.f32 %v5276, %v5725
      %v5804 = vadd.f32 %v5277, %v5728
      %v5805 = vadd.f32 %v5278, %v5733
      %v5806 = vadd.f32 %v5279, %v5736
      %v5807 = vadd.f32 %v5280, %v5741
      %v5808 = vadd.f32 %v5281, %v5744
      %v5809 = vadd.f32 %v5282, %v5749
      %v5810 = vadd.f32 %v5283, %v5752
      %v5811 = vadd.f32 %v5284, %v5757
      %v5812 = vadd.f32 %v5285, %v5760
      %v5813 = vadd.f32 %v5286, %v5765
      %v5814 = vadd.f32 %v5287, %v5768
      %v5815 = vadd.f32 %v5288, %v5773
      %v5816 = vadd.f32 %v5289, %v5776
      %v5817 = vadd.f32 %v5290, %v5781
      %v5818 = vadd.f32 %v5291, %v5784
      %v5819 = vpack.c.bf16 %v5788, %v5787
      %v5820 = vpack.c.bf16 %v5790, %v5789
      %v5821 = vpack.c.bf16 %v5792, %v5791
      %v5822 = vpack.c.bf16 %v5794, %v5793
      %v5823 = vpack.c.bf16 %v5796, %v5795
      %v5824 = vpack.c.bf16 %v5798, %v5797
      %v5825 = vpack.c.bf16 %v5800, %v5799
      %v5826 = vpack.c.bf16 %v5802, %v5801
      %v5827 = vpack.c.bf16 %v5804, %v5803
      %v5828 = vpack.c.bf16 %v5806, %v5805
      %v5829 = vpack.c.bf16 %v5808, %v5807
      %v5830 = vpack.c.bf16 %v5810, %v5809
      %v5831 = vpack.c.bf16 %v5812, %v5811
      %v5832 = vpack.c.bf16 %v5814, %v5813
      %v5833 = vpack.c.bf16 %v5816, %v5815
      %v5834 = vpack.c.bf16 %v5818, %v5817
      %v5851 = vunpack.c.l.b16 %v5819
      %v5852 = vunpack.c.h.b16 %v5819
      %v5853 = vunpack.c.l.b16 %v5820
      %v5854 = vunpack.c.h.b16 %v5820
      %v5855 = vunpack.c.l.b16 %v5821
      %v5856 = vunpack.c.h.b16 %v5821
      %v5857 = vunpack.c.l.b16 %v5822
      %v5858 = vunpack.c.h.b16 %v5822
      %v5859 = vunpack.c.l.b16 %v5823
      %v5860 = vunpack.c.h.b16 %v5823
      %v5861 = vunpack.c.l.b16 %v5824
      %v5862 = vunpack.c.h.b16 %v5824
      %v5863 = vunpack.c.l.b16 %v5825
      %v5864 = vunpack.c.h.b16 %v5825
      %v5865 = vunpack.c.l.b16 %v5826
      %v5866 = vunpack.c.h.b16 %v5826
      %v5867 = vunpack.c.l.b16 %v5827
      %v5868 = vunpack.c.h.b16 %v5827
      %v5869 = vunpack.c.l.b16 %v5828
      %v5870 = vunpack.c.h.b16 %v5828
      %v5871 = vunpack.c.l.b16 %v5829
      %v5872 = vunpack.c.h.b16 %v5829
      %v5873 = vunpack.c.l.b16 %v5830
      %v5874 = vunpack.c.h.b16 %v5830
      %v5875 = vunpack.c.l.b16 %v5831
      %v5876 = vunpack.c.h.b16 %v5831
      %v5877 = vunpack.c.l.b16 %v5832
      %v5878 = vunpack.c.h.b16 %v5832
      %v5879 = vunpack.c.l.b16 %v5833
      %v5880 = vunpack.c.h.b16 %v5833
      %v5881 = vunpack.c.l.b16 %v5834
      %v5882 = vunpack.c.h.b16 %v5834
      %v5883 = vpack.c.b16 %v5851, %v5851
      %v5884 = vpack.c.b16 %v5852, %v5852
      %v5885 = vpack.c.b16 %v5853, %v5853
      %v5886 = vpack.c.b16 %v5854, %v5854
      %v5887 = vpack.c.b16 %v5855, %v5855
      %v5888 = vpack.c.b16 %v5856, %v5856
      %v5889 = vpack.c.b16 %v5857, %v5857
      %v5890 = vpack.c.b16 %v5858, %v5858
      %v5891 = vpack.c.b16 %v5859, %v5859
      %v5892 = vpack.c.b16 %v5860, %v5860
      %v5893 = vpack.c.b16 %v5861, %v5861
      %v5894 = vpack.c.b16 %v5862, %v5862
      %v5895 = vpack.c.b16 %v5863, %v5863
      %v5896 = vpack.c.b16 %v5864, %v5864
      %v5897 = vpack.c.b16 %v5865, %v5865
      %v5898 = vpack.c.b16 %v5866, %v5866
      %v5899 = vpack.c.b16 %v5867, %v5867
      %v5900 = vpack.c.b16 %v5868, %v5868
      %v5901 = vpack.c.b16 %v5869, %v5869
      %v5902 = vpack.c.b16 %v5870, %v5870
      %v5903 = vpack.c.b16 %v5871, %v5871
      %v5904 = vpack.c.b16 %v5872, %v5872
      %v5905 = vpack.c.b16 %v5873, %v5873
      %v5906 = vpack.c.b16 %v5874, %v5874
      %v5907 = vpack.c.b16 %v5875, %v5875
      %v5908 = vpack.c.b16 %v5876, %v5876
      %v5909 = vpack.c.b16 %v5877, %v5877
      %v5910 = vpack.c.b16 %v5878, %v5878
      %v5911 = vpack.c.b16 %v5879, %v5879
      %v5912 = vpack.c.b16 %v5880, %v5880
      %v5913 = vpack.c.b16 %v5881, %v5881
      %v5914 = vpack.c.b16 %v5882, %v5882
      %vm5947 = vcmask 60416
      %5948 = vst.msk [vmem:[%s177] sm:$0xf] %vm5947, %v5883
      %5949 = vst.msk [vmem:[%s177 + $0x4] sm:$0xf] %vm5947, %v5884
      %5950 = vst.msk [vmem:[%s177 + $0x8] sm:$0xf] %vm5947, %v5885
      %5951 = vst.msk [vmem:[%s177 + $0xc] sm:$0xf] %vm5947, %v5886
      %5952 = vst.msk [vmem:[%s177 + $0x10] sm:$0xf] %vm5947, %v5887
      %5953 = vst.msk [vmem:[%s177 + $0x14] sm:$0xf] %vm5947, %v5888
      %5954 = vst.msk [vmem:[%s177 + $0x18] sm:$0xf] %vm5947, %v5889
      %5955 = vst.msk [vmem:[%s177 + $0x1c] sm:$0xf] %vm5947, %v5890
      %5956 = vst.msk [vmem:[%s177 + $0x20] sm:$0xf] %vm5947, %v5891
      %5957 = vst.msk [vmem:[%s177 + $0x24] sm:$0xf] %vm5947, %v5892
      %5958 = vst.msk [vmem:[%s177 + $0x28] sm:$0xf] %vm5947, %v5893
      %5959 = vst.msk [vmem:[%s177 + $0x2c] sm:$0xf] %vm5947, %v5894
      %5960 = vst.msk [vmem:[%s177 + $0x30] sm:$0xf] %vm5947, %v5895
      %5961 = vst.msk [vmem:[%s177 + $0x34] sm:$0xf] %vm5947, %v5896
      %5962 = vst.msk [vmem:[%s177 + $0x38] sm:$0xf] %vm5947, %v5897
      %5963 = vst.msk [vmem:[%s177 + $0x3c] sm:$0xf] %vm5947, %v5898
      %5964 = vst.msk [vmem:[%s177 + $0x40] sm:$0xf] %vm5947, %v5899
      %5965 = vst.msk [vmem:[%s177 + $0x44] sm:$0xf] %vm5947, %v5900
      %5966 = vst.msk [vmem:[%s177 + $0x48] sm:$0xf] %vm5947, %v5901
      %5967 = vst.msk [vmem:[%s177 + $0x4c] sm:$0xf] %vm5947, %v5902
      %5968 = vst.msk [vmem:[%s177 + $0x50] sm:$0xf] %vm5947, %v5903
      %5969 = vst.msk [vmem:[%s177 + $0x54] sm:$0xf] %vm5947, %v5904
      %5970 = vst.msk [vmem:[%s177 + $0x58] sm:$0xf] %vm5947, %v5905
      %5971 = vst.msk [vmem:[%s177 + $0x5c] sm:$0xf] %vm5947, %v5906
      %5972 = vst.msk [vmem:[%s177 + $0x60] sm:$0xf] %vm5947, %v5907
      %5973 = vst.msk [vmem:[%s177 + $0x64] sm:$0xf] %vm5947, %v5908
      %5974 = vst.msk [vmem:[%s177 + $0x68] sm:$0xf] %vm5947, %v5909
      %5975 = vst.msk [vmem:[%s177 + $0x6c] sm:$0xf] %vm5947, %v5910
      %5976 = vst.msk [vmem:[%s177 + $0x70] sm:$0xf] %vm5947, %v5911
      %5977 = vst.msk [vmem:[%s177 + $0x74] sm:$0xf] %vm5947, %v5912
      %5978 = vst.msk [vmem:[%s177 + $0x78] sm:$0xf] %vm5947, %v5913
      %5979 = vst.msk [vmem:[%s177 + $0x7c] sm:$0xf] %vm5947, %v5914
      %vm5980 = vcmask 64512
      %v5981 = vsel %vm5980, %v5787, 0.0
      %v5982 = vsel %vm5980, %v5788, 0.0
      %v5983 = vadd.f32 %v5981, %v5982
      %v5984 = vsel %vm5980, %v5789, 0.0
      %v5985 = vadd.f32 %v5983, %v5984
      %v5986 = vsel %vm5980, %v5790, 0.0
      %v5987 = vadd.f32 %v5985, %v5986
      %v5988 = vsel %vm5980, %v5791, 0.0
      %v5989 = vadd.f32 %v5987, %v5988
      %v5990 = vsel %vm5980, %v5792, 0.0
      %v5991 = vadd.f32 %v5989, %v5990
      %v5992 = vsel %vm5980, %v5793, 0.0
      %v5993 = vadd.f32 %v5991, %v5992
      %v5994 = vsel %vm5980, %v5794, 0.0
      %v5995 = vadd.f32 %v5993, %v5994
      %v5996 = vsel %vm5980, %v5795, 0.0
      %v5997 = vadd.f32 %v5995, %v5996
      %v5998 = vsel %vm5980, %v5796, 0.0
      %v5999 = vadd.f32 %v5997, %v5998
      %v6000 = vsel %vm5980, %v5797, 0.0
      %v6001 = vadd.f32 %v5999, %v6000
      %v6002 = vsel %vm5980, %v5798, 0.0
      %v6003 = vadd.f32 %v6001, %v6002
      %v6004 = vsel %vm5980, %v5799, 0.0
      %v6005 = vadd.f32 %v6003, %v6004
      %v6006 = vsel %vm5980, %v5800, 0.0
      %v6007 = vadd.f32 %v6005, %v6006
      %v6008 = vsel %vm5980, %v5801, 0.0
      %v6009 = vadd.f32 %v6007, %v6008
      %v6010 = vsel %vm5980, %v5802, 0.0
      %v6011 = vadd.f32 %v6009, %v6010
      %v6012 = vsel %vm5980, %v5803, 0.0
      %v6013 = vadd.f32 %v6011, %v6012
      %v6014 = vsel %vm5980, %v5804, 0.0
      %v6015 = vadd.f32 %v6013, %v6014
      %v6016 = vsel %vm5980, %v5805, 0.0
      %v6017 = vadd.f32 %v6015, %v6016
      %v6018 = vsel %vm5980, %v5806, 0.0
      %v6019 = vadd.f32 %v6017, %v6018
      %v6020 = vsel %vm5980, %v5807, 0.0
      %v6021 = vadd.f32 %v6019, %v6020
      %v6022 = vsel %vm5980, %v5808, 0.0
      %v6023 = vadd.f32 %v6021, %v6022
      %v6024 = vsel %vm5980, %v5809, 0.0
      %v6025 = vadd.f32 %v6023, %v6024
      %v6026 = vsel %vm5980, %v5810, 0.0
      %v6027 = vadd.f32 %v6025, %v6026
      %v6028 = vsel %vm5980, %v5811, 0.0
      %v6029 = vadd.f32 %v6027, %v6028
      %v6030 = vsel %vm5980, %v5812, 0.0
      %v6031 = vadd.f32 %v6029, %v6030
      %v6032 = vsel %vm5980, %v5813, 0.0
      %v6033 = vadd.f32 %v6031, %v6032
      %v6034 = vsel %vm5980, %v5814, 0.0
      %v6035 = vadd.f32 %v6033, %v6034
      %v6036 = vsel %vm5980, %v5815, 0.0
      %v6037 = vadd.f32 %v6035, %v6036
      %v6038 = vsel %vm5980, %v5816, 0.0
      %v6039 = vadd.f32 %v6037, %v6038
      %v6040 = vsel %vm5980, %v5817, 0.0
      %v6041 = vadd.f32 %v6039, %v6040
      %v6042 = vsel %vm5980, %v5818, 0.0
      %v6043 = vadd.f32 %v6041, %v6042
      %v6044 = vrot.slane %v6043, 4
      %v6045 = vadd.f32 %v6043, %v6044
      %v6046 = vrot.slane %v6045, 2
      %v6047 = vadd.f32 %v6045, %v6046
      %v6048 = vrot.slane %v6047, 1
      %v6049 = vadd.f32 %v6047, %v6048
      %vm6050 = vcmask 57344
      %6051 = vst.msk [vmem:[%s181] sm:$0x1] %vm6050, %v6049
      %v6052 = vmul.f32 %v5787, %v5787
      %v6053 = vmul.f32 %v5788, %v5788
      %v6054 = vmul.f32 %v5789, %v5789
      %v6055 = vmul.f32 %v5790, %v5790
      %v6056 = vmul.f32 %v5791, %v5791
      %v6057 = vmul.f32 %v5792, %v5792
      %v6058 = vmul.f32 %v5793, %v5793
      %v6059 = vmul.f32 %v5794, %v5794
      %v6060 = vmul.f32 %v5795, %v5795
      %v6061 = vmul.f32 %v5796, %v5796
      %v6062 = vmul.f32 %v5797, %v5797
      %v6063 = vmul.f32 %v5798, %v5798
      %v6064 = vmul.f32 %v5799, %v5799
      %v6065 = vmul.f32 %v5800, %v5800
      %v6066 = vmul.f32 %v5801, %v5801
      %v6067 = vmul.f32 %v5802, %v5802
      %v6068 = vmul.f32 %v5803, %v5803
      %v6069 = vmul.f32 %v5804, %v5804
      %v6070 = vmul.f32 %v5805, %v5805
      %v6071 = vmul.f32 %v5806, %v5806
      %v6072 = vmul.f32 %v5807, %v5807
      %v6073 = vmul.f32 %v5808, %v5808
      %v6074 = vmul.f32 %v5809, %v5809
      %v6075 = vmul.f32 %v5810, %v5810
      %v6076 = vmul.f32 %v5811, %v5811
      %v6077 = vmul.f32 %v5812, %v5812
      %v6078 = vmul.f32 %v5813, %v5813
      %v6079 = vmul.f32 %v5814, %v5814
      %v6080 = vmul.f32 %v5815, %v5815
      %v6081 = vmul.f32 %v5816, %v5816
      %v6082 = vmul.f32 %v5817, %v5817
      %v6083 = vmul.f32 %v5818, %v5818
      %v6084 = vsel %vm5980, %v6052, 0.0
      %v6085 = vsel %vm5980, %v6053, 0.0
      %v6086 = vadd.f32 %v6084, %v6085
      %v6087 = vsel %vm5980, %v6054, 0.0
      %v6088 = vadd.f32 %v6086, %v6087
      %v6089 = vsel %vm5980, %v6055, 0.0
      %v6090 = vadd.f32 %v6088, %v6089
      %v6091 = vsel %vm5980, %v6056, 0.0
      %v6092 = vadd.f32 %v6090, %v6091
      %v6093 = vsel %vm5980, %v6057, 0.0
      %v6094 = vadd.f32 %v6092, %v6093
      %v6095 = vsel %vm5980, %v6058, 0.0
      %v6096 = vadd.f32 %v6094, %v6095
      %v6097 = vsel %vm5980, %v6059, 0.0
      %v6098 = vadd.f32 %v6096, %v6097
      %v6099 = vsel %vm5980, %v6060, 0.0
      %v6100 = vadd.f32 %v6098, %v6099
      %v6101 = vsel %vm5980, %v6061, 0.0
      %v6102 = vadd.f32 %v6100, %v6101
      %v6103 = vsel %vm5980, %v6062, 0.0
      %v6104 = vadd.f32 %v6102, %v6103
      %v6105 = vsel %vm5980, %v6063, 0.0
      %v6106 = vadd.f32 %v6104, %v6105
      %v6107 = vsel %vm5980, %v6064, 0.0
      %v6108 = vadd.f32 %v6106, %v6107
      %v6109 = vsel %vm5980, %v6065, 0.0
      %v6110 = vadd.f32 %v6108, %v6109
      %v6111 = vsel %vm5980, %v6066, 0.0
      %v6112 = vadd.f32 %v6110, %v6111
      %v6113 = vsel %vm5980, %v6067, 0.0
      %v6114 = vadd.f32 %v6112, %v6113
      %v6115 = vsel %vm5980, %v6068, 0.0
      %v6116 = vadd.f32 %v6114, %v6115
      %v6117 = vsel %vm5980, %v6069, 0.0
      %v6118 = vadd.f32 %v6116, %v6117
      %v6119 = vsel %vm5980, %v6070, 0.0
      %v6120 = vadd.f32 %v6118, %v6119
      %v6121 = vsel %vm5980, %v6071, 0.0
      %v6122 = vadd.f32 %v6120, %v6121
      %v6123 = vsel %vm5980, %v6072, 0.0
      %v6124 = vadd.f32 %v6122, %v6123
      %v6125 = vsel %vm5980, %v6073, 0.0
      %v6126 = vadd.f32 %v6124, %v6125
      %v6127 = vsel %vm5980, %v6074, 0.0
      %v6128 = vadd.f32 %v6126, %v6127
      %v6129 = vsel %vm5980, %v6075, 0.0
      %v6130 = vadd.f32 %v6128, %v6129
      %v6131 = vsel %vm5980, %v6076, 0.0
      %v6132 = vadd.f32 %v6130, %v6131
      %v6133 = vsel %vm5980, %v6077, 0.0
      %v6134 = vadd.f32 %v6132, %v6133
      %v6135 = vsel %vm5980, %v6078, 0.0
      %v6136 = vadd.f32 %v6134, %v6135
      %v6137 = vsel %vm5980, %v6079, 0.0
      %v6138 = vadd.f32 %v6136, %v6137
      %v6139 = vsel %vm5980, %v6080, 0.0
      %v6140 = vadd.f32 %v6138, %v6139
      %v6141 = vsel %vm5980, %v6081, 0.0
      %v6142 = vadd.f32 %v6140, %v6141
      %v6143 = vsel %vm5980, %v6082, 0.0
      %v6144 = vadd.f32 %v6142, %v6143
      %v6145 = vsel %vm5980, %v6083, 0.0
      %v6146 = vadd.f32 %v6144, %v6145
      %v6147 = vrot.slane %v6146, 4
      %v6148 = vadd.f32 %v6146, %v6147
      %v6149 = vrot.slane %v6148, 2
      %v6150 = vadd.f32 %v6148, %v6149
      %v6151 = vrot.slane %v6150, 1
      %v6152 = vadd.f32 %v6150, %v6151
      %6153 = vst.msk [vmem:[%s181 + $0x1] sm:$0x1] %vm6050, %v6152
      %p6154 = scmp.lt.s32.totalorder %s15, 1
      %s6155 = scalar_select %p6154, %s15, 1
      %s6156 = smul.addr %s6155, 32
      %s6157 = smul.addr %s6156, 4
      %s6158 = scalar_lea.vmem %s2, %s6157
      %p6159 = scmp.lt.s32.totalorder %s15, 1
      %s6160 = scalar_select %p6159, %s15, 1
      %s6161 = smul.addr %s6160, 2
      %s6162 = scalar_lea.vmem %s3, %s6161
      // Predicated region
      $region29: #{double_conv.3} parent=27 // pred_check
        %p6163 = pneg %p80
      $region30: #{double_conv.3} parent=27 // pred_check_branch
        %6165 = sbr.rel (%p6163) target = $region32
      $region31: #{double_conv.3} parent=27 // pred_region
        _
      $region32: #{double_conv.3} parent=27 // pred_fallthru
        _
      // Predicated region
      $region33: #{double_conv.3} parent=27 // pred_check
        %p6166 = pneg %p106
      $region34: #{double_conv.3} parent=27 // pred_check_branch
        %6168 = sbr.rel (%p6166) target = $region36
      $region35: #{double_conv.3} parent=27 // pred_region
        _
      $region36: #{double_conv.3} parent=27 // pred_fallthru
        _
    $region28: #{double_conv.3} parent=5 // pred_fallthru
      _
    %p6169 = scmp.le.s32.totalorder 2, %s10
    // Predicated region
    $region37: #{double_conv.3} parent=5 // pred_check
      %p6170 = pneg %p6169
    $region38: #{double_conv.3} parent=5 // pred_check_branch
      %6172 = sbr.rel (%p6170) target = $region40
    $region39: #{double_conv.3} parent=5 // pred_region
      %s6173 = ssub.s32 %s10, 2
      // Predicated region
      $region41: #{double_conv.3} parent=39 // pred_check
        %p6174 = pneg %p86
      $region42: #{double_conv.3} parent=39 // pred_check_branch
        %6176 = sbr.rel (%p6174) target = $region44
      $region43: #{double_conv.3} parent=39 // pred_region
        %p6177 = scmp.lt.s32.totalorder %s16, 1
        %s6178 = scalar_select %p6177, %s16, 1
        %s6179 = smul.addr %s6178, 32
        %s6180 = smul.addr %s6179, 4
        %s6181 = scalar_lea.vmem %s2, %s6180
      $region44: #{double_conv.3} parent=39 // pred_fallthru
        _
      // Predicated region
      $region45: #{double_conv.3} parent=39 // pred_check
        %p6182 = pneg %p112
      $region46: #{double_conv.3} parent=39 // pred_check_branch
        %6184 = sbr.rel (%p6182) target = $region48
      $region47: #{double_conv.3} parent=39 // pred_region
        %p6185 = scmp.lt.s32.totalorder %s16, 1
        %s6186 = scalar_select %p6185, %s16, 1
        %s6187 = smul.addr %s6186, 2
        %s6188 = scalar_lea.vmem %s3, %s6187
      $region48: #{double_conv.3} parent=39 // pred_fallthru
        _
    $region40: #{double_conv.3} parent=5 // pred_fallthru
      _
  $region6: #{double_conv.3} parent=0 // loop_footer
    %s14 = sadd.s32 1, %s10
  $region7: #{double_conv.3} parent=0 // loop_footer_branch
    %9 = sbr.rel target = $region3
  $region8: #{double_conv.3} parent=0 // loop_exit
    _

// kernel: double_conv.4
$region0: #{double_conv.4}
  #allocation0 [shape = 'u32[]', space=smem, size = 0x4, offset = 0x4, fixed_abs, tag = 'smem constant byte address 0x4 - core index']
  #allocation1 [shape = 'u32[144,128]{1,0:T(1,128)}', space=vmem, size = 0x12000, scoped, tag = 'internal scratch']
  #allocation2 [shape = 'bf16[312,8]{1,0:T(8,128)(2,1)}', space=vmem, size = 0x13800, scoped, tag = 'scratch operand']
  %s0 = inlined_call_operand.vmem [shape: bf16[2,256,8], index: 0, kind: input, shape index: {}]
  %s1 = inlined_call_operand.vmem [shape: f32[1,8], index: 1, kind: input, shape index: {}]
  %s2 = inlined_call_operand.vmem [shape: f32[1,8], index: 2, kind: input, shape index: {}]
  %s3 = inlined_call_operand.vmem [shape: bf16[9,8,8], index: 3, kind: input, shape index: {}]
  %s4 = inlined_call_operand.vmem [shape: bf16[2,256,8], index: 4, kind: output, shape index: {0}]
  %s5 = inlined_call_operand.vmem [shape: f32[2,2,8], index: 5, kind: output, shape index: {1}]
  %6 = xla_tuple %s4, %s5
  %s7 = sld [smem:[#allocation0]]
  $region57: #{double_conv.4} parent=0
    _
  %s9 = ssub.s32 1, %s7
  %s10 = scalar_select 0, %s9, %s7
  loop: start=0, step=1, limit=4
  $region2: #{double_conv.4} parent=0 // loop_pre_header
    _
  $region3: #{double_conv.4} parent=0 // loop_header
    %s12 = sphi 0, %s16
    %p13 = scmp.ge.s32.totalorder %s12, 4
    %s22 = sphi 0, %s24
    %s25 = sphi 0, %s22
    %s26 = sphi 0, %s25
    %s42 = sphi 0, %s26
    %s46 = sphi 0, %s46
    %s48 = sphi 0, %s46
    %s49 = sphi 0, %s48
    %s63 = sphi 0, %s49
    %s67 = sphi 0, %s67
    %s69 = sphi 0, %s67
    %s70 = sphi 0, %s69
    %s84 = sphi 0, %s70
    %s88 = sphi 0, %s88
    %s90 = sphi 0, %s88
    %s91 = sphi 0, %s90
    %s105 = sphi 0, %s91
    %s111 = sphi 0, %s113
    %s114 = sphi 0, %s111
    %s115 = sphi 0, %s114
    %s131 = sphi 0, %s115
    %s137 = sphi 0, %s139
    %s140 = sphi 0, %s137
    %s141 = sphi 0, %s140
    %s157 = sphi 0, %s141
  $region4: #{double_conv.4} parent=0 // loop_header_branch
    %15 = sbr.rel (%p13) target = $region8
  $region5: #{double_conv.4} parent=0 // loop_body
    %s17 = ssub.s32 %s12, 1
    %s18 = ssub.s32 %s12, 2
    %s19 = sadd.s32 %s12, 1
    %s20 = ssub.s32 %s12, %s19
    %p21 = scmp.eq.s32.totalorder %s20, 0
    %s23 = sadd.s32 %s22, 1
    %s24 = scalar_select %p21, %s22, %s23
    %p27 = pneg %p21
    %p28 = scmp.eq.s32.totalorder %s12, 1
    %p29 = por %p27, %p28
    %p30 = scmp.ne.s32.totalorder %s22, %s25
    %p31 = scmp.eq.s32.totalorder %s12, 0
    %p32 = por %p30, %p31
    %p33 = scmp.ne.s32.totalorder %s22, %s25
    %p34 = scmp.eq.s32.totalorder %s17, 1
    %p35 = por %p33, %p34
    %p36 = scmp.ne.s32.totalorder %s25, %s26
    %p37 = scmp.eq.s32.totalorder %s17, 0
    %p38 = por %p36, %p37
    %p39 = scmp.ne.s32.totalorder %s25, %s26
    %p40 = scmp.eq.s32.totalorder %s18, 1
    %p41 = por %p39, %p40
    %p43 = scmp.ne.s32.totalorder %s26, %s42
    %p44 = scmp.eq.s32.totalorder %s18, 0
    %p45 = por %p43, %p44
    %s47 = sadd.s32 %s46, 1
    %p50 = scmp.eq.s32.totalorder %s12, 1
    %p51 = scmp.ne.s32.totalorder %s46, %s48
    %p52 = scmp.eq.s32.totalorder %s12, 0
    %p53 = por %p51, %p52
    %p54 = scmp.ne.s32.totalorder %s46, %s48
    %p55 = scmp.eq.s32.totalorder %s17, 1
    %p56 = por %p54, %p55
    %p57 = scmp.ne.s32.totalorder %s48, %s49
    %p58 = scmp.eq.s32.totalorder %s17, 0
    %p59 = por %p57, %p58
    %p60 = scmp.ne.s32.totalorder %s48, %s49
    %p61 = scmp.eq.s32.totalorder %s18, 1
    %p62 = por %p60, %p61
    %p64 = scmp.ne.s32.totalorder %s49, %s63
    %p65 = scmp.eq.s32.totalorder %s18, 0
    %p66 = por %p64, %p65
    %s68 = sadd.s32 %s67, 1
    %p71 = scmp.eq.s32.totalorder %s12, 1
    %p72 = scmp.ne.s32.totalorder %s67, %s69
    %p73 = scmp.eq.s32.totalorder %s12, 0
    %p74 = por %p72, %p73
    %p75 = scmp.ne.s32.totalorder %s67, %s69
    %p76 = scmp.eq.s32.totalorder %s17, 1
    %p77 = por %p75, %p76
    %p78 = scmp.ne.s32.totalorder %s69, %s70
    %p79 = scmp.eq.s32.totalorder %s17, 0
    %p80 = por %p78, %p79
    %p81 = scmp.ne.s32.totalorder %s69, %s70
    %p82 = scmp.eq.s32.totalorder %s18, 1
    %p83 = por %p81, %p82
    %p85 = scmp.ne.s32.totalorder %s70, %s84
    %p86 = scmp.eq.s32.totalorder %s18, 0
    %p87 = por %p85, %p86
    %s89 = sadd.s32 %s88, 1
    %p92 = scmp.eq.s32.totalorder %s12, 1
    %p93 = scmp.ne.s32.totalorder %s88, %s90
    %p94 = scmp.eq.s32.totalorder %s12, 0
    %p95 = por %p93, %p94
    %p96 = scmp.ne.s32.totalorder %s88, %s90
    %p97 = scmp.eq.s32.totalorder %s17, 1
    %p98 = por %p96, %p97
    %p99 = scmp.ne.s32.totalorder %s90, %s91
    %p100 = scmp.eq.s32.totalorder %s17, 0
    %p101 = por %p99, %p100
    %p102 = scmp.ne.s32.totalorder %s90, %s91
    %p103 = scmp.eq.s32.totalorder %s18, 1
    %p104 = por %p102, %p103
    %p106 = scmp.ne.s32.totalorder %s91, %s105
    %p107 = scmp.eq.s32.totalorder %s18, 0
    %p108 = por %p106, %p107
    %s109 = ssub.s32 %s12, %s19
    %p110 = scmp.eq.s32.totalorder %s109, 0
    %s112 = sadd.s32 %s111, 1
    %s113 = scalar_select %p110, %s111, %s112
    %p116 = pneg %p110
    %p117 = scmp.eq.s32.totalorder %s12, 1
    %p118 = por %p116, %p117
    %p119 = scmp.ne.s32.totalorder %s111, %s114
    %p120 = scmp.eq.s32.totalorder %s12, 0
    %p121 = por %p119, %p120
    %p122 = scmp.ne.s32.totalorder %s111, %s114
    %p123 = scmp.eq.s32.totalorder %s17, 1
    %p124 = por %p122, %p123
    %p125 = scmp.ne.s32.totalorder %s114, %s115
    %p126 = scmp.eq.s32.totalorder %s17, 0
    %p127 = por %p125, %p126
    %p128 = scmp.ne.s32.totalorder %s114, %s115
    %p129 = scmp.eq.s32.totalorder %s18, 1
    %p130 = por %p128, %p129
    %p132 = scmp.ne.s32.totalorder %s115, %s131
    %p133 = scmp.eq.s32.totalorder %s18, 0
    %p134 = por %p132, %p133
    %s135 = ssub.s32 %s12, %s19
    %p136 = scmp.eq.s32.totalorder %s135, 0
    %s138 = sadd.s32 %s137, 1
    %s139 = scalar_select %p136, %s137, %s138
    %p142 = pneg %p136
    %p143 = scmp.eq.s32.totalorder %s12, 1
    %p144 = por %p142, %p143
    %p145 = scmp.ne.s32.totalorder %s137, %s140
    %p146 = scmp.eq.s32.totalorder %s12, 0
    %p147 = por %p145, %p146
    %p148 = scmp.ne.s32.totalorder %s137, %s140
    %p149 = scmp.eq.s32.totalorder %s17, 1
    %p150 = por %p148, %p149
    %p151 = scmp.ne.s32.totalorder %s140, %s141
    %p152 = scmp.eq.s32.totalorder %s17, 0
    %p153 = por %p151, %p152
    %p154 = scmp.ne.s32.totalorder %s140, %s141
    %p155 = scmp.eq.s32.totalorder %s18, 1
    %p156 = por %p154, %p155
    %p158 = scmp.ne.s32.totalorder %s141, %s157
    %p159 = scmp.eq.s32.totalorder %s18, 0
    %p160 = por %p158, %p159
    %p161 = scmp.le.s32.totalorder 1, %s12
    %p162 = scmp.lt.s32.totalorder %s12, 3
    %p163 = pnand %p161, %p162
    %p164 = pneg %p163
    // Predicated region
    $region9: #{double_conv.4} parent=5 // pred_check
      _
    $region10: #{double_conv.4} parent=5 // pred_check_branch
      %166 = sbr.rel (%p163) target = $region12
    $region11: #{double_conv.4} parent=5 // pred_region
      %s167 = ssub.s32 %s12, 1
      // Predicated region
      $region13: #{double_conv.4} parent=11 // pred_check
        %p168 = pneg %p59
      $region14: #{double_conv.4} parent=11 // pred_check_branch
        %170 = sbr.rel (%p168) target = $region16
      $region15: #{double_conv.4} parent=11 // pred_region
        _
      $region16: #{double_conv.4} parent=11 // pred_fallthru
        _
      // Predicated region
      $region17: #{double_conv.4} parent=11 // pred_check
        %p171 = pneg %p80
      $region18: #{double_conv.4} parent=11 // pred_check_branch
        %173 = sbr.rel (%p171) target = $region20
      $region19: #{double_conv.4} parent=11 // pred_region
        _
      $region20: #{double_conv.4} parent=11 // pred_fallthru
        _
      // Predicated region
      $region21: #{double_conv.4} parent=11 // pred_check
        %p174 = pneg %p101
      $region22: #{double_conv.4} parent=11 // pred_check_branch
        %176 = sbr.rel (%p174) target = $region24
      $region23: #{double_conv.4} parent=11 // pred_region
        _
      $region24: #{double_conv.4} parent=11 // pred_fallthru
        _
    $region12: #{double_conv.4} parent=5 // pred_fallthru
      _
    %p177 = scmp.lt.s32.totalorder %s12, 2
    // Predicated region
    $region25: #{double_conv.4} parent=5 // pred_check
      %p178 = pneg %p177
    $region26: #{double_conv.4} parent=5 // pred_check_branch
      %180 = sbr.rel (%p178) target = $region28
    $region27: #{double_conv.4} parent=5 // pred_region
      // Predicated region
      $region29: #{double_conv.4} parent=27 // pred_check
        %p181 = pneg %p32
      $region30: #{double_conv.4} parent=27 // pred_check_branch
        %183 = sbr.rel (%p181) target = $region32
      $region31: #{double_conv.4} parent=27 // pred_region
        %p184 = scmp.lt.s32.totalorder %s12, 1
        %s185 = scalar_select %p184, %s12, 1
        %s186 = smul.addr %s185, 32
        %s187 = smul.addr %s186, 4
        %s188 = scalar_lea.vmem %s0, %s187
      $region32: #{double_conv.4} parent=27 // pred_fallthru
        _
    $region28: #{double_conv.4} parent=5 // pred_fallthru
      _
    %p189 = scmp.le.s32.totalorder 1, %s12
    %p190 = scmp.lt.s32.totalorder %s12, 3
    %p191 = pnand %p189, %p190
    %p192 = pneg %p191
    // Predicated region
    $region33: #{double_conv.4} parent=5 // pred_check
      _
    $region34: #{double_conv.4} parent=5 // pred_check_branch
      %194 = sbr.rel (%p191) target = $region36
    $region35: #{double_conv.4} parent=5 // pred_region
      %s195 = ssub.s32 %s12, 1
      %p196 = scmp.lt.s32.totalorder %s17, 1
      %s197 = scalar_select %p196, %s17, 1
      %s198 = smul.addr %s197, 32
      %s199 = smul.addr %s198, 4
      %s200 = scalar_lea.vmem %s0, %s199
      %p201 = pneg %p38
      %p202 = pneg %p35
      %p203 = pneg %p59
      %p204 = pneg %p56
      %p205 = pneg %p80
      %p206 = pneg %p77
      %p207 = pneg %p101
      %p208 = pneg %p98
      %p209 = pneg %p127
      %p210 = pneg %p124
      %p211 = scmp.lt.s32.totalorder %s17, 1
      %s212 = scalar_select %p211, %s17, 1
      %s213 = smul.addr %s212, 32
      %s214 = smul.addr %s213, 4
      %s215 = scalar_lea.vmem %s4, %s214
      %p216 = pneg %p153
      %p217 = pneg %p150
      %p218 = scmp.lt.s32.totalorder %s17, 1
      %s219 = scalar_select %p218, %s17, 1
      %s220 = smul.addr %s219, 2
      %s221 = scalar_lea.vmem %s5, %s220
      %p222 = scmp.lt.s32.totalorder %s17, 1
      %s223 = scalar_select %p222, %s17, 1
      %s224 = smul.addr %s223, 32
      %s225 = smul.addr %s224, 4
      %s226 = scalar_lea.vmem %s0, %s225
      %p227 = scmp.lt.s32.totalorder %s17, 1
      %s228 = scalar_select %p227, %s17, 1
      %s229 = smul.addr %s228, 32
      %s230 = smul.addr %s229, 4
      %s231 = scalar_lea.vmem %s4, %s230
      %p232 = scmp.lt.s32.totalorder %s17, 1
      %s233 = scalar_select %p232, %s17, 1
      %s234 = smul.addr %s233, 2
      %s235 = scalar_lea.vmem %s5, %s234
      %v239 = vld [vmem:[%s226] sm:$0xf]
      %v240 = vld [vmem:[%s226 + $0x4] sm:$0xf]
      %v241 = vld [vmem:[%s226 + $0x8] sm:$0xf]
      %v242 = vld [vmem:[%s226 + $0xc] sm:$0xf]
      %v243 = vld [vmem:[%s226 + $0x10] sm:$0xf]
      %v244 = vld [vmem:[%s226 + $0x14] sm:$0xf]
      %v245 = vld [vmem:[%s226 + $0x18] sm:$0xf]
      %v246 = vld [vmem:[%s226 + $0x1c] sm:$0xf]
      %v247 = vld [vmem:[%s226 + $0x20] sm:$0xf]
      %v248 = vld [vmem:[%s226 + $0x24] sm:$0xf]
      %v249 = vld [vmem:[%s226 + $0x28] sm:$0xf]
      %v250 = vld [vmem:[%s226 + $0x2c] sm:$0xf]
      %v251 = vld [vmem:[%s226 + $0x30] sm:$0xf]
      %v252 = vld [vmem:[%s226 + $0x34] sm:$0xf]
      %v253 = vld [vmem:[%s226 + $0x38] sm:$0xf]
      %v254 = vld [vmem:[%s226 + $0x3c] sm:$0xf]
      %v255 = vld [vmem:[%s226 + $0x40] sm:$0xf]
      %v256 = vld [vmem:[%s226 + $0x44] sm:$0xf]
      %v257 = vld [vmem:[%s226 + $0x48] sm:$0xf]
      %v258 = vld [vmem:[%s226 + $0x4c] sm:$0xf]
      %v259 = vld [vmem:[%s226 + $0x50] sm:$0xf]
      %v260 = vld [vmem:[%s226 + $0x54] sm:$0xf]
      %v261 = vld [vmem:[%s226 + $0x58] sm:$0xf]
      %v262 = vld [vmem:[%s226 + $0x5c] sm:$0xf]
      %v263 = vld [vmem:[%s226 + $0x60] sm:$0xf]
      %v264 = vld [vmem:[%s226 + $0x64] sm:$0xf]
      %v265 = vld [vmem:[%s226 + $0x68] sm:$0xf]
      %v266 = vld [vmem:[%s226 + $0x6c] sm:$0xf]
      %v267 = vld [vmem:[%s226 + $0x70] sm:$0xf]
      %v268 = vld [vmem:[%s226 + $0x74] sm:$0xf]
      %v269 = vld [vmem:[%s226 + $0x78] sm:$0xf]
      %v270 = vld [vmem:[%s226 + $0x7c] sm:$0xf]
      %v271 = vunpack.c.l.bf16 %v239
      %v272 = vunpack.c.l.bf16 %v240
      %v273 = vunpack.c.l.bf16 %v241
      %v274 = vunpack.c.l.bf16 %v242
      %v275 = vunpack.c.l.bf16 %v243
      %v276 = vunpack.c.l.bf16 %v244
      %v277 = vunpack.c.l.bf16 %v245
      %v278 = vunpack.c.l.bf16 %v246
      %v279 = vunpack.c.l.bf16 %v247
      %v280 = vunpack.c.l.bf16 %v248
      %v281 = vunpack.c.l.bf16 %v249
      %v282 = vunpack.c.l.bf16 %v250
      %v283 = vunpack.c.l.bf16 %v251
      %v284 = vunpack.c.l.bf16 %v252
      %v285 = vunpack.c.l.bf16 %v253
      %v286 = vunpack.c.l.bf16 %v254
      %v287 = vunpack.c.l.bf16 %v255
      %v288 = vunpack.c.l.bf16 %v256
      %v289 = vunpack.c.l.bf16 %v257
      %v290 = vunpack.c.l.bf16 %v258
      %v291 = vunpack.c.l.bf16 %v259
      %v292 = vunpack.c.l.bf16 %v260
      %v293 = vunpack.c.l.bf16 %v261
      %v294 = vunpack.c.l.bf16 %v262
      %v295 = vunpack.c.l.bf16 %v263
      %v296 = vunpack.c.l.bf16 %v264
      %v297 = vunpack.c.l.bf16 %v265
      %v298 = vunpack.c.l.bf16 %v266
      %v299 = vunpack.c.l.bf16 %v267
      %v300 = vunpack.c.l.bf16 %v268
      %v301 = vunpack.c.l.bf16 %v269
      %v302 = vunpack.c.l.bf16 %v270
      %v303 = vld [vmem:[%s1] sm:$0x1]
      %v305 = vlaneseq
      %v306 = vshrl.u32 %v305, 7
      %v307 = vsub.s32 0, %v306
      %v308 = vrot.slane %v303, %v307
      %v310 = vmul.f32 %v271, %v308
      %v311 = vmul.f32 %v272, %v308
      %v312 = vmul.f32 %v273, %v308
      %v313 = vmul.f32 %v274, %v308
      %v314 = vmul.f32 %v275, %v308
      %v315 = vmul.f32 %v276, %v308
      %v316 = vmul.f32 %v277, %v308
      %v317 = vmul.f32 %v278, %v308
      %v318 = vmul.f32 %v279, %v308
      %v319 = vmul.f32 %v280, %v308
      %v320 = vmul.f32 %v281, %v308
      %v321 = vmul.f32 %v282, %v308
      %v322 = vmul.f32 %v283, %v308
      %v323 = vmul.f32 %v284, %v308
      %v324 = vmul.f32 %v285, %v308
      %v325 = vmul.f32 %v286, %v308
      %v326 = vmul.f32 %v287, %v308
      %v327 = vmul.f32 %v288, %v308
      %v328 = vmul.f32 %v289, %v308
      %v329 = vmul.f32 %v290, %v308
      %v330 = vmul.f32 %v291, %v308
      %v331 = vmul.f32 %v292, %v308
      %v332 = vmul.f32 %v293, %v308
      %v333 = vmul.f32 %v294, %v308
      %v334 = vmul.f32 %v295, %v308
      %v335 = vmul.f32 %v296, %v308
      %v336 = vmul.f32 %v297, %v308
      %v337 = vmul.f32 %v298, %v308
      %v338 = vmul.f32 %v299, %v308
      %v339 = vmul.f32 %v300, %v308
      %v340 = vmul.f32 %v301, %v308
      %v341 = vmul.f32 %v302, %v308
      %v342 = vld [vmem:[%s2] sm:$0x1]
      %v344 = vlaneseq
      %v345 = vshrl.u32 %v344, 7
      %v346 = vsub.s32 0, %v345
      %v347 = vrot.slane %v342, %v346
      %v349 = vadd.f32 %v310, %v347
      %v350 = vadd.f32 %v311, %v347
      %v351 = vadd.f32 %v312, %v347
      %v352 = vadd.f32 %v313, %v347
      %v353 = vadd.f32 %v314, %v347
      %v354 = vadd.f32 %v315, %v347
      %v355 = vadd.f32 %v316, %v347
      %v356 = vadd.f32 %v317, %v347
      %v357 = vadd.f32 %v318, %v347
      %v358 = vadd.f32 %v319, %v347
      %v359 = vadd.f32 %v320, %v347
      %v360 = vadd.f32 %v321, %v347
      %v361 = vadd.f32 %v322, %v347
      %v362 = vadd.f32 %v323, %v347
      %v363 = vadd.f32 %v324, %v347
      %v364 = vadd.f32 %v325, %v347
      %v365 = vadd.f32 %v326, %v347
      %v366 = vadd.f32 %v327, %v347
      %v367 = vadd.f32 %v328, %v347
      %v368 = vadd.f32 %v329, %v347
      %v369 = vadd.f32 %v330, %v347
      %v370 = vadd.f32 %v331, %v347
      %v371 = vadd.f32 %v332, %v347
      %v372 = vadd.f32 %v333, %v347
      %v373 = vadd.f32 %v334, %v347
      %v374 = vadd.f32 %v335, %v347
      %v375 = vadd.f32 %v336, %v347
      %v376 = vadd.f32 %v337, %v347
      %v377 = vadd.f32 %v338, %v347
      %v378 = vadd.f32 %v339, %v347
      %v379 = vadd.f32 %v340, %v347
      %v380 = vadd.f32 %v341, %v347
      %v381 = vmax.f32 %v349, 0.0
      %v382 = vmax.f32 %v350, 0.0
      %v383 = vmax.f32 %v351, 0.0
      %v384 = vmax.f32 %v352, 0.0
      %v385 = vmax.f32 %v353, 0.0
      %v386 = vmax.f32 %v354, 0.0
      %v387 = vmax.f32 %v355, 0.0
      %v388 = vmax.f32 %v356, 0.0
      %v389 = vmax.f32 %v357, 0.0
      %v390 = vmax.f32 %v358, 0.0
      %v391 = vmax.f32 %v359, 0.0
      %v392 = vmax.f32 %v360, 0.0
      %v393 = vmax.f32 %v361, 0.0
      %v394 = vmax.f32 %v362, 0.0
      %v395 = vmax.f32 %v363, 0.0
      %v396 = vmax.f32 %v364, 0.0
      %v397 = vmax.f32 %v365, 0.0
      %v398 = vmax.f32 %v366, 0.0
      %v399 = vmax.f32 %v367, 0.0
      %v400 = vmax.f32 %v368, 0.0
      %v401 = vmax.f32 %v369, 0.0
      %v402 = vmax.f32 %v370, 0.0
      %v403 = vmax.f32 %v371, 0.0
      %v404 = vmax.f32 %v372, 0.0
      %v405 = vmax.f32 %v373, 0.0
      %v406 = vmax.f32 %v374, 0.0
      %v407 = vmax.f32 %v375, 0.0
      %v408 = vmax.f32 %v376, 0.0
      %v409 = vmax.f32 %v377, 0.0
      %v410 = vmax.f32 %v378, 0.0
      %v411 = vmax.f32 %v379, 0.0
      %v412 = vmax.f32 %v380, 0.0
      %v413 = vpack.c.bf16 %v382, %v381
      %v414 = vpack.c.bf16 %v384, %v383
      %v415 = vpack.c.bf16 %v386, %v385
      %v416 = vpack.c.bf16 %v388, %v387
      %v417 = vpack.c.bf16 %v390, %v389
      %v418 = vpack.c.bf16 %v392, %v391
      %v419 = vpack.c.bf16 %v394, %v393
      %v420 = vpack.c.bf16 %v396, %v395
      %v421 = vpack.c.bf16 %v398, %v397
      %v422 = vpack.c.bf16 %v400, %v399
      %v423 = vpack.c.bf16 %v402, %v401
      %v424 = vpack.c.bf16 %v404, %v403
      %v425 = vpack.c.bf16 %v406, %v405
      %v426 = vpack.c.bf16 %v408, %v407
      %v427 = vpack.c.bf16 %v410, %v409
      %v428 = vpack.c.bf16 %v412, %v411
      %vm429 = vcmask 60419
      %vm430 = vsmask.f32 7950
      %vm431 = vmand %vm429, %vm430
      %v432 = vld [vmem:[#allocation2 + $0x4] sm:$0x8]
      %v433 = vsel %vm431, 0, %v432
      %434 = vst [vmem:[#allocation2 + $0x4] sm:$0x8] %v433
      %vm435 = vcmask 60416
      %436 = vst.msk [vmem:[#allocation2 + $0x8] sm:$0xf] %vm435, 0
      %437 = vst.msk [vmem:[#allocation2 + $0xc] sm:$0xf] %vm435, 0
      %438 = vst.msk [vmem:[#allocation2 + $0x90] sm:$0xf] %vm435, 0
      %439 = vst.msk [vmem:[#allocation2 + $0x94] sm:$0xf] %vm435, 0
      %vm440 = vcmask 57344
      %vm441 = vsmask.f32 256
      %vm442 = vmand %vm440, %vm441
      %v443 = vld [vmem:[#allocation2 + $0x98] sm:$0x1]
      %v444 = vsel %vm442, 0, %v443
      %445 = vst [vmem:[#allocation2 + $0x98] sm:$0x1] %v444
      %v462 = vunpack.c.l.b16 %v413
      %v463 = vunpack.c.h.b16 %v413
      %v464 = vunpack.c.l.b16 %v414
      %v465 = vunpack.c.h.b16 %v414
      %v466 = vunpack.c.l.b16 %v415
      %v467 = vunpack.c.h.b16 %v415
      %v468 = vunpack.c.l.b16 %v416
      %v469 = vunpack.c.h.b16 %v416
      %v470 = vunpack.c.l.b16 %v417
      %v471 = vunpack.c.h.b16 %v417
      %v472 = vunpack.c.l.b16 %v418
      %v473 = vunpack.c.h.b16 %v418
      %v474 = vunpack.c.l.b16 %v419
      %v475 = vunpack.c.h.b16 %v419
      %v476 = vunpack.c.l.b16 %v420
      %v477 = vunpack.c.h.b16 %v420
      %v478 = vunpack.c.l.b16 %v421
      %v479 = vunpack.c.h.b16 %v421
      %v480 = vunpack.c.l.b16 %v422
      %v481 = vunpack.c.h.b16 %v422
      %v482 = vunpack.c.l.b16 %v423
      %v483 = vunpack.c.h.b16 %v423
      %v484 = vunpack.c.l.b16 %v424
      %v485 = vunpack.c.h.b16 %v424
      %v486 = vunpack.c.l.b16 %v425
      %v487 = vunpack.c.h.b16 %v425
      %v488 = vunpack.c.l.b16 %v426
      %v489 = vunpack.c.h.b16 %v426
      %v490 = vunpack.c.l.b16 %v427
      %v491 = vunpack.c.h.b16 %v427
      %v492 = vunpack.c.l.b16 %v428
      %v493 = vunpack.c.h.b16 %v428
      %v494 = vpack.c.b16 %v462, %v462
      %v495 = vpack.c.b16 %v463, %v463
      %v496 = vpack.c.b16 %v464, %v464
      %v497 = vpack.c.b16 %v465, %v465
      %v498 = vpack.c.b16 %v466, %v466
      %v499 = vpack.c.b16 %v467, %v467
      %v500 = vpack.c.b16 %v468, %v468
      %v501 = vpack.c.b16 %v469, %v469
      %v502 = vpack.c.b16 %v470, %v470
      %v503 = vpack.c.b16 %v471, %v471
      %v504 = vpack.c.b16 %v472, %v472
      %v505 = vpack.c.b16 %v473, %v473
      %v506 = vpack.c.b16 %v474, %v474
      %v507 = vpack.c.b16 %v475, %v475
      %v508 = vpack.c.b16 %v476, %v476
      %v509 = vpack.c.b16 %v477, %v477
      %v510 = vpack.c.b16 %v478, %v478
      %v511 = vpack.c.b16 %v479, %v479
      %v512 = vpack.c.b16 %v480, %v480
      %v513 = vpack.c.b16 %v481, %v481
      %v514 = vpack.c.b16 %v482, %v482
      %v515 = vpack.c.b16 %v483, %v483
      %v516 = vpack.c.b16 %v484, %v484
      %v517 = vpack.c.b16 %v485, %v485
      %v518 = vpack.c.b16 %v486, %v486
      %v519 = vpack.c.b16 %v487, %v487
      %v520 = vpack.c.b16 %v488, %v488
      %v521 = vpack.c.b16 %v489, %v489
      %v522 = vpack.c.b16 %v490, %v490
      %v523 = vpack.c.b16 %v491, %v491
      %v524 = vpack.c.b16 %v492, %v492
      %v525 = vpack.c.b16 %v493, %v493
      %558 = vst.msk [vmem:[#allocation2 + $0x10] sm:$0xf] %vm435, %v494
      %559 = vst.msk [vmem:[#allocation2 + $0x14] sm:$0xf] %vm435, %v495
      %560 = vst.msk [vmem:[#allocation2 + $0x18] sm:$0xf] %vm435, %v496
      %561 = vst.msk [vmem:[#allocation2 + $0x1c] sm:$0xf] %vm435, %v497
      %562 = vst.msk [vmem:[#allocation2 + $0x20] sm:$0xf] %vm435, %v498
      %563 = vst.msk [vmem:[#allocation2 + $0x24] sm:$0xf] %vm435, %v499
      %564 = vst.msk [vmem:[#allocation2 + $0x28] sm:$0xf] %vm435, %v500
      %565 = vst.msk [vmem:[#allocation2 + $0x2c] sm:$0xf] %vm435, %v501
      %566 = vst.msk [vmem:[#allocation2 + $0x30] sm:$0xf] %vm435, %v502
      %567 = vst.msk [vmem:[#allocation2 + $0x34] sm:$0xf] %vm435, %v503
      %568 = vst.msk [vmem:[#allocation2 + $0x38] sm:$0xf] %vm435, %v504
      %569 = vst.msk [vmem:[#allocation2 + $0x3c] sm:$0xf] %vm435, %v505
      %570 = vst.msk [vmem:[#allocation2 + $0x40] sm:$0xf] %vm435, %v506
      %571 = vst.msk [vmem:[#allocation2 + $0x44] sm:$0xf] %vm435, %v507
      %572 = vst.msk [vmem:[#allocation2 + $0x48] sm:$0xf] %vm435, %v508
      %573 = vst.msk [vmem:[#allocation2 + $0x4c] sm:$0xf] %vm435, %v509
      %574 = vst.msk [vmem:[#allocation2 + $0x50] sm:$0xf] %vm435, %v510
      %575 = vst.msk [vmem:[#allocation2 + $0x54] sm:$0xf] %vm435, %v511
      %576 = vst.msk [vmem:[#allocation2 + $0x58] sm:$0xf] %vm435, %v512
      %577 = vst.msk [vmem:[#allocation2 + $0x5c] sm:$0xf] %vm435, %v513
      %578 = vst.msk [vmem:[#allocation2 + $0x60] sm:$0xf] %vm435, %v514
      %579 = vst.msk [vmem:[#allocation2 + $0x64] sm:$0xf] %vm435, %v515
      %580 = vst.msk [vmem:[#allocation2 + $0x68] sm:$0xf] %vm435, %v516
      %581 = vst.msk [vmem:[#allocation2 + $0x6c] sm:$0xf] %vm435, %v517
      %582 = vst.msk [vmem:[#allocation2 + $0x70] sm:$0xf] %vm435, %v518
      %583 = vst.msk [vmem:[#allocation2 + $0x74] sm:$0xf] %vm435, %v519
      %584 = vst.msk [vmem:[#allocation2 + $0x78] sm:$0xf] %vm435, %v520
      %585 = vst.msk [vmem:[#allocation2 + $0x7c] sm:$0xf] %vm435, %v521
      %586 = vst.msk [vmem:[#allocation2 + $0x80] sm:$0xf] %vm435, %v522
      %587 = vst.msk [vmem:[#allocation2 + $0x84] sm:$0xf] %vm435, %v523
      %588 = vst.msk [vmem:[#allocation2 + $0x88] sm:$0xf] %vm435, %v524
      %589 = vst.msk [vmem:[#allocation2 + $0x8c] sm:$0xf] %vm435, %v525
      %v590 = vlaneseq
      %v591 = vshrl.u32 %v590, 7
      %v592 = vadd.s32 %v591, 8
      %v593 = vadd.s32 %v591, 16
      %v594 = vadd.s32 %v591, 24
      %v595 = vadd.s32 %v591, 32
      %v596 = vadd.s32 %v591, 40
      %v597 = vadd.s32 %v591, 48
      %v598 = vadd.s32 %v591, 56
      %v599 = vadd.s32 %v591, 64
      %v600 = vadd.s32 %v591, 72
      %v601 = vadd.s32 %v591, 80
      %v602 = vadd.s32 %v591, 88
      %v603 = vadd.s32 %v591, 96
      %v604 = vadd.s32 %v591, 104
      %v605 = vadd.s32 %v591, 112
      %v606 = vadd.s32 %v591, 120
      %v607 = vadd.s32 %v591, 128
      %v608 = vadd.s32 %v591, 136
      %v609 = vadd.s32 %v591, 144
      %v610 = vadd.s32 %v591, 152
      %v611 = vadd.s32 %v591, 160
      %v612 = vadd.s32 %v591, 168
      %v613 = vadd.s32 %v591, 176
      %v614 = vadd.s32 %v591, 184
      %v615 = vadd.s32 %v591, 192
      %v616 = vadd.s32 %v591, 200
      %v617 = vadd.s32 %v591, 208
      %v618 = vadd.s32 %v591, 216
      %v619 = vadd.s32 %v591, 224
      %v620 = vadd.s32 %v591, 232
      %v621 = vadd.s32 %v591, 240
      %v622 = vadd.s32 %v591, 248
      %vm623 = vcmp.lt.s32.totalorder %v591, 0
      %v624 = vsub.s32 0, %v591
      %v625 = vsel %vm623, %v624, %v591
      %v626 = vshrl.u32 %v625, 4
      %v627 = vand.u32 %v625, 15
      %v628 = vsub.s32 0, %v627
      %v629 = vsel %vm623, %v628, %v627
      %vm630 = vcmp.lt.s32.totalorder %v592, 0
      %v631 = vsub.s32 0, %v592
      %v632 = vsel %vm630, %v631, %v592
      %v633 = vshrl.u32 %v632, 4
      %v634 = vand.u32 %v632, 15
      %v635 = vsub.s32 0, %v634
      %v636 = vsel %vm630, %v635, %v634
      %vm637 = vcmp.lt.s32.totalorder %v593, 0
      %v638 = vsub.s32 0, %v593
      %v639 = vsel %vm637, %v638, %v593
      %v640 = vshrl.u32 %v639, 4
      %v641 = vand.u32 %v639, 15
      %v642 = vsub.s32 0, %v641
      %v643 = vsel %vm637, %v642, %v641
      %vm644 = vcmp.lt.s32.totalorder %v594, 0
      %v645 = vsub.s32 0, %v594
      %v646 = vsel %vm644, %v645, %v594
      %v647 = vshrl.u32 %v646, 4
      %v648 = vand.u32 %v646, 15
      %v649 = vsub.s32 0, %v648
      %v650 = vsel %vm644, %v649, %v648
      %vm651 = vcmp.lt.s32.totalorder %v595, 0
      %v652 = vsub.s32 0, %v595
      %v653 = vsel %vm651, %v652, %v595
      %v654 = vshrl.u32 %v653, 4
      %v655 = vand.u32 %v653, 15
      %v656 = vsub.s32 0, %v655
      %v657 = vsel %vm651, %v656, %v655
      %vm658 = vcmp.lt.s32.totalorder %v596, 0
      %v659 = vsub.s32 0, %v596
      %v660 = vsel %vm658, %v659, %v596
      %v661 = vshrl.u32 %v660, 4
      %v662 = vand.u32 %v660, 15
      %v663 = vsub.s32 0, %v662
      %v664 = vsel %vm658, %v663, %v662
      %vm665 = vcmp.lt.s32.totalorder %v597, 0
      %v666 = vsub.s32 0, %v597
      %v667 = vsel %vm665, %v666, %v597
      %v668 = vshrl.u32 %v667, 4
      %v669 = vand.u32 %v667, 15
      %v670 = vsub.s32 0, %v669
      %v671 = vsel %vm665, %v670, %v669
      %vm672 = vcmp.lt.s32.totalorder %v598, 0
      %v673 = vsub.s32 0, %v598
      %v674 = vsel %vm672, %v673, %v598
      %v675 = vshrl.u32 %v674, 4
      %v676 = vand.u32 %v674, 15
      %v677 = vsub.s32 0, %v676
      %v678 = vsel %vm672, %v677, %v676
      %vm679 = vcmp.lt.s32.totalorder %v599, 0
      %v680 = vsub.s32 0, %v599
      %v681 = vsel %vm679, %v680, %v599
      %v682 = vshrl.u32 %v681, 4
      %v683 = vand.u32 %v681, 15
      %v684 = vsub.s32 0, %v683
      %v685 = vsel %vm679, %v684, %v683
      %vm686 = vcmp.lt.s32.totalorder %v600, 0
      %v687 = vsub.s32 0, %v600
      %v688 = vsel %vm686, %v687, %v600
      %v689 = vshrl.u32 %v688, 4
      %v690 = vand.u32 %v688, 15
      %v691 = vsub.s32 0, %v690
      %v692 = vsel %vm686, %v691, %v690
      %vm693 = vcmp.lt.s32.totalorder %v601, 0
      %v694 = vsub.s32 0, %v601
      %v695 = vsel %vm693, %v694, %v601
      %v696 = vshrl.u32 %v695, 4
      %v697 = vand.u32 %v695, 15
      %v698 = vsub.s32 0, %v697
      %v699 = vsel %vm693, %v698, %v697
      %vm700 = vcmp.lt.s32.totalorder %v602, 0
      %v701 = vsub.s32 0, %v602
      %v702 = vsel %vm700, %v701, %v602
      %v703 = vshrl.u32 %v702, 4
      %v704 = vand.u32 %v702, 15
      %v705 = vsub.s32 0, %v704
      %v706 = vsel %vm700, %v705, %v704
      %vm707 = vcmp.lt.s32.totalorder %v603, 0
      %v708 = vsub.s32 0, %v603
      %v709 = vsel %vm707, %v708, %v603
      %v710 = vshrl.u32 %v709, 4
      %v711 = vand.u32 %v709, 15
      %v712 = vsub.s32 0, %v711
      %v713 = vsel %vm707, %v712, %v711
      %vm714 = vcmp.lt.s32.totalorder %v604, 0
      %v715 = vsub.s32 0, %v604
      %v716 = vsel %vm714, %v715, %v604
      %v717 = vshrl.u32 %v716, 4
      %v718 = vand.u32 %v716, 15
      %v719 = vsub.s32 0, %v718
      %v720 = vsel %vm714, %v719, %v718
      %vm721 = vcmp.lt.s32.totalorder %v605, 0
      %v722 = vsub.s32 0, %v605
      %v723 = vsel %vm721, %v722, %v605
      %v724 = vshrl.u32 %v723, 4
      %v725 = vand.u32 %v723, 15
      %v726 = vsub.s32 0, %v725
      %v727 = vsel %vm721, %v726, %v725
      %vm728 = vcmp.lt.s32.totalorder %v606, 0
      %v729 = vsub.s32 0, %v606
      %v730 = vsel %vm728, %v729, %v606
      %v731 = vshrl.u32 %v730, 4
      %v732 = vand.u32 %v730, 15
      %v733 = vsub.s32 0, %v732
      %v734 = vsel %vm728, %v733, %v732
      %vm735 = vcmp.lt.s32.totalorder %v607, 0
      %v736 = vsub.s32 0, %v607
      %v737 = vsel %vm735, %v736, %v607
      %v738 = vshrl.u32 %v737, 4
      %v739 = vand.u32 %v737, 15
      %v740 = vsub.s32 0, %v739
      %v741 = vsel %vm735, %v740, %v739
      %vm742 = vcmp.lt.s32.totalorder %v608, 0
      %v743 = vsub.s32 0, %v608
      %v744 = vsel %vm742, %v743, %v608
      %v745 = vshrl.u32 %v744, 4
      %v746 = vand.u32 %v744, 15
      %v747 = vsub.s32 0, %v746
      %v748 = vsel %vm742, %v747, %v746
      %vm749 = vcmp.lt.s32.totalorder %v609, 0
      %v750 = vsub.s32 0, %v609
      %v751 = vsel %vm749, %v750, %v609
      %v752 = vshrl.u32 %v751, 4
      %v753 = vand.u32 %v751, 15
      %v754 = vsub.s32 0, %v753
      %v755 = vsel %vm749, %v754, %v753
      %vm756 = vcmp.lt.s32.totalorder %v610, 0
      %v757 = vsub.s32 0, %v610
      %v758 = vsel %vm756, %v757, %v610
      %v759 = vshrl.u32 %v758, 4
      %v760 = vand.u32 %v758, 15
      %v761 = vsub.s32 0, %v760
      %v762 = vsel %vm756, %v761, %v760
      %vm763 = vcmp.lt.s32.totalorder %v611, 0
      %v764 = vsub.s32 0, %v611
      %v765 = vsel %vm763, %v764, %v611
      %v766 = vshrl.u32 %v765, 4
      %v767 = vand.u32 %v765, 15
      %v768 = vsub.s32 0, %v767
      %v769 = vsel %vm763, %v768, %v767
      %vm770 = vcmp.lt.s32.totalorder %v612, 0
      %v771 = vsub.s32 0, %v612
      %v772 = vsel %vm770, %v771, %v612
      %v773 = vshrl.u32 %v772, 4
      %v774 = vand.u32 %v772, 15
      %v775 = vsub.s32 0, %v774
      %v776 = vsel %vm770, %v775, %v774
      %vm777 = vcmp.lt.s32.totalorder %v613, 0
      %v778 = vsub.s32 0, %v613
      %v779 = vsel %vm777, %v778, %v613
      %v780 = vshrl.u32 %v779, 4
      %v781 = vand.u32 %v779, 15
      %v782 = vsub.s32 0, %v781
      %v783 = vsel %vm777, %v782, %v781
      %vm784 = vcmp.lt.s32.totalorder %v614, 0
      %v785 = vsub.s32 0, %v614
      %v786 = vsel %vm784, %v785, %v614
      %v787 = vshrl.u32 %v786, 4
      %v788 = vand.u32 %v786, 15
      %v789 = vsub.s32 0, %v788
      %v790 = vsel %vm784, %v789, %v788
      %vm791 = vcmp.lt.s32.totalorder %v615, 0
      %v792 = vsub.s32 0, %v615
      %v793 = vsel %vm791, %v792, %v615
      %v794 = vshrl.u32 %v793, 4
      %v795 = vand.u32 %v793, 15
      %v796 = vsub.s32 0, %v795
      %v797 = vsel %vm791, %v796, %v795
      %vm798 = vcmp.lt.s32.totalorder %v616, 0
      %v799 = vsub.s32 0, %v616
      %v800 = vsel %vm798, %v799, %v616
      %v801 = vshrl.u32 %v800, 4
      %v802 = vand.u32 %v800, 15
      %v803 = vsub.s32 0, %v802
      %v804 = vsel %vm798, %v803, %v802
      %vm805 = vcmp.lt.s32.totalorder %v617, 0
      %v806 = vsub.s32 0, %v617
      %v807 = vsel %vm805, %v806, %v617
      %v808 = vshrl.u32 %v807, 4
      %v809 = vand.u32 %v807, 15
      %v810 = vsub.s32 0, %v809
      %v811 = vsel %vm805, %v810, %v809
      %vm812 = vcmp.lt.s32.totalorder %v618, 0
      %v813 = vsub.s32 0, %v618
      %v814 = vsel %vm812, %v813, %v618
      %v815 = vshrl.u32 %v814, 4
      %v816 = vand.u32 %v814, 15
      %v817 = vsub.s32 0, %v816
      %v818 = vsel %vm812, %v817, %v816
      %vm819 = vcmp.lt.s32.totalorder %v619, 0
      %v820 = vsub.s32 0, %v619
      %v821 = vsel %vm819, %v820, %v619
      %v822 = vshrl.u32 %v821, 4
      %v823 = vand.u32 %v821, 15
      %v824 = vsub.s32 0, %v823
      %v825 = vsel %vm819, %v824, %v823
      %vm826 = vcmp.lt.s32.totalorder %v620, 0
      %v827 = vsub.s32 0, %v620
      %v828 = vsel %vm826, %v827, %v620
      %v829 = vshrl.u32 %v828, 4
      %v830 = vand.u32 %v828, 15
      %v831 = vsub.s32 0, %v830
      %v832 = vsel %vm826, %v831, %v830
      %vm833 = vcmp.lt.s32.totalorder %v621, 0
      %v834 = vsub.s32 0, %v621
      %v835 = vsel %vm833, %v834, %v621
      %v836 = vshrl.u32 %v835, 4
      %v837 = vand.u32 %v835, 15
      %v838 = vsub.s32 0, %v837
      %v839 = vsel %vm833, %v838, %v837
      %vm840 = vcmp.lt.s32.totalorder %v622, 0
      %v841 = vsub.s32 0, %v622
      %v842 = vsel %vm840, %v841, %v622
      %v843 = vshrl.u32 %v842, 4
      %v844 = vand.u32 %v842, 15
      %v845 = vsub.s32 0, %v844
      %v846 = vsel %vm840, %v845, %v844
      %vm847 = vcmp.ne.s32.totalorder %v629, 0
      %vm848 = vcmp.ne.s32.totalorder %v636, 0
      %vm849 = vcmp.ne.s32.totalorder %v643, 0
      %vm850 = vcmp.ne.s32.totalorder %v650, 0
      %vm851 = vcmp.ne.s32.totalorder %v657, 0
      %vm852 = vcmp.ne.s32.totalorder %v664, 0
      %vm853 = vcmp.ne.s32.totalorder %v671, 0
      %vm854 = vcmp.ne.s32.totalorder %v678, 0
      %vm855 = vcmp.ne.s32.totalorder %v685, 0
      %vm856 = vcmp.ne.s32.totalorder %v692, 0
      %vm857 = vcmp.ne.s32.totalorder %v699, 0
      %vm858 = vcmp.ne.s32.totalorder %v706, 0
      %vm859 = vcmp.ne.s32.totalorder %v713, 0
      %vm860 = vcmp.ne.s32.totalorder %v720, 0
      %vm861 = vcmp.ne.s32.totalorder %v727, 0
      %vm862 = vcmp.ne.s32.totalorder %v734, 0
      %vm863 = vcmp.ne.s32.totalorder %v741, 0
      %vm864 = vcmp.ne.s32.totalorder %v748, 0
      %vm865 = vcmp.ne.s32.totalorder %v755, 0
      %vm866 = vcmp.ne.s32.totalorder %v762, 0
      %vm867 = vcmp.ne.s32.totalorder %v769, 0
      %vm868 = vcmp.ne.s32.totalorder %v776, 0
      %vm869 = vcmp.ne.s32.totalorder %v783, 0
      %vm870 = vcmp.ne.s32.totalorder %v790, 0
      %vm871 = vcmp.ne.s32.totalorder %v797, 0
      %vm872 = vcmp.ne.s32.totalorder %v804, 0
      %vm873 = vcmp.ne.s32.totalorder %v811, 0
      %vm874 = vcmp.ne.s32.totalorder %v818, 0
      %vm875 = vcmp.ne.s32.totalorder %v825, 0
      %vm876 = vcmp.ne.s32.totalorder %v832, 0
      %vm877 = vcmp.ne.s32.totalorder %v839, 0
      %vm878 = vcmp.ne.s32.totalorder %v846, 0
      %vm879 = vcmp.lt.s32.totalorder %v629, 0
      %vm880 = vcmp.lt.s32.totalorder %v636, 0
      %vm881 = vcmp.lt.s32.totalorder %v643, 0
      %vm882 = vcmp.lt.s32.totalorder %v650, 0
      %vm883 = vcmp.lt.s32.totalorder %v657, 0
      %vm884 = vcmp.lt.s32.totalorder %v664, 0
      %vm885 = vcmp.lt.s32.totalorder %v671, 0
      %vm886 = vcmp.lt.s32.totalorder %v678, 0
      %vm887 = vcmp.lt.s32.totalorder %v685, 0
      %vm888 = vcmp.lt.s32.totalorder %v692, 0
      %vm889 = vcmp.lt.s32.totalorder %v699, 0
      %vm890 = vcmp.lt.s32.totalorder %v706, 0
      %vm891 = vcmp.lt.s32.totalorder %v713, 0
      %vm892 = vcmp.lt.s32.totalorder %v720, 0
      %vm893 = vcmp.lt.s32.totalorder %v727, 0
      %vm894 = vcmp.lt.s32.totalorder %v734, 0
      %vm895 = vcmp.lt.s32.totalorder %v741, 0
      %vm896 = vcmp.lt.s32.totalorder %v748, 0
      %vm897 = vcmp.lt.s32.totalorder %v755, 0
      %vm898 = vcmp.lt.s32.totalorder %v762, 0
      %vm899 = vcmp.lt.s32.totalorder %v769, 0
      %vm900 = vcmp.lt.s32.totalorder %v776, 0
      %vm901 = vcmp.lt.s32.totalorder %v783, 0
      %vm902 = vcmp.lt.s32.totalorder %v790, 0
      %vm903 = vcmp.lt.s32.totalorder %v797, 0
      %vm904 = vcmp.lt.s32.totalorder %v804, 0
      %vm905 = vcmp.lt.s32.totalorder %v811, 0
      %vm906 = vcmp.lt.s32.totalorder %v818, 0
      %vm907 = vcmp.lt.s32.totalorder %v825, 0
      %vm908 = vcmp.lt.s32.totalorder %v832, 0
      %vm909 = vcmp.lt.s32.totalorder %v839, 0
      %vm910 = vcmp.lt.s32.totalorder %v846, 0
      %vm911 = vmand %vm879, %vm847
      %vm912 = vmand %vm880, %vm848
      %vm913 = vmand %vm881, %vm849
      %vm914 = vmand %vm882, %vm850
      %vm915 = vmand %vm883, %vm851
      %vm916 = vmand %vm884, %vm852
      %vm917 = vmand %vm885, %vm853
      %vm918 = vmand %vm886, %vm854
      %vm919 = vmand %vm887, %vm855
      %vm920 = vmand %vm888, %vm856
      %vm921 = vmand %vm889, %vm857
      %vm922 = vmand %vm890, %vm858
      %vm923 = vmand %vm891, %vm859
      %vm924 = vmand %vm892, %vm860
      %vm925 = vmand %vm893, %vm861
      %vm926 = vmand %vm894, %vm862
      %vm927 = vmand %vm895, %vm863
      %vm928 = vmand %vm896, %vm864
      %vm929 = vmand %vm897, %vm865
      %vm930 = vmand %vm898, %vm866
      %vm931 = vmand %vm899, %vm867
      %vm932 = vmand %vm900, %vm868
      %vm933 = vmand %vm901, %vm869
      %vm934 = vmand %vm902, %vm870
      %vm935 = vmand %vm903, %vm871
      %vm936 = vmand %vm904, %vm872
      %vm937 = vmand %vm905, %vm873
      %vm938 = vmand %vm906, %vm874
      %vm939 = vmand %vm907, %vm875
      %vm940 = vmand %vm908, %vm876
      %vm941 = vmand %vm909, %vm877
      %vm942 = vmand %vm910, %vm878
      %v943 = vadd.s32 %v629, 16
      %v944 = vadd.s32 %v636, 16
      %v945 = vadd.s32 %v643, 16
      %v946 = vadd.s32 %v650, 16
      %v947 = vadd.s32 %v657, 16
      %v948 = vadd.s32 %v664, 16
      %v949 = vadd.s32 %v671, 16
      %v950 = vadd.s32 %v678, 16
      %v951 = vadd.s32 %v685, 16
      %v952 = vadd.s32 %v692, 16
      %v953 = vadd.s32 %v699, 16
      %v954 = vadd.s32 %v706, 16
      %v955 = vadd.s32 %v713, 16
      %v956 = vadd.s32 %v720, 16
      %v957 = vadd.s32 %v727, 16
      %v958 = vadd.s32 %v734, 16
      %v959 = vadd.s32 %v741, 16
      %v960 = vadd.s32 %v748, 16
      %v961 = vadd.s32 %v755, 16
      %v962 = vadd.s32 %v762, 16
      %v963 = vadd.s32 %v769, 16
      %v964 = vadd.s32 %v776, 16
      %v965 = vadd.s32 %v783, 16
      %v966 = vadd.s32 %v790, 16
      %v967 = vadd.s32 %v797, 16
      %v968 = vadd.s32 %v804, 16
      %v969 = vadd.s32 %v811, 16
      %v970 = vadd.s32 %v818, 16
      %v971 = vadd.s32 %v825, 16
      %v972 = vadd.s32 %v832, 16
      %v973 = vadd.s32 %v839, 16
      %v974 = vadd.s32 %v846, 16
      %v975 = vsel %vm911, %v943, %v629
      %v976 = vsel %vm912, %v944, %v636
      %v977 = vsel %vm913, %v945, %v643
      %v978 = vsel %vm914, %v946, %v650
      %v979 = vsel %vm915, %v947, %v657
      %v980 = vsel %vm916, %v948, %v664
      %v981 = vsel %vm917, %v949, %v671
      %v982 = vsel %vm918, %v950, %v678
      %v983 = vsel %vm919, %v951, %v685
      %v984 = vsel %vm920, %v952, %v692
      %v985 = vsel %vm921, %v953, %v699
      %v986 = vsel %vm922, %v954, %v706
      %v987 = vsel %vm923, %v955, %v713
      %v988 = vsel %vm924, %v956, %v720
      %v989 = vsel %vm925, %v957, %v727
      %v990 = vsel %vm926, %v958, %v734
      %v991 = vsel %vm927, %v959, %v741
      %v992 = vsel %vm928, %v960, %v748
      %v993 = vsel %vm929, %v961, %v755
      %v994 = vsel %vm930, %v962, %v762
      %v995 = vsel %vm931, %v963, %v769
      %v996 = vsel %vm932, %v964, %v776
      %v997 = vsel %vm933, %v965, %v783
      %v998 = vsel %vm934, %v966, %v790
      %v999 = vsel %vm935, %v967, %v797
      %v1000 = vsel %vm936, %v968, %v804
      %v1001 = vsel %vm937, %v969, %v811
      %v1002 = vsel %vm938, %v970, %v818
      %v1003 = vsel %vm939, %v971, %v825
      %v1004 = vsel %vm940, %v972, %v832
      %v1005 = vsel %vm941, %v973, %v839
      %v1006 = vsel %vm942, %v974, %v846
      %vm1007 = vcmp.ne.s32.totalorder %v975, 0
      %vm1008 = vcmp.ne.s32.totalorder %v976, 0
      %vm1009 = vcmp.ne.s32.totalorder %v977, 0
      %vm1010 = vcmp.ne.s32.totalorder %v978, 0
      %vm1011 = vcmp.ne.s32.totalorder %v979, 0
      %vm1012 = vcmp.ne.s32.totalorder %v980, 0
      %vm1013 = vcmp.ne.s32.totalorder %v981, 0
      %vm1014 = vcmp.ne.s32.totalorder %v982, 0
      %vm1015 = vcmp.ne.s32.totalorder %v983, 0
      %vm1016 = vcmp.ne.s32.totalorder %v984, 0
      %vm1017 = vcmp.ne.s32.totalorder %v985, 0
      %vm1018 = vcmp.ne.s32.totalorder %v986, 0
      %vm1019 = vcmp.ne.s32.totalorder %v987, 0
      %vm1020 = vcmp.ne.s32.totalorder %v988, 0
      %vm1021 = vcmp.ne.s32.totalorder %v989, 0
      %vm1022 = vcmp.ne.s32.totalorder %v990, 0
      %vm1023 = vcmp.ne.s32.totalorder %v991, 0
      %vm1024 = vcmp.ne.s32.totalorder %v992, 0
      %vm1025 = vcmp.ne.s32.totalorder %v993, 0
      %vm1026 = vcmp.ne.s32.totalorder %v994, 0
      %vm1027 = vcmp.ne.s32.totalorder %v995, 0
      %vm1028 = vcmp.ne.s32.totalorder %v996, 0
      %vm1029 = vcmp.ne.s32.totalorder %v997, 0
      %vm1030 = vcmp.ne.s32.totalorder %v998, 0
      %vm1031 = vcmp.ne.s32.totalorder %v999, 0
      %vm1032 = vcmp.ne.s32.totalorder %v1000, 0
      %vm1033 = vcmp.ne.s32.totalorder %v1001, 0
      %vm1034 = vcmp.ne.s32.totalorder %v1002, 0
      %vm1035 = vcmp.ne.s32.totalorder %v1003, 0
      %vm1036 = vcmp.ne.s32.totalorder %v1004, 0
      %vm1037 = vcmp.ne.s32.totalorder %v1005, 0
      %vm1038 = vcmp.ne.s32.totalorder %v1006, 0
      %vm1039 = vcmp.ne.s32.totalorder %v975, 15
      %vm1040 = vcmp.ne.s32.totalorder %v976, 15
      %vm1041 = vcmp.ne.s32.totalorder %v977, 15
      %vm1042 = vcmp.ne.s32.totalorder %v978, 15
      %vm1043 = vcmp.ne.s32.totalorder %v979, 15
      %vm1044 = vcmp.ne.s32.totalorder %v980, 15
      %vm1045 = vcmp.ne.s32.totalorder %v981, 15
      %vm1046 = vcmp.ne.s32.totalorder %v982, 15
      %vm1047 = vcmp.ne.s32.totalorder %v983, 15
      %vm1048 = vcmp.ne.s32.totalorder %v984, 15
      %vm1049 = vcmp.ne.s32.totalorder %v985, 15
      %vm1050 = vcmp.ne.s32.totalorder %v986, 15
      %vm1051 = vcmp.ne.s32.totalorder %v987, 15
      %vm1052 = vcmp.ne.s32.totalorder %v988, 15
      %vm1053 = vcmp.ne.s32.totalorder %v989, 15
      %vm1054 = vcmp.ne.s32.totalorder %v990, 15
      %vm1055 = vcmp.ne.s32.totalorder %v991, 15
      %vm1056 = vcmp.ne.s32.totalorder %v992, 15
      %vm1057 = vcmp.ne.s32.totalorder %v993, 15
      %vm1058 = vcmp.ne.s32.totalorder %v994, 15
      %vm1059 = vcmp.ne.s32.totalorder %v995, 15
      %vm1060 = vcmp.ne.s32.totalorder %v996, 15
      %vm1061 = vcmp.ne.s32.totalorder %v997, 15
      %vm1062 = vcmp.ne.s32.totalorder %v998, 15
      %vm1063 = vcmp.ne.s32.totalorder %v999, 15
      %vm1064 = vcmp.ne.s32.totalorder %v1000, 15
      %vm1065 = vcmp.ne.s32.totalorder %v1001, 15
      %vm1066 = vcmp.ne.s32.totalorder %v1002, 15
      %vm1067 = vcmp.ne.s32.totalorder %v1003, 15
      %vm1068 = vcmp.ne.s32.totalorder %v1004, 15
      %vm1069 = vcmp.ne.s32.totalorder %v1005, 15
      %vm1070 = vcmp.ne.s32.totalorder %v1006, 15
      %v1071 = vld [vmem:[#allocation2 + $0x4] sm:$0x8]
      %v1072 = vld [vmem:[#allocation2 + $0x8] sm:$0xf]
      %v1073 = vld [vmem:[#allocation2 + $0xc] sm:$0xf]
      %v1074 = vld [vmem:[#allocation2 + $0x10] sm:$0xf]
      %v1075 = vld [vmem:[#allocation2 + $0x14] sm:$0xf]
      %v1076 = vld [vmem:[#allocation2 + $0x18] sm:$0xf]
      %v1077 = vld [vmem:[#allocation2 + $0x1c] sm:$0xf]
      %v1078 = vld [vmem:[#allocation2 + $0x20] sm:$0xf]
      %v1079 = vld [vmem:[#allocation2 + $0x24] sm:$0xf]
      %v1080 = vld [vmem:[#allocation2 + $0x28] sm:$0xf]
      %v1081 = vld [vmem:[#allocation2 + $0x2c] sm:$0xf]
      %v1082 = vld [vmem:[#allocation2 + $0x30] sm:$0xf]
      %v1083 = vld [vmem:[#allocation2 + $0x34] sm:$0xf]
      %v1084 = vld [vmem:[#allocation2 + $0x38] sm:$0xf]
      %v1085 = vld [vmem:[#allocation2 + $0x3c] sm:$0xf]
      %v1086 = vld [vmem:[#allocation2 + $0x40] sm:$0xf]
      %v1087 = vld [vmem:[#allocation2 + $0x44] sm:$0xf]
      %v1088 = vld [vmem:[#allocation2 + $0x48] sm:$0xf]
      %v1089 = vld [vmem:[#allocation2 + $0x4c] sm:$0xf]
      %v1090 = vld [vmem:[#allocation2 + $0x50] sm:$0xf]
      %v1091 = vld [vmem:[#allocation2 + $0x54] sm:$0xf]
      %v1092 = vld [vmem:[#allocation2 + $0x58] sm:$0xf]
      %v1093 = vld [vmem:[#allocation2 + $0x5c] sm:$0xf]
      %v1094 = vld [vmem:[#allocation2 + $0x60] sm:$0xf]
      %v1095 = vld [vmem:[#allocation2 + $0x64] sm:$0xf]
      %v1096 = vld [vmem:[#allocation2 + $0x68] sm:$0xf]
      %v1097 = vld [vmem:[#allocation2 + $0x6c] sm:$0xf]
      %v1098 = vld [vmem:[#allocation2 + $0x70] sm:$0xf]
      %v1099 = vld [vmem:[#allocation2 + $0x74] sm:$0xf]
      %v1100 = vld [vmem:[#allocation2 + $0x78] sm:$0xf]
      %v1101 = vld [vmem:[#allocation2 + $0x7c] sm:$0xf]
      %v1102 = vld [vmem:[#allocation2 + $0x80] sm:$0xf]
      %v1103 = vld [vmem:[#allocation2 + $0x84] sm:$0xf]
      %v1104 = vsel %vm1007, 1, 0
      %v1105 = vsel %vm1008, 1, 0
      %v1106 = vsel %vm1009, 1, 0
      %v1107 = vsel %vm1010, 1, 0
      %v1108 = vsel %vm1011, 1, 0
      %v1109 = vsel %vm1012, 1, 0
      %v1110 = vsel %vm1013, 1, 0
      %v1111 = vsel %vm1014, 1, 0
      %v1112 = vsel %vm1015, 1, 0
      %v1113 = vsel %vm1016, 1, 0
      %v1114 = vsel %vm1017, 1, 0
      %v1115 = vsel %vm1018, 1, 0
      %v1116 = vsel %vm1019, 1, 0
      %v1117 = vsel %vm1020, 1, 0
      %v1118 = vsel %vm1021, 1, 0
      %v1119 = vsel %vm1022, 1, 0
      %v1120 = vsel %vm1023, 1, 0
      %v1121 = vsel %vm1024, 1, 0
      %v1122 = vsel %vm1025, 1, 0
      %v1123 = vsel %vm1026, 1, 0
      %v1124 = vsel %vm1027, 1, 0
      %v1125 = vsel %vm1028, 1, 0
      %v1126 = vsel %vm1029, 1, 0
      %v1127 = vsel %vm1030, 1, 0
      %v1128 = vsel %vm1031, 1, 0
      %v1129 = vsel %vm1032, 1, 0
      %v1130 = vsel %vm1033, 1, 0
      %v1131 = vsel %vm1034, 1, 0
      %v1132 = vsel %vm1035, 1, 0
      %v1133 = vsel %vm1036, 1, 0
      %v1134 = vsel %vm1037, 1, 0
      %v1135 = vsel %vm1038, 1, 0
      %vm1136 = vcmp.eq.s32.totalorder %v1104, 1
      %vm1137 = vcmp.eq.s32.totalorder %v1105, 1
      %vm1138 = vcmp.eq.s32.totalorder %v1106, 1
      %vm1139 = vcmp.eq.s32.totalorder %v1107, 1
      %vm1140 = vcmp.eq.s32.totalorder %v1108, 1
      %vm1141 = vcmp.eq.s32.totalorder %v1109, 1
      %vm1142 = vcmp.eq.s32.totalorder %v1110, 1
      %vm1143 = vcmp.eq.s32.totalorder %v1111, 1
      %vm1144 = vcmp.eq.s32.totalorder %v1112, 1
      %vm1145 = vcmp.eq.s32.totalorder %v1113, 1
      %vm1146 = vcmp.eq.s32.totalorder %v1114, 1
      %vm1147 = vcmp.eq.s32.totalorder %v1115, 1
      %vm1148 = vcmp.eq.s32.totalorder %v1116, 1
      %vm1149 = vcmp.eq.s32.totalorder %v1117, 1
      %vm1150 = vcmp.eq.s32.totalorder %v1118, 1
      %vm1151 = vcmp.eq.s32.totalorder %v1119, 1
      %vm1152 = vcmp.eq.s32.totalorder %v1120, 1
      %vm1153 = vcmp.eq.s32.totalorder %v1121, 1
      %vm1154 = vcmp.eq.s32.totalorder %v1122, 1
      %vm1155 = vcmp.eq.s32.totalorder %v1123, 1
      %vm1156 = vcmp.eq.s32.totalorder %v1124, 1
      %vm1157 = vcmp.eq.s32.totalorder %v1125, 1
      %vm1158 = vcmp.eq.s32.totalorder %v1126, 1
      %vm1159 = vcmp.eq.s32.totalorder %v1127, 1
      %vm1160 = vcmp.eq.s32.totalorder %v1128, 1
      %vm1161 = vcmp.eq.s32.totalorder %v1129, 1
      %vm1162 = vcmp.eq.s32.totalorder %v1130, 1
      %vm1163 = vcmp.eq.s32.totalorder %v1131, 1
      %vm1164 = vcmp.eq.s32.totalorder %v1132, 1
      %vm1165 = vcmp.eq.s32.totalorder %v1133, 1
      %vm1166 = vcmp.eq.s32.totalorder %v1134, 1
      %vm1167 = vcmp.eq.s32.totalorder %v1135, 1
      %vm1168 = vmpackc.low %vm1136, %vm1136
      %vm1169 = vmpackc.low %vm1137, %vm1137
      %vm1170 = vmpackc.low %vm1138, %vm1138
      %vm1171 = vmpackc.low %vm1139, %vm1139
      %vm1172 = vmpackc.low %vm1140, %vm1140
      %vm1173 = vmpackc.low %vm1141, %vm1141
      %vm1174 = vmpackc.low %vm1142, %vm1142
      %vm1175 = vmpackc.low %vm1143, %vm1143
      %vm1176 = vmpackc.low %vm1144, %vm1144
      %vm1177 = vmpackc.low %vm1145, %vm1145
      %vm1178 = vmpackc.low %vm1146, %vm1146
      %vm1179 = vmpackc.low %vm1147, %vm1147
      %vm1180 = vmpackc.low %vm1148, %vm1148
      %vm1181 = vmpackc.low %vm1149, %vm1149
      %vm1182 = vmpackc.low %vm1150, %vm1150
      %vm1183 = vmpackc.low %vm1151, %vm1151
      %vm1184 = vmpackc.low %vm1152, %vm1152
      %vm1185 = vmpackc.low %vm1153, %vm1153
      %vm1186 = vmpackc.low %vm1154, %vm1154
      %vm1187 = vmpackc.low %vm1155, %vm1155
      %vm1188 = vmpackc.low %vm1156, %vm1156
      %vm1189 = vmpackc.low %vm1157, %vm1157
      %vm1190 = vmpackc.low %vm1158, %vm1158
      %vm1191 = vmpackc.low %vm1159, %vm1159
      %vm1192 = vmpackc.low %vm1160, %vm1160
      %vm1193 = vmpackc.low %vm1161, %vm1161
      %vm1194 = vmpackc.low %vm1162, %vm1162
      %vm1195 = vmpackc.low %vm1163, %vm1163
      %vm1196 = vmpackc.low %vm1164, %vm1164
      %vm1197 = vmpackc.low %vm1165, %vm1165
      %vm1198 = vmpackc.low %vm1166, %vm1166
      %vm1199 = vmpackc.low %vm1167, %vm1167
      %v1200 = vsel %vm1168, 65537, 0
      %v1201 = vsel %vm1169, 65537, 0
      %v1202 = vsel %vm1170, 65537, 0
      %v1203 = vsel %vm1171, 65537, 0
      %v1204 = vsel %vm1172, 65537, 0
      %v1205 = vsel %vm1173, 65537, 0
      %v1206 = vsel %vm1174, 65537, 0
      %v1207 = vsel %vm1175, 65537, 0
      %v1208 = vsel %vm1176, 65537, 0
      %v1209 = vsel %vm1177, 65537, 0
      %v1210 = vsel %vm1178, 65537, 0
      %v1211 = vsel %vm1179, 65537, 0
      %v1212 = vsel %vm1180, 65537, 0
      %v1213 = vsel %vm1181, 65537, 0
      %v1214 = vsel %vm1182, 65537, 0
      %v1215 = vsel %vm1183, 65537, 0
      %v1216 = vsel %vm1184, 65537, 0
      %v1217 = vsel %vm1185, 65537, 0
      %v1218 = vsel %vm1186, 65537, 0
      %v1219 = vsel %vm1187, 65537, 0
      %v1220 = vsel %vm1188, 65537, 0
      %v1221 = vsel %vm1189, 65537, 0
      %v1222 = vsel %vm1190, 65537, 0
      %v1223 = vsel %vm1191, 65537, 0
      %v1224 = vsel %vm1192, 65537, 0
      %v1225 = vsel %vm1193, 65537, 0
      %v1226 = vsel %vm1194, 65537, 0
      %v1227 = vsel %vm1195, 65537, 0
      %v1228 = vsel %vm1196, 65537, 0
      %v1229 = vsel %vm1197, 65537, 0
      %v1230 = vsel %vm1198, 65537, 0
      %v1231 = vsel %vm1199, 65537, 0
      %vm1232 = vsmask.f32 3328
      %vm1233 = vsmask.f32 7440
      %vm1234 = vmor %vm1232, %vm1233
      %v1236 = vshll.u32 %v1200, 16
      %v1238 = vrot.slane %v1236, 5
      %v1239 = vshrl.u32 %v1200, 16
      %v1241 = vrot.slane %v1239, 4
      %v1242 = vor.u32 %v1241, %v1238
      %v1243 = vrot.slane %v1242, 4
      %v1245 = vshll.u32 %v1201, 16
      %v1247 = vrot.slane %v1245, 5
      %v1248 = vsel %vm1234, %v1243, %v1247
      %v1249 = vshrl.u32 %v1201, 16
      %v1251 = vrot.slane %v1249, 4
      %v1252 = vor.u32 %v1251, %v1247
      %v1253 = vrot.slane %v1252, 4
      %v1255 = vshll.u32 %v1202, 16
      %v1257 = vrot.slane %v1255, 5
      %v1258 = vsel %vm1234, %v1253, %v1257
      %v1259 = vshrl.u32 %v1202, 16
      %v1261 = vrot.slane %v1259, 4
      %v1262 = vor.u32 %v1261, %v1257
      %v1263 = vrot.slane %v1262, 4
      %v1265 = vshll.u32 %v1203, 16
      %v1267 = vrot.slane %v1265, 5
      %v1268 = vsel %vm1234, %v1263, %v1267
      %v1269 = vshrl.u32 %v1203, 16
      %v1271 = vrot.slane %v1269, 4
      %v1272 = vor.u32 %v1271, %v1267
      %v1273 = vrot.slane %v1272, 4
      %v1275 = vshll.u32 %v1204, 16
      %v1277 = vrot.slane %v1275, 5
      %v1278 = vsel %vm1234, %v1273, %v1277
      %v1279 = vshrl.u32 %v1204, 16
      %v1281 = vrot.slane %v1279, 4
      %v1282 = vor.u32 %v1281, %v1277
      %v1283 = vrot.slane %v1282, 4
      %v1285 = vshll.u32 %v1205, 16
      %v1287 = vrot.slane %v1285, 5
      %v1288 = vsel %vm1234, %v1283, %v1287
      %v1289 = vshrl.u32 %v1205, 16
      %v1291 = vrot.slane %v1289, 4
      %v1292 = vor.u32 %v1291, %v1287
      %v1293 = vrot.slane %v1292, 4
      %v1295 = vshll.u32 %v1206, 16
      %v1297 = vrot.slane %v1295, 5
      %v1298 = vsel %vm1234, %v1293, %v1297
      %v1299 = vshrl.u32 %v1206, 16
      %v1301 = vrot.slane %v1299, 4
      %v1302 = vor.u32 %v1301, %v1297
      %v1303 = vrot.slane %v1302, 4
      %v1305 = vshll.u32 %v1207, 16
      %v1307 = vrot.slane %v1305, 5
      %v1308 = vsel %vm1234, %v1303, %v1307
      %v1309 = vshrl.u32 %v1207, 16
      %v1311 = vrot.slane %v1309, 4
      %v1312 = vor.u32 %v1311, %v1307
      %v1313 = vrot.slane %v1312, 4
      %v1315 = vshll.u32 %v1208, 16
      %v1317 = vrot.slane %v1315, 5
      %v1318 = vsel %vm1234, %v1313, %v1317
      %v1319 = vshrl.u32 %v1208, 16
      %v1321 = vrot.slane %v1319, 4
      %v1322 = vor.u32 %v1321, %v1317
      %v1323 = vrot.slane %v1322, 4
      %v1325 = vshll.u32 %v1209, 16
      %v1327 = vrot.slane %v1325, 5
      %v1328 = vsel %vm1234, %v1323, %v1327
      %v1329 = vshrl.u32 %v1209, 16
      %v1331 = vrot.slane %v1329, 4
      %v1332 = vor.u32 %v1331, %v1327
      %v1333 = vrot.slane %v1332, 4
      %v1335 = vshll.u32 %v1210, 16
      %v1337 = vrot.slane %v1335, 5
      %v1338 = vsel %vm1234, %v1333, %v1337
      %v1339 = vshrl.u32 %v1210, 16
      %v1341 = vrot.slane %v1339, 4
      %v1342 = vor.u32 %v1341, %v1337
      %v1343 = vrot.slane %v1342, 4
      %v1345 = vshll.u32 %v1211, 16
      %v1347 = vrot.slane %v1345, 5
      %v1348 = vsel %vm1234, %v1343, %v1347
      %v1349 = vshrl.u32 %v1211, 16
      %v1351 = vrot.slane %v1349, 4
      %v1352 = vor.u32 %v1351, %v1347
      %v1353 = vrot.slane %v1352, 4
      %v1355 = vshll.u32 %v1212, 16
      %v1357 = vrot.slane %v1355, 5
      %v1358 = vsel %vm1234, %v1353, %v1357
      %v1359 = vshrl.u32 %v1212, 16
      %v1361 = vrot.slane %v1359, 4
      %v1362 = vor.u32 %v1361, %v1357
      %v1363 = vrot.slane %v1362, 4
      %v1365 = vshll.u32 %v1213, 16
      %v1367 = vrot.slane %v1365, 5
      %v1368 = vsel %vm1234, %v1363, %v1367
      %v1369 = vshrl.u32 %v1213, 16
      %v1371 = vrot.slane %v1369, 4
      %v1372 = vor.u32 %v1371, %v1367
      %v1373 = vrot.slane %v1372, 4
      %v1375 = vshll.u32 %v1214, 16
      %v1377 = vrot.slane %v1375, 5
      %v1378 = vsel %vm1234, %v1373, %v1377
      %v1379 = vshrl.u32 %v1214, 16
      %v1381 = vrot.slane %v1379, 4
      %v1382 = vor.u32 %v1381, %v1377
      %v1383 = vrot.slane %v1382, 4
      %v1385 = vshll.u32 %v1215, 16
      %v1387 = vrot.slane %v1385, 5
      %v1388 = vsel %vm1234, %v1383, %v1387
      %v1389 = vshrl.u32 %v1215, 16
      %v1391 = vrot.slane %v1389, 4
      %v1392 = vor.u32 %v1391, %v1387
      %v1393 = vrot.slane %v1392, 4
      %v1395 = vshll.u32 %v1216, 16
      %v1397 = vrot.slane %v1395, 5
      %v1398 = vsel %vm1234, %v1393, %v1397
      %v1399 = vshrl.u32 %v1216, 16
      %v1401 = vrot.slane %v1399, 4
      %v1402 = vor.u32 %v1401, %v1397
      %v1403 = vrot.slane %v1402, 4
      %v1405 = vshll.u32 %v1217, 16
      %v1407 = vrot.slane %v1405, 5
      %v1408 = vsel %vm1234, %v1403, %v1407
      %v1409 = vshrl.u32 %v1217, 16
      %v1411 = vrot.slane %v1409, 4
      %v1412 = vor.u32 %v1411, %v1407
      %v1413 = vrot.slane %v1412, 4
      %v1415 = vshll.u32 %v1218, 16
      %v1417 = vrot.slane %v1415, 5
      %v1418 = vsel %vm1234, %v1413, %v1417
      %v1419 = vshrl.u32 %v1218, 16
      %v1421 = vrot.slane %v1419, 4
      %v1422 = vor.u32 %v1421, %v1417
      %v1423 = vrot.slane %v1422, 4
      %v1425 = vshll.u32 %v1219, 16
      %v1427 = vrot.slane %v1425, 5
      %v1428 = vsel %vm1234, %v1423, %v1427
      %v1429 = vshrl.u32 %v1219, 16
      %v1431 = vrot.slane %v1429, 4
      %v1432 = vor.u32 %v1431, %v1427
      %v1433 = vrot.slane %v1432, 4
      %v1435 = vshll.u32 %v1220, 16
      %v1437 = vrot.slane %v1435, 5
      %v1438 = vsel %vm1234, %v1433, %v1437
      %v1439 = vshrl.u32 %v1220, 16
      %v1441 = vrot.slane %v1439, 4
      %v1442 = vor.u32 %v1441, %v1437
      %v1443 = vrot.slane %v1442, 4
      %v1445 = vshll.u32 %v1221, 16
      %v1447 = vrot.slane %v1445, 5
      %v1448 = vsel %vm1234, %v1443, %v1447
      %v1449 = vshrl.u32 %v1221, 16
      %v1451 = vrot.slane %v1449, 4
      %v1452 = vor.u32 %v1451, %v1447
      %v1453 = vrot.slane %v1452, 4
      %v1455 = vshll.u32 %v1222, 16
      %v1457 = vrot.slane %v1455, 5
      %v1458 = vsel %vm1234, %v1453, %v1457
      %v1459 = vshrl.u32 %v1222, 16
      %v1461 = vrot.slane %v1459, 4
      %v1462 = vor.u32 %v1461, %v1457
      %v1463 = vrot.slane %v1462, 4
      %v1465 = vshll.u32 %v1223, 16
      %v1467 = vrot.slane %v1465, 5
      %v1468 = vsel %vm1234, %v1463, %v1467
      %v1469 = vshrl.u32 %v1223, 16
      %v1471 = vrot.slane %v1469, 4
      %v1472 = vor.u32 %v1471, %v1467
      %v1473 = vrot.slane %v1472, 4
      %v1475 = vshll.u32 %v1224, 16
      %v1477 = vrot.slane %v1475, 5
      %v1478 = vsel %vm1234, %v1473, %v1477
      %v1479 = vshrl.u32 %v1224, 16
      %v1481 = vrot.slane %v1479, 4
      %v1482 = vor.u32 %v1481, %v1477
      %v1483 = vrot.slane %v1482, 4
      %v1485 = vshll.u32 %v1225, 16
      %v1487 = vrot.slane %v1485, 5
      %v1488 = vsel %vm1234, %v1483, %v1487
      %v1489 = vshrl.u32 %v1225, 16
      %v1491 = vrot.slane %v1489, 4
      %v1492 = vor.u32 %v1491, %v1487
      %v1493 = vrot.slane %v1492, 4
      %v1495 = vshll.u32 %v1226, 16
      %v1497 = vrot.slane %v1495, 5
      %v1498 = vsel %vm1234, %v1493, %v1497
      %v1499 = vshrl.u32 %v1226, 16
      %v1501 = vrot.slane %v1499, 4
      %v1502 = vor.u32 %v1501, %v1497
      %v1503 = vrot.slane %v1502, 4
      %v1505 = vshll.u32 %v1227, 16
      %v1507 = vrot.slane %v1505, 5
      %v1508 = vsel %vm1234, %v1503, %v1507
      %v1509 = vshrl.u32 %v1227, 16
      %v1511 = vrot.slane %v1509, 4
      %v1512 = vor.u32 %v1511, %v1507
      %v1513 = vrot.slane %v1512, 4
      %v1515 = vshll.u32 %v1228, 16
      %v1517 = vrot.slane %v1515, 5
      %v1518 = vsel %vm1234, %v1513, %v1517
      %v1519 = vshrl.u32 %v1228, 16
      %v1521 = vrot.slane %v1519, 4
      %v1522 = vor.u32 %v1521, %v1517
      %v1523 = vrot.slane %v1522, 4
      %v1525 = vshll.u32 %v1229, 16
      %v1527 = vrot.slane %v1525, 5
      %v1528 = vsel %vm1234, %v1523, %v1527
      %v1529 = vshrl.u32 %v1229, 16
      %v1531 = vrot.slane %v1529, 4
      %v1532 = vor.u32 %v1531, %v1527
      %v1533 = vrot.slane %v1532, 4
      %v1535 = vshll.u32 %v1230, 16
      %v1537 = vrot.slane %v1535, 5
      %v1538 = vsel %vm1234, %v1533, %v1537
      %v1539 = vshrl.u32 %v1230, 16
      %v1541 = vrot.slane %v1539, 4
      %v1542 = vor.u32 %v1541, %v1537
      %v1543 = vrot.slane %v1542, 4
      %v1545 = vshll.u32 %v1231, 16
      %v1547 = vrot.slane %v1545, 5
      %v1548 = vsel %vm1234, %v1543, %v1547
      %v1549 = vshrl.u32 %v1231, 16
      %v1551 = vrot.slane %v1549, 4
      %v1552 = vor.u32 %v1551, %v1547
      %v1553 = vrot.slane %v1552, 4
      %vm1554 = vcmp.ne.s16.totalorder %v1238, 0
      %vm1555 = vcmp.ne.s16.totalorder %v1248, 0
      %vm1556 = vcmp.ne.s16.totalorder %v1258, 0
      %vm1557 = vcmp.ne.s16.totalorder %v1268, 0
      %vm1558 = vcmp.ne.s16.totalorder %v1278, 0
      %vm1559 = vcmp.ne.s16.totalorder %v1288, 0
      %vm1560 = vcmp.ne.s16.totalorder %v1298, 0
      %vm1561 = vcmp.ne.s16.totalorder %v1308, 0
      %vm1562 = vcmp.ne.s16.totalorder %v1318, 0
      %vm1563 = vcmp.ne.s16.totalorder %v1328, 0
      %vm1564 = vcmp.ne.s16.totalorder %v1338, 0
      %vm1565 = vcmp.ne.s16.totalorder %v1348, 0
      %vm1566 = vcmp.ne.s16.totalorder %v1358, 0
      %vm1567 = vcmp.ne.s16.totalorder %v1368, 0
      %vm1568 = vcmp.ne.s16.totalorder %v1378, 0
      %vm1569 = vcmp.ne.s16.totalorder %v1388, 0
      %vm1570 = vcmp.ne.s16.totalorder %v1398, 0
      %vm1571 = vcmp.ne.s16.totalorder %v1408, 0
      %vm1572 = vcmp.ne.s16.totalorder %v1418, 0
      %vm1573 = vcmp.ne.s16.totalorder %v1428, 0
      %vm1574 = vcmp.ne.s16.totalorder %v1438, 0
      %vm1575 = vcmp.ne.s16.totalorder %v1448, 0
      %vm1576 = vcmp.ne.s16.totalorder %v1458, 0
      %vm1577 = vcmp.ne.s16.totalorder %v1468, 0
      %vm1578 = vcmp.ne.s16.totalorder %v1478, 0
      %vm1579 = vcmp.ne.s16.totalorder %v1488, 0
      %vm1580 = vcmp.ne.s16.totalorder %v1498, 0
      %vm1581 = vcmp.ne.s16.totalorder %v1508, 0
      %vm1582 = vcmp.ne.s16.totalorder %v1518, 0
      %vm1583 = vcmp.ne.s16.totalorder %v1528, 0
      %vm1584 = vcmp.ne.s16.totalorder %v1538, 0
      %vm1585 = vcmp.ne.s16.totalorder %v1548, 0
      %vm1586 = vcmp.ne.s16.totalorder %v1553, 0
      %v1587 = vsel %vm1554, %v1071, 0
      %v1588 = vsel %vm1555, %v1072, 0
      %v1589 = vsel %vm1556, %v1073, 0
      %v1590 = vsel %vm1557, %v1074, 0
      %v1591 = vsel %vm1558, %v1075, 0
      %v1592 = vsel %vm1559, %v1076, 0
      %v1593 = vsel %vm1560, %v1077, 0
      %v1594 = vsel %vm1561, %v1078, 0
      %v1595 = vsel %vm1562, %v1079, 0
      %v1596 = vsel %vm1563, %v1080, 0
      %v1597 = vsel %vm1564, %v1081, 0
      %v1598 = vsel %vm1565, %v1082, 0
      %v1599 = vsel %vm1566, %v1083, 0
      %v1600 = vsel %vm1567, %v1084, 0
      %v1601 = vsel %vm1568, %v1085, 0
      %v1602 = vsel %vm1569, %v1086, 0
      %v1603 = vsel %vm1570, %v1087, 0
      %v1604 = vsel %vm1571, %v1088, 0
      %v1605 = vsel %vm1572, %v1089, 0
      %v1606 = vsel %vm1573, %v1090, 0
      %v1607 = vsel %vm1574, %v1091, 0
      %v1608 = vsel %vm1575, %v1092, 0
      %v1609 = vsel %vm1576, %v1093, 0
      %v1610 = vsel %vm1577, %v1094, 0
      %v1611 = vsel %vm1578, %v1095, 0
      %v1612 = vsel %vm1579, %v1096, 0
      %v1613 = vsel %vm1580, %v1097, 0
      %v1614 = vsel %vm1581, %v1098, 0
      %v1615 = vsel %vm1582, %v1099, 0
      %v1616 = vsel %vm1583, %v1100, 0
      %v1617 = vsel %vm1584, %v1101, 0
      %v1618 = vsel %vm1585, %v1102, 0
      %v1619 = vsel %vm1586, %v1103, 0
      %v1620 = vld [vmem:[%s3] sm:$0xf]
      %s1621 = scalar_lea.vmem %s3, 4
      %v1622 = vld [vmem:[%s1621] sm:$0xf]
      %v1655 = vunpack.c.l.b16 %v1072
      %v1656 = vunpack.c.l.b16 %v1073
      %v1657 = vunpack.c.l.b16 %v1074
      %v1658 = vunpack.c.l.b16 %v1075
      %v1659 = vunpack.c.l.b16 %v1076
      %v1660 = vunpack.c.l.b16 %v1077
      %v1661 = vunpack.c.l.b16 %v1078
      %v1662 = vunpack.c.l.b16 %v1079
      %v1663 = vunpack.c.l.b16 %v1080
      %v1664 = vunpack.c.l.b16 %v1081
      %v1665 = vunpack.c.l.b16 %v1082
      %v1666 = vunpack.c.l.b16 %v1083
      %v1667 = vunpack.c.l.b16 %v1084
      %v1668 = vunpack.c.l.b16 %v1085
      %v1669 = vunpack.c.l.b16 %v1086
      %v1670 = vunpack.c.l.b16 %v1087
      %v1671 = vunpack.c.l.b16 %v1088
      %v1672 = vunpack.c.l.b16 %v1089
      %v1673 = vunpack.c.l.b16 %v1090
      %v1674 = vunpack.c.l.b16 %v1091
      %v1675 = vunpack.c.l.b16 %v1092
      %v1676 = vunpack.c.l.b16 %v1093
      %v1677 = vunpack.c.l.b16 %v1094
      %v1678 = vunpack.c.l.b16 %v1095
      %v1679 = vunpack.c.l.b16 %v1096
      %v1680 = vunpack.c.l.b16 %v1097
      %v1681 = vunpack.c.l.b16 %v1098
      %v1682 = vunpack.c.l.b16 %v1099
      %v1683 = vunpack.c.l.b16 %v1100
      %v1684 = vunpack.c.l.b16 %v1101
      %v1685 = vunpack.c.l.b16 %v1102
      %v1686 = vunpack.c.l.b16 %v1103
      %v1687 = vpack.c.b16 %v1656, %v1655
      %v1688 = vpack.c.b16 %v1658, %v1657
      %v1689 = vpack.c.b16 %v1660, %v1659
      %v1690 = vpack.c.b16 %v1662, %v1661
      %v1691 = vpack.c.b16 %v1664, %v1663
      %v1692 = vpack.c.b16 %v1666, %v1665
      %v1693 = vpack.c.b16 %v1668, %v1667
      %v1694 = vpack.c.b16 %v1670, %v1669
      %v1695 = vpack.c.b16 %v1672, %v1671
      %v1696 = vpack.c.b16 %v1674, %v1673
      %v1697 = vpack.c.b16 %v1676, %v1675
      %v1698 = vpack.c.b16 %v1678, %v1677
      %v1699 = vpack.c.b16 %v1680, %v1679
      %v1700 = vpack.c.b16 %v1682, %v1681
      %v1701 = vpack.c.b16 %v1684, %v1683
      %v1702 = vpack.c.b16 %v1686, %v1685
      %vm1703 = vcmask 64512
      %v1705 = vsel %vm1703, %v1687, 0
      %v1708 = vsel %vm1703, %v1688, 0
      %v1711 = vsel %vm1703, %v1689, 0
      %v1714 = vsel %vm1703, %v1690, 0
      %v1717 = vsel %vm1703, %v1691, 0
      %v1720 = vsel %vm1703, %v1692, 0
      %v1723 = vsel %vm1703, %v1693, 0
      %v1726 = vsel %vm1703, %v1694, 0
      %v1729 = vsel %vm1703, %v1695, 0
      %v1732 = vsel %vm1703, %v1696, 0
      %v1735 = vsel %vm1703, %v1697, 0
      %v1738 = vsel %vm1703, %v1698, 0
      %v1741 = vsel %vm1703, %v1699, 0
      %v1744 = vsel %vm1703, %v1700, 0
      %v1747 = vsel %vm1703, %v1701, 0
      %v1750 = vsel %vm1703, %v1702, 0
      %vm1752 = vcmask 1043456
      %v1754 = vsel %vm1752, %v1622, 0
      %1756 = vmatprep.subr.bf16.mxu0 0
      %1757 = vmatpush1.bf16.msra.mxu0 %v1754
      %1758 = vmatprep.subr.bf16.mxu0 0
      %1759 = vmatpush1.bf16.msra.mxu0 0
      %1760 = vmatprep.subr.bf16.mxu0 0
      %1761 = vmatpush1.bf16.msra.mxu0 0
      %1762 = vmatprep.subr.bf16.mxu0 0
      %1763 = vmatpush1.bf16.msra.mxu0 0
      %1764 = vmatprep.subr.bf16.mxu0 0
      %1765 = vmatpush1.bf16.msra.mxu0 0
      %1766 = vmatprep.subr.bf16.mxu0 0
      %1767 = vmatpush1.bf16.msra.mxu0 0
      %1768 = vmatprep.subr.bf16.mxu0 0
      %1769 = vmatpush1.bf16.msra.mxu0 0
      %1770 = vmatprep.subr.bf16.mxu0 0
      %1771 = vmatpush1.bf16.msra.mxu0 0
      %1772 = vmatprep.subr.bf16.mxu0 0
      %1773 = vmatpush1.bf16.msra.mxu0 0
      %1774 = vmatprep.subr.bf16.mxu0 0
      %1775 = vmatpush1.bf16.msra.mxu0 0
      %1776 = vmatprep.subr.bf16.mxu0 0
      %1777 = vmatpush1.bf16.msra.mxu0 0
      %1778 = vmatprep.subr.bf16.mxu0 0
      %1779 = vmatpush1.bf16.msra.mxu0 0
      %1780 = vmatprep.subr.bf16.mxu0 0
      %1781 = vmatpush1.bf16.msra.mxu0 0
      %1782 = vmatprep.subr.bf16.mxu0 0
      %1783 = vmatpush1.bf16.msra.mxu0 0
      %1784 = vmatprep.subr.bf16.mxu0 0
      %1785 = vmatpush1.bf16.msra.mxu0 0
      %1786 = vmatprep.subr.bf16.mxu0 0
      %1787 = vmatpush1.bf16.msra.mxu0 0
      %1788 = vmatprep.mubr.bf16.mxu0 0
      %1789 = vmatmul.mubr.bf16.gmra.mrb[0].mxu0 %v1705
      %v1790 = vpop.f32.mrb[0].mxu0
      %v1791 = vadd.f32 0.0, %v1790
      %v1792 = vpop.f32.mrb[0].mxu0
      %v1793 = vpop.f32.mrb[0].mxu0
      %v1794 = vadd.f32 0.0, %v1793
      %v1795 = vpop.f32.mrb[0].mxu0
      %1796 = vmatprep.mubr.bf16.mxu0 0
      %1797 = vmatmul.mubr.bf16.gmra.mrb[0].mxu0 %v1708
      %v1798 = vpop.f32.mrb[0].mxu0
      %v1799 = vadd.f32 0.0, %v1798
      %v1800 = vpop.f32.mrb[0].mxu0
      %v1801 = vpop.f32.mrb[0].mxu0
      %v1802 = vadd.f32 0.0, %v1801
      %v1803 = vpop.f32.mrb[0].mxu0
      %1804 = vmatprep.mubr.bf16.mxu0 0
      %1805 = vmatmul.mubr.bf16.gmra.mrb[0].mxu0 %v1711
      %v1806 = vpop.f32.mrb[0].mxu0
      %v1807 = vadd.f32 0.0, %v1806
      %v1808 = vpop.f32.mrb[0].mxu0
      %v1809 = vpop.f32.mrb[0].mxu0
      %v1810 = vadd.f32 0.0, %v1809
      %v1811 = vpop.f32.mrb[0].mxu0
      %1812 = vmatprep.mubr.bf16.mxu0 0
      %1813 = vmatmul.mubr.bf16.gmra.mrb[0].mxu0 %v1714
      %v1814 = vpop.f32.mrb[0].mxu0
      %v1815 = vadd.f32 0.0, %v1814
      %v1816 = vpop.f32.mrb[0].mxu0
      %v1817 = vpop.f32.mrb[0].mxu0
      %v1818 = vadd.f32 0.0, %v1817
      %v1819 = vpop.f32.mrb[0].mxu0
      %1820 = vmatprep.mubr.bf16.mxu0 0
      %1821 = vmatmul.mubr.bf16.gmra.mrb[0].mxu0 %v1717
      %v1822 = vpop.f32.mrb[0].mxu0
      %v1823 = vadd.f32 0.0, %v1822
      %v1824 = vpop.f32.mrb[0].mxu0
      %v1825 = vpop.f32.mrb[0].mxu0
      %v1826 = vadd.f32 0.0, %v1825
      %v1827 = vpop.f32.mrb[0].mxu0
      %1828 = vmatprep.mubr.bf16.mxu0 0
      %1829 = vmatmul.mubr.bf16.gmra.mrb[0].mxu0 %v1720
      %v1830 = vpop.f32.mrb[0].mxu0
      %v1831 = vadd.f32 0.0, %v1830
      %v1832 = vpop.f32.mrb[0].mxu0
      %v1833 = vpop.f32.mrb[0].mxu0
      %v1834 = vadd.f32 0.0, %v1833
      %v1835 = vpop.f32.mrb[0].mxu0
      %1836 = vmatprep.mubr.bf16.mxu0 0
      %1837 = vmatmul.mubr.bf16.gmra.mrb[0].mxu0 %v1723
      %v1838 = vpop.f32.mrb[0].mxu0
      %v1839 = vadd.f32 0.0, %v1838
      %v1840 = vpop.f32.mrb[0].mxu0
      %v1841 = vpop.f32.mrb[0].mxu0
      %v1842 = vadd.f32 0.0, %v1841
      %v1843 = vpop.f32.mrb[0].mxu0
      %1844 = vmatprep.mubr.bf16.mxu0 0
      %1845 = vmatmul.mubr.bf16.gmra.mrb[0].mxu0 %v1726
      %v1846 = vpop.f32.mrb[0].mxu0
      %v1847 = vadd.f32 0.0, %v1846
      %v1848 = vpop.f32.mrb[0].mxu0
      %v1849 = vpop.f32.mrb[0].mxu0
      %v1850 = vadd.f32 0.0, %v1849
      %v1851 = vpop.f32.mrb[0].mxu0
      %1852 = vmatprep.mubr.bf16.mxu0 0
      %1853 = vmatmul.mubr.bf16.gmra.mrb[0].mxu0 %v1729
      %v1854 = vpop.f32.mrb[0].mxu0
      %v1855 = vadd.f32 0.0, %v1854
      %v1856 = vpop.f32.mrb[0].mxu0
      %v1857 = vpop.f32.mrb[0].mxu0
      %v1858 = vadd.f32 0.0, %v1857
      %v1859 = vpop.f32.mrb[0].mxu0
      %1860 = vmatprep.mubr.bf16.mxu0 0
      %1861 = vmatmul.mubr.bf16.gmra.mrb[0].mxu0 %v1732
      %v1862 = vpop.f32.mrb[0].mxu0
      %v1863 = vadd.f32 0.0, %v1862
      %v1864 = vpop.f32.mrb[0].mxu0
      %v1865 = vpop.f32.mrb[0].mxu0
      %v1866 = vadd.f32 0.0, %v1865
      %v1867 = vpop.f32.mrb[0].mxu0
      %1868 = vmatprep.mubr.bf16.mxu0 0
      %1869 = vmatmul.mubr.bf16.gmra.mrb[0].mxu0 %v1735
      %v1870 = vpop.f32.mrb[0].mxu0
      %v1871 = vadd.f32 0.0, %v1870
      %v1872 = vpop.f32.mrb[0].mxu0
      %v1873 = vpop.f32.mrb[0].mxu0
      %v1874 = vadd.f32 0.0, %v1873
      %v1875 = vpop.f32.mrb[0].mxu0
      %1876 = vmatprep.mubr.bf16.mxu0 0
      %1877 = vmatmul.mubr.bf16.gmra.mrb[0].mxu0 %v1738
      %v1878 = vpop.f32.mrb[0].mxu0
      %v1879 = vadd.f32 0.0, %v1878
      %v1880 = vpop.f32.mrb[0].mxu0
      %v1881 = vpop.f32.mrb[0].mxu0
      %v1882 = vadd.f32 0.0, %v1881
      %v1883 = vpop.f32.mrb[0].mxu0
      %1884 = vmatprep.mubr.bf16.mxu0 0
      %1885 = vmatmul.mubr.bf16.gmra.mrb[0].mxu0 %v1741
      %v1886 = vpop.f32.mrb[0].mxu0
      %v1887 = vadd.f32 0.0, %v1886
      %v1888 = vpop.f32.mrb[0].mxu0
      %v1889 = vpop.f32.mrb[0].mxu0
      %v1890 = vadd.f32 0.0, %v1889
      %v1891 = vpop.f32.mrb[0].mxu0
      %1892 = vmatprep.mubr.bf16.mxu0 0
      %1893 = vmatmul.mubr.bf16.gmra.mrb[0].mxu0 %v1744
      %v1894 = vpop.f32.mrb[0].mxu0
      %v1895 = vadd.f32 0.0, %v1894
      %v1896 = vpop.f32.mrb[0].mxu0
      %v1897 = vpop.f32.mrb[0].mxu0
      %v1898 = vadd.f32 0.0, %v1897
      %v1899 = vpop.f32.mrb[0].mxu0
      %1900 = vmatprep.mubr.bf16.mxu0 0
      %1901 = vmatmul.mubr.bf16.gmra.mrb[0].mxu0 %v1747
      %v1902 = vpop.f32.mrb[0].mxu0
      %v1903 = vadd.f32 0.0, %v1902
      %v1904 = vpop.f32.mrb[0].mxu0
      %v1905 = vpop.f32.mrb[0].mxu0
      %v1906 = vadd.f32 0.0, %v1905
      %v1907 = vpop.f32.mrb[0].mxu0
      %1908 = vmatprep.mubr.bf16.mxu0 0
      %1909 = vmatmul.mubr.bf16.gmra.mrb[0].mxu0 %v1750
      %v1910 = vpop.f32.mrb[0].mxu0
      %v1911 = vadd.f32 0.0, %v1910
      %v1912 = vpop.f32.mrb[0].mxu0
      %v1913 = vpop.f32.mrb[0].mxu0
      %v1914 = vadd.f32 0.0, %v1913
      %v1915 = vpop.f32.mrb[0].mxu0
      %1916 = vdwg.mxu0
      %v1950 = vunpack.c.l.b16 %v1587
      %v1951 = vunpack.c.l.b16 %v1588
      %v1952 = vunpack.c.l.b16 %v1589
      %v1953 = vunpack.c.l.b16 %v1590
      %v1954 = vunpack.c.l.b16 %v1591
      %v1955 = vunpack.c.l.b16 %v1592
      %v1956 = vunpack.c.l.b16 %v1593
      %v1957 = vunpack.c.l.b16 %v1594
      %v1958 = vunpack.c.l.b16 %v1595
      %v1959 = vunpack.c.l.b16 %v1596
      %v1960 = vunpack.c.l.b16 %v1597
      %v1961 = vunpack.c.l.b16 %v1598
      %v1962 = vunpack.c.l.b16 %v1599
      %v1963 = vunpack.c.l.b16 %v1600
      %v1964 = vunpack.c.l.b16 %v1601
      %v1965 = vunpack.c.l.b16 %v1602
      %v1966 = vunpack.c.l.b16 %v1603
      %v1967 = vunpack.c.l.b16 %v1604
      %v1968 = vunpack.c.l.b16 %v1605
      %v1969 = vunpack.c.l.b16 %v1606
      %v1970 = vunpack.c.l.b16 %v1607
      %v1971 = vunpack.c.l.b16 %v1608
      %v1972 = vunpack.c.l.b16 %v1609
      %v1973 = vunpack.c.l.b16 %v1610
      %v1974 = vunpack.c.l.b16 %v1611
      %v1975 = vunpack.c.l.b16 %v1612
      %v1976 = vunpack.c.l.b16 %v1613
      %v1977 = vunpack.c.l.b16 %v1614
      %v1978 = vunpack.c.l.b16 %v1615
      %v1979 = vunpack.c.l.b16 %v1616
      %v1980 = vunpack.c.l.b16 %v1617
      %v1981 = vunpack.c.l.b16 %v1618
      %v1982 = vunpack.c.l.b16 %v1619
      %v1983 = vpack.c.b16 %v1951, %v1950
      %v1984 = vpack.c.b16 %v1953, %v1952
      %v1985 = vpack.c.b16 %v1955, %v1954
      %v1986 = vpack.c.b16 %v1957, %v1956
      %v1987 = vpack.c.b16 %v1959, %v1958
      %v1988 = vpack.c.b16 %v1961, %v1960
      %v1989 = vpack.c.b16 %v1963, %v1962
      %v1990 = vpack.c.b16 %v1965, %v1964
      %v1991 = vpack.c.b16 %v1967, %v1966
      %v1992 = vpack.c.b16 %v1969, %v1968
      %v1993 = vpack.c.b16 %v1971, %v1970
      %v1994 = vpack.c.b16 %v1973, %v1972
      %v1995 = vpack.c.b16 %v1975, %v1974
      %v1996 = vpack.c.b16 %v1977, %v1976
      %v1997 = vpack.c.b16 %v1979, %v1978
      %v1998 = vpack.c.b16 %v1981, %v1980
      %v1999 = vpack.c.b16 %v1982, %v1982
      %vm2000 = vsmask.f32 4352
      %v2002 = vshrl.u32 %v1983, 16
      %v2004 = vrot.slane %v2002, 3
      %v2005 = vshll.u32 %v1983, 16
      %v2007 = vrot.slane %v2005, 4
      %v2008 = vor.u32 %v2004, %v2007
      %v2010 = vshrl.u32 %v1984, 16
      %v2012 = vrot.slane %v2010, 3
      %v2013 = vshll.u32 %v1984, 16
      %v2015 = vrot.slane %v2013, 4
      %v2016 = vor.u32 %v2012, %v2015
      %v2017 = vsel %vm2000, %v2008, %v2016
      %v2019 = vshrl.u32 %v1985, 16
      %v2021 = vrot.slane %v2019, 3
      %v2022 = vshll.u32 %v1985, 16
      %v2024 = vrot.slane %v2022, 4
      %v2025 = vor.u32 %v2021, %v2024
      %v2026 = vsel %vm2000, %v2016, %v2025
      %v2028 = vshrl.u32 %v1986, 16
      %v2030 = vrot.slane %v2028, 3
      %v2031 = vshll.u32 %v1986, 16
      %v2033 = vrot.slane %v2031, 4
      %v2034 = vor.u32 %v2030, %v2033
      %v2035 = vsel %vm2000, %v2025, %v2034
      %v2037 = vshrl.u32 %v1987, 16
      %v2039 = vrot.slane %v2037, 3
      %v2040 = vshll.u32 %v1987, 16
      %v2042 = vrot.slane %v2040, 4
      %v2043 = vor.u32 %v2039, %v2042
      %v2044 = vsel %vm2000, %v2034, %v2043
      %v2046 = vshrl.u32 %v1988, 16
      %v2048 = vrot.slane %v2046, 3
      %v2049 = vshll.u32 %v1988, 16
      %v2051 = vrot.slane %v2049, 4
      %v2052 = vor.u32 %v2048, %v2051
      %v2053 = vsel %vm2000, %v2043, %v2052
      %v2055 = vshrl.u32 %v1989, 16
      %v2057 = vrot.slane %v2055, 3
      %v2058 = vshll.u32 %v1989, 16
      %v2060 = vrot.slane %v2058, 4
      %v2061 = vor.u32 %v2057, %v2060
      %v2062 = vsel %vm2000, %v2052, %v2061
      %v2064 = vshrl.u32 %v1990, 16
      %v2066 = vrot.slane %v2064, 3
      %v2067 = vshll.u32 %v1990, 16
      %v2069 = vrot.slane %v2067, 4
      %v2070 = vor.u32 %v2066, %v2069
      %v2071 = vsel %vm2000, %v2061, %v2070
      %v2073 = vshrl.u32 %v1991, 16
      %v2075 = vrot.slane %v2073, 3
      %v2076 = vshll.u32 %v1991, 16
      %v2078 = vrot.slane %v2076, 4
      %v2079 = vor.u32 %v2075, %v2078
      %v2080 = vsel %vm2000, %v2070, %v2079
      %v2082 = vshrl.u32 %v1992, 16
      %v2084 = vrot.slane %v2082, 3
      %v2085 = vshll.u32 %v1992, 16
      %v2087 = vrot.slane %v2085, 4
      %v2088 = vor.u32 %v2084, %v2087
      %v2089 = vsel %vm2000, %v2079, %v2088
      %v2091 = vshrl.u32 %v1993, 16
      %v2093 = vrot.slane %v2091, 3
      %v2094 = vshll.u32 %v1993, 16
      %v2096 = vrot.slane %v2094, 4
      %v2097 = vor.u32 %v2093, %v2096
      %v2098 = vsel %vm2000, %v2088, %v2097
      %v2100 = vshrl.u32 %v1994, 16
      %v2102 = vrot.slane %v2100, 3
      %v2103 = vshll.u32 %v1994, 16
      %v2105 = vrot.slane %v2103, 4
      %v2106 = vor.u32 %v2102, %v2105
      %v2107 = vsel %vm2000, %v2097, %v2106
      %v2109 = vshrl.u32 %v1995, 16
      %v2111 = vrot.slane %v2109, 3
      %v2112 = vshll.u32 %v1995, 16
      %v2114 = vrot.slane %v2112, 4
      %v2115 = vor.u32 %v2111, %v2114
      %v2116 = vsel %vm2000, %v2106, %v2115
      %v2118 = vshrl.u32 %v1996, 16
      %v2120 = vrot.slane %v2118, 3
      %v2121 = vshll.u32 %v1996, 16
      %v2123 = vrot.slane %v2121, 4
      %v2124 = vor.u32 %v2120, %v2123
      %v2125 = vsel %vm2000, %v2115, %v2124
      %v2127 = vshrl.u32 %v1997, 16
      %v2129 = vrot.slane %v2127, 3
      %v2130 = vshll.u32 %v1997, 16
      %v2132 = vrot.slane %v2130, 4
      %v2133 = vor.u32 %v2129, %v2132
      %v2134 = vsel %vm2000, %v2124, %v2133
      %v2136 = vshrl.u32 %v1998, 16
      %v2138 = vrot.slane %v2136, 3
      %v2139 = vshll.u32 %v1998, 16
      %v2141 = vrot.slane %v2139, 4
      %v2142 = vor.u32 %v2138, %v2141
      %v2143 = vsel %vm2000, %v2133, %v2142
      %v2145 = vshrl.u32 %v1999, 16
      %v2147 = vrot.slane %v2145, 3
      %v2148 = vshll.u32 %v1999, 16
      %v2150 = vrot.slane %v2148, 4
      %v2151 = vor.u32 %v2147, %v2150
      %v2152 = vsel %vm2000, %v2142, %v2151
      %v2154 = vsel %vm1703, %v2017, 0
      %v2157 = vsel %vm1703, %v2026, 0
      %v2160 = vsel %vm1703, %v2035, 0
      %v2163 = vsel %vm1703, %v2044, 0
      %v2166 = vsel %vm1703, %v2053, 0
      %v2169 = vsel %vm1703, %v2062, 0
      %v2172 = vsel %vm1703, %v2071, 0
      %v2175 = vsel %vm1703, %v2080, 0
      %v2178 = vsel %vm1703, %v2089, 0
      %v2181 = vsel %vm1703, %v2098, 0
      %v2184 = vsel %vm1703, %v2107, 0
      %v2187 = vsel %vm1703, %v2116, 0
      %v2190 = vsel %vm1703, %v2125, 0
      %v2193 = vsel %vm1703, %v2134, 0
      %v2196 = vsel %vm1703, %v2143, 0
      %v2199 = vsel %vm1703, %v2152, 0
      %v2202 = vsel %vm1752, %v1620, 0
      %2204 = vmatprep.subr.bf16.mxu0 0
      %2205 = vmatpush1.bf16.msra.mxu0 %v2202
      %2206 = vmatprep.subr.bf16.mxu0 0
      %2207 = vmatpush1.bf16.msra.mxu0 0
      %2208 = vmatprep.subr.bf16.mxu0 0
      %2209 = vmatpush1.bf16.msra.mxu0 0
      %2210 = vmatprep.subr.bf16.mxu0 0
      %2211 = vmatpush1.bf16.msra.mxu0 0
      %2212 = vmatprep.subr.bf16.mxu0 0
      %2213 = vmatpush1.bf16.msra.mxu0 0
      %2214 = vmatprep.subr.bf16.mxu0 0
      %2215 = vmatpush1.bf16.msra.mxu0 0
      %2216 = vmatprep.subr.bf16.mxu0 0
      %2217 = vmatpush1.bf16.msra.mxu0 0
      %2218 = vmatprep.subr.bf16.mxu0 0
      %2219 = vmatpush1.bf16.msra.mxu0 0
      %2220 = vmatprep.subr.bf16.mxu0 0
      %2221 = vmatpush1.bf16.msra.mxu0 0
      %2222 = vmatprep.subr.bf16.mxu0 0
      %2223 = vmatpush1.bf16.msra.mxu0 0
      %2224 = vmatprep.subr.bf16.mxu0 0
      %2225 = vmatpush1.bf16.msra.mxu0 0
      %2226 = vmatprep.subr.bf16.mxu0 0
      %2227 = vmatpush1.bf16.msra.mxu0 0
      %2228 = vmatprep.subr.bf16.mxu0 0
      %2229 = vmatpush1.bf16.msra.mxu0 0
      %2230 = vmatprep.subr.bf16.mxu0 0
      %2231 = vmatpush1.bf16.msra.mxu0 0
      %2232 = vmatprep.subr.bf16.mxu0 0
      %2233 = vmatpush1.bf16.msra.mxu0 0
      %2234 = vmatprep.subr.bf16.mxu0 0
      %2235 = vmatpush1.bf16.msra.mxu0 0
      %2236 = vmatprep.mubr.bf16.mxu0 0
      %2237 = vmatmul.mubr.bf16.gmra.mrb[0].mxu0 %v2154
      %v2238 = vpop.f32.mrb[0].mxu0
      %v2239 = vadd.f32 %v1791, %v2238
      %v2240 = vpop.f32.mrb[0].mxu0
      %v2241 = vpop.f32.mrb[0].mxu0
      %v2242 = vadd.f32 %v1794, %v2241
      %v2243 = vpop.f32.mrb[0].mxu0
      %2244 = vmatprep.mubr.bf16.mxu0 0
      %2245 = vmatmul.mubr.bf16.gmra.mrb[0].mxu0 %v2157
      %v2246 = vpop.f32.mrb[0].mxu0
      %v2247 = vadd.f32 %v1799, %v2246
      %v2248 = vpop.f32.mrb[0].mxu0
      %v2249 = vpop.f32.mrb[0].mxu0
      %v2250 = vadd.f32 %v1802, %v2249
      %v2251 = vpop.f32.mrb[0].mxu0
      %2252 = vmatprep.mubr.bf16.mxu0 0
      %2253 = vmatmul.mubr.bf16.gmra.mrb[0].mxu0 %v2160
      %v2254 = vpop.f32.mrb[0].mxu0
      %v2255 = vadd.f32 %v1807, %v2254
      %v2256 = vpop.f32.mrb[0].mxu0
      %v2257 = vpop.f32.mrb[0].mxu0
      %v2258 = vadd.f32 %v1810, %v2257
      %v2259 = vpop.f32.mrb[0].mxu0
      %2260 = vmatprep.mubr.bf16.mxu0 0
      %2261 = vmatmul.mubr.bf16.gmra.mrb[0].mxu0 %v2163
      %v2262 = vpop.f32.mrb[0].mxu0
      %v2263 = vadd.f32 %v1815, %v2262
      %v2264 = vpop.f32.mrb[0].mxu0
      %v2265 = vpop.f32.mrb[0].mxu0
      %v2266 = vadd.f32 %v1818, %v2265
      %v2267 = vpop.f32.mrb[0].mxu0
      %2268 = vmatprep.mubr.bf16.mxu0 0
      %2269 = vmatmul.mubr.bf16.gmra.mrb[0].mxu0 %v2166
      %v2270 = vpop.f32.mrb[0].mxu0
      %v2271 = vadd.f32 %v1823, %v2270
      %v2272 = vpop.f32.mrb[0].mxu0
      %v2273 = vpop.f32.mrb[0].mxu0
      %v2274 = vadd.f32 %v1826, %v2273
      %v2275 = vpop.f32.mrb[0].mxu0
      %2276 = vmatprep.mubr.bf16.mxu0 0
      %2277 = vmatmul.mubr.bf16.gmra.mrb[0].mxu0 %v2169
      %v2278 = vpop.f32.mrb[0].mxu0
      %v2279 = vadd.f32 %v1831, %v2278
      %v2280 = vpop.f32.mrb[0].mxu0
      %v2281 = vpop.f32.mrb[0].mxu0
      %v2282 = vadd.f32 %v1834, %v2281
      %v2283 = vpop.f32.mrb[0].mxu0
      %2284 = vmatprep.mubr.bf16.mxu0 0
      %2285 = vmatmul.mubr.bf16.gmra.mrb[0].mxu0 %v2172
      %v2286 = vpop.f32.mrb[0].mxu0
      %v2287 = vadd.f32 %v1839, %v2286
      %v2288 = vpop.f32.mrb[0].mxu0
      %v2289 = vpop.f32.mrb[0].mxu0
      %v2290 = vadd.f32 %v1842, %v2289
      %v2291 = vpop.f32.mrb[0].mxu0
      %2292 = vmatprep.mubr.bf16.mxu0 0
      %2293 = vmatmul.mubr.bf16.gmra.mrb[0].mxu0 %v2175
      %v2294 = vpop.f32.mrb[0].mxu0
      %v2295 = vadd.f32 %v1847, %v2294
      %v2296 = vpop.f32.mrb[0].mxu0
      %v2297 = vpop.f32.mrb[0].mxu0
      %v2298 = vadd.f32 %v1850, %v2297
      %v2299 = vpop.f32.mrb[0].mxu0
      %2300 = vmatprep.mubr.bf16.mxu0 0
      %2301 = vmatmul.mubr.bf16.gmra.mrb[0].mxu0 %v2178
      %v2302 = vpop.f32.mrb[0].mxu0
      %v2303 = vadd.f32 %v1855, %v2302
      %v2304 = vpop.f32.mrb[0].mxu0
      %v2305 = vpop.f32.mrb[0].mxu0
      %v2306 = vadd.f32 %v1858, %v2305
      %v2307 = vpop.f32.mrb[0].mxu0
      %2308 = vmatprep.mubr.bf16.mxu0 0
      %2309 = vmatmul.mubr.bf16.gmra.mrb[0].mxu0 %v2181
      %v2310 = vpop.f32.mrb[0].mxu0
      %v2311 = vadd.f32 %v1863, %v2310
      %v2312 = vpop.f32.mrb[0].mxu0
      %v2313 = vpop.f32.mrb[0].mxu0
      %v2314 = vadd.f32 %v1866, %v2313
      %v2315 = vpop.f32.mrb[0].mxu0
      %2316 = vmatprep.mubr.bf16.mxu0 0
      %2317 = vmatmul.mubr.bf16.gmra.mrb[0].mxu0 %v2184
      %v2318 = vpop.f32.mrb[0].mxu0
      %v2319 = vadd.f32 %v1871, %v2318
      %v2320 = vpop.f32.mrb[0].mxu0
      %v2321 = vpop.f32.mrb[0].mxu0
      %v2322 = vadd.f32 %v1874, %v2321
      %v2323 = vpop.f32.mrb[0].mxu0
      %2324 = vmatprep.mubr.bf16.mxu0 0
      %2325 = vmatmul.mubr.bf16.gmra.mrb[0].mxu0 %v2187
      %v2326 = vpop.f32.mrb[0].mxu0
      %v2327 = vadd.f32 %v1879, %v2326
      %v2328 = vpop.f32.mrb[0].mxu0
      %v2329 = vpop.f32.mrb[0].mxu0
      %v2330 = vadd.f32 %v1882, %v2329
      %v2331 = vpop.f32.mrb[0].mxu0
      %2332 = vmatprep.mubr.bf16.mxu0 0
      %2333 = vmatmul.mubr.bf16.gmra.mrb[0].mxu0 %v2190
      %v2334 = vpop.f32.mrb[0].mxu0
      %v2335 = vadd.f32 %v1887, %v2334
      %v2336 = vpop.f32.mrb[0].mxu0
      %v2337 = vpop.f32.mrb[0].mxu0
      %v2338 = vadd.f32 %v1890, %v2337
      %v2339 = vpop.f32.mrb[0].mxu0
      %2340 = vmatprep.mubr.bf16.mxu0 0
      %2341 = vmatmul.mubr.bf16.gmra.mrb[0].mxu0 %v2193
      %v2342 = vpop.f32.mrb[0].mxu0
      %v2343 = vadd.f32 %v1895, %v2342
      %v2344 = vpop.f32.mrb[0].mxu0
      %v2345 = vpop.f32.mrb[0].mxu0
      %v2346 = vadd.f32 %v1898, %v2345
      %v2347 = vpop.f32.mrb[0].mxu0
      %2348 = vmatprep.mubr.bf16.mxu0 0
      %2349 = vmatmul.mubr.bf16.gmra.mrb[0].mxu0 %v2196
      %v2350 = vpop.f32.mrb[0].mxu0
      %v2351 = vadd.f32 %v1903, %v2350
      %v2352 = vpop.f32.mrb[0].mxu0
      %v2353 = vpop.f32.mrb[0].mxu0
      %v2354 = vadd.f32 %v1906, %v2353
      %v2355 = vpop.f32.mrb[0].mxu0
      %2356 = vmatprep.mubr.bf16.mxu0 0
      %2357 = vmatmul.mubr.bf16.gmra.mrb[0].mxu0 %v2199
      %v2358 = vpop.f32.mrb[0].mxu0
      %v2359 = vadd.f32 %v1911, %v2358
      %v2360 = vpop.f32.mrb[0].mxu0
      %v2361 = vpop.f32.mrb[0].mxu0
      %v2362 = vadd.f32 %v1914, %v2361
      %v2363 = vpop.f32.mrb[0].mxu0
      %2364 = vdwg.mxu0
      %v2365 = vld [vmem:[#allocation2 + $0x8] sm:$0xf]
      %v2366 = vld [vmem:[#allocation2 + $0xc] sm:$0xf]
      %v2367 = vld [vmem:[#allocation2 + $0x10] sm:$0xf]
      %v2368 = vld [vmem:[#allocation2 + $0x14] sm:$0xf]
      %v2369 = vld [vmem:[#allocation2 + $0x18] sm:$0xf]
      %v2370 = vld [vmem:[#allocation2 + $0x1c] sm:$0xf]
      %v2371 = vld [vmem:[#allocation2 + $0x20] sm:$0xf]
      %v2372 = vld [vmem:[#allocation2 + $0x24] sm:$0xf]
      %v2373 = vld [vmem:[#allocation2 + $0x28] sm:$0xf]
      %v2374 = vld [vmem:[#allocation2 + $0x2c] sm:$0xf]
      %v2375 = vld [vmem:[#allocation2 + $0x30] sm:$0xf]
      %v2376 = vld [vmem:[#allocation2 + $0x34] sm:$0xf]
      %v2377 = vld [vmem:[#allocation2 + $0x38] sm:$0xf]
      %v2378 = vld [vmem:[#allocation2 + $0x3c] sm:$0xf]
      %v2379 = vld [vmem:[#allocation2 + $0x40] sm:$0xf]
      %v2380 = vld [vmem:[#allocation2 + $0x44] sm:$0xf]
      %v2381 = vld [vmem:[#allocation2 + $0x48] sm:$0xf]
      %v2382 = vld [vmem:[#allocation2 + $0x4c] sm:$0xf]
      %v2383 = vld [vmem:[#allocation2 + $0x50] sm:$0xf]
      %v2384 = vld [vmem:[#allocation2 + $0x54] sm:$0xf]
      %v2385 = vld [vmem:[#allocation2 + $0x58] sm:$0xf]
      %v2386 = vld [vmem:[#allocation2 + $0x5c] sm:$0xf]
      %v2387 = vld [vmem:[#allocation2 + $0x60] sm:$0xf]
      %v2388 = vld [vmem:[#allocation2 + $0x64] sm:$0xf]
      %v2389 = vld [vmem:[#allocation2 + $0x68] sm:$0xf]
      %v2390 = vld [vmem:[#allocation2 + $0x6c] sm:$0xf]
      %v2391 = vld [vmem:[#allocation2 + $0x70] sm:$0xf]
      %v2392 = vld [vmem:[#allocation2 + $0x74] sm:$0xf]
      %v2393 = vld [vmem:[#allocation2 + $0x78] sm:$0xf]
      %v2394 = vld [vmem:[#allocation2 + $0x7c] sm:$0xf]
      %v2395 = vld [vmem:[#allocation2 + $0x80] sm:$0xf]
      %v2396 = vld [vmem:[#allocation2 + $0x84] sm:$0xf]
      %v2397 = vld [vmem:[#allocation2 + $0x88] sm:$0x1]
      %v2398 = vsel %vm1039, 1, 0
      %v2399 = vsel %vm1040, 1, 0
      %v2400 = vsel %vm1041, 1, 0
      %v2401 = vsel %vm1042, 1, 0
      %v2402 = vsel %vm1043, 1, 0
      %v2403 = vsel %vm1044, 1, 0
      %v2404 = vsel %vm1045, 1, 0
      %v2405 = vsel %vm1046, 1, 0
      %v2406 = vsel %vm1047, 1, 0
      %v2407 = vsel %vm1048, 1, 0
      %v2408 = vsel %vm1049, 1, 0
      %v2409 = vsel %vm1050, 1, 0
      %v2410 = vsel %vm1051, 1, 0
      %v2411 = vsel %vm1052, 1, 0
      %v2412 = vsel %vm1053, 1, 0
      %v2413 = vsel %vm1054, 1, 0
      %v2414 = vsel %vm1055, 1, 0
      %v2415 = vsel %vm1056, 1, 0
      %v2416 = vsel %vm1057, 1, 0
      %v2417 = vsel %vm1058, 1, 0
      %v2418 = vsel %vm1059, 1, 0
      %v2419 = vsel %vm1060, 1, 0
      %v2420 = vsel %vm1061, 1, 0
      %v2421 = vsel %vm1062, 1, 0
      %v2422 = vsel %vm1063, 1, 0
      %v2423 = vsel %vm1064, 1, 0
      %v2424 = vsel %vm1065, 1, 0
      %v2425 = vsel %vm1066, 1, 0
      %v2426 = vsel %vm1067, 1, 0
      %v2427 = vsel %vm1068, 1, 0
      %v2428 = vsel %vm1069, 1, 0
      %v2429 = vsel %vm1070, 1, 0
      %vm2430 = vcmp.eq.s32.totalorder %v2398, 1
      %vm2431 = vcmp.eq.s32.totalorder %v2399, 1
      %vm2432 = vcmp.eq.s32.totalorder %v2400, 1
      %vm2433 = vcmp.eq.s32.totalorder %v2401, 1
      %vm2434 = vcmp.eq.s32.totalorder %v2402, 1
      %vm2435 = vcmp.eq.s32.totalorder %v2403, 1
      %vm2436 = vcmp.eq.s32.totalorder %v2404, 1
      %vm2437 = vcmp.eq.s32.totalorder %v2405, 1
      %vm2438 = vcmp.eq.s32.totalorder %v2406, 1
      %vm2439 = vcmp.eq.s32.totalorder %v2407, 1
      %vm2440 = vcmp.eq.s32.totalorder %v2408, 1
      %vm2441 = vcmp.eq.s32.totalorder %v2409, 1
      %vm2442 = vcmp.eq.s32.totalorder %v2410, 1
      %vm2443 = vcmp.eq.s32.totalorder %v2411, 1
      %vm2444 = vcmp.eq.s32.totalorder %v2412, 1
      %vm2445 = vcmp.eq.s32.totalorder %v2413, 1
      %vm2446 = vcmp.eq.s32.totalorder %v2414, 1
      %vm2447 = vcmp.eq.s32.totalorder %v2415, 1
      %vm2448 = vcmp.eq.s32.totalorder %v2416, 1
      %vm2449 = vcmp.eq.s32.totalorder %v2417, 1
      %vm2450 = vcmp.eq.s32.totalorder %v2418, 1
      %vm2451 = vcmp.eq.s32.totalorder %v2419, 1
      %vm2452 = vcmp.eq.s32.totalorder %v2420, 1
      %vm2453 = vcmp.eq.s32.totalorder %v2421, 1
      %vm2454 = vcmp.eq.s32.totalorder %v2422, 1
      %vm2455 = vcmp.eq.s32.totalorder %v2423, 1
      %vm2456 = vcmp.eq.s32.totalorder %v2424, 1
      %vm2457 = vcmp.eq.s32.totalorder %v2425, 1
      %vm2458 = vcmp.eq.s32.totalorder %v2426, 1
      %vm2459 = vcmp.eq.s32.totalorder %v2427, 1
      %vm2460 = vcmp.eq.s32.totalorder %v2428, 1
      %vm2461 = vcmp.eq.s32.totalorder %v2429, 1
      %vm2462 = vmpackc.low %vm2430, %vm2430
      %vm2463 = vmpackc.low %vm2431, %vm2431
      %vm2464 = vmpackc.low %vm2432, %vm2432
      %vm2465 = vmpackc.low %vm2433, %vm2433
      %vm2466 = vmpackc.low %vm2434, %vm2434
      %vm2467 = vmpackc.low %vm2435, %vm2435
      %vm2468 = vmpackc.low %vm2436, %vm2436
      %vm2469 = vmpackc.low %vm2437, %vm2437
      %vm2470 = vmpackc.low %vm2438, %vm2438
      %vm2471 = vmpackc.low %vm2439, %vm2439
      %vm2472 = vmpackc.low %vm2440, %vm2440
      %vm2473 = vmpackc.low %vm2441, %vm2441
      %vm2474 = vmpackc.low %vm2442, %vm2442
      %vm2475 = vmpackc.low %vm2443, %vm2443
      %vm2476 = vmpackc.low %vm2444, %vm2444
      %vm2477 = vmpackc.low %vm2445, %vm2445
      %vm2478 = vmpackc.low %vm2446, %vm2446
      %vm2479 = vmpackc.low %vm2447, %vm2447
      %vm2480 = vmpackc.low %vm2448, %vm2448
      %vm2481 = vmpackc.low %vm2449, %vm2449
      %vm2482 = vmpackc.low %vm2450, %vm2450
      %vm2483 = vmpackc.low %vm2451, %vm2451
      %vm2484 = vmpackc.low %vm2452, %vm2452
      %vm2485 = vmpackc.low %vm2453, %vm2453
      %vm2486 = vmpackc.low %vm2454, %vm2454
      %vm2487 = vmpackc.low %vm2455, %vm2455
      %vm2488 = vmpackc.low %vm2456, %vm2456
      %vm2489 = vmpackc.low %vm2457, %vm2457
      %vm2490 = vmpackc.low %vm2458, %vm2458
      %vm2491 = vmpackc.low %vm2459, %vm2459
      %vm2492 = vmpackc.low %vm2460, %vm2460
      %vm2493 = vmpackc.low %vm2461, %vm2461
      %v2494 = vsel %vm2462, 65537, 0
      %v2495 = vsel %vm2463, 65537, 0
      %v2496 = vsel %vm2464, 65537, 0
      %v2497 = vsel %vm2465, 65537, 0
      %v2498 = vsel %vm2466, 65537, 0
      %v2499 = vsel %vm2467, 65537, 0
      %v2500 = vsel %vm2468, 65537, 0
      %v2501 = vsel %vm2469, 65537, 0
      %v2502 = vsel %vm2470, 65537, 0
      %v2503 = vsel %vm2471, 65537, 0
      %v2504 = vsel %vm2472, 65537, 0
      %v2505 = vsel %vm2473, 65537, 0
      %v2506 = vsel %vm2474, 65537, 0
      %v2507 = vsel %vm2475, 65537, 0
      %v2508 = vsel %vm2476, 65537, 0
      %v2509 = vsel %vm2477, 65537, 0
      %v2510 = vsel %vm2478, 65537, 0
      %v2511 = vsel %vm2479, 65537, 0
      %v2512 = vsel %vm2480, 65537, 0
      %v2513 = vsel %vm2481, 65537, 0
      %v2514 = vsel %vm2482, 65537, 0
      %v2515 = vsel %vm2483, 65537, 0
      %v2516 = vsel %vm2484, 65537, 0
      %v2517 = vsel %vm2485, 65537, 0
      %v2518 = vsel %vm2486, 65537, 0
      %v2519 = vsel %vm2487, 65537, 0
      %v2520 = vsel %vm2488, 65537, 0
      %v2521 = vsel %vm2489, 65537, 0
      %v2522 = vsel %vm2490, 65537, 0
      %v2523 = vsel %vm2491, 65537, 0
      %v2524 = vsel %vm2492, 65537, 0
      %v2525 = vsel %vm2493, 65537, 0
      %vm2526 = vsmask.f32 4368
      %vm2527 = vmor %vm441, %vm2526
      %v2529 = vshrl.u32 %v2494, 16
      %v2531 = vrot.slane %v2529, 7
      %v2532 = vshll.u32 %v2494, 16
      %v2534 = vor.u32 %v2531, %v2532
      %v2535 = vrot.slane %v2531, 4
      %v2537 = vshrl.u32 %v2495, 16
      %v2539 = vrot.slane %v2537, 7
      %v2540 = vshll.u32 %v2495, 16
      %v2542 = vor.u32 %v2539, %v2540
      %v2543 = vsel %vm2527, %v2535, %v2542
      %v2544 = vrot.slane %v2539, 4
      %v2546 = vshrl.u32 %v2496, 16
      %v2548 = vrot.slane %v2546, 7
      %v2549 = vshll.u32 %v2496, 16
      %v2551 = vor.u32 %v2548, %v2549
      %v2552 = vsel %vm2527, %v2544, %v2551
      %v2553 = vrot.slane %v2548, 4
      %v2555 = vshrl.u32 %v2497, 16
      %v2557 = vrot.slane %v2555, 7
      %v2558 = vshll.u32 %v2497, 16
      %v2560 = vor.u32 %v2557, %v2558
      %v2561 = vsel %vm2527, %v2553, %v2560
      %v2562 = vrot.slane %v2557, 4
      %v2564 = vshrl.u32 %v2498, 16
      %v2566 = vrot.slane %v2564, 7
      %v2567 = vshll.u32 %v2498, 16
      %v2569 = vor.u32 %v2566, %v2567
      %v2570 = vsel %vm2527, %v2562, %v2569
      %v2571 = vrot.slane %v2566, 4
      %v2573 = vshrl.u32 %v2499, 16
      %v2575 = vrot.slane %v2573, 7
      %v2576 = vshll.u32 %v2499, 16
      %v2578 = vor.u32 %v2575, %v2576
      %v2579 = vsel %vm2527, %v2571, %v2578
      %v2580 = vrot.slane %v2575, 4
      %v2582 = vshrl.u32 %v2500, 16
      %v2584 = vrot.slane %v2582, 7
      %v2585 = vshll.u32 %v2500, 16
      %v2587 = vor.u32 %v2584, %v2585
      %v2588 = vsel %vm2527, %v2580, %v2587
      %v2589 = vrot.slane %v2584, 4
      %v2591 = vshrl.u32 %v2501, 16
      %v2593 = vrot.slane %v2591, 7
      %v2594 = vshll.u32 %v2501, 16
      %v2596 = vor.u32 %v2593, %v2594
      %v2597 = vsel %vm2527, %v2589, %v2596
      %v2598 = vrot.slane %v2593, 4
      %v2600 = vshrl.u32 %v2502, 16
      %v2602 = vrot.slane %v2600, 7
      %v2603 = vshll.u32 %v2502, 16
      %v2605 = vor.u32 %v2602, %v2603
      %v2606 = vsel %vm2527, %v2598, %v2605
      %v2607 = vrot.slane %v2602, 4
      %v2609 = vshrl.u32 %v2503, 16
      %v2611 = vrot.slane %v2609, 7
      %v2612 = vshll.u32 %v2503, 16
      %v2614 = vor.u32 %v2611, %v2612
      %v2615 = vsel %vm2527, %v2607, %v2614
      %v2616 = vrot.slane %v2611, 4
      %v2618 = vshrl.u32 %v2504, 16
      %v2620 = vrot.slane %v2618, 7
      %v2621 = vshll.u32 %v2504, 16
      %v2623 = vor.u32 %v2620, %v2621
      %v2624 = vsel %vm2527, %v2616, %v2623
      %v2625 = vrot.slane %v2620, 4
      %v2627 = vshrl.u32 %v2505, 16
      %v2629 = vrot.slane %v2627, 7
      %v2630 = vshll.u32 %v2505, 16
      %v2632 = vor.u32 %v2629, %v2630
      %v2633 = vsel %vm2527, %v2625, %v2632
      %v2634 = vrot.slane %v2629, 4
      %v2636 = vshrl.u32 %v2506, 16
      %v2638 = vrot.slane %v2636, 7
      %v2639 = vshll.u32 %v2506, 16
      %v2641 = vor.u32 %v2638, %v2639
      %v2642 = vsel %vm2527, %v2634, %v2641
      %v2643 = vrot.slane %v2638, 4
      %v2645 = vshrl.u32 %v2507, 16
      %v2647 = vrot.slane %v2645, 7
      %v2648 = vshll.u32 %v2507, 16
      %v2650 = vor.u32 %v2647, %v2648
      %v2651 = vsel %vm2527, %v2643, %v2650
      %v2652 = vrot.slane %v2647, 4
      %v2654 = vshrl.u32 %v2508, 16
      %v2656 = vrot.slane %v2654, 7
      %v2657 = vshll.u32 %v2508, 16
      %v2659 = vor.u32 %v2656, %v2657
      %v2660 = vsel %vm2527, %v2652, %v2659
      %v2661 = vrot.slane %v2656, 4
      %v2663 = vshrl.u32 %v2509, 16
      %v2665 = vrot.slane %v2663, 7
      %v2666 = vshll.u32 %v2509, 16
      %v2668 = vor.u32 %v2665, %v2666
      %v2669 = vsel %vm2527, %v2661, %v2668
      %v2670 = vrot.slane %v2665, 4
      %v2672 = vshrl.u32 %v2510, 16
      %v2674 = vrot.slane %v2672, 7
      %v2675 = vshll.u32 %v2510, 16
      %v2677 = vor.u32 %v2674, %v2675
      %v2678 = vsel %vm2527, %v2670, %v2677
      %v2679 = vrot.slane %v2674, 4
      %v2681 = vshrl.u32 %v2511, 16
      %v2683 = vrot.slane %v2681, 7
      %v2684 = vshll.u32 %v2511, 16
      %v2686 = vor.u32 %v2683, %v2684
      %v2687 = vsel %vm2527, %v2679, %v2686
      %v2688 = vrot.slane %v2683, 4
      %v2690 = vshrl.u32 %v2512, 16
      %v2692 = vrot.slane %v2690, 7
      %v2693 = vshll.u32 %v2512, 16
      %v2695 = vor.u32 %v2692, %v2693
      %v2696 = vsel %vm2527, %v2688, %v2695
      %v2697 = vrot.slane %v2692, 4
      %v2699 = vshrl.u32 %v2513, 16
      %v2701 = vrot.slane %v2699, 7
      %v2702 = vshll.u32 %v2513, 16
      %v2704 = vor.u32 %v2701, %v2702
      %v2705 = vsel %vm2527, %v2697, %v2704
      %v2706 = vrot.slane %v2701, 4
      %v2708 = vshrl.u32 %v2514, 16
      %v2710 = vrot.slane %v2708, 7
      %v2711 = vshll.u32 %v2514, 16
      %v2713 = vor.u32 %v2710, %v2711
      %v2714 = vsel %vm2527, %v2706, %v2713
      %v2715 = vrot.slane %v2710, 4
      %v2717 = vshrl.u32 %v2515, 16
      %v2719 = vrot.slane %v2717, 7
      %v2720 = vshll.u32 %v2515, 16
      %v2722 = vor.u32 %v2719, %v2720
      %v2723 = vsel %vm2527, %v2715, %v2722
      %v2724 = vrot.slane %v2719, 4
      %v2726 = vshrl.u32 %v2516, 16
      %v2728 = vrot.slane %v2726, 7
      %v2729 = vshll.u32 %v2516, 16
      %v2731 = vor.u32 %v2728, %v2729
      %v2732 = vsel %vm2527, %v2724, %v2731
      %v2733 = vrot.slane %v2728, 4
      %v2735 = vshrl.u32 %v2517, 16
      %v2737 = vrot.slane %v2735, 7
      %v2738 = vshll.u32 %v2517, 16
      %v2740 = vor.u32 %v2737, %v2738
      %v2741 = vsel %vm2527, %v2733, %v2740
      %v2742 = vrot.slane %v2737, 4
      %v2744 = vshrl.u32 %v2518, 16
      %v2746 = vrot.slane %v2744, 7
      %v2747 = vshll.u32 %v2518, 16
      %v2749 = vor.u32 %v2746, %v2747
      %v2750 = vsel %vm2527, %v2742, %v2749
      %v2751 = vrot.slane %v2746, 4
      %v2753 = vshrl.u32 %v2519, 16
      %v2755 = vrot.slane %v2753, 7
      %v2756 = vshll.u32 %v2519, 16
      %v2758 = vor.u32 %v2755, %v2756
      %v2759 = vsel %vm2527, %v2751, %v2758
      %v2760 = vrot.slane %v2755, 4
      %v2762 = vshrl.u32 %v2520, 16
      %v2764 = vrot.slane %v2762, 7
      %v2765 = vshll.u32 %v2520, 16
      %v2767 = vor.u32 %v2764, %v2765
      %v2768 = vsel %vm2527, %v2760, %v2767
      %v2769 = vrot.slane %v2764, 4
      %v2771 = vshrl.u32 %v2521, 16
      %v2773 = vrot.slane %v2771, 7
      %v2774 = vshll.u32 %v2521, 16
      %v2776 = vor.u32 %v2773, %v2774
      %v2777 = vsel %vm2527, %v2769, %v2776
      %v2778 = vrot.slane %v2773, 4
      %v2780 = vshrl.u32 %v2522, 16
      %v2782 = vrot.slane %v2780, 7
      %v2783 = vshll.u32 %v2522, 16
      %v2785 = vor.u32 %v2782, %v2783
      %v2786 = vsel %vm2527, %v2778, %v2785
      %v2787 = vrot.slane %v2782, 4
      %v2789 = vshrl.u32 %v2523, 16
      %v2791 = vrot.slane %v2789, 7
      %v2792 = vshll.u32 %v2523, 16
      %v2794 = vor.u32 %v2791, %v2792
      %v2795 = vsel %vm2527, %v2787, %v2794
      %v2796 = vrot.slane %v2791, 4
      %v2798 = vshrl.u32 %v2524, 16
      %v2800 = vrot.slane %v2798, 7
      %v2801 = vshll.u32 %v2524, 16
      %v2803 = vor.u32 %v2800, %v2801
      %v2804 = vsel %vm2527, %v2796, %v2803
      %v2805 = vrot.slane %v2800, 4
      %v2807 = vshrl.u32 %v2525, 16
      %v2809 = vrot.slane %v2807, 7
      %v2810 = vshll.u32 %v2525, 16
      %v2812 = vor.u32 %v2809, %v2810
      %v2813 = vsel %vm2527, %v2805, %v2812
      %v2814 = vrot.slane %v2809, 4
      %vm2815 = vcmp.ne.s16.totalorder %v2534, 0
      %vm2816 = vcmp.ne.s16.totalorder %v2543, 0
      %vm2817 = vcmp.ne.s16.totalorder %v2552, 0
      %vm2818 = vcmp.ne.s16.totalorder %v2561, 0
      %vm2819 = vcmp.ne.s16.totalorder %v2570, 0
      %vm2820 = vcmp.ne.s16.totalorder %v2579, 0
      %vm2821 = vcmp.ne.s16.totalorder %v2588, 0
      %vm2822 = vcmp.ne.s16.totalorder %v2597, 0
      %vm2823 = vcmp.ne.s16.totalorder %v2606, 0
      %vm2824 = vcmp.ne.s16.totalorder %v2615, 0
      %vm2825 = vcmp.ne.s16.totalorder %v2624, 0
      %vm2826 = vcmp.ne.s16.totalorder %v2633, 0
      %vm2827 = vcmp.ne.s16.totalorder %v2642, 0
      %vm2828 = vcmp.ne.s16.totalorder %v2651, 0
      %vm2829 = vcmp.ne.s16.totalorder %v2660, 0
      %vm2830 = vcmp.ne.s16.totalorder %v2669, 0
      %vm2831 = vcmp.ne.s16.totalorder %v2678, 0
      %vm2832 = vcmp.ne.s16.totalorder %v2687, 0
      %vm2833 = vcmp.ne.s16.totalorder %v2696, 0
      %vm2834 = vcmp.ne.s16.totalorder %v2705, 0
      %vm2835 = vcmp.ne.s16.totalorder %v2714, 0
      %vm2836 = vcmp.ne.s16.totalorder %v2723, 0
      %vm2837 = vcmp.ne.s16.totalorder %v2732, 0
      %vm2838 = vcmp.ne.s16.totalorder %v2741, 0
      %vm2839 = vcmp.ne.s16.totalorder %v2750, 0
      %vm2840 = vcmp.ne.s16.totalorder %v2759, 0
      %vm2841 = vcmp.ne.s16.totalorder %v2768, 0
      %vm2842 = vcmp.ne.s16.totalorder %v2777, 0
      %vm2843 = vcmp.ne.s16.totalorder %v2786, 0
      %vm2844 = vcmp.ne.s16.totalorder %v2795, 0
      %vm2845 = vcmp.ne.s16.totalorder %v2804, 0
      %vm2846 = vcmp.ne.s16.totalorder %v2813, 0
      %vm2847 = vcmp.ne.s16.totalorder %v2814, 0
      %v2848 = vsel %vm2815, %v2365, 0
      %v2849 = vsel %vm2816, %v2366, 0
      %v2850 = vsel %vm2817, %v2367, 0
      %v2851 = vsel %vm2818, %v2368, 0
      %v2852 = vsel %vm2819, %v2369, 0
      %v2853 = vsel %vm2820, %v2370, 0
      %v2854 = vsel %vm2821, %v2371, 0
      %v2855 = vsel %vm2822, %v2372, 0
      %v2856 = vsel %vm2823, %v2373, 0
      %v2857 = vsel %vm2824, %v2374, 0
      %v2858 = vsel %vm2825, %v2375, 0
      %v2859 = vsel %vm2826, %v2376, 0
      %v2860 = vsel %vm2827, %v2377, 0
      %v2861 = vsel %vm2828, %v2378, 0
      %v2862 = vsel %vm2829, %v2379, 0
      %v2863 = vsel %vm2830, %v2380, 0
      %v2864 = vsel %vm2831, %v2381, 0
      %v2865 = vsel %vm2832, %v2382, 0
      %v2866 = vsel %vm2833, %v2383, 0
      %v2867 = vsel %vm2834, %v2384, 0
      %v2868 = vsel %vm2835, %v2385, 0
      %v2869 = vsel %vm2836, %v2386, 0
      %v2870 = vsel %vm2837, %v2387, 0
      %v2871 = vsel %vm2838, %v2388, 0
      %v2872 = vsel %vm2839, %v2389, 0
      %v2873 = vsel %vm2840, %v2390, 0
      %v2874 = vsel %vm2841, %v2391, 0
      %v2875 = vsel %vm2842, %v2392, 0
      %v2876 = vsel %vm2843, %v2393, 0
      %v2877 = vsel %vm2844, %v2394, 0
      %v2878 = vsel %vm2845, %v2395, 0
      %v2879 = vsel %vm2846, %v2396, 0
      %v2880 = vsel %vm2847, %v2397, 0
      %s2881 = scalar_lea.vmem %s3, 8
      %v2882 = vld [vmem:[%s2881] sm:$0xf]
      %v2916 = vunpack.c.l.b16 %v2848
      %v2917 = vunpack.c.l.b16 %v2849
      %v2918 = vunpack.c.l.b16 %v2850
      %v2919 = vunpack.c.l.b16 %v2851
      %v2920 = vunpack.c.l.b16 %v2852
      %v2921 = vunpack.c.l.b16 %v2853
      %v2922 = vunpack.c.l.b16 %v2854
      %v2923 = vunpack.c.l.b16 %v2855
      %v2924 = vunpack.c.l.b16 %v2856
      %v2925 = vunpack.c.l.b16 %v2857
      %v2926 = vunpack.c.l.b16 %v2858
      %v2927 = vunpack.c.l.b16 %v2859
      %v2928 = vunpack.c.l.b16 %v2860
      %v2929 = vunpack.c.l.b16 %v2861
      %v2930 = vunpack.c.l.b16 %v2862
      %v2931 = vunpack.c.l.b16 %v2863
      %v2932 = vunpack.c.l.b16 %v2864
      %v2933 = vunpack.c.l.b16 %v2865
      %v2934 = vunpack.c.l.b16 %v2866
      %v2935 = vunpack.c.l.b16 %v2867
      %v2936 = vunpack.c.l.b16 %v2868
      %v2937 = vunpack.c.l.b16 %v2869
      %v2938 = vunpack.c.l.b16 %v2870
      %v2939 = vunpack.c.l.b16 %v2871
      %v2940 = vunpack.c.l.b16 %v2872
      %v2941 = vunpack.c.l.b16 %v2873
      %v2942 = vunpack.c.l.b16 %v2874
      %v2943 = vunpack.c.l.b16 %v2875
      %v2944 = vunpack.c.l.b16 %v2876
      %v2945 = vunpack.c.l.b16 %v2877
      %v2946 = vunpack.c.l.b16 %v2878
      %v2947 = vunpack.c.l.b16 %v2879
      %v2948 = vunpack.c.l.b16 %v2880
      %v2949 = vpack.c.b16 %v2917, %v2916
      %v2950 = vpack.c.b16 %v2919, %v2918
      %v2951 = vpack.c.b16 %v2921, %v2920
      %v2952 = vpack.c.b16 %v2923, %v2922
      %v2953 = vpack.c.b16 %v2925, %v2924
      %v2954 = vpack.c.b16 %v2927, %v2926
      %v2955 = vpack.c.b16 %v2929, %v2928
      %v2956 = vpack.c.b16 %v2931, %v2930
      %v2957 = vpack.c.b16 %v2933, %v2932
      %v2958 = vpack.c.b16 %v2935, %v2934
      %v2959 = vpack.c.b16 %v2937, %v2936
      %v2960 = vpack.c.b16 %v2939, %v2938
      %v2961 = vpack.c.b16 %v2941, %v2940
      %v2962 = vpack.c.b16 %v2943, %v2942
      %v2963 = vpack.c.b16 %v2945, %v2944
      %v2964 = vpack.c.b16 %v2947, %v2946
      %v2965 = vpack.c.b16 %v2948, %v2948
      %vm2966 = vsmask.f32 7424
      %v2968 = vshrl.u32 %v2949, 16
      %v2970 = vshll.u32 %v2949, 16
      %v2972 = vrot.slane %v2970, 1
      %v2973 = vor.u32 %v2968, %v2972
      %v2975 = vshll.u32 %v2950, 16
      %v2977 = vrot.slane %v2975, 1
      %v2978 = vsel %vm2966, %v2973, %v2977
      %v2979 = vshrl.u32 %v2950, 16
      %v2981 = vor.u32 %v2979, %v2977
      %v2983 = vshll.u32 %v2951, 16
      %v2985 = vrot.slane %v2983, 1
      %v2986 = vsel %vm2966, %v2981, %v2985
      %v2987 = vshrl.u32 %v2951, 16
      %v2989 = vor.u32 %v2987, %v2985
      %v2991 = vshll.u32 %v2952, 16
      %v2993 = vrot.slane %v2991, 1
      %v2994 = vsel %vm2966, %v2989, %v2993
      %v2995 = vshrl.u32 %v2952, 16
      %v2997 = vor.u32 %v2995, %v2993
      %v2999 = vshll.u32 %v2953, 16
      %v3001 = vrot.slane %v2999, 1
      %v3002 = vsel %vm2966, %v2997, %v3001
      %v3003 = vshrl.u32 %v2953, 16
      %v3005 = vor.u32 %v3003, %v3001
      %v3007 = vshll.u32 %v2954, 16
      %v3009 = vrot.slane %v3007, 1
      %v3010 = vsel %vm2966, %v3005, %v3009
      %v3011 = vshrl.u32 %v2954, 16
      %v3013 = vor.u32 %v3011, %v3009
      %v3015 = vshll.u32 %v2955, 16
      %v3017 = vrot.slane %v3015, 1
      %v3018 = vsel %vm2966, %v3013, %v3017
      %v3019 = vshrl.u32 %v2955, 16
      %v3021 = vor.u32 %v3019, %v3017
      %v3023 = vshll.u32 %v2956, 16
      %v3025 = vrot.slane %v3023, 1
      %v3026 = vsel %vm2966, %v3021, %v3025
      %v3027 = vshrl.u32 %v2956, 16
      %v3029 = vor.u32 %v3027, %v3025
      %v3031 = vshll.u32 %v2957, 16
      %v3033 = vrot.slane %v3031, 1
      %v3034 = vsel %vm2966, %v3029, %v3033
      %v3035 = vshrl.u32 %v2957, 16
      %v3037 = vor.u32 %v3035, %v3033
      %v3039 = vshll.u32 %v2958, 16
      %v3041 = vrot.slane %v3039, 1
      %v3042 = vsel %vm2966, %v3037, %v3041
      %v3043 = vshrl.u32 %v2958, 16
      %v3045 = vor.u32 %v3043, %v3041
      %v3047 = vshll.u32 %v2959, 16
      %v3049 = vrot.slane %v3047, 1
      %v3050 = vsel %vm2966, %v3045, %v3049
      %v3051 = vshrl.u32 %v2959, 16
      %v3053 = vor.u32 %v3051, %v3049
      %v3055 = vshll.u32 %v2960, 16
      %v3057 = vrot.slane %v3055, 1
      %v3058 = vsel %vm2966, %v3053, %v3057
      %v3059 = vshrl.u32 %v2960, 16
      %v3061 = vor.u32 %v3059, %v3057
      %v3063 = vshll.u32 %v2961, 16
      %v3065 = vrot.slane %v3063, 1
      %v3066 = vsel %vm2966, %v3061, %v3065
      %v3067 = vshrl.u32 %v2961, 16
      %v3069 = vor.u32 %v3067, %v3065
      %v3071 = vshll.u32 %v2962, 16
      %v3073 = vrot.slane %v3071, 1
      %v3074 = vsel %vm2966, %v3069, %v3073
      %v3075 = vshrl.u32 %v2962, 16
      %v3077 = vor.u32 %v3075, %v3073
      %v3079 = vshll.u32 %v2963, 16
      %v3081 = vrot.slane %v3079, 1
      %v3082 = vsel %vm2966, %v3077, %v3081
      %v3083 = vshrl.u32 %v2963, 16
      %v3085 = vor.u32 %v3083, %v3081
      %v3087 = vshll.u32 %v2964, 16
      %v3089 = vrot.slane %v3087, 1
      %v3090 = vsel %vm2966, %v3085, %v3089
      %v3091 = vshrl.u32 %v2964, 16
      %v3093 = vor.u32 %v3091, %v3089
      %v3095 = vshll.u32 %v2965, 16
      %v3097 = vrot.slane %v3095, 1
      %v3098 = vsel %vm2966, %v3093, %v3097
      %v3100 = vsel %vm1703, %v2978, 0
      %v3103 = vsel %vm1703, %v2986, 0
      %v3106 = vsel %vm1703, %v2994, 0
      %v3109 = vsel %vm1703, %v3002, 0
      %v3112 = vsel %vm1703, %v3010, 0
      %v3115 = vsel %vm1703, %v3018, 0
      %v3118 = vsel %vm1703, %v3026, 0
      %v3121 = vsel %vm1703, %v3034, 0
      %v3124 = vsel %vm1703, %v3042, 0
      %v3127 = vsel %vm1703, %v3050, 0
      %v3130 = vsel %vm1703, %v3058, 0
      %v3133 = vsel %vm1703, %v3066, 0
      %v3136 = vsel %vm1703, %v3074, 0
      %v3139 = vsel %vm1703, %v3082, 0
      %v3142 = vsel %vm1703, %v3090, 0
      %v3145 = vsel %vm1703, %v3098, 0
      %v3148 = vsel %vm1752, %v2882, 0
      %3150 = vmatprep.subr.bf16.mxu0 0
      %3151 = vmatpush1.bf16.msra.mxu0 %v3148
      %3152 = vmatprep.subr.bf16.mxu0 0
      %3153 = vmatpush1.bf16.msra.mxu0 0
      %3154 = vmatprep.subr.bf16.mxu0 0
      %3155 = vmatpush1.bf16.msra.mxu0 0
      %3156 = vmatprep.subr.bf16.mxu0 0
      %3157 = vmatpush1.bf16.msra.mxu0 0
      %3158 = vmatprep.subr.bf16.mxu0 0
      %3159 = vmatpush1.bf16.msra.mxu0 0
      %3160 = vmatprep.subr.bf16.mxu0 0
      %3161 = vmatpush1.bf16.msra.mxu0 0
      %3162 = vmatprep.subr.bf16.mxu0 0
      %3163 = vmatpush1.bf16.msra.mxu0 0
      %3164 = vmatprep.subr.bf16.mxu0 0
      %3165 = vmatpush1.bf16.msra.mxu0 0
      %3166 = vmatprep.subr.bf16.mxu0 0
      %3167 = vmatpush1.bf16.msra.mxu0 0
      %3168 = vmatprep.subr.bf16.mxu0 0
      %3169 = vmatpush1.bf16.msra.mxu0 0
      %3170 = vmatprep.subr.bf16.mxu0 0
      %3171 = vmatpush1.bf16.msra.mxu0 0
      %3172 = vmatprep.subr.bf16.mxu0 0
      %3173 = vmatpush1.bf16.msra.mxu0 0
      %3174 = vmatprep.subr.bf16.mxu0 0
      %3175 = vmatpush1.bf16.msra.mxu0 0
      %3176 = vmatprep.subr.bf16.mxu0 0
      %3177 = vmatpush1.bf16.msra.mxu0 0
      %3178 = vmatprep.subr.bf16.mxu0 0
      %3179 = vmatpush1.bf16.msra.mxu0 0
      %3180 = vmatprep.subr.bf16.mxu0 0
      %3181 = vmatpush1.bf16.msra.mxu0 0
      %3182 = vmatprep.mubr.bf16.mxu0 0
      %3183 = vmatmul.mubr.bf16.gmra.mrb[0].mxu0 %v3100
      %v3184 = vpop.f32.mrb[0].mxu0
      %v3185 = vadd.f32 0.0, %v3184
      %v3186 = vpop.f32.mrb[0].mxu0
      %v3187 = vpop.f32.mrb[0].mxu0
      %v3188 = vadd.f32 0.0, %v3187
      %v3189 = vpop.f32.mrb[0].mxu0
      %3190 = vmatprep.mubr.bf16.mxu0 0
      %3191 = vmatmul.mubr.bf16.gmra.mrb[0].mxu0 %v3103
      %v3192 = vpop.f32.mrb[0].mxu0
      %v3193 = vadd.f32 0.0, %v3192
      %v3194 = vpop.f32.mrb[0].mxu0
      %v3195 = vpop.f32.mrb[0].mxu0
      %v3196 = vadd.f32 0.0, %v3195
      %v3197 = vpop.f32.mrb[0].mxu0
      %3198 = vmatprep.mubr.bf16.mxu0 0
      %3199 = vmatmul.mubr.bf16.gmra.mrb[0].mxu0 %v3106
      %v3200 = vpop.f32.mrb[0].mxu0
      %v3201 = vadd.f32 0.0, %v3200
      %v3202 = vpop.f32.mrb[0].mxu0
      %v3203 = vpop.f32.mrb[0].mxu0
      %v3204 = vadd.f32 0.0, %v3203
      %v3205 = vpop.f32.mrb[0].mxu0
      %3206 = vmatprep.mubr.bf16.mxu0 0
      %3207 = vmatmul.mubr.bf16.gmra.mrb[0].mxu0 %v3109
      %v3208 = vpop.f32.mrb[0].mxu0
      %v3209 = vadd.f32 0.0, %v3208
      %v3210 = vpop.f32.mrb[0].mxu0
      %v3211 = vpop.f32.mrb[0].mxu0
      %v3212 = vadd.f32 0.0, %v3211
      %v3213 = vpop.f32.mrb[0].mxu0
      %3214 = vmatprep.mubr.bf16.mxu0 0
      %3215 = vmatmul.mubr.bf16.gmra.mrb[0].mxu0 %v3112
      %v3216 = vpop.f32.mrb[0].mxu0
      %v3217 = vadd.f32 0.0, %v3216
      %v3218 = vpop.f32.mrb[0].mxu0
      %v3219 = vpop.f32.mrb[0].mxu0
      %v3220 = vadd.f32 0.0, %v3219
      %v3221 = vpop.f32.mrb[0].mxu0
      %3222 = vmatprep.mubr.bf16.mxu0 0
      %3223 = vmatmul.mubr.bf16.gmra.mrb[0].mxu0 %v3115
      %v3224 = vpop.f32.mrb[0].mxu0
      %v3225 = vadd.f32 0.0, %v3224
      %v3226 = vpop.f32.mrb[0].mxu0
      %v3227 = vpop.f32.mrb[0].mxu0
      %v3228 = vadd.f32 0.0, %v3227
      %v3229 = vpop.f32.mrb[0].mxu0
      %3230 = vmatprep.mubr.bf16.mxu0 0
      %3231 = vmatmul.mubr.bf16.gmra.mrb[0].mxu0 %v3118
      %v3232 = vpop.f32.mrb[0].mxu0
      %v3233 = vadd.f32 0.0, %v3232
      %v3234 = vpop.f32.mrb[0].mxu0
      %v3235 = vpop.f32.mrb[0].mxu0
      %v3236 = vadd.f32 0.0, %v3235
      %v3237 = vpop.f32.mrb[0].mxu0
      %3238 = vmatprep.mubr.bf16.mxu0 0
      %3239 = vmatmul.mubr.bf16.gmra.mrb[0].mxu0 %v3121
      %v3240 = vpop.f32.mrb[0].mxu0
      %v3241 = vadd.f32 0.0, %v3240
      %v3242 = vpop.f32.mrb[0].mxu0
      %v3243 = vpop.f32.mrb[0].mxu0
      %v3244 = vadd.f32 0.0, %v3243
      %v3245 = vpop.f32.mrb[0].mxu0
      %3246 = vmatprep.mubr.bf16.mxu0 0
      %3247 = vmatmul.mubr.bf16.gmra.mrb[0].mxu0 %v3124
      %v3248 = vpop.f32.mrb[0].mxu0
      %v3249 = vadd.f32 0.0, %v3248
      %v3250 = vpop.f32.mrb[0].mxu0
      %v3251 = vpop.f32.mrb[0].mxu0
      %v3252 = vadd.f32 0.0, %v3251
      %v3253 = vpop.f32.mrb[0].mxu0
      %3254 = vmatprep.mubr.bf16.mxu0 0
      %3255 = vmatmul.mubr.bf16.gmra.mrb[0].mxu0 %v3127
      %v3256 = vpop.f32.mrb[0].mxu0
      %v3257 = vadd.f32 0.0, %v3256
      %v3258 = vpop.f32.mrb[0].mxu0
      %v3259 = vpop.f32.mrb[0].mxu0
      %v3260 = vadd.f32 0.0, %v3259
      %v3261 = vpop.f32.mrb[0].mxu0
      %3262 = vmatprep.mubr.bf16.mxu0 0
      %3263 = vmatmul.mubr.bf16.gmra.mrb[0].mxu0 %v3130
      %v3264 = vpop.f32.mrb[0].mxu0
      %v3265 = vadd.f32 0.0, %v3264
      %v3266 = vpop.f32.mrb[0].mxu0
      %v3267 = vpop.f32.mrb[0].mxu0
      %v3268 = vadd.f32 0.0, %v3267
      %v3269 = vpop.f32.mrb[0].mxu0
      %3270 = vmatprep.mubr.bf16.mxu0 0
      %3271 = vmatmul.mubr.bf16.gmra.mrb[0].mxu0 %v3133
      %v3272 = vpop.f32.mrb[0].mxu0
      %v3273 = vadd.f32 0.0, %v3272
      %v3274 = vpop.f32.mrb[0].mxu0
      %v3275 = vpop.f32.mrb[0].mxu0
      %v3276 = vadd.f32 0.0, %v3275
      %v3277 = vpop.f32.mrb[0].mxu0
      %3278 = vmatprep.mubr.bf16.mxu0 0
      %3279 = vmatmul.mubr.bf16.gmra.mrb[0].mxu0 %v3136
      %v3280 = vpop.f32.mrb[0].mxu0
      %v3281 = vadd.f32 0.0, %v3280
      %v3282 = vpop.f32.mrb[0].mxu0
      %v3283 = vpop.f32.mrb[0].mxu0
      %v3284 = vadd.f32 0.0, %v3283
      %v3285 = vpop.f32.mrb[0].mxu0
      %3286 = vmatprep.mubr.bf16.mxu0 0
      %3287 = vmatmul.mubr.bf16.gmra.mrb[0].mxu0 %v3139
      %v3288 = vpop.f32.mrb[0].mxu0
      %v3289 = vadd.f32 0.0, %v3288
      %v3290 = vpop.f32.mrb[0].mxu0
      %v3291 = vpop.f32.mrb[0].mxu0
      %v3292 = vadd.f32 0.0, %v3291
      %v3293 = vpop.f32.mrb[0].mxu0
      %3294 = vmatprep.mubr.bf16.mxu0 0
      %3295 = vmatmul.mubr.bf16.gmra.mrb[0].mxu0 %v3142
      %v3296 = vpop.f32.mrb[0].mxu0
      %v3297 = vadd.f32 0.0, %v3296
      %v3298 = vpop.f32.mrb[0].mxu0
      %v3299 = vpop.f32.mrb[0].mxu0
      %v3300 = vadd.f32 0.0, %v3299
      %v3301 = vpop.f32.mrb[0].mxu0
      %3302 = vmatprep.mubr.bf16.mxu0 0
      %3303 = vmatmul.mubr.bf16.gmra.mrb[0].mxu0 %v3145
      %v3304 = vpop.f32.mrb[0].mxu0
      %v3305 = vadd.f32 0.0, %v3304
      %v3306 = vpop.f32.mrb[0].mxu0
      %v3307 = vpop.f32.mrb[0].mxu0
      %v3308 = vadd.f32 0.0, %v3307
      %v3309 = vpop.f32.mrb[0].mxu0
      %3310 = vdwg.mxu0
      %v3311 = vadd.f32 %v2239, %v3185
      %v3312 = vadd.f32 %v2242, %v3188
      %v3313 = vadd.f32 %v2247, %v3193
      %v3314 = vadd.f32 %v2250, %v3196
      %v3315 = vadd.f32 %v2255, %v3201
      %v3316 = vadd.f32 %v2258, %v3204
      %v3317 = vadd.f32 %v2263, %v3209
      %v3318 = vadd.f32 %v2266, %v3212
      %v3319 = vadd.f32 %v2271, %v3217
      %v3320 = vadd.f32 %v2274, %v3220
      %v3321 = vadd.f32 %v2279, %v3225
      %v3322 = vadd.f32 %v2282, %v3228
      %v3323 = vadd.f32 %v2287, %v3233
      %v3324 = vadd.f32 %v2290, %v3236
      %v3325 = vadd.f32 %v2295, %v3241
      %v3326 = vadd.f32 %v2298, %v3244
      %v3327 = vadd.f32 %v2303, %v3249
      %v3328 = vadd.f32 %v2306, %v3252
      %v3329 = vadd.f32 %v2311, %v3257
      %v3330 = vadd.f32 %v2314, %v3260
      %v3331 = vadd.f32 %v2319, %v3265
      %v3332 = vadd.f32 %v2322, %v3268
      %v3333 = vadd.f32 %v2327, %v3273
      %v3334 = vadd.f32 %v2330, %v3276
      %v3335 = vadd.f32 %v2335, %v3281
      %v3336 = vadd.f32 %v2338, %v3284
      %v3337 = vadd.f32 %v2343, %v3289
      %v3338 = vadd.f32 %v2346, %v3292
      %v3339 = vadd.f32 %v2351, %v3297
      %v3340 = vadd.f32 %v2354, %v3300
      %v3341 = vadd.f32 %v2359, %v3305
      %v3342 = vadd.f32 %v2362, %v3308
      %v3343 = vld [vmem:[#allocation2 + $0xc] sm:$0x8]
      %v3344 = vld [vmem:[#allocation2 + $0x10] sm:$0xf]
      %v3345 = vld [vmem:[#allocation2 + $0x14] sm:$0xf]
      %v3346 = vld [vmem:[#allocation2 + $0x18] sm:$0xf]
      %v3347 = vld [vmem:[#allocation2 + $0x1c] sm:$0xf]
      %v3348 = vld [vmem:[#allocation2 + $0x20] sm:$0xf]
      %v3349 = vld [vmem:[#allocation2 + $0x24] sm:$0xf]
      %v3350 = vld [vmem:[#allocation2 + $0x28] sm:$0xf]
      %v3351 = vld [vmem:[#allocation2 + $0x2c] sm:$0xf]
      %v3352 = vld [vmem:[#allocation2 + $0x30] sm:$0xf]
      %v3353 = vld [vmem:[#allocation2 + $0x34] sm:$0xf]
      %v3354 = vld [vmem:[#allocation2 + $0x38] sm:$0xf]
      %v3355 = vld [vmem:[#allocation2 + $0x3c] sm:$0xf]
      %v3356 = vld [vmem:[#allocation2 + $0x40] sm:$0xf]
      %v3357 = vld [vmem:[#allocation2 + $0x44] sm:$0xf]
      %v3358 = vld [vmem:[#allocation2 + $0x48] sm:$0xf]
      %v3359 = vld [vmem:[#allocation2 + $0x4c] sm:$0xf]
      %v3360 = vld [vmem:[#allocation2 + $0x50] sm:$0xf]
      %v3361 = vld [vmem:[#allocation2 + $0x54] sm:$0xf]
      %v3362 = vld [vmem:[#allocation2 + $0x58] sm:$0xf]
      %v3363 = vld [vmem:[#allocation2 + $0x5c] sm:$0xf]
      %v3364 = vld [vmem:[#allocation2 + $0x60] sm:$0xf]
      %v3365 = vld [vmem:[#allocation2 + $0x64] sm:$0xf]
      %v3366 = vld [vmem:[#allocation2 + $0x68] sm:$0xf]
      %v3367 = vld [vmem:[#allocation2 + $0x6c] sm:$0xf]
      %v3368 = vld [vmem:[#allocation2 + $0x70] sm:$0xf]
      %v3369 = vld [vmem:[#allocation2 + $0x74] sm:$0xf]
      %v3370 = vld [vmem:[#allocation2 + $0x78] sm:$0xf]
      %v3371 = vld [vmem:[#allocation2 + $0x7c] sm:$0xf]
      %v3372 = vld [vmem:[#allocation2 + $0x80] sm:$0xf]
      %v3373 = vld [vmem:[#allocation2 + $0x84] sm:$0xf]
      %v3374 = vld [vmem:[#allocation2 + $0x88] sm:$0xf]
      %v3375 = vld [vmem:[#allocation2 + $0x8c] sm:$0xf]
      %v3376 = vsel %vm1554, %v3343, 0
      %v3377 = vsel %vm1555, %v3344, 0
      %v3378 = vsel %vm1556, %v3345, 0
      %v3379 = vsel %vm1557, %v3346, 0
      %v3380 = vsel %vm1558, %v3347, 0
      %v3381 = vsel %vm1559, %v3348, 0
      %v3382 = vsel %vm1560, %v3349, 0
      %v3383 = vsel %vm1561, %v3350, 0
      %v3384 = vsel %vm1562, %v3351, 0
      %v3385 = vsel %vm1563, %v3352, 0
      %v3386 = vsel %vm1564, %v3353, 0
      %v3387 = vsel %vm1565, %v3354, 0
      %v3388 = vsel %vm1566, %v3355, 0
      %v3389 = vsel %vm1567, %v3356, 0
      %v3390 = vsel %vm1568, %v3357, 0
      %v3391 = vsel %vm1569, %v3358, 0
      %v3392 = vsel %vm1570, %v3359, 0
      %v3393 = vsel %vm1571, %v3360, 0
      %v3394 = vsel %vm1572, %v3361, 0
      %v3395 = vsel %vm1573, %v3362, 0
      %v3396 = vsel %vm1574, %v3363, 0
      %v3397 = vsel %vm1575, %v3364, 0
      %v3398 = vsel %vm1576, %v3365, 0
      %v3399 = vsel %vm1577, %v3366, 0
      %v3400 = vsel %vm1578, %v3367, 0
      %v3401 = vsel %vm1579, %v3368, 0
      %v3402 = vsel %vm1580, %v3369, 0
      %v3403 = vsel %vm1581, %v3370, 0
      %v3404 = vsel %vm1582, %v3371, 0
      %v3405 = vsel %vm1583, %v3372, 0
      %v3406 = vsel %vm1584, %v3373, 0
      %v3407 = vsel %vm1585, %v3374, 0
      %v3408 = vsel %vm1586, %v3375, 0
      %s3409 = scalar_lea.vmem %s3, 12
      %v3410 = vld [vmem:[%s3409] sm:$0xf]
      %v3444 = vunpack.c.l.b16 %v3376
      %v3445 = vunpack.c.l.b16 %v3377
      %v3446 = vunpack.c.l.b16 %v3378
      %v3447 = vunpack.c.l.b16 %v3379
      %v3448 = vunpack.c.l.b16 %v3380
      %v3449 = vunpack.c.l.b16 %v3381
      %v3450 = vunpack.c.l.b16 %v3382
      %v3451 = vunpack.c.l.b16 %v3383
      %v3452 = vunpack.c.l.b16 %v3384
      %v3453 = vunpack.c.l.b16 %v3385
      %v3454 = vunpack.c.l.b16 %v3386
      %v3455 = vunpack.c.l.b16 %v3387
      %v3456 = vunpack.c.l.b16 %v3388
      %v3457 = vunpack.c.l.b16 %v3389
      %v3458 = vunpack.c.l.b16 %v3390
      %v3459 = vunpack.c.l.b16 %v3391
      %v3460 = vunpack.c.l.b16 %v3392
      %v3461 = vunpack.c.l.b16 %v3393
      %v3462 = vunpack.c.l.b16 %v3394
      %v3463 = vunpack.c.l.b16 %v3395
      %v3464 = vunpack.c.l.b16 %v3396
      %v3465 = vunpack.c.l.b16 %v3397
      %v3466 = vunpack.c.l.b16 %v3398
      %v3467 = vunpack.c.l.b16 %v3399
      %v3468 = vunpack.c.l.b16 %v3400
      %v3469 = vunpack.c.l.b16 %v3401
      %v3470 = vunpack.c.l.b16 %v3402
      %v3471 = vunpack.c.l.b16 %v3403
      %v3472 = vunpack.c.l.b16 %v3404
      %v3473 = vunpack.c.l.b16 %v3405
      %v3474 = vunpack.c.l.b16 %v3406
      %v3475 = vunpack.c.l.b16 %v3407
      %v3476 = vunpack.c.l.b16 %v3408
      %v3477 = vpack.c.b16 %v3445, %v3444
      %v3478 = vpack.c.b16 %v3447, %v3446
      %v3479 = vpack.c.b16 %v3449, %v3448
      %v3480 = vpack.c.b16 %v3451, %v3450
      %v3481 = vpack.c.b16 %v3453, %v3452
      %v3482 = vpack.c.b16 %v3455, %v3454
      %v3483 = vpack.c.b16 %v3457, %v3456
      %v3484 = vpack.c.b16 %v3459, %v3458
      %v3485 = vpack.c.b16 %v3461, %v3460
      %v3486 = vpack.c.b16 %v3463, %v3462
      %v3487 = vpack.c.b16 %v3465, %v3464
      %v3488 = vpack.c.b16 %v3467, %v3466
      %v3489 = vpack.c.b16 %v3469, %v3468
      %v3490 = vpack.c.b16 %v3471, %v3470
      %v3491 = vpack.c.b16 %v3473, %v3472
      %v3492 = vpack.c.b16 %v3475, %v3474
      %v3493 = vpack.c.b16 %v3476, %v3476
      %v3495 = vshrl.u32 %v3477, 16
      %v3497 = vrot.slane %v3495, 3
      %v3498 = vshll.u32 %v3477, 16
      %v3500 = vrot.slane %v3498, 4
      %v3501 = vor.u32 %v3497, %v3500
      %v3503 = vshrl.u32 %v3478, 16
      %v3505 = vrot.slane %v3503, 3
      %v3506 = vshll.u32 %v3478, 16
      %v3508 = vrot.slane %v3506, 4
      %v3509 = vor.u32 %v3505, %v3508
      %v3510 = vsel %vm2000, %v3501, %v3509
      %v3512 = vshrl.u32 %v3479, 16
      %v3514 = vrot.slane %v3512, 3
      %v3515 = vshll.u32 %v3479, 16
      %v3517 = vrot.slane %v3515, 4
      %v3518 = vor.u32 %v3514, %v3517
      %v3519 = vsel %vm2000, %v3509, %v3518
      %v3521 = vshrl.u32 %v3480, 16
      %v3523 = vrot.slane %v3521, 3
      %v3524 = vshll.u32 %v3480, 16
      %v3526 = vrot.slane %v3524, 4
      %v3527 = vor.u32 %v3523, %v3526
      %v3528 = vsel %vm2000, %v3518, %v3527
      %v3530 = vshrl.u32 %v3481, 16
      %v3532 = vrot.slane %v3530, 3
      %v3533 = vshll.u32 %v3481, 16
      %v3535 = vrot.slane %v3533, 4
      %v3536 = vor.u32 %v3532, %v3535
      %v3537 = vsel %vm2000, %v3527, %v3536
      %v3539 = vshrl.u32 %v3482, 16
      %v3541 = vrot.slane %v3539, 3
      %v3542 = vshll.u32 %v3482, 16
      %v3544 = vrot.slane %v3542, 4
      %v3545 = vor.u32 %v3541, %v3544
      %v3546 = vsel %vm2000, %v3536, %v3545
      %v3548 = vshrl.u32 %v3483, 16
      %v3550 = vrot.slane %v3548, 3
      %v3551 = vshll.u32 %v3483, 16
      %v3553 = vrot.slane %v3551, 4
      %v3554 = vor.u32 %v3550, %v3553
      %v3555 = vsel %vm2000, %v3545, %v3554
      %v3557 = vshrl.u32 %v3484, 16
      %v3559 = vrot.slane %v3557, 3
      %v3560 = vshll.u32 %v3484, 16
      %v3562 = vrot.slane %v3560, 4
      %v3563 = vor.u32 %v3559, %v3562
      %v3564 = vsel %vm2000, %v3554, %v3563
      %v3566 = vshrl.u32 %v3485, 16
      %v3568 = vrot.slane %v3566, 3
      %v3569 = vshll.u32 %v3485, 16
      %v3571 = vrot.slane %v3569, 4
      %v3572 = vor.u32 %v3568, %v3571
      %v3573 = vsel %vm2000, %v3563, %v3572
      %v3575 = vshrl.u32 %v3486, 16
      %v3577 = vrot.slane %v3575, 3
      %v3578 = vshll.u32 %v3486, 16
      %v3580 = vrot.slane %v3578, 4
      %v3581 = vor.u32 %v3577, %v3580
      %v3582 = vsel %vm2000, %v3572, %v3581
      %v3584 = vshrl.u32 %v3487, 16
      %v3586 = vrot.slane %v3584, 3
      %v3587 = vshll.u32 %v3487, 16
      %v3589 = vrot.slane %v3587, 4
      %v3590 = vor.u32 %v3586, %v3589
      %v3591 = vsel %vm2000, %v3581, %v3590
      %v3593 = vshrl.u32 %v3488, 16
      %v3595 = vrot.slane %v3593, 3
      %v3596 = vshll.u32 %v3488, 16
      %v3598 = vrot.slane %v3596, 4
      %v3599 = vor.u32 %v3595, %v3598
      %v3600 = vsel %vm2000, %v3590, %v3599
      %v3602 = vshrl.u32 %v3489, 16
      %v3604 = vrot.slane %v3602, 3
      %v3605 = vshll.u32 %v3489, 16
      %v3607 = vrot.slane %v3605, 4
      %v3608 = vor.u32 %v3604, %v3607
      %v3609 = vsel %vm2000, %v3599, %v3608
      %v3611 = vshrl.u32 %v3490, 16
      %v3613 = vrot.slane %v3611, 3
      %v3614 = vshll.u32 %v3490, 16
      %v3616 = vrot.slane %v3614, 4
      %v3617 = vor.u32 %v3613, %v3616
      %v3618 = vsel %vm2000, %v3608, %v3617
      %v3620 = vshrl.u32 %v3491, 16
      %v3622 = vrot.slane %v3620, 3
      %v3623 = vshll.u32 %v3491, 16
      %v3625 = vrot.slane %v3623, 4
      %v3626 = vor.u32 %v3622, %v3625
      %v3627 = vsel %vm2000, %v3617, %v3626
      %v3629 = vshrl.u32 %v3492, 16
      %v3631 = vrot.slane %v3629, 3
      %v3632 = vshll.u32 %v3492, 16
      %v3634 = vrot.slane %v3632, 4
      %v3635 = vor.u32 %v3631, %v3634
      %v3636 = vsel %vm2000, %v3626, %v3635
      %v3638 = vshrl.u32 %v3493, 16
      %v3640 = vrot.slane %v3638, 3
      %v3641 = vshll.u32 %v3493, 16
      %v3643 = vrot.slane %v3641, 4
      %v3644 = vor.u32 %v3640, %v3643
      %v3645 = vsel %vm2000, %v3635, %v3644
      %v3647 = vsel %vm1703, %v3510, 0
      %v3650 = vsel %vm1703, %v3519, 0
      %v3653 = vsel %vm1703, %v3528, 0
      %v3656 = vsel %vm1703, %v3537, 0
      %v3659 = vsel %vm1703, %v3546, 0
      %v3662 = vsel %vm1703, %v3555, 0
      %v3665 = vsel %vm1703, %v3564, 0
      %v3668 = vsel %vm1703, %v3573, 0
      %v3671 = vsel %vm1703, %v3582, 0
      %v3674 = vsel %vm1703, %v3591, 0
      %v3677 = vsel %vm1703, %v3600, 0
      %v3680 = vsel %vm1703, %v3609, 0
      %v3683 = vsel %vm1703, %v3618, 0
      %v3686 = vsel %vm1703, %v3627, 0
      %v3689 = vsel %vm1703, %v3636, 0
      %v3692 = vsel %vm1703, %v3645, 0
      %v3695 = vsel %vm1752, %v3410, 0
      %3697 = vmatprep.subr.bf16.mxu0 0
      %3698 = vmatpush1.bf16.msra.mxu0 %v3695
      %3699 = vmatprep.subr.bf16.mxu0 0
      %3700 = vmatpush1.bf16.msra.mxu0 0
      %3701 = vmatprep.subr.bf16.mxu0 0
      %3702 = vmatpush1.bf16.msra.mxu0 0
      %3703 = vmatprep.subr.bf16.mxu0 0
      %3704 = vmatpush1.bf16.msra.mxu0 0
      %3705 = vmatprep.subr.bf16.mxu0 0
      %3706 = vmatpush1.bf16.msra.mxu0 0
      %3707 = vmatprep.subr.bf16.mxu0 0
      %3708 = vmatpush1.bf16.msra.mxu0 0
      %3709 = vmatprep.subr.bf16.mxu0 0
      %3710 = vmatpush1.bf16.msra.mxu0 0
      %3711 = vmatprep.subr.bf16.mxu0 0
      %3712 = vmatpush1.bf16.msra.mxu0 0
      %3713 = vmatprep.subr.bf16.mxu0 0
      %3714 = vmatpush1.bf16.msra.mxu0 0
      %3715 = vmatprep.subr.bf16.mxu0 0
      %3716 = vmatpush1.bf16.msra.mxu0 0
      %3717 = vmatprep.subr.bf16.mxu0 0
      %3718 = vmatpush1.bf16.msra.mxu0 0
      %3719 = vmatprep.subr.bf16.mxu0 0
      %3720 = vmatpush1.bf16.msra.mxu0 0
      %3721 = vmatprep.subr.bf16.mxu0 0
      %3722 = vmatpush1.bf16.msra.mxu0 0
      %3723 = vmatprep.subr.bf16.mxu0 0
      %3724 = vmatpush1.bf16.msra.mxu0 0
      %3725 = vmatprep.subr.bf16.mxu0 0
      %3726 = vmatpush1.bf16.msra.mxu0 0
      %3727 = vmatprep.subr.bf16.mxu0 0
      %3728 = vmatpush1.bf16.msra.mxu0 0
      %3729 = vmatprep.mubr.bf16.mxu0 0
      %3730 = vmatmul.mubr.bf16.gmra.mrb[0].mxu0 %v3647
      %v3731 = vpop.f32.mrb[0].mxu0
      %v3732 = vadd.f32 0.0, %v3731
      %v3733 = vpop.f32.mrb[0].mxu0
      %v3734 = vpop.f32.mrb[0].mxu0
      %v3735 = vadd.f32 0.0, %v3734
      %v3736 = vpop.f32.mrb[0].mxu0
      %3737 = vmatprep.mubr.bf16.mxu0 0
      %3738 = vmatmul.mubr.bf16.gmra.mrb[0].mxu0 %v3650
      %v3739 = vpop.f32.mrb[0].mxu0
      %v3740 = vadd.f32 0.0, %v3739
      %v3741 = vpop.f32.mrb[0].mxu0
      %v3742 = vpop.f32.mrb[0].mxu0
      %v3743 = vadd.f32 0.0, %v3742
      %v3744 = vpop.f32.mrb[0].mxu0
      %3745 = vmatprep.mubr.bf16.mxu0 0
      %3746 = vmatmul.mubr.bf16.gmra.mrb[0].mxu0 %v3653
      %v3747 = vpop.f32.mrb[0].mxu0
      %v3748 = vadd.f32 0.0, %v3747
      %v3749 = vpop.f32.mrb[0].mxu0
      %v3750 = vpop.f32.mrb[0].mxu0
      %v3751 = vadd.f32 0.0, %v3750
      %v3752 = vpop.f32.mrb[0].mxu0
      %3753 = vmatprep.mubr.bf16.mxu0 0
      %3754 = vmatmul.mubr.bf16.gmra.mrb[0].mxu0 %v3656
      %v3755 = vpop.f32.mrb[0].mxu0
      %v3756 = vadd.f32 0.0, %v3755
      %v3757 = vpop.f32.mrb[0].mxu0
      %v3758 = vpop.f32.mrb[0].mxu0
      %v3759 = vadd.f32 0.0, %v3758
      %v3760 = vpop.f32.mrb[0].mxu0
      %3761 = vmatprep.mubr.bf16.mxu0 0
      %3762 = vmatmul.mubr.bf16.gmra.mrb[0].mxu0 %v3659
      %v3763 = vpop.f32.mrb[0].mxu0
      %v3764 = vadd.f32 0.0, %v3763
      %v3765 = vpop.f32.mrb[0].mxu0
      %v3766 = vpop.f32.mrb[0].mxu0
      %v3767 = vadd.f32 0.0, %v3766
      %v3768 = vpop.f32.mrb[0].mxu0
      %3769 = vmatprep.mubr.bf16.mxu0 0
      %3770 = vmatmul.mubr.bf16.gmra.mrb[0].mxu0 %v3662
      %v3771 = vpop.f32.mrb[0].mxu0
      %v3772 = vadd.f32 0.0, %v3771
      %v3773 = vpop.f32.mrb[0].mxu0
      %v3774 = vpop.f32.mrb[0].mxu0
      %v3775 = vadd.f32 0.0, %v3774
      %v3776 = vpop.f32.mrb[0].mxu0
      %3777 = vmatprep.mubr.bf16.mxu0 0
      %3778 = vmatmul.mubr.bf16.gmra.mrb[0].mxu0 %v3665
      %v3779 = vpop.f32.mrb[0].mxu0
      %v3780 = vadd.f32 0.0, %v3779
      %v3781 = vpop.f32.mrb[0].mxu0
      %v3782 = vpop.f32.mrb[0].mxu0
      %v3783 = vadd.f32 0.0, %v3782
      %v3784 = vpop.f32.mrb[0].mxu0
      %3785 = vmatprep.mubr.bf16.mxu0 0
      %3786 = vmatmul.mubr.bf16.gmra.mrb[0].mxu0 %v3668
      %v3787 = vpop.f32.mrb[0].mxu0
      %v3788 = vadd.f32 0.0, %v3787
      %v3789 = vpop.f32.mrb[0].mxu0
      %v3790 = vpop.f32.mrb[0].mxu0
      %v3791 = vadd.f32 0.0, %v3790
      %v3792 = vpop.f32.mrb[0].mxu0
      %3793 = vmatprep.mubr.bf16.mxu0 0
      %3794 = vmatmul.mubr.bf16.gmra.mrb[0].mxu0 %v3671
      %v3795 = vpop.f32.mrb[0].mxu0
      %v3796 = vadd.f32 0.0, %v3795
      %v3797 = vpop.f32.mrb[0].mxu0
      %v3798 = vpop.f32.mrb[0].mxu0
      %v3799 = vadd.f32 0.0, %v3798
      %v3800 = vpop.f32.mrb[0].mxu0
      %3801 = vmatprep.mubr.bf16.mxu0 0
      %3802 = vmatmul.mubr.bf16.gmra.mrb[0].mxu0 %v3674
      %v3803 = vpop.f32.mrb[0].mxu0
      %v3804 = vadd.f32 0.0, %v3803
      %v3805 = vpop.f32.mrb[0].mxu0
      %v3806 = vpop.f32.mrb[0].mxu0
      %v3807 = vadd.f32 0.0, %v3806
      %v3808 = vpop.f32.mrb[0].mxu0
      %3809 = vmatprep.mubr.bf16.mxu0 0
      %3810 = vmatmul.mubr.bf16.gmra.mrb[0].mxu0 %v3677
      %v3811 = vpop.f32.mrb[0].mxu0
      %v3812 = vadd.f32 0.0, %v3811
      %v3813 = vpop.f32.mrb[0].mxu0
      %v3814 = vpop.f32.mrb[0].mxu0
      %v3815 = vadd.f32 0.0, %v3814
      %v3816 = vpop.f32.mrb[0].mxu0
      %3817 = vmatprep.mubr.bf16.mxu0 0
      %3818 = vmatmul.mubr.bf16.gmra.mrb[0].mxu0 %v3680
      %v3819 = vpop.f32.mrb[0].mxu0
      %v3820 = vadd.f32 0.0, %v3819
      %v3821 = vpop.f32.mrb[0].mxu0
      %v3822 = vpop.f32.mrb[0].mxu0
      %v3823 = vadd.f32 0.0, %v3822
      %v3824 = vpop.f32.mrb[0].mxu0
      %3825 = vmatprep.mubr.bf16.mxu0 0
      %3826 = vmatmul.mubr.bf16.gmra.mrb[0].mxu0 %v3683
      %v3827 = vpop.f32.mrb[0].mxu0
      %v3828 = vadd.f32 0.0, %v3827
      %v3829 = vpop.f32.mrb[0].mxu0
      %v3830 = vpop.f32.mrb[0].mxu0
      %v3831 = vadd.f32 0.0, %v3830
      %v3832 = vpop.f32.mrb[0].mxu0
      %3833 = vmatprep.mubr.bf16.mxu0 0
      %3834 = vmatmul.mubr.bf16.gmra.mrb[0].mxu0 %v3686
      %v3835 = vpop.f32.mrb[0].mxu0
      %v3836 = vadd.f32 0.0, %v3835
      %v3837 = vpop.f32.mrb[0].mxu0
      %v3838 = vpop.f32.mrb[0].mxu0
      %v3839 = vadd.f32 0.0, %v3838
      %v3840 = vpop.f32.mrb[0].mxu0
      %3841 = vmatprep.mubr.bf16.mxu0 0
      %3842 = vmatmul.mubr.bf16.gmra.mrb[0].mxu0 %v3689
      %v3843 = vpop.f32.mrb[0].mxu0
      %v3844 = vadd.f32 0.0, %v3843
      %v3845 = vpop.f32.mrb[0].mxu0
      %v3846 = vpop.f32.mrb[0].mxu0
      %v3847 = vadd.f32 0.0, %v3846
      %v3848 = vpop.f32.mrb[0].mxu0
      %3849 = vmatprep.mubr.bf16.mxu0 0
      %3850 = vmatmul.mubr.bf16.gmra.mrb[0].mxu0 %v3692
      %v3851 = vpop.f32.mrb[0].mxu0
      %v3852 = vadd.f32 0.0, %v3851
      %v3853 = vpop.f32.mrb[0].mxu0
      %v3854 = vpop.f32.mrb[0].mxu0
      %v3855 = vadd.f32 0.0, %v3854
      %v3856 = vpop.f32.mrb[0].mxu0
      %3857 = vdwg.mxu0
      %v3858 = vadd.f32 %v3311, %v3732
      %v3859 = vadd.f32 %v3312, %v3735
      %v3860 = vadd.f32 %v3313, %v3740
      %v3861 = vadd.f32 %v3314, %v3743
      %v3862 = vadd.f32 %v3315, %v3748
      %v3863 = vadd.f32 %v3316, %v3751
      %v3864 = vadd.f32 %v3317, %v3756
      %v3865 = vadd.f32 %v3318, %v3759
      %v3866 = vadd.f32 %v3319, %v3764
      %v3867 = vadd.f32 %v3320, %v3767
      %v3868 = vadd.f32 %v3321, %v3772
      %v3869 = vadd.f32 %v3322, %v3775
      %v3870 = vadd.f32 %v3323, %v3780
      %v3871 = vadd.f32 %v3324, %v3783
      %v3872 = vadd.f32 %v3325, %v3788
      %v3873 = vadd.f32 %v3326, %v3791
      %v3874 = vadd.f32 %v3327, %v3796
      %v3875 = vadd.f32 %v3328, %v3799
      %v3876 = vadd.f32 %v3329, %v3804
      %v3877 = vadd.f32 %v3330, %v3807
      %v3878 = vadd.f32 %v3331, %v3812
      %v3879 = vadd.f32 %v3332, %v3815
      %v3880 = vadd.f32 %v3333, %v3820
      %v3881 = vadd.f32 %v3334, %v3823
      %v3882 = vadd.f32 %v3335, %v3828
      %v3883 = vadd.f32 %v3336, %v3831
      %v3884 = vadd.f32 %v3337, %v3836
      %v3885 = vadd.f32 %v3338, %v3839
      %v3886 = vadd.f32 %v3339, %v3844
      %v3887 = vadd.f32 %v3340, %v3847
      %v3888 = vadd.f32 %v3341, %v3852
      %v3889 = vadd.f32 %v3342, %v3855
      %s3890 = scalar_lea.vmem %s3, 16
      %v3891 = vld [vmem:[%s3890] sm:$0xf]
      %v3924 = vunpack.c.l.b16 %v3344
      %v3925 = vunpack.c.l.b16 %v3345
      %v3926 = vunpack.c.l.b16 %v3346
      %v3927 = vunpack.c.l.b16 %v3347
      %v3928 = vunpack.c.l.b16 %v3348
      %v3929 = vunpack.c.l.b16 %v3349
      %v3930 = vunpack.c.l.b16 %v3350
      %v3931 = vunpack.c.l.b16 %v3351
      %v3932 = vunpack.c.l.b16 %v3352
      %v3933 = vunpack.c.l.b16 %v3353
      %v3934 = vunpack.c.l.b16 %v3354
      %v3935 = vunpack.c.l.b16 %v3355
      %v3936 = vunpack.c.l.b16 %v3356
      %v3937 = vunpack.c.l.b16 %v3357
      %v3938 = vunpack.c.l.b16 %v3358
      %v3939 = vunpack.c.l.b16 %v3359
      %v3940 = vunpack.c.l.b16 %v3360
      %v3941 = vunpack.c.l.b16 %v3361
      %v3942 = vunpack.c.l.b16 %v3362
      %v3943 = vunpack.c.l.b16 %v3363
      %v3944 = vunpack.c.l.b16 %v3364
      %v3945 = vunpack.c.l.b16 %v3365
      %v3946 = vunpack.c.l.b16 %v3366
      %v3947 = vunpack.c.l.b16 %v3367
      %v3948 = vunpack.c.l.b16 %v3368
      %v3949 = vunpack.c.l.b16 %v3369
      %v3950 = vunpack.c.l.b16 %v3370
      %v3951 = vunpack.c.l.b16 %v3371
      %v3952 = vunpack.c.l.b16 %v3372
      %v3953 = vunpack.c.l.b16 %v3373
      %v3954 = vunpack.c.l.b16 %v3374
      %v3955 = vunpack.c.l.b16 %v3375
      %v3956 = vpack.c.b16 %v3925, %v3924
      %v3957 = vpack.c.b16 %v3927, %v3926
      %v3958 = vpack.c.b16 %v3929, %v3928
      %v3959 = vpack.c.b16 %v3931, %v3930
      %v3960 = vpack.c.b16 %v3933, %v3932
      %v3961 = vpack.c.b16 %v3935, %v3934
      %v3962 = vpack.c.b16 %v3937, %v3936
      %v3963 = vpack.c.b16 %v3939, %v3938
      %v3964 = vpack.c.b16 %v3941, %v3940
      %v3965 = vpack.c.b16 %v3943, %v3942
      %v3966 = vpack.c.b16 %v3945, %v3944
      %v3967 = vpack.c.b16 %v3947, %v3946
      %v3968 = vpack.c.b16 %v3949, %v3948
      %v3969 = vpack.c.b16 %v3951, %v3950
      %v3970 = vpack.c.b16 %v3953, %v3952
      %v3971 = vpack.c.b16 %v3955, %v3954
      %v3973 = vsel %vm1703, %v3956, 0
      %v3976 = vsel %vm1703, %v3957, 0
      %v3979 = vsel %vm1703, %v3958, 0
      %v3982 = vsel %vm1703, %v3959, 0
      %v3985 = vsel %vm1703, %v3960, 0
      %v3988 = vsel %vm1703, %v3961, 0
      %v3991 = vsel %vm1703, %v3962, 0
      %v3994 = vsel %vm1703, %v3963, 0
      %v3997 = vsel %vm1703, %v3964, 0
      %v4000 = vsel %vm1703, %v3965, 0
      %v4003 = vsel %vm1703, %v3966, 0
      %v4006 = vsel %vm1703, %v3967, 0
      %v4009 = vsel %vm1703, %v3968, 0
      %v4012 = vsel %vm1703, %v3969, 0
      %v4015 = vsel %vm1703, %v3970, 0
      %v4018 = vsel %vm1703, %v3971, 0
      %v4021 = vsel %vm1752, %v3891, 0
      %4023 = vmatprep.subr.bf16.mxu0 0
      %4024 = vmatpush1.bf16.msra.mxu0 %v4021
      %4025 = vmatprep.subr.bf16.mxu0 0
      %4026 = vmatpush1.bf16.msra.mxu0 0
      %4027 = vmatprep.subr.bf16.mxu0 0
      %4028 = vmatpush1.bf16.msra.mxu0 0
      %4029 = vmatprep.subr.bf16.mxu0 0
      %4030 = vmatpush1.bf16.msra.mxu0 0
      %4031 = vmatprep.subr.bf16.mxu0 0
      %4032 = vmatpush1.bf16.msra.mxu0 0
      %4033 = vmatprep.subr.bf16.mxu0 0
      %4034 = vmatpush1.bf16.msra.mxu0 0
      %4035 = vmatprep.subr.bf16.mxu0 0
      %4036 = vmatpush1.bf16.msra.mxu0 0
      %4037 = vmatprep.subr.bf16.mxu0 0
      %4038 = vmatpush1.bf16.msra.mxu0 0
      %4039 = vmatprep.subr.bf16.mxu0 0
      %4040 = vmatpush1.bf16.msra.mxu0 0
      %4041 = vmatprep.subr.bf16.mxu0 0
      %4042 = vmatpush1.bf16.msra.mxu0 0
      %4043 = vmatprep.subr.bf16.mxu0 0
      %4044 = vmatpush1.bf16.msra.mxu0 0
      %4045 = vmatprep.subr.bf16.mxu0 0
      %4046 = vmatpush1.bf16.msra.mxu0 0
      %4047 = vmatprep.subr.bf16.mxu0 0
      %4048 = vmatpush1.bf16.msra.mxu0 0
      %4049 = vmatprep.subr.bf16.mxu0 0
      %4050 = vmatpush1.bf16.msra.mxu0 0
      %4051 = vmatprep.subr.bf16.mxu0 0
      %4052 = vmatpush1.bf16.msra.mxu0 0
      %4053 = vmatprep.subr.bf16.mxu0 0
      %4054 = vmatpush1.bf16.msra.mxu0 0
      %4055 = vmatprep.mubr.bf16.mxu0 0
      %4056 = vmatmul.mubr.bf16.gmra.mrb[0].mxu0 %v3973
      %v4057 = vpop.f32.mrb[0].mxu0
      %v4058 = vadd.f32 0.0, %v4057
      %v4059 = vpop.f32.mrb[0].mxu0
      %v4060 = vpop.f32.mrb[0].mxu0
      %v4061 = vadd.f32 0.0, %v4060
      %v4062 = vpop.f32.mrb[0].mxu0
      %4063 = vmatprep.mubr.bf16.mxu0 0
      %4064 = vmatmul.mubr.bf16.gmra.mrb[0].mxu0 %v3976
      %v4065 = vpop.f32.mrb[0].mxu0
      %v4066 = vadd.f32 0.0, %v4065
      %v4067 = vpop.f32.mrb[0].mxu0
      %v4068 = vpop.f32.mrb[0].mxu0
      %v4069 = vadd.f32 0.0, %v4068
      %v4070 = vpop.f32.mrb[0].mxu0
      %4071 = vmatprep.mubr.bf16.mxu0 0
      %4072 = vmatmul.mubr.bf16.gmra.mrb[0].mxu0 %v3979
      %v4073 = vpop.f32.mrb[0].mxu0
      %v4074 = vadd.f32 0.0, %v4073
      %v4075 = vpop.f32.mrb[0].mxu0
      %v4076 = vpop.f32.mrb[0].mxu0
      %v4077 = vadd.f32 0.0, %v4076
      %v4078 = vpop.f32.mrb[0].mxu0
      %4079 = vmatprep.mubr.bf16.mxu0 0
      %4080 = vmatmul.mubr.bf16.gmra.mrb[0].mxu0 %v3982
      %v4081 = vpop.f32.mrb[0].mxu0
      %v4082 = vadd.f32 0.0, %v4081
      %v4083 = vpop.f32.mrb[0].mxu0
      %v4084 = vpop.f32.mrb[0].mxu0
      %v4085 = vadd.f32 0.0, %v4084
      %v4086 = vpop.f32.mrb[0].mxu0
      %4087 = vmatprep.mubr.bf16.mxu0 0
      %4088 = vmatmul.mubr.bf16.gmra.mrb[0].mxu0 %v3985
      %v4089 = vpop.f32.mrb[0].mxu0
      %v4090 = vadd.f32 0.0, %v4089
      %v4091 = vpop.f32.mrb[0].mxu0
      %v4092 = vpop.f32.mrb[0].mxu0
      %v4093 = vadd.f32 0.0, %v4092
      %v4094 = vpop.f32.mrb[0].mxu0
      %4095 = vmatprep.mubr.bf16.mxu0 0
      %4096 = vmatmul.mubr.bf16.gmra.mrb[0].mxu0 %v3988
      %v4097 = vpop.f32.mrb[0].mxu0
      %v4098 = vadd.f32 0.0, %v4097
      %v4099 = vpop.f32.mrb[0].mxu0
      %v4100 = vpop.f32.mrb[0].mxu0
      %v4101 = vadd.f32 0.0, %v4100
      %v4102 = vpop.f32.mrb[0].mxu0
      %4103 = vmatprep.mubr.bf16.mxu0 0
      %4104 = vmatmul.mubr.bf16.gmra.mrb[0].mxu0 %v3991
      %v4105 = vpop.f32.mrb[0].mxu0
      %v4106 = vadd.f32 0.0, %v4105
      %v4107 = vpop.f32.mrb[0].mxu0
      %v4108 = vpop.f32.mrb[0].mxu0
      %v4109 = vadd.f32 0.0, %v4108
      %v4110 = vpop.f32.mrb[0].mxu0
      %4111 = vmatprep.mubr.bf16.mxu0 0
      %4112 = vmatmul.mubr.bf16.gmra.mrb[0].mxu0 %v3994
      %v4113 = vpop.f32.mrb[0].mxu0
      %v4114 = vadd.f32 0.0, %v4113
      %v4115 = vpop.f32.mrb[0].mxu0
      %v4116 = vpop.f32.mrb[0].mxu0
      %v4117 = vadd.f32 0.0, %v4116
      %v4118 = vpop.f32.mrb[0].mxu0
      %4119 = vmatprep.mubr.bf16.mxu0 0
      %4120 = vmatmul.mubr.bf16.gmra.mrb[0].mxu0 %v3997
      %v4121 = vpop.f32.mrb[0].mxu0
      %v4122 = vadd.f32 0.0, %v4121
      %v4123 = vpop.f32.mrb[0].mxu0
      %v4124 = vpop.f32.mrb[0].mxu0
      %v4125 = vadd.f32 0.0, %v4124
      %v4126 = vpop.f32.mrb[0].mxu0
      %4127 = vmatprep.mubr.bf16.mxu0 0
      %4128 = vmatmul.mubr.bf16.gmra.mrb[0].mxu0 %v4000
      %v4129 = vpop.f32.mrb[0].mxu0
      %v4130 = vadd.f32 0.0, %v4129
      %v4131 = vpop.f32.mrb[0].mxu0
      %v4132 = vpop.f32.mrb[0].mxu0
      %v4133 = vadd.f32 0.0, %v4132
      %v4134 = vpop.f32.mrb[0].mxu0
      %4135 = vmatprep.mubr.bf16.mxu0 0
      %4136 = vmatmul.mubr.bf16.gmra.mrb[0].mxu0 %v4003
      %v4137 = vpop.f32.mrb[0].mxu0
      %v4138 = vadd.f32 0.0, %v4137
      %v4139 = vpop.f32.mrb[0].mxu0
      %v4140 = vpop.f32.mrb[0].mxu0
      %v4141 = vadd.f32 0.0, %v4140
      %v4142 = vpop.f32.mrb[0].mxu0
      %4143 = vmatprep.mubr.bf16.mxu0 0
      %4144 = vmatmul.mubr.bf16.gmra.mrb[0].mxu0 %v4006
      %v4145 = vpop.f32.mrb[0].mxu0
      %v4146 = vadd.f32 0.0, %v4145
      %v4147 = vpop.f32.mrb[0].mxu0
      %v4148 = vpop.f32.mrb[0].mxu0
      %v4149 = vadd.f32 0.0, %v4148
      %v4150 = vpop.f32.mrb[0].mxu0
      %4151 = vmatprep.mubr.bf16.mxu0 0
      %4152 = vmatmul.mubr.bf16.gmra.mrb[0].mxu0 %v4009
      %v4153 = vpop.f32.mrb[0].mxu0
      %v4154 = vadd.f32 0.0, %v4153
      %v4155 = vpop.f32.mrb[0].mxu0
      %v4156 = vpop.f32.mrb[0].mxu0
      %v4157 = vadd.f32 0.0, %v4156
      %v4158 = vpop.f32.mrb[0].mxu0
      %4159 = vmatprep.mubr.bf16.mxu0 0
      %4160 = vmatmul.mubr.bf16.gmra.mrb[0].mxu0 %v4012
      %v4161 = vpop.f32.mrb[0].mxu0
      %v4162 = vadd.f32 0.0, %v4161
      %v4163 = vpop.f32.mrb[0].mxu0
      %v4164 = vpop.f32.mrb[0].mxu0
      %v4165 = vadd.f32 0.0, %v4164
      %v4166 = vpop.f32.mrb[0].mxu0
      %4167 = vmatprep.mubr.bf16.mxu0 0
      %4168 = vmatmul.mubr.bf16.gmra.mrb[0].mxu0 %v4015
      %v4169 = vpop.f32.mrb[0].mxu0
      %v4170 = vadd.f32 0.0, %v4169
      %v4171 = vpop.f32.mrb[0].mxu0
      %v4172 = vpop.f32.mrb[0].mxu0
      %v4173 = vadd.f32 0.0, %v4172
      %v4174 = vpop.f32.mrb[0].mxu0
      %4175 = vmatprep.mubr.bf16.mxu0 0
      %4176 = vmatmul.mubr.bf16.gmra.mrb[0].mxu0 %v4018
      %v4177 = vpop.f32.mrb[0].mxu0
      %v4178 = vadd.f32 0.0, %v4177
      %v4179 = vpop.f32.mrb[0].mxu0
      %v4180 = vpop.f32.mrb[0].mxu0
      %v4181 = vadd.f32 0.0, %v4180
      %v4182 = vpop.f32.mrb[0].mxu0
      %4183 = vdwg.mxu0
      %v4184 = vadd.f32 %v3858, %v4058
      %v4185 = vadd.f32 %v3859, %v4061
      %v4186 = vadd.f32 %v3860, %v4066
      %v4187 = vadd.f32 %v3861, %v4069
      %v4188 = vadd.f32 %v3862, %v4074
      %v4189 = vadd.f32 %v3863, %v4077
      %v4190 = vadd.f32 %v3864, %v4082
      %v4191 = vadd.f32 %v3865, %v4085
      %v4192 = vadd.f32 %v3866, %v4090
      %v4193 = vadd.f32 %v3867, %v4093
      %v4194 = vadd.f32 %v3868, %v4098
      %v4195 = vadd.f32 %v3869, %v4101
      %v4196 = vadd.f32 %v3870, %v4106
      %v4197 = vadd.f32 %v3871, %v4109
      %v4198 = vadd.f32 %v3872, %v4114
      %v4199 = vadd.f32 %v3873, %v4117
      %v4200 = vadd.f32 %v3874, %v4122
      %v4201 = vadd.f32 %v3875, %v4125
      %v4202 = vadd.f32 %v3876, %v4130
      %v4203 = vadd.f32 %v3877, %v4133
      %v4204 = vadd.f32 %v3878, %v4138
      %v4205 = vadd.f32 %v3879, %v4141
      %v4206 = vadd.f32 %v3880, %v4146
      %v4207 = vadd.f32 %v3881, %v4149
      %v4208 = vadd.f32 %v3882, %v4154
      %v4209 = vadd.f32 %v3883, %v4157
      %v4210 = vadd.f32 %v3884, %v4162
      %v4211 = vadd.f32 %v3885, %v4165
      %v4212 = vadd.f32 %v3886, %v4170
      %v4213 = vadd.f32 %v3887, %v4173
      %v4214 = vadd.f32 %v3888, %v4178
      %v4215 = vadd.f32 %v3889, %v4181
      %v4216 = vld [vmem:[#allocation2 + $0x10] sm:$0xf]
      %v4217 = vld [vmem:[#allocation2 + $0x14] sm:$0xf]
      %v4218 = vld [vmem:[#allocation2 + $0x18] sm:$0xf]
      %v4219 = vld [vmem:[#allocation2 + $0x1c] sm:$0xf]
      %v4220 = vld [vmem:[#allocation2 + $0x20] sm:$0xf]
      %v4221 = vld [vmem:[#allocation2 + $0x24] sm:$0xf]
      %v4222 = vld [vmem:[#allocation2 + $0x28] sm:$0xf]
      %v4223 = vld [vmem:[#allocation2 + $0x2c] sm:$0xf]
      %v4224 = vld [vmem:[#allocation2 + $0x30] sm:$0xf]
      %v4225 = vld [vmem:[#allocation2 + $0x34] sm:$0xf]
      %v4226 = vld [vmem:[#allocation2 + $0x38] sm:$0xf]
      %v4227 = vld [vmem:[#allocation2 + $0x3c] sm:$0xf]
      %v4228 = vld [vmem:[#allocation2 + $0x40] sm:$0xf]
      %v4229 = vld [vmem:[#allocation2 + $0x44] sm:$0xf]
      %v4230 = vld [vmem:[#allocation2 + $0x48] sm:$0xf]
      %v4231 = vld [vmem:[#allocation2 + $0x4c] sm:$0xf]
      %v4232 = vld [vmem:[#allocation2 + $0x50] sm:$0xf]
      %v4233 = vld [vmem:[#allocation2 + $0x54] sm:$0xf]
      %v4234 = vld [vmem:[#allocation2 + $0x58] sm:$0xf]
      %v4235 = vld [vmem:[#allocation2 + $0x5c] sm:$0xf]
      %v4236 = vld [vmem:[#allocation2 + $0x60] sm:$0xf]
      %v4237 = vld [vmem:[#allocation2 + $0x64] sm:$0xf]
      %v4238 = vld [vmem:[#allocation2 + $0x68] sm:$0xf]
      %v4239 = vld [vmem:[#allocation2 + $0x6c] sm:$0xf]
      %v4240 = vld [vmem:[#allocation2 + $0x70] sm:$0xf]
      %v4241 = vld [vmem:[#allocation2 + $0x74] sm:$0xf]
      %v4242 = vld [vmem:[#allocation2 + $0x78] sm:$0xf]
      %v4243 = vld [vmem:[#allocation2 + $0x7c] sm:$0xf]
      %v4244 = vld [vmem:[#allocation2 + $0x80] sm:$0xf]
      %v4245 = vld [vmem:[#allocation2 + $0x84] sm:$0xf]
      %v4246 = vld [vmem:[#allocation2 + $0x88] sm:$0xf]
      %v4247 = vld [vmem:[#allocation2 + $0x8c] sm:$0xf]
      %v4248 = vld [vmem:[#allocation2 + $0x90] sm:$0x1]
      %v4249 = vsel %vm2815, %v4216, 0
      %v4250 = vsel %vm2816, %v4217, 0
      %v4251 = vsel %vm2817, %v4218, 0
      %v4252 = vsel %vm2818, %v4219, 0
      %v4253 = vsel %vm2819, %v4220, 0
      %v4254 = vsel %vm2820, %v4221, 0
      %v4255 = vsel %vm2821, %v4222, 0
      %v4256 = vsel %vm2822, %v4223, 0
      %v4257 = vsel %vm2823, %v4224, 0
      %v4258 = vsel %vm2824, %v4225, 0
      %v4259 = vsel %vm2825, %v4226, 0
      %v4260 = vsel %vm2826, %v4227, 0
      %v4261 = vsel %vm2827, %v4228, 0
      %v4262 = vsel %vm2828, %v4229, 0
      %v4263 = vsel %vm2829, %v4230, 0
      %v4264 = vsel %vm2830, %v4231, 0
      %v4265 = vsel %vm2831, %v4232, 0
      %v4266 = vsel %vm2832, %v4233, 0
      %v4267 = vsel %vm2833, %v4234, 0
      %v4268 = vsel %vm2834, %v4235, 0
      %v4269 = vsel %vm2835, %v4236, 0
      %v4270 = vsel %vm2836, %v4237, 0
      %v4271 = vsel %vm2837, %v4238, 0
      %v4272 = vsel %vm2838, %v4239, 0
      %v4273 = vsel %vm2839, %v4240, 0
      %v4274 = vsel %vm2840, %v4241, 0
      %v4275 = vsel %vm2841, %v4242, 0
      %v4276 = vsel %vm2842, %v4243, 0
      %v4277 = vsel %vm2843, %v4244, 0
      %v4278 = vsel %vm2844, %v4245, 0
      %v4279 = vsel %vm2845, %v4246, 0
      %v4280 = vsel %vm2846, %v4247, 0
      %v4281 = vsel %vm2847, %v4248, 0
      %s4282 = scalar_lea.vmem %s3, 20
      %v4283 = vld [vmem:[%s4282] sm:$0xf]
      %v4317 = vunpack.c.l.b16 %v4249
      %v4318 = vunpack.c.l.b16 %v4250
      %v4319 = vunpack.c.l.b16 %v4251
      %v4320 = vunpack.c.l.b16 %v4252
      %v4321 = vunpack.c.l.b16 %v4253
      %v4322 = vunpack.c.l.b16 %v4254
      %v4323 = vunpack.c.l.b16 %v4255
      %v4324 = vunpack.c.l.b16 %v4256
      %v4325 = vunpack.c.l.b16 %v4257
      %v4326 = vunpack.c.l.b16 %v4258
      %v4327 = vunpack.c.l.b16 %v4259
      %v4328 = vunpack.c.l.b16 %v4260
      %v4329 = vunpack.c.l.b16 %v4261
      %v4330 = vunpack.c.l.b16 %v4262
      %v4331 = vunpack.c.l.b16 %v4263
      %v4332 = vunpack.c.l.b16 %v4264
      %v4333 = vunpack.c.l.b16 %v4265
      %v4334 = vunpack.c.l.b16 %v4266
      %v4335 = vunpack.c.l.b16 %v4267
      %v4336 = vunpack.c.l.b16 %v4268
      %v4337 = vunpack.c.l.b16 %v4269
      %v4338 = vunpack.c.l.b16 %v4270
      %v4339 = vunpack.c.l.b16 %v4271
      %v4340 = vunpack.c.l.b16 %v4272
      %v4341 = vunpack.c.l.b16 %v4273
      %v4342 = vunpack.c.l.b16 %v4274
      %v4343 = vunpack.c.l.b16 %v4275
      %v4344 = vunpack.c.l.b16 %v4276
      %v4345 = vunpack.c.l.b16 %v4277
      %v4346 = vunpack.c.l.b16 %v4278
      %v4347 = vunpack.c.l.b16 %v4279
      %v4348 = vunpack.c.l.b16 %v4280
      %v4349 = vunpack.c.l.b16 %v4281
      %v4350 = vpack.c.b16 %v4318, %v4317
      %v4351 = vpack.c.b16 %v4320, %v4319
      %v4352 = vpack.c.b16 %v4322, %v4321
      %v4353 = vpack.c.b16 %v4324, %v4323
      %v4354 = vpack.c.b16 %v4326, %v4325
      %v4355 = vpack.c.b16 %v4328, %v4327
      %v4356 = vpack.c.b16 %v4330, %v4329
      %v4357 = vpack.c.b16 %v4332, %v4331
      %v4358 = vpack.c.b16 %v4334, %v4333
      %v4359 = vpack.c.b16 %v4336, %v4335
      %v4360 = vpack.c.b16 %v4338, %v4337
      %v4361 = vpack.c.b16 %v4340, %v4339
      %v4362 = vpack.c.b16 %v4342, %v4341
      %v4363 = vpack.c.b16 %v4344, %v4343
      %v4364 = vpack.c.b16 %v4346, %v4345
      %v4365 = vpack.c.b16 %v4348, %v4347
      %v4366 = vpack.c.b16 %v4349, %v4349
      %v4368 = vshrl.u32 %v4350, 16
      %v4370 = vshll.u32 %v4350, 16
      %v4372 = vrot.slane %v4370, 1
      %v4373 = vor.u32 %v4368, %v4372
      %v4375 = vshll.u32 %v4351, 16
      %v4377 = vrot.slane %v4375, 1
      %v4378 = vsel %vm2966, %v4373, %v4377
      %v4379 = vshrl.u32 %v4351, 16
      %v4381 = vor.u32 %v4379, %v4377
      %v4383 = vshll.u32 %v4352, 16
      %v4385 = vrot.slane %v4383, 1
      %v4386 = vsel %vm2966, %v4381, %v4385
      %v4387 = vshrl.u32 %v4352, 16
      %v4389 = vor.u32 %v4387, %v4385
      %v4391 = vshll.u32 %v4353, 16
      %v4393 = vrot.slane %v4391, 1
      %v4394 = vsel %vm2966, %v4389, %v4393
      %v4395 = vshrl.u32 %v4353, 16
      %v4397 = vor.u32 %v4395, %v4393
      %v4399 = vshll.u32 %v4354, 16
      %v4401 = vrot.slane %v4399, 1
      %v4402 = vsel %vm2966, %v4397, %v4401
      %v4403 = vshrl.u32 %v4354, 16
      %v4405 = vor.u32 %v4403, %v4401
      %v4407 = vshll.u32 %v4355, 16
      %v4409 = vrot.slane %v4407, 1
      %v4410 = vsel %vm2966, %v4405, %v4409
      %v4411 = vshrl.u32 %v4355, 16
      %v4413 = vor.u32 %v4411, %v4409
      %v4415 = vshll.u32 %v4356, 16
      %v4417 = vrot.slane %v4415, 1
      %v4418 = vsel %vm2966, %v4413, %v4417
      %v4419 = vshrl.u32 %v4356, 16
      %v4421 = vor.u32 %v4419, %v4417
      %v4423 = vshll.u32 %v4357, 16
      %v4425 = vrot.slane %v4423, 1
      %v4426 = vsel %vm2966, %v4421, %v4425
      %v4427 = vshrl.u32 %v4357, 16
      %v4429 = vor.u32 %v4427, %v4425
      %v4431 = vshll.u32 %v4358, 16
      %v4433 = vrot.slane %v4431, 1
      %v4434 = vsel %vm2966, %v4429, %v4433
      %v4435 = vshrl.u32 %v4358, 16
      %v4437 = vor.u32 %v4435, %v4433
      %v4439 = vshll.u32 %v4359, 16
      %v4441 = vrot.slane %v4439, 1
      %v4442 = vsel %vm2966, %v4437, %v4441
      %v4443 = vshrl.u32 %v4359, 16
      %v4445 = vor.u32 %v4443, %v4441
      %v4447 = vshll.u32 %v4360, 16
      %v4449 = vrot.slane %v4447, 1
      %v4450 = vsel %vm2966, %v4445, %v4449
      %v4451 = vshrl.u32 %v4360, 16
      %v4453 = vor.u32 %v4451, %v4449
      %v4455 = vshll.u32 %v4361, 16
      %v4457 = vrot.slane %v4455, 1
      %v4458 = vsel %vm2966, %v4453, %v4457
      %v4459 = vshrl.u32 %v4361, 16
      %v4461 = vor.u32 %v4459, %v4457
      %v4463 = vshll.u32 %v4362, 16
      %v4465 = vrot.slane %v4463, 1
      %v4466 = vsel %vm2966, %v4461, %v4465
      %v4467 = vshrl.u32 %v4362, 16
      %v4469 = vor.u32 %v4467, %v4465
      %v4471 = vshll.u32 %v4363, 16
      %v4473 = vrot.slane %v4471, 1
      %v4474 = vsel %vm2966, %v4469, %v4473
      %v4475 = vshrl.u32 %v4363, 16
      %v4477 = vor.u32 %v4475, %v4473
      %v4479 = vshll.u32 %v4364, 16
      %v4481 = vrot.slane %v4479, 1
      %v4482 = vsel %vm2966, %v4477, %v4481
      %v4483 = vshrl.u32 %v4364, 16
      %v4485 = vor.u32 %v4483, %v4481
      %v4487 = vshll.u32 %v4365, 16
      %v4489 = vrot.slane %v4487, 1
      %v4490 = vsel %vm2966, %v4485, %v4489
      %v4491 = vshrl.u32 %v4365, 16
      %v4493 = vor.u32 %v4491, %v4489
      %v4495 = vshll.u32 %v4366, 16
      %v4497 = vrot.slane %v4495, 1
      %v4498 = vsel %vm2966, %v4493, %v4497
      %v4500 = vsel %vm1703, %v4378, 0
      %v4503 = vsel %vm1703, %v4386, 0
      %v4506 = vsel %vm1703, %v4394, 0
      %v4509 = vsel %vm1703, %v4402, 0
      %v4512 = vsel %vm1703, %v4410, 0
      %v4515 = vsel %vm1703, %v4418, 0
      %v4518 = vsel %vm1703, %v4426, 0
      %v4521 = vsel %vm1703, %v4434, 0
      %v4524 = vsel %vm1703, %v4442, 0
      %v4527 = vsel %vm1703, %v4450, 0
      %v4530 = vsel %vm1703, %v4458, 0
      %v4533 = vsel %vm1703, %v4466, 0
      %v4536 = vsel %vm1703, %v4474, 0
      %v4539 = vsel %vm1703, %v4482, 0
      %v4542 = vsel %vm1703, %v4490, 0
      %v4545 = vsel %vm1703, %v4498, 0
      %v4548 = vsel %vm1752, %v4283, 0
      %4550 = vmatprep.subr.bf16.mxu0 0
      %4551 = vmatpush1.bf16.msra.mxu0 %v4548
      %4552 = vmatprep.subr.bf16.mxu0 0
      %4553 = vmatpush1.bf16.msra.mxu0 0
      %4554 = vmatprep.subr.bf16.mxu0 0
      %4555 = vmatpush1.bf16.msra.mxu0 0
      %4556 = vmatprep.subr.bf16.mxu0 0
      %4557 = vmatpush1.bf16.msra.mxu0 0
      %4558 = vmatprep.subr.bf16.mxu0 0
      %4559 = vmatpush1.bf16.msra.mxu0 0
      %4560 = vmatprep.subr.bf16.mxu0 0
      %4561 = vmatpush1.bf16.msra.mxu0 0
      %4562 = vmatprep.subr.bf16.mxu0 0
      %4563 = vmatpush1.bf16.msra.mxu0 0
      %4564 = vmatprep.subr.bf16.mxu0 0
      %4565 = vmatpush1.bf16.msra.mxu0 0
      %4566 = vmatprep.subr.bf16.mxu0 0
      %4567 = vmatpush1.bf16.msra.mxu0 0
      %4568 = vmatprep.subr.bf16.mxu0 0
      %4569 = vmatpush1.bf16.msra.mxu0 0
      %4570 = vmatprep.subr.bf16.mxu0 0
      %4571 = vmatpush1.bf16.msra.mxu0 0
      %4572 = vmatprep.subr.bf16.mxu0 0
      %4573 = vmatpush1.bf16.msra.mxu0 0
      %4574 = vmatprep.subr.bf16.mxu0 0
      %4575 = vmatpush1.bf16.msra.mxu0 0
      %4576 = vmatprep.subr.bf16.mxu0 0
      %4577 = vmatpush1.bf16.msra.mxu0 0
      %4578 = vmatprep.subr.bf16.mxu0 0
      %4579 = vmatpush1.bf16.msra.mxu0 0
      %4580 = vmatprep.subr.bf16.mxu0 0
      %4581 = vmatpush1.bf16.msra.mxu0 0
      %4582 = vmatprep.mubr.bf16.mxu0 0
      %4583 = vmatmul.mubr.bf16.gmra.mrb[0].mxu0 %v4500
      %v4584 = vpop.f32.mrb[0].mxu0
      %v4585 = vadd.f32 0.0, %v4584
      %v4586 = vpop.f32.mrb[0].mxu0
      %v4587 = vpop.f32.mrb[0].mxu0
      %v4588 = vadd.f32 0.0, %v4587
      %v4589 = vpop.f32.mrb[0].mxu0
      %4590 = vmatprep.mubr.bf16.mxu0 0
      %4591 = vmatmul.mubr.bf16.gmra.mrb[0].mxu0 %v4503
      %v4592 = vpop.f32.mrb[0].mxu0
      %v4593 = vadd.f32 0.0, %v4592
      %v4594 = vpop.f32.mrb[0].mxu0
      %v4595 = vpop.f32.mrb[0].mxu0
      %v4596 = vadd.f32 0.0, %v4595
      %v4597 = vpop.f32.mrb[0].mxu0
      %4598 = vmatprep.mubr.bf16.mxu0 0
      %4599 = vmatmul.mubr.bf16.gmra.mrb[0].mxu0 %v4506
      %v4600 = vpop.f32.mrb[0].mxu0
      %v4601 = vadd.f32 0.0, %v4600
      %v4602 = vpop.f32.mrb[0].mxu0
      %v4603 = vpop.f32.mrb[0].mxu0
      %v4604 = vadd.f32 0.0, %v4603
      %v4605 = vpop.f32.mrb[0].mxu0
      %4606 = vmatprep.mubr.bf16.mxu0 0
      %4607 = vmatmul.mubr.bf16.gmra.mrb[0].mxu0 %v4509
      %v4608 = vpop.f32.mrb[0].mxu0
      %v4609 = vadd.f32 0.0, %v4608
      %v4610 = vpop.f32.mrb[0].mxu0
      %v4611 = vpop.f32.mrb[0].mxu0
      %v4612 = vadd.f32 0.0, %v4611
      %v4613 = vpop.f32.mrb[0].mxu0
      %4614 = vmatprep.mubr.bf16.mxu0 0
      %4615 = vmatmul.mubr.bf16.gmra.mrb[0].mxu0 %v4512
      %v4616 = vpop.f32.mrb[0].mxu0
      %v4617 = vadd.f32 0.0, %v4616
      %v4618 = vpop.f32.mrb[0].mxu0
      %v4619 = vpop.f32.mrb[0].mxu0
      %v4620 = vadd.f32 0.0, %v4619
      %v4621 = vpop.f32.mrb[0].mxu0
      %4622 = vmatprep.mubr.bf16.mxu0 0
      %4623 = vmatmul.mubr.bf16.gmra.mrb[0].mxu0 %v4515
      %v4624 = vpop.f32.mrb[0].mxu0
      %v4625 = vadd.f32 0.0, %v4624
      %v4626 = vpop.f32.mrb[0].mxu0
      %v4627 = vpop.f32.mrb[0].mxu0
      %v4628 = vadd.f32 0.0, %v4627
      %v4629 = vpop.f32.mrb[0].mxu0
      %4630 = vmatprep.mubr.bf16.mxu0 0
      %4631 = vmatmul.mubr.bf16.gmra.mrb[0].mxu0 %v4518
      %v4632 = vpop.f32.mrb[0].mxu0
      %v4633 = vadd.f32 0.0, %v4632
      %v4634 = vpop.f32.mrb[0].mxu0
      %v4635 = vpop.f32.mrb[0].mxu0
      %v4636 = vadd.f32 0.0, %v4635
      %v4637 = vpop.f32.mrb[0].mxu0
      %4638 = vmatprep.mubr.bf16.mxu0 0
      %4639 = vmatmul.mubr.bf16.gmra.mrb[0].mxu0 %v4521
      %v4640 = vpop.f32.mrb[0].mxu0
      %v4641 = vadd.f32 0.0, %v4640
      %v4642 = vpop.f32.mrb[0].mxu0
      %v4643 = vpop.f32.mrb[0].mxu0
      %v4644 = vadd.f32 0.0, %v4643
      %v4645 = vpop.f32.mrb[0].mxu0
      %4646 = vmatprep.mubr.bf16.mxu0 0
      %4647 = vmatmul.mubr.bf16.gmra.mrb[0].mxu0 %v4524
      %v4648 = vpop.f32.mrb[0].mxu0
      %v4649 = vadd.f32 0.0, %v4648
      %v4650 = vpop.f32.mrb[0].mxu0
      %v4651 = vpop.f32.mrb[0].mxu0
      %v4652 = vadd.f32 0.0, %v4651
      %v4653 = vpop.f32.mrb[0].mxu0
      %4654 = vmatprep.mubr.bf16.mxu0 0
      %4655 = vmatmul.mubr.bf16.gmra.mrb[0].mxu0 %v4527
      %v4656 = vpop.f32.mrb[0].mxu0
      %v4657 = vadd.f32 0.0, %v4656
      %v4658 = vpop.f32.mrb[0].mxu0
      %v4659 = vpop.f32.mrb[0].mxu0
      %v4660 = vadd.f32 0.0, %v4659
      %v4661 = vpop.f32.mrb[0].mxu0
      %4662 = vmatprep.mubr.bf16.mxu0 0
      %4663 = vmatmul.mubr.bf16.gmra.mrb[0].mxu0 %v4530
      %v4664 = vpop.f32.mrb[0].mxu0
      %v4665 = vadd.f32 0.0, %v4664
      %v4666 = vpop.f32.mrb[0].mxu0
      %v4667 = vpop.f32.mrb[0].mxu0
      %v4668 = vadd.f32 0.0, %v4667
      %v4669 = vpop.f32.mrb[0].mxu0
      %4670 = vmatprep.mubr.bf16.mxu0 0
      %4671 = vmatmul.mubr.bf16.gmra.mrb[0].mxu0 %v4533
      %v4672 = vpop.f32.mrb[0].mxu0
      %v4673 = vadd.f32 0.0, %v4672
      %v4674 = vpop.f32.mrb[0].mxu0
      %v4675 = vpop.f32.mrb[0].mxu0
      %v4676 = vadd.f32 0.0, %v4675
      %v4677 = vpop.f32.mrb[0].mxu0
      %4678 = vmatprep.mubr.bf16.mxu0 0
      %4679 = vmatmul.mubr.bf16.gmra.mrb[0].mxu0 %v4536
      %v4680 = vpop.f32.mrb[0].mxu0
      %v4681 = vadd.f32 0.0, %v4680
      %v4682 = vpop.f32.mrb[0].mxu0
      %v4683 = vpop.f32.mrb[0].mxu0
      %v4684 = vadd.f32 0.0, %v4683
      %v4685 = vpop.f32.mrb[0].mxu0
      %4686 = vmatprep.mubr.bf16.mxu0 0
      %4687 = vmatmul.mubr.bf16.gmra.mrb[0].mxu0 %v4539
      %v4688 = vpop.f32.mrb[0].mxu0
      %v4689 = vadd.f32 0.0, %v4688
      %v4690 = vpop.f32.mrb[0].mxu0
      %v4691 = vpop.f32.mrb[0].mxu0
      %v4692 = vadd.f32 0.0, %v4691
      %v4693 = vpop.f32.mrb[0].mxu0
      %4694 = vmatprep.mubr.bf16.mxu0 0
      %4695 = vmatmul.mubr.bf16.gmra.mrb[0].mxu0 %v4542
      %v4696 = vpop.f32.mrb[0].mxu0
      %v4697 = vadd.f32 0.0, %v4696
      %v4698 = vpop.f32.mrb[0].mxu0
      %v4699 = vpop.f32.mrb[0].mxu0
      %v4700 = vadd.f32 0.0, %v4699
      %v4701 = vpop.f32.mrb[0].mxu0
      %4702 = vmatprep.mubr.bf16.mxu0 0
      %4703 = vmatmul.mubr.bf16.gmra.mrb[0].mxu0 %v4545
      %v4704 = vpop.f32.mrb[0].mxu0
      %v4705 = vadd.f32 0.0, %v4704
      %v4706 = vpop.f32.mrb[0].mxu0
      %v4707 = vpop.f32.mrb[0].mxu0
      %v4708 = vadd.f32 0.0, %v4707
      %v4709 = vpop.f32.mrb[0].mxu0
      %4710 = vdwg.mxu0
      %v4711 = vadd.f32 %v4184, %v4585
      %v4712 = vadd.f32 %v4185, %v4588
      %v4713 = vadd.f32 %v4186, %v4593
      %v4714 = vadd.f32 %v4187, %v4596
      %v4715 = vadd.f32 %v4188, %v4601
      %v4716 = vadd.f32 %v4189, %v4604
      %v4717 = vadd.f32 %v4190, %v4609
      %v4718 = vadd.f32 %v4191, %v4612
      %v4719 = vadd.f32 %v4192, %v4617
      %v4720 = vadd.f32 %v4193, %v4620
      %v4721 = vadd.f32 %v4194, %v4625
      %v4722 = vadd.f32 %v4195, %v4628
      %v4723 = vadd.f32 %v4196, %v4633
      %v4724 = vadd.f32 %v4197, %v4636
      %v4725 = vadd.f32 %v4198, %v4641
      %v4726 = vadd.f32 %v4199, %v4644
      %v4727 = vadd.f32 %v4200, %v4649
      %v4728 = vadd.f32 %v4201, %v4652
      %v4729 = vadd.f32 %v4202, %v4657
      %v4730 = vadd.f32 %v4203, %v4660
      %v4731 = vadd.f32 %v4204, %v4665
      %v4732 = vadd.f32 %v4205, %v4668
      %v4733 = vadd.f32 %v4206, %v4673
      %v4734 = vadd.f32 %v4207, %v4676
      %v4735 = vadd.f32 %v4208, %v4681
      %v4736 = vadd.f32 %v4209, %v4684
      %v4737 = vadd.f32 %v4210, %v4689
      %v4738 = vadd.f32 %v4211, %v4692
      %v4739 = vadd.f32 %v4212, %v4697
      %v4740 = vadd.f32 %v4213, %v4700
      %v4741 = vadd.f32 %v4214, %v4705
      %v4742 = vadd.f32 %v4215, %v4708
      %v4743 = vld [vmem:[#allocation2 + $0x14] sm:$0x8]
      %v4744 = vld [vmem:[#allocation2 + $0x18] sm:$0xf]
      %v4745 = vld [vmem:[#allocation2 + $0x1c] sm:$0xf]
      %v4746 = vld [vmem:[#allocation2 + $0x20] sm:$0xf]
      %v4747 = vld [vmem:[#allocation2 + $0x24] sm:$0xf]
      %v4748 = vld [vmem:[#allocation2 + $0x28] sm:$0xf]
      %v4749 = vld [vmem:[#allocation2 + $0x2c] sm:$0xf]
      %v4750 = vld [vmem:[#allocation2 + $0x30] sm:$0xf]
      %v4751 = vld [vmem:[#allocation2 + $0x34] sm:$0xf]
      %v4752 = vld [vmem:[#allocation2 + $0x38] sm:$0xf]
      %v4753 = vld [vmem:[#allocation2 + $0x3c] sm:$0xf]
      %v4754 = vld [vmem:[#allocation2 + $0x40] sm:$0xf]
      %v4755 = vld [vmem:[#allocation2 + $0x44] sm:$0xf]
      %v4756 = vld [vmem:[#allocation2 + $0x48] sm:$0xf]
      %v4757 = vld [vmem:[#allocation2 + $0x4c] sm:$0xf]
      %v4758 = vld [vmem:[#allocation2 + $0x50] sm:$0xf]
      %v4759 = vld [vmem:[#allocation2 + $0x54] sm:$0xf]
      %v4760 = vld [vmem:[#allocation2 + $0x58] sm:$0xf]
      %v4761 = vld [vmem:[#allocation2 + $0x5c] sm:$0xf]
      %v4762 = vld [vmem:[#allocation2 + $0x60] sm:$0xf]
      %v4763 = vld [vmem:[#allocation2 + $0x64] sm:$0xf]
      %v4764 = vld [vmem:[#allocation2 + $0x68] sm:$0xf]
      %v4765 = vld [vmem:[#allocation2 + $0x6c] sm:$0xf]
      %v4766 = vld [vmem:[#allocation2 + $0x70] sm:$0xf]
      %v4767 = vld [vmem:[#allocation2 + $0x74] sm:$0xf]
      %v4768 = vld [vmem:[#allocation2 + $0x78] sm:$0xf]
      %v4769 = vld [vmem:[#allocation2 + $0x7c] sm:$0xf]
      %v4770 = vld [vmem:[#allocation2 + $0x80] sm:$0xf]
      %v4771 = vld [vmem:[#allocation2 + $0x84] sm:$0xf]
      %v4772 = vld [vmem:[#allocation2 + $0x88] sm:$0xf]
      %v4773 = vld [vmem:[#allocation2 + $0x8c] sm:$0xf]
      %v4774 = vld [vmem:[#allocation2 + $0x90] sm:$0xf]
      %v4775 = vld [vmem:[#allocation2 + $0x94] sm:$0xf]
      %v4776 = vsel %vm1554, %v4743, 0
      %v4777 = vsel %vm1555, %v4744, 0
      %v4778 = vsel %vm1556, %v4745, 0
      %v4779 = vsel %vm1557, %v4746, 0
      %v4780 = vsel %vm1558, %v4747, 0
      %v4781 = vsel %vm1559, %v4748, 0
      %v4782 = vsel %vm1560, %v4749, 0
      %v4783 = vsel %vm1561, %v4750, 0
      %v4784 = vsel %vm1562, %v4751, 0
      %v4785 = vsel %vm1563, %v4752, 0
      %v4786 = vsel %vm1564, %v4753, 0
      %v4787 = vsel %vm1565, %v4754, 0
      %v4788 = vsel %vm1566, %v4755, 0
      %v4789 = vsel %vm1567, %v4756, 0
      %v4790 = vsel %vm1568, %v4757, 0
      %v4791 = vsel %vm1569, %v4758, 0
      %v4792 = vsel %vm1570, %v4759, 0
      %v4793 = vsel %vm1571, %v4760, 0
      %v4794 = vsel %vm1572, %v4761, 0
      %v4795 = vsel %vm1573, %v4762, 0
      %v4796 = vsel %vm1574, %v4763, 0
      %v4797 = vsel %vm1575, %v4764, 0
      %v4798 = vsel %vm1576, %v4765, 0
      %v4799 = vsel %vm1577, %v4766, 0
      %v4800 = vsel %vm1578, %v4767, 0
      %v4801 = vsel %vm1579, %v4768, 0
      %v4802 = vsel %vm1580, %v4769, 0
      %v4803 = vsel %vm1581, %v4770, 0
      %v4804 = vsel %vm1582, %v4771, 0
      %v4805 = vsel %vm1583, %v4772, 0
      %v4806 = vsel %vm1584, %v4773, 0
      %v4807 = vsel %vm1585, %v4774, 0
      %v4808 = vsel %vm1586, %v4775, 0
      %s4809 = scalar_lea.vmem %s3, 24
      %v4810 = vld [vmem:[%s4809] sm:$0xf]
      %v4844 = vunpack.c.l.b16 %v4776
      %v4845 = vunpack.c.l.b16 %v4777
      %v4846 = vunpack.c.l.b16 %v4778
      %v4847 = vunpack.c.l.b16 %v4779
      %v4848 = vunpack.c.l.b16 %v4780
      %v4849 = vunpack.c.l.b16 %v4781
      %v4850 = vunpack.c.l.b16 %v4782
      %v4851 = vunpack.c.l.b16 %v4783
      %v4852 = vunpack.c.l.b16 %v4784
      %v4853 = vunpack.c.l.b16 %v4785
      %v4854 = vunpack.c.l.b16 %v4786
      %v4855 = vunpack.c.l.b16 %v4787
      %v4856 = vunpack.c.l.b16 %v4788
      %v4857 = vunpack.c.l.b16 %v4789
      %v4858 = vunpack.c.l.b16 %v4790
      %v4859 = vunpack.c.l.b16 %v4791
      %v4860 = vunpack.c.l.b16 %v4792
      %v4861 = vunpack.c.l.b16 %v4793
      %v4862 = vunpack.c.l.b16 %v4794
      %v4863 = vunpack.c.l.b16 %v4795
      %v4864 = vunpack.c.l.b16 %v4796
      %v4865 = vunpack.c.l.b16 %v4797
      %v4866 = vunpack.c.l.b16 %v4798
      %v4867 = vunpack.c.l.b16 %v4799
      %v4868 = vunpack.c.l.b16 %v4800
      %v4869 = vunpack.c.l.b16 %v4801
      %v4870 = vunpack.c.l.b16 %v4802
      %v4871 = vunpack.c.l.b16 %v4803
      %v4872 = vunpack.c.l.b16 %v4804
      %v4873 = vunpack.c.l.b16 %v4805
      %v4874 = vunpack.c.l.b16 %v4806
      %v4875 = vunpack.c.l.b16 %v4807
      %v4876 = vunpack.c.l.b16 %v4808
      %v4877 = vpack.c.b16 %v4845, %v4844
      %v4878 = vpack.c.b16 %v4847, %v4846
      %v4879 = vpack.c.b16 %v4849, %v4848
      %v4880 = vpack.c.b16 %v4851, %v4850
      %v4881 = vpack.c.b16 %v4853, %v4852
      %v4882 = vpack.c.b16 %v4855, %v4854
      %v4883 = vpack.c.b16 %v4857, %v4856
      %v4884 = vpack.c.b16 %v4859, %v4858
      %v4885 = vpack.c.b16 %v4861, %v4860
      %v4886 = vpack.c.b16 %v4863, %v4862
      %v4887 = vpack.c.b16 %v4865, %v4864
      %v4888 = vpack.c.b16 %v4867, %v4866
      %v4889 = vpack.c.b16 %v4869, %v4868
      %v4890 = vpack.c.b16 %v4871, %v4870
      %v4891 = vpack.c.b16 %v4873, %v4872
      %v4892 = vpack.c.b16 %v4875, %v4874
      %v4893 = vpack.c.b16 %v4876, %v4876
      %v4895 = vshrl.u32 %v4877, 16
      %v4897 = vrot.slane %v4895, 3
      %v4898 = vshll.u32 %v4877, 16
      %v4900 = vrot.slane %v4898, 4
      %v4901 = vor.u32 %v4897, %v4900
      %v4903 = vshrl.u32 %v4878, 16
      %v4905 = vrot.slane %v4903, 3
      %v4906 = vshll.u32 %v4878, 16
      %v4908 = vrot.slane %v4906, 4
      %v4909 = vor.u32 %v4905, %v4908
      %v4910 = vsel %vm2000, %v4901, %v4909
      %v4912 = vshrl.u32 %v4879, 16
      %v4914 = vrot.slane %v4912, 3
      %v4915 = vshll.u32 %v4879, 16
      %v4917 = vrot.slane %v4915, 4
      %v4918 = vor.u32 %v4914, %v4917
      %v4919 = vsel %vm2000, %v4909, %v4918
      %v4921 = vshrl.u32 %v4880, 16
      %v4923 = vrot.slane %v4921, 3
      %v4924 = vshll.u32 %v4880, 16
      %v4926 = vrot.slane %v4924, 4
      %v4927 = vor.u32 %v4923, %v4926
      %v4928 = vsel %vm2000, %v4918, %v4927
      %v4930 = vshrl.u32 %v4881, 16
      %v4932 = vrot.slane %v4930, 3
      %v4933 = vshll.u32 %v4881, 16
      %v4935 = vrot.slane %v4933, 4
      %v4936 = vor.u32 %v4932, %v4935
      %v4937 = vsel %vm2000, %v4927, %v4936
      %v4939 = vshrl.u32 %v4882, 16
      %v4941 = vrot.slane %v4939, 3
      %v4942 = vshll.u32 %v4882, 16
      %v4944 = vrot.slane %v4942, 4
      %v4945 = vor.u32 %v4941, %v4944
      %v4946 = vsel %vm2000, %v4936, %v4945
      %v4948 = vshrl.u32 %v4883, 16
      %v4950 = vrot.slane %v4948, 3
      %v4951 = vshll.u32 %v4883, 16
      %v4953 = vrot.slane %v4951, 4
      %v4954 = vor.u32 %v4950, %v4953
      %v4955 = vsel %vm2000, %v4945, %v4954
      %v4957 = vshrl.u32 %v4884, 16
      %v4959 = vrot.slane %v4957, 3
      %v4960 = vshll.u32 %v4884, 16
      %v4962 = vrot.slane %v4960, 4
      %v4963 = vor.u32 %v4959, %v4962
      %v4964 = vsel %vm2000, %v4954, %v4963
      %v4966 = vshrl.u32 %v4885, 16
      %v4968 = vrot.slane %v4966, 3
      %v4969 = vshll.u32 %v4885, 16
      %v4971 = vrot.slane %v4969, 4
      %v4972 = vor.u32 %v4968, %v4971
      %v4973 = vsel %vm2000, %v4963, %v4972
      %v4975 = vshrl.u32 %v4886, 16
      %v4977 = vrot.slane %v4975, 3
      %v4978 = vshll.u32 %v4886, 16
      %v4980 = vrot.slane %v4978, 4
      %v4981 = vor.u32 %v4977, %v4980
      %v4982 = vsel %vm2000, %v4972, %v4981
      %v4984 = vshrl.u32 %v4887, 16
      %v4986 = vrot.slane %v4984, 3
      %v4987 = vshll.u32 %v4887, 16
      %v4989 = vrot.slane %v4987, 4
      %v4990 = vor.u32 %v4986, %v4989
      %v4991 = vsel %vm2000, %v4981, %v4990
      %v4993 = vshrl.u32 %v4888, 16
      %v4995 = vrot.slane %v4993, 3
      %v4996 = vshll.u32 %v4888, 16
      %v4998 = vrot.slane %v4996, 4
      %v4999 = vor.u32 %v4995, %v4998
      %v5000 = vsel %vm2000, %v4990, %v4999
      %v5002 = vshrl.u32 %v4889, 16
      %v5004 = vrot.slane %v5002, 3
      %v5005 = vshll.u32 %v4889, 16
      %v5007 = vrot.slane %v5005, 4
      %v5008 = vor.u32 %v5004, %v5007
      %v5009 = vsel %vm2000, %v4999, %v5008
      %v5011 = vshrl.u32 %v4890, 16
      %v5013 = vrot.slane %v5011, 3
      %v5014 = vshll.u32 %v4890, 16
      %v5016 = vrot.slane %v5014, 4
      %v5017 = vor.u32 %v5013, %v5016
      %v5018 = vsel %vm2000, %v5008, %v5017
      %v5020 = vshrl.u32 %v4891, 16
      %v5022 = vrot.slane %v5020, 3
      %v5023 = vshll.u32 %v4891, 16
      %v5025 = vrot.slane %v5023, 4
      %v5026 = vor.u32 %v5022, %v5025
      %v5027 = vsel %vm2000, %v5017, %v5026
      %v5029 = vshrl.u32 %v4892, 16
      %v5031 = vrot.slane %v5029, 3
      %v5032 = vshll.u32 %v4892, 16
      %v5034 = vrot.slane %v5032, 4
      %v5035 = vor.u32 %v5031, %v5034
      %v5036 = vsel %vm2000, %v5026, %v5035
      %v5038 = vshrl.u32 %v4893, 16
      %v5040 = vrot.slane %v5038, 3
      %v5041 = vshll.u32 %v4893, 16
      %v5043 = vrot.slane %v5041, 4
      %v5044 = vor.u32 %v5040, %v5043
      %v5045 = vsel %vm2000, %v5035, %v5044
      %v5047 = vsel %vm1703, %v4910, 0
      %v5050 = vsel %vm1703, %v4919, 0
      %v5053 = vsel %vm1703, %v4928, 0
      %v5056 = vsel %vm1703, %v4937, 0
      %v5059 = vsel %vm1703, %v4946, 0
      %v5062 = vsel %vm1703, %v4955, 0
      %v5065 = vsel %vm1703, %v4964, 0
      %v5068 = vsel %vm1703, %v4973, 0
      %v5071 = vsel %vm1703, %v4982, 0
      %v5074 = vsel %vm1703, %v4991, 0
      %v5077 = vsel %vm1703, %v5000, 0
      %v5080 = vsel %vm1703, %v5009, 0
      %v5083 = vsel %vm1703, %v5018, 0
      %v5086 = vsel %vm1703, %v5027, 0
      %v5089 = vsel %vm1703, %v5036, 0
      %v5092 = vsel %vm1703, %v5045, 0
      %v5095 = vsel %vm1752, %v4810, 0
      %5097 = vmatprep.subr.bf16.mxu0 0
      %5098 = vmatpush1.bf16.msra.mxu0 %v5095
      %5099 = vmatprep.subr.bf16.mxu0 0
      %5100 = vmatpush1.bf16.msra.mxu0 0
      %5101 = vmatprep.subr.bf16.mxu0 0
      %5102 = vmatpush1.bf16.msra.mxu0 0
      %5103 = vmatprep.subr.bf16.mxu0 0
      %5104 = vmatpush1.bf16.msra.mxu0 0
      %5105 = vmatprep.subr.bf16.mxu0 0
      %5106 = vmatpush1.bf16.msra.mxu0 0
      %5107 = vmatprep.subr.bf16.mxu0 0
      %5108 = vmatpush1.bf16.msra.mxu0 0
      %5109 = vmatprep.subr.bf16.mxu0 0
      %5110 = vmatpush1.bf16.msra.mxu0 0
      %5111 = vmatprep.subr.bf16.mxu0 0
      %5112 = vmatpush1.bf16.msra.mxu0 0
      %5113 = vmatprep.subr.bf16.mxu0 0
      %5114 = vmatpush1.bf16.msra.mxu0 0
      %5115 = vmatprep.subr.bf16.mxu0 0
      %5116 = vmatpush1.bf16.msra.mxu0 0
      %5117 = vmatprep.subr.bf16.mxu0 0
      %5118 = vmatpush1.bf16.msra.mxu0 0
      %5119 = vmatprep.subr.bf16.mxu0 0
      %5120 = vmatpush1.bf16.msra.mxu0 0
      %5121 = vmatprep.subr.bf16.mxu0 0
      %5122 = vmatpush1.bf16.msra.mxu0 0
      %5123 = vmatprep.subr.bf16.mxu0 0
      %5124 = vmatpush1.bf16.msra.mxu0 0
      %5125 = vmatprep.subr.bf16.mxu0 0
      %5126 = vmatpush1.bf16.msra.mxu0 0
      %5127 = vmatprep.subr.bf16.mxu0 0
      %5128 = vmatpush1.bf16.msra.mxu0 0
      %5129 = vmatprep.mubr.bf16.mxu0 0
      %5130 = vmatmul.mubr.bf16.gmra.mrb[0].mxu0 %v5047
      %v5131 = vpop.f32.mrb[0].mxu0
      %v5132 = vadd.f32 0.0, %v5131
      %v5133 = vpop.f32.mrb[0].mxu0
      %v5134 = vpop.f32.mrb[0].mxu0
      %v5135 = vadd.f32 0.0, %v5134
      %v5136 = vpop.f32.mrb[0].mxu0
      %5137 = vmatprep.mubr.bf16.mxu0 0
      %5138 = vmatmul.mubr.bf16.gmra.mrb[0].mxu0 %v5050
      %v5139 = vpop.f32.mrb[0].mxu0
      %v5140 = vadd.f32 0.0, %v5139
      %v5141 = vpop.f32.mrb[0].mxu0
      %v5142 = vpop.f32.mrb[0].mxu0
      %v5143 = vadd.f32 0.0, %v5142
      %v5144 = vpop.f32.mrb[0].mxu0
      %5145 = vmatprep.mubr.bf16.mxu0 0
      %5146 = vmatmul.mubr.bf16.gmra.mrb[0].mxu0 %v5053
      %v5147 = vpop.f32.mrb[0].mxu0
      %v5148 = vadd.f32 0.0, %v5147
      %v5149 = vpop.f32.mrb[0].mxu0
      %v5150 = vpop.f32.mrb[0].mxu0
      %v5151 = vadd.f32 0.0, %v5150
      %v5152 = vpop.f32.mrb[0].mxu0
      %5153 = vmatprep.mubr.bf16.mxu0 0
      %5154 = vmatmul.mubr.bf16.gmra.mrb[0].mxu0 %v5056
      %v5155 = vpop.f32.mrb[0].mxu0
      %v5156 = vadd.f32 0.0, %v5155
      %v5157 = vpop.f32.mrb[0].mxu0
      %v5158 = vpop.f32.mrb[0].mxu0
      %v5159 = vadd.f32 0.0, %v5158
      %v5160 = vpop.f32.mrb[0].mxu0
      %5161 = vmatprep.mubr.bf16.mxu0 0
      %5162 = vmatmul.mubr.bf16.gmra.mrb[0].mxu0 %v5059
      %v5163 = vpop.f32.mrb[0].mxu0
      %v5164 = vadd.f32 0.0, %v5163
      %v5165 = vpop.f32.mrb[0].mxu0
      %v5166 = vpop.f32.mrb[0].mxu0
      %v5167 = vadd.f32 0.0, %v5166
      %v5168 = vpop.f32.mrb[0].mxu0
      %5169 = vmatprep.mubr.bf16.mxu0 0
      %5170 = vmatmul.mubr.bf16.gmra.mrb[0].mxu0 %v5062
      %v5171 = vpop.f32.mrb[0].mxu0
      %v5172 = vadd.f32 0.0, %v5171
      %v5173 = vpop.f32.mrb[0].mxu0
      %v5174 = vpop.f32.mrb[0].mxu0
      %v5175 = vadd.f32 0.0, %v5174
      %v5176 = vpop.f32.mrb[0].mxu0
      %5177 = vmatprep.mubr.bf16.mxu0 0
      %5178 = vmatmul.mubr.bf16.gmra.mrb[0].mxu0 %v5065
      %v5179 = vpop.f32.mrb[0].mxu0
      %v5180 = vadd.f32 0.0, %v5179
      %v5181 = vpop.f32.mrb[0].mxu0
      %v5182 = vpop.f32.mrb[0].mxu0
      %v5183 = vadd.f32 0.0, %v5182
      %v5184 = vpop.f32.mrb[0].mxu0
      %5185 = vmatprep.mubr.bf16.mxu0 0
      %5186 = vmatmul.mubr.bf16.gmra.mrb[0].mxu0 %v5068
      %v5187 = vpop.f32.mrb[0].mxu0
      %v5188 = vadd.f32 0.0, %v5187
      %v5189 = vpop.f32.mrb[0].mxu0
      %v5190 = vpop.f32.mrb[0].mxu0
      %v5191 = vadd.f32 0.0, %v5190
      %v5192 = vpop.f32.mrb[0].mxu0
      %5193 = vmatprep.mubr.bf16.mxu0 0
      %5194 = vmatmul.mubr.bf16.gmra.mrb[0].mxu0 %v5071
      %v5195 = vpop.f32.mrb[0].mxu0
      %v5196 = vadd.f32 0.0, %v5195
      %v5197 = vpop.f32.mrb[0].mxu0
      %v5198 = vpop.f32.mrb[0].mxu0
      %v5199 = vadd.f32 0.0, %v5198
      %v5200 = vpop.f32.mrb[0].mxu0
      %5201 = vmatprep.mubr.bf16.mxu0 0
      %5202 = vmatmul.mubr.bf16.gmra.mrb[0].mxu0 %v5074
      %v5203 = vpop.f32.mrb[0].mxu0
      %v5204 = vadd.f32 0.0, %v5203
      %v5205 = vpop.f32.mrb[0].mxu0
      %v5206 = vpop.f32.mrb[0].mxu0
      %v5207 = vadd.f32 0.0, %v5206
      %v5208 = vpop.f32.mrb[0].mxu0
      %5209 = vmatprep.mubr.bf16.mxu0 0
      %5210 = vmatmul.mubr.bf16.gmra.mrb[0].mxu0 %v5077
      %v5211 = vpop.f32.mrb[0].mxu0
      %v5212 = vadd.f32 0.0, %v5211
      %v5213 = vpop.f32.mrb[0].mxu0
      %v5214 = vpop.f32.mrb[0].mxu0
      %v5215 = vadd.f32 0.0, %v5214
      %v5216 = vpop.f32.mrb[0].mxu0
      %5217 = vmatprep.mubr.bf16.mxu0 0
      %5218 = vmatmul.mubr.bf16.gmra.mrb[0].mxu0 %v5080
      %v5219 = vpop.f32.mrb[0].mxu0
      %v5220 = vadd.f32 0.0, %v5219
      %v5221 = vpop.f32.mrb[0].mxu0
      %v5222 = vpop.f32.mrb[0].mxu0
      %v5223 = vadd.f32 0.0, %v5222
      %v5224 = vpop.f32.mrb[0].mxu0
      %5225 = vmatprep.mubr.bf16.mxu0 0
      %5226 = vmatmul.mubr.bf16.gmra.mrb[0].mxu0 %v5083
      %v5227 = vpop.f32.mrb[0].mxu0
      %v5228 = vadd.f32 0.0, %v5227
      %v5229 = vpop.f32.mrb[0].mxu0
      %v5230 = vpop.f32.mrb[0].mxu0
      %v5231 = vadd.f32 0.0, %v5230
      %v5232 = vpop.f32.mrb[0].mxu0
      %5233 = vmatprep.mubr.bf16.mxu0 0
      %5234 = vmatmul.mubr.bf16.gmra.mrb[0].mxu0 %v5086
      %v5235 = vpop.f32.mrb[0].mxu0
      %v5236 = vadd.f32 0.0, %v5235
      %v5237 = vpop.f32.mrb[0].mxu0
      %v5238 = vpop.f32.mrb[0].mxu0
      %v5239 = vadd.f32 0.0, %v5238
      %v5240 = vpop.f32.mrb[0].mxu0
      %5241 = vmatprep.mubr.bf16.mxu0 0
      %5242 = vmatmul.mubr.bf16.gmra.mrb[0].mxu0 %v5089
      %v5243 = vpop.f32.mrb[0].mxu0
      %v5244 = vadd.f32 0.0, %v5243
      %v5245 = vpop.f32.mrb[0].mxu0
      %v5246 = vpop.f32.mrb[0].mxu0
      %v5247 = vadd.f32 0.0, %v5246
      %v5248 = vpop.f32.mrb[0].mxu0
      %5249 = vmatprep.mubr.bf16.mxu0 0
      %5250 = vmatmul.mubr.bf16.gmra.mrb[0].mxu0 %v5092
      %v5251 = vpop.f32.mrb[0].mxu0
      %v5252 = vadd.f32 0.0, %v5251
      %v5253 = vpop.f32.mrb[0].mxu0
      %v5254 = vpop.f32.mrb[0].mxu0
      %v5255 = vadd.f32 0.0, %v5254
      %v5256 = vpop.f32.mrb[0].mxu0
      %5257 = vdwg.mxu0
      %v5258 = vadd.f32 %v4711, %v5132
      %v5259 = vadd.f32 %v4712, %v5135
      %v5260 = vadd.f32 %v4713, %v5140
      %v5261 = vadd.f32 %v4714, %v5143
      %v5262 = vadd.f32 %v4715, %v5148
      %v5263 = vadd.f32 %v4716, %v5151
      %v5264 = vadd.f32 %v4717, %v5156
      %v5265 = vadd.f32 %v4718, %v5159
      %v5266 = vadd.f32 %v4719, %v5164
      %v5267 = vadd.f32 %v4720, %v5167
      %v5268 = vadd.f32 %v4721, %v5172
      %v5269 = vadd.f32 %v4722, %v5175
      %v5270 = vadd.f32 %v4723, %v5180
      %v5271 = vadd.f32 %v4724, %v5183
      %v5272 = vadd.f32 %v4725, %v5188
      %v5273 = vadd.f32 %v4726, %v5191
      %v5274 = vadd.f32 %v4727, %v5196
      %v5275 = vadd.f32 %v4728, %v5199
      %v5276 = vadd.f32 %v4729, %v5204
      %v5277 = vadd.f32 %v4730, %v5207
      %v5278 = vadd.f32 %v4731, %v5212
      %v5279 = vadd.f32 %v4732, %v5215
      %v5280 = vadd.f32 %v4733, %v5220
      %v5281 = vadd.f32 %v4734, %v5223
      %v5282 = vadd.f32 %v4735, %v5228
      %v5283 = vadd.f32 %v4736, %v5231
      %v5284 = vadd.f32 %v4737, %v5236
      %v5285 = vadd.f32 %v4738, %v5239
      %v5286 = vadd.f32 %v4739, %v5244
      %v5287 = vadd.f32 %v4740, %v5247
      %v5288 = vadd.f32 %v4741, %v5252
      %v5289 = vadd.f32 %v4742, %v5255
      %s5290 = scalar_lea.vmem %s3, 28
      %v5291 = vld [vmem:[%s5290] sm:$0xf]
      %v5324 = vunpack.c.l.b16 %v4744
      %v5325 = vunpack.c.l.b16 %v4745
      %v5326 = vunpack.c.l.b16 %v4746
      %v5327 = vunpack.c.l.b16 %v4747
      %v5328 = vunpack.c.l.b16 %v4748
      %v5329 = vunpack.c.l.b16 %v4749
      %v5330 = vunpack.c.l.b16 %v4750
      %v5331 = vunpack.c.l.b16 %v4751
      %v5332 = vunpack.c.l.b16 %v4752
      %v5333 = vunpack.c.l.b16 %v4753
      %v5334 = vunpack.c.l.b16 %v4754
      %v5335 = vunpack.c.l.b16 %v4755
      %v5336 = vunpack.c.l.b16 %v4756
      %v5337 = vunpack.c.l.b16 %v4757
      %v5338 = vunpack.c.l.b16 %v4758
      %v5339 = vunpack.c.l.b16 %v4759
      %v5340 = vunpack.c.l.b16 %v4760
      %v5341 = vunpack.c.l.b16 %v4761
      %v5342 = vunpack.c.l.b16 %v4762
      %v5343 = vunpack.c.l.b16 %v4763
      %v5344 = vunpack.c.l.b16 %v4764
      %v5345 = vunpack.c.l.b16 %v4765
      %v5346 = vunpack.c.l.b16 %v4766
      %v5347 = vunpack.c.l.b16 %v4767
      %v5348 = vunpack.c.l.b16 %v4768
      %v5349 = vunpack.c.l.b16 %v4769
      %v5350 = vunpack.c.l.b16 %v4770
      %v5351 = vunpack.c.l.b16 %v4771
      %v5352 = vunpack.c.l.b16 %v4772
      %v5353 = vunpack.c.l.b16 %v4773
      %v5354 = vunpack.c.l.b16 %v4774
      %v5355 = vunpack.c.l.b16 %v4775
      %v5356 = vpack.c.b16 %v5325, %v5324
      %v5357 = vpack.c.b16 %v5327, %v5326
      %v5358 = vpack.c.b16 %v5329, %v5328
      %v5359 = vpack.c.b16 %v5331, %v5330
      %v5360 = vpack.c.b16 %v5333, %v5332
      %v5361 = vpack.c.b16 %v5335, %v5334
      %v5362 = vpack.c.b16 %v5337, %v5336
      %v5363 = vpack.c.b16 %v5339, %v5338
      %v5364 = vpack.c.b16 %v5341, %v5340
      %v5365 = vpack.c.b16 %v5343, %v5342
      %v5366 = vpack.c.b16 %v5345, %v5344
      %v5367 = vpack.c.b16 %v5347, %v5346
      %v5368 = vpack.c.b16 %v5349, %v5348
      %v5369 = vpack.c.b16 %v5351, %v5350
      %v5370 = vpack.c.b16 %v5353, %v5352
      %v5371 = vpack.c.b16 %v5355, %v5354
      %v5373 = vsel %vm1703, %v5356, 0
      %v5376 = vsel %vm1703, %v5357, 0
      %v5379 = vsel %vm1703, %v5358, 0
      %v5382 = vsel %vm1703, %v5359, 0
      %v5385 = vsel %vm1703, %v5360, 0
      %v5388 = vsel %vm1703, %v5361, 0
      %v5391 = vsel %vm1703, %v5362, 0
      %v5394 = vsel %vm1703, %v5363, 0
      %v5397 = vsel %vm1703, %v5364, 0
      %v5400 = vsel %vm1703, %v5365, 0
      %v5403 = vsel %vm1703, %v5366, 0
      %v5406 = vsel %vm1703, %v5367, 0
      %v5409 = vsel %vm1703, %v5368, 0
      %v5412 = vsel %vm1703, %v5369, 0
      %v5415 = vsel %vm1703, %v5370, 0
      %v5418 = vsel %vm1703, %v5371, 0
      %v5421 = vsel %vm1752, %v5291, 0
      %5423 = vmatprep.subr.bf16.mxu0 0
      %5424 = vmatpush1.bf16.msra.mxu0 %v5421
      %5425 = vmatprep.subr.bf16.mxu0 0
      %5426 = vmatpush1.bf16.msra.mxu0 0
      %5427 = vmatprep.subr.bf16.mxu0 0
      %5428 = vmatpush1.bf16.msra.mxu0 0
      %5429 = vmatprep.subr.bf16.mxu0 0
      %5430 = vmatpush1.bf16.msra.mxu0 0
      %5431 = vmatprep.subr.bf16.mxu0 0
      %5432 = vmatpush1.bf16.msra.mxu0 0
      %5433 = vmatprep.subr.bf16.mxu0 0
      %5434 = vmatpush1.bf16.msra.mxu0 0
      %5435 = vmatprep.subr.bf16.mxu0 0
      %5436 = vmatpush1.bf16.msra.mxu0 0
      %5437 = vmatprep.subr.bf16.mxu0 0
      %5438 = vmatpush1.bf16.msra.mxu0 0
      %5439 = vmatprep.subr.bf16.mxu0 0
      %5440 = vmatpush1.bf16.msra.mxu0 0
      %5441 = vmatprep.subr.bf16.mxu0 0
      %5442 = vmatpush1.bf16.msra.mxu0 0
      %5443 = vmatprep.subr.bf16.mxu0 0
      %5444 = vmatpush1.bf16.msra.mxu0 0
      %5445 = vmatprep.subr.bf16.mxu0 0
      %5446 = vmatpush1.bf16.msra.mxu0 0
      %5447 = vmatprep.subr.bf16.mxu0 0
      %5448 = vmatpush1.bf16.msra.mxu0 0
      %5449 = vmatprep.subr.bf16.mxu0 0
      %5450 = vmatpush1.bf16.msra.mxu0 0
      %5451 = vmatprep.subr.bf16.mxu0 0
      %5452 = vmatpush1.bf16.msra.mxu0 0
      %5453 = vmatprep.subr.bf16.mxu0 0
      %5454 = vmatpush1.bf16.msra.mxu0 0
      %5455 = vmatprep.mubr.bf16.mxu0 0
      %5456 = vmatmul.mubr.bf16.gmra.mrb[0].mxu0 %v5373
      %v5457 = vpop.f32.mrb[0].mxu0
      %v5458 = vadd.f32 0.0, %v5457
      %v5459 = vpop.f32.mrb[0].mxu0
      %v5460 = vpop.f32.mrb[0].mxu0
      %v5461 = vadd.f32 0.0, %v5460
      %v5462 = vpop.f32.mrb[0].mxu0
      %5463 = vmatprep.mubr.bf16.mxu0 0
      %5464 = vmatmul.mubr.bf16.gmra.mrb[0].mxu0 %v5376
      %v5465 = vpop.f32.mrb[0].mxu0
      %v5466 = vadd.f32 0.0, %v5465
      %v5467 = vpop.f32.mrb[0].mxu0
      %v5468 = vpop.f32.mrb[0].mxu0
      %v5469 = vadd.f32 0.0, %v5468
      %v5470 = vpop.f32.mrb[0].mxu0
      %5471 = vmatprep.mubr.bf16.mxu0 0
      %5472 = vmatmul.mubr.bf16.gmra.mrb[0].mxu0 %v5379
      %v5473 = vpop.f32.mrb[0].mxu0
      %v5474 = vadd.f32 0.0, %v5473
      %v5475 = vpop.f32.mrb[0].mxu0
      %v5476 = vpop.f32.mrb[0].mxu0
      %v5477 = vadd.f32 0.0, %v5476
      %v5478 = vpop.f32.mrb[0].mxu0
      %5479 = vmatprep.mubr.bf16.mxu0 0
      %5480 = vmatmul.mubr.bf16.gmra.mrb[0].mxu0 %v5382
      %v5481 = vpop.f32.mrb[0].mxu0
      %v5482 = vadd.f32 0.0, %v5481
      %v5483 = vpop.f32.mrb[0].mxu0
      %v5484 = vpop.f32.mrb[0].mxu0
      %v5485 = vadd.f32 0.0, %v5484
      %v5486 = vpop.f32.mrb[0].mxu0
      %5487 = vmatprep.mubr.bf16.mxu0 0
      %5488 = vmatmul.mubr.bf16.gmra.mrb[0].mxu0 %v5385
      %v5489 = vpop.f32.mrb[0].mxu0
      %v5490 = vadd.f32 0.0, %v5489
      %v5491 = vpop.f32.mrb[0].mxu0
      %v5492 = vpop.f32.mrb[0].mxu0
      %v5493 = vadd.f32 0.0, %v5492
      %v5494 = vpop.f32.mrb[0].mxu0
      %5495 = vmatprep.mubr.bf16.mxu0 0
      %5496 = vmatmul.mubr.bf16.gmra.mrb[0].mxu0 %v5388
      %v5497 = vpop.f32.mrb[0].mxu0
      %v5498 = vadd.f32 0.0, %v5497
      %v5499 = vpop.f32.mrb[0].mxu0
      %v5500 = vpop.f32.mrb[0].mxu0
      %v5501 = vadd.f32 0.0, %v5500
      %v5502 = vpop.f32.mrb[0].mxu0
      %5503 = vmatprep.mubr.bf16.mxu0 0
      %5504 = vmatmul.mubr.bf16.gmra.mrb[0].mxu0 %v5391
      %v5505 = vpop.f32.mrb[0].mxu0
      %v5506 = vadd.f32 0.0, %v5505
      %v5507 = vpop.f32.mrb[0].mxu0
      %v5508 = vpop.f32.mrb[0].mxu0
      %v5509 = vadd.f32 0.0, %v5508
      %v5510 = vpop.f32.mrb[0].mxu0
      %5511 = vmatprep.mubr.bf16.mxu0 0
      %5512 = vmatmul.mubr.bf16.gmra.mrb[0].mxu0 %v5394
      %v5513 = vpop.f32.mrb[0].mxu0
      %v5514 = vadd.f32 0.0, %v5513
      %v5515 = vpop.f32.mrb[0].mxu0
      %v5516 = vpop.f32.mrb[0].mxu0
      %v5517 = vadd.f32 0.0, %v5516
      %v5518 = vpop.f32.mrb[0].mxu0
      %5519 = vmatprep.mubr.bf16.mxu0 0
      %5520 = vmatmul.mubr.bf16.gmra.mrb[0].mxu0 %v5397
      %v5521 = vpop.f32.mrb[0].mxu0
      %v5522 = vadd.f32 0.0, %v5521
      %v5523 = vpop.f32.mrb[0].mxu0
      %v5524 = vpop.f32.mrb[0].mxu0
      %v5525 = vadd.f32 0.0, %v5524
      %v5526 = vpop.f32.mrb[0].mxu0
      %5527 = vmatprep.mubr.bf16.mxu0 0
      %5528 = vmatmul.mubr.bf16.gmra.mrb[0].mxu0 %v5400
      %v5529 = vpop.f32.mrb[0].mxu0
      %v5530 = vadd.f32 0.0, %v5529
      %v5531 = vpop.f32.mrb[0].mxu0
      %v5532 = vpop.f32.mrb[0].mxu0
      %v5533 = vadd.f32 0.0, %v5532
      %v5534 = vpop.f32.mrb[0].mxu0
      %5535 = vmatprep.mubr.bf16.mxu0 0
      %5536 = vmatmul.mubr.bf16.gmra.mrb[0].mxu0 %v5403
      %v5537 = vpop.f32.mrb[0].mxu0
      %v5538 = vadd.f32 0.0, %v5537
      %v5539 = vpop.f32.mrb[0].mxu0
      %v5540 = vpop.f32.mrb[0].mxu0
      %v5541 = vadd.f32 0.0, %v5540
      %v5542 = vpop.f32.mrb[0].mxu0
      %5543 = vmatprep.mubr.bf16.mxu0 0
      %5544 = vmatmul.mubr.bf16.gmra.mrb[0].mxu0 %v5406
      %v5545 = vpop.f32.mrb[0].mxu0
      %v5546 = vadd.f32 0.0, %v5545
      %v5547 = vpop.f32.mrb[0].mxu0
      %v5548 = vpop.f32.mrb[0].mxu0
      %v5549 = vadd.f32 0.0, %v5548
      %v5550 = vpop.f32.mrb[0].mxu0
      %5551 = vmatprep.mubr.bf16.mxu0 0
      %5552 = vmatmul.mubr.bf16.gmra.mrb[0].mxu0 %v5409
      %v5553 = vpop.f32.mrb[0].mxu0
      %v5554 = vadd.f32 0.0, %v5553
      %v5555 = vpop.f32.mrb[0].mxu0
      %v5556 = vpop.f32.mrb[0].mxu0
      %v5557 = vadd.f32 0.0, %v5556
      %v5558 = vpop.f32.mrb[0].mxu0
      %5559 = vmatprep.mubr.bf16.mxu0 0
      %5560 = vmatmul.mubr.bf16.gmra.mrb[0].mxu0 %v5412
      %v5561 = vpop.f32.mrb[0].mxu0
      %v5562 = vadd.f32 0.0, %v5561
      %v5563 = vpop.f32.mrb[0].mxu0
      %v5564 = vpop.f32.mrb[0].mxu0
      %v5565 = vadd.f32 0.0, %v5564
      %v5566 = vpop.f32.mrb[0].mxu0
      %5567 = vmatprep.mubr.bf16.mxu0 0
      %5568 = vmatmul.mubr.bf16.gmra.mrb[0].mxu0 %v5415
      %v5569 = vpop.f32.mrb[0].mxu0
      %v5570 = vadd.f32 0.0, %v5569
      %v5571 = vpop.f32.mrb[0].mxu0
      %v5572 = vpop.f32.mrb[0].mxu0
      %v5573 = vadd.f32 0.0, %v5572
      %v5574 = vpop.f32.mrb[0].mxu0
      %5575 = vmatprep.mubr.bf16.mxu0 0
      %5576 = vmatmul.mubr.bf16.gmra.mrb[0].mxu0 %v5418
      %v5577 = vpop.f32.mrb[0].mxu0
      %v5578 = vadd.f32 0.0, %v5577
      %v5579 = vpop.f32.mrb[0].mxu0
      %v5580 = vpop.f32.mrb[0].mxu0
      %v5581 = vadd.f32 0.0, %v5580
      %v5582 = vpop.f32.mrb[0].mxu0
      %5583 = vdwg.mxu0
      %v5584 = vadd.f32 %v5258, %v5458
      %v5585 = vadd.f32 %v5259, %v5461
      %v5586 = vadd.f32 %v5260, %v5466
      %v5587 = vadd.f32 %v5261, %v5469
      %v5588 = vadd.f32 %v5262, %v5474
      %v5589 = vadd.f32 %v5263, %v5477
      %v5590 = vadd.f32 %v5264, %v5482
      %v5591 = vadd.f32 %v5265, %v5485
      %v5592 = vadd.f32 %v5266, %v5490
      %v5593 = vadd.f32 %v5267, %v5493
      %v5594 = vadd.f32 %v5268, %v5498
      %v5595 = vadd.f32 %v5269, %v5501
      %v5596 = vadd.f32 %v5270, %v5506
      %v5597 = vadd.f32 %v5271, %v5509
      %v5598 = vadd.f32 %v5272, %v5514
      %v5599 = vadd.f32 %v5273, %v5517
      %v5600 = vadd.f32 %v5274, %v5522
      %v5601 = vadd.f32 %v5275, %v5525
      %v5602 = vadd.f32 %v5276, %v5530
      %v5603 = vadd.f32 %v5277, %v5533
      %v5604 = vadd.f32 %v5278, %v5538
      %v5605 = vadd.f32 %v5279, %v5541
      %v5606 = vadd.f32 %v5280, %v5546
      %v5607 = vadd.f32 %v5281, %v5549
      %v5608 = vadd.f32 %v5282, %v5554
      %v5609 = vadd.f32 %v5283, %v5557
      %v5610 = vadd.f32 %v5284, %v5562
      %v5611 = vadd.f32 %v5285, %v5565
      %v5612 = vadd.f32 %v5286, %v5570
      %v5613 = vadd.f32 %v5287, %v5573
      %v5614 = vadd.f32 %v5288, %v5578
      %v5615 = vadd.f32 %v5289, %v5581
      %v5616 = vld [vmem:[#allocation2 + $0x18] sm:$0xf]
      %v5617 = vld [vmem:[#allocation2 + $0x1c] sm:$0xf]
      %v5618 = vld [vmem:[#allocation2 + $0x20] sm:$0xf]
      %v5619 = vld [vmem:[#allocation2 + $0x24] sm:$0xf]
      %v5620 = vld [vmem:[#allocation2 + $0x28] sm:$0xf]
      %v5621 = vld [vmem:[#allocation2 + $0x2c] sm:$0xf]
      %v5622 = vld [vmem:[#allocation2 + $0x30] sm:$0xf]
      %v5623 = vld [vmem:[#allocation2 + $0x34] sm:$0xf]
      %v5624 = vld [vmem:[#allocation2 + $0x38] sm:$0xf]
      %v5625 = vld [vmem:[#allocation2 + $0x3c] sm:$0xf]
      %v5626 = vld [vmem:[#allocation2 + $0x40] sm:$0xf]
      %v5627 = vld [vmem:[#allocation2 + $0x44] sm:$0xf]
      %v5628 = vld [vmem:[#allocation2 + $0x48] sm:$0xf]
      %v5629 = vld [vmem:[#allocation2 + $0x4c] sm:$0xf]
      %v5630 = vld [vmem:[#allocation2 + $0x50] sm:$0xf]
      %v5631 = vld [vmem:[#allocation2 + $0x54] sm:$0xf]
      %v5632 = vld [vmem:[#allocation2 + $0x58] sm:$0xf]
      %v5633 = vld [vmem:[#allocation2 + $0x5c] sm:$0xf]
      %v5634 = vld [vmem:[#allocation2 + $0x60] sm:$0xf]
      %v5635 = vld [vmem:[#allocation2 + $0x64] sm:$0xf]
      %v5636 = vld [vmem:[#allocation2 + $0x68] sm:$0xf]
      %v5637 = vld [vmem:[#allocation2 + $0x6c] sm:$0xf]
      %v5638 = vld [vmem:[#allocation2 + $0x70] sm:$0xf]
      %v5639 = vld [vmem:[#allocation2 + $0x74] sm:$0xf]
      %v5640 = vld [vmem:[#allocation2 + $0x78] sm:$0xf]
      %v5641 = vld [vmem:[#allocation2 + $0x7c] sm:$0xf]
      %v5642 = vld [vmem:[#allocation2 + $0x80] sm:$0xf]
      %v5643 = vld [vmem:[#allocation2 + $0x84] sm:$0xf]
      %v5644 = vld [vmem:[#allocation2 + $0x88] sm:$0xf]
      %v5645 = vld [vmem:[#allocation2 + $0x8c] sm:$0xf]
      %v5646 = vld [vmem:[#allocation2 + $0x90] sm:$0xf]
      %v5647 = vld [vmem:[#allocation2 + $0x94] sm:$0xf]
      %v5648 = vld [vmem:[#allocation2 + $0x98] sm:$0x1]
      %v5649 = vsel %vm2815, %v5616, 0
      %v5650 = vsel %vm2816, %v5617, 0
      %v5651 = vsel %vm2817, %v5618, 0
      %v5652 = vsel %vm2818, %v5619, 0
      %v5653 = vsel %vm2819, %v5620, 0
      %v5654 = vsel %vm2820, %v5621, 0
      %v5655 = vsel %vm2821, %v5622, 0
      %v5656 = vsel %vm2822, %v5623, 0
      %v5657 = vsel %vm2823, %v5624, 0
      %v5658 = vsel %vm2824, %v5625, 0
      %v5659 = vsel %vm2825, %v5626, 0
      %v5660 = vsel %vm2826, %v5627, 0
      %v5661 = vsel %vm2827, %v5628, 0
      %v5662 = vsel %vm2828, %v5629, 0
      %v5663 = vsel %vm2829, %v5630, 0
      %v5664 = vsel %vm2830, %v5631, 0
      %v5665 = vsel %vm2831, %v5632, 0
      %v5666 = vsel %vm2832, %v5633, 0
      %v5667 = vsel %vm2833, %v5634, 0
      %v5668 = vsel %vm2834, %v5635, 0
      %v5669 = vsel %vm2835, %v5636, 0
      %v5670 = vsel %vm2836, %v5637, 0
      %v5671 = vsel %vm2837, %v5638, 0
      %v5672 = vsel %vm2838, %v5639, 0
      %v5673 = vsel %vm2839, %v5640, 0
      %v5674 = vsel %vm2840, %v5641, 0
      %v5675 = vsel %vm2841, %v5642, 0
      %v5676 = vsel %vm2842, %v5643, 0
      %v5677 = vsel %vm2843, %v5644, 0
      %v5678 = vsel %vm2844, %v5645, 0
      %v5679 = vsel %vm2845, %v5646, 0
      %v5680 = vsel %vm2846, %v5647, 0
      %v5681 = vsel %vm2847, %v5648, 0
      %s5682 = scalar_lea.vmem %s3, 32
      %v5683 = vld [vmem:[%s5682] sm:$0xf]
      %v5717 = vunpack.c.l.b16 %v5649
      %v5718 = vunpack.c.l.b16 %v5650
      %v5719 = vunpack.c.l.b16 %v5651
      %v5720 = vunpack.c.l.b16 %v5652
      %v5721 = vunpack.c.l.b16 %v5653
      %v5722 = vunpack.c.l.b16 %v5654
      %v5723 = vunpack.c.l.b16 %v5655
      %v5724 = vunpack.c.l.b16 %v5656
      %v5725 = vunpack.c.l.b16 %v5657
      %v5726 = vunpack.c.l.b16 %v5658
      %v5727 = vunpack.c.l.b16 %v5659
      %v5728 = vunpack.c.l.b16 %v5660
      %v5729 = vunpack.c.l.b16 %v5661
      %v5730 = vunpack.c.l.b16 %v5662
      %v5731 = vunpack.c.l.b16 %v5663
      %v5732 = vunpack.c.l.b16 %v5664
      %v5733 = vunpack.c.l.b16 %v5665
      %v5734 = vunpack.c.l.b16 %v5666
      %v5735 = vunpack.c.l.b16 %v5667
      %v5736 = vunpack.c.l.b16 %v5668
      %v5737 = vunpack.c.l.b16 %v5669
      %v5738 = vunpack.c.l.b16 %v5670
      %v5739 = vunpack.c.l.b16 %v5671
      %v5740 = vunpack.c.l.b16 %v5672
      %v5741 = vunpack.c.l.b16 %v5673
      %v5742 = vunpack.c.l.b16 %v5674
      %v5743 = vunpack.c.l.b16 %v5675
      %v5744 = vunpack.c.l.b16 %v5676
      %v5745 = vunpack.c.l.b16 %v5677
      %v5746 = vunpack.c.l.b16 %v5678
      %v5747 = vunpack.c.l.b16 %v5679
      %v5748 = vunpack.c.l.b16 %v5680
      %v5749 = vunpack.c.l.b16 %v5681
      %v5750 = vpack.c.b16 %v5718, %v5717
      %v5751 = vpack.c.b16 %v5720, %v5719
      %v5752 = vpack.c.b16 %v5722, %v5721
      %v5753 = vpack.c.b16 %v5724, %v5723
      %v5754 = vpack.c.b16 %v5726, %v5725
      %v5755 = vpack.c.b16 %v5728, %v5727
      %v5756 = vpack.c.b16 %v5730, %v5729
      %v5757 = vpack.c.b16 %v5732, %v5731
      %v5758 = vpack.c.b16 %v5734, %v5733
      %v5759 = vpack.c.b16 %v5736, %v5735
      %v5760 = vpack.c.b16 %v5738, %v5737
      %v5761 = vpack.c.b16 %v5740, %v5739
      %v5762 = vpack.c.b16 %v5742, %v5741
      %v5763 = vpack.c.b16 %v5744, %v5743
      %v5764 = vpack.c.b16 %v5746, %v5745
      %v5765 = vpack.c.b16 %v5748, %v5747
      %v5766 = vpack.c.b16 %v5749, %v5749
      %v5768 = vshrl.u32 %v5750, 16
      %v5770 = vshll.u32 %v5750, 16
      %v5772 = vrot.slane %v5770, 1
      %v5773 = vor.u32 %v5768, %v5772
      %v5775 = vshll.u32 %v5751, 16
      %v5777 = vrot.slane %v5775, 1
      %v5778 = vsel %vm2966, %v5773, %v5777
      %v5779 = vshrl.u32 %v5751, 16
      %v5781 = vor.u32 %v5779, %v5777
      %v5783 = vshll.u32 %v5752, 16
      %v5785 = vrot.slane %v5783, 1
      %v5786 = vsel %vm2966, %v5781, %v5785
      %v5787 = vshrl.u32 %v5752, 16
      %v5789 = vor.u32 %v5787, %v5785
      %v5791 = vshll.u32 %v5753, 16
      %v5793 = vrot.slane %v5791, 1
      %v5794 = vsel %vm2966, %v5789, %v5793
      %v5795 = vshrl.u32 %v5753, 16
      %v5797 = vor.u32 %v5795, %v5793
      %v5799 = vshll.u32 %v5754, 16
      %v5801 = vrot.slane %v5799, 1
      %v5802 = vsel %vm2966, %v5797, %v5801
      %v5803 = vshrl.u32 %v5754, 16
      %v5805 = vor.u32 %v5803, %v5801
      %v5807 = vshll.u32 %v5755, 16
      %v5809 = vrot.slane %v5807, 1
      %v5810 = vsel %vm2966, %v5805, %v5809
      %v5811 = vshrl.u32 %v5755, 16
      %v5813 = vor.u32 %v5811, %v5809
      %v5815 = vshll.u32 %v5756, 16
      %v5817 = vrot.slane %v5815, 1
      %v5818 = vsel %vm2966, %v5813, %v5817
      %v5819 = vshrl.u32 %v5756, 16
      %v5821 = vor.u32 %v5819, %v5817
      %v5823 = vshll.u32 %v5757, 16
      %v5825 = vrot.slane %v5823, 1
      %v5826 = vsel %vm2966, %v5821, %v5825
      %v5827 = vshrl.u32 %v5757, 16
      %v5829 = vor.u32 %v5827, %v5825
      %v5831 = vshll.u32 %v5758, 16
      %v5833 = vrot.slane %v5831, 1
      %v5834 = vsel %vm2966, %v5829, %v5833
      %v5835 = vshrl.u32 %v5758, 16
      %v5837 = vor.u32 %v5835, %v5833
      %v5839 = vshll.u32 %v5759, 16
      %v5841 = vrot.slane %v5839, 1
      %v5842 = vsel %vm2966, %v5837, %v5841
      %v5843 = vshrl.u32 %v5759, 16
      %v5845 = vor.u32 %v5843, %v5841
      %v5847 = vshll.u32 %v5760, 16
      %v5849 = vrot.slane %v5847, 1
      %v5850 = vsel %vm2966, %v5845, %v5849
      %v5851 = vshrl.u32 %v5760, 16
      %v5853 = vor.u32 %v5851, %v5849
      %v5855 = vshll.u32 %v5761, 16
      %v5857 = vrot.slane %v5855, 1
      %v5858 = vsel %vm2966, %v5853, %v5857
      %v5859 = vshrl.u32 %v5761, 16
      %v5861 = vor.u32 %v5859, %v5857
      %v5863 = vshll.u32 %v5762, 16
      %v5865 = vrot.slane %v5863, 1
      %v5866 = vsel %vm2966, %v5861, %v5865
      %v5867 = vshrl.u32 %v5762, 16
      %v5869 = vor.u32 %v5867, %v5865
      %v5871 = vshll.u32 %v5763, 16
      %v5873 = vrot.slane %v5871, 1
      %v5874 = vsel %vm2966, %v5869, %v5873
      %v5875 = vshrl.u32 %v5763, 16
      %v5877 = vor.u32 %v5875, %v5873
      %v5879 = vshll.u32 %v5764, 16
      %v5881 = vrot.slane %v5879, 1
      %v5882 = vsel %vm2966, %v5877, %v5881
      %v5883 = vshrl.u32 %v5764, 16
      %v5885 = vor.u32 %v5883, %v5881
      %v5887 = vshll.u32 %v5765, 16
      %v5889 = vrot.slane %v5887, 1
      %v5890 = vsel %vm2966, %v5885, %v5889
      %v5891 = vshrl.u32 %v5765, 16
      %v5893 = vor.u32 %v5891, %v5889
      %v5895 = vshll.u32 %v5766, 16
      %v5897 = vrot.slane %v5895, 1
      %v5898 = vsel %vm2966, %v5893, %v5897
      %v5900 = vsel %vm1703, %v5778, 0
      %v5903 = vsel %vm1703, %v5786, 0
      %v5906 = vsel %vm1703, %v5794, 0
      %v5909 = vsel %vm1703, %v5802, 0
      %v5912 = vsel %vm1703, %v5810, 0
      %v5915 = vsel %vm1703, %v5818, 0
      %v5918 = vsel %vm1703, %v5826, 0
      %v5921 = vsel %vm1703, %v5834, 0
      %v5924 = vsel %vm1703, %v5842, 0
      %v5927 = vsel %vm1703, %v5850, 0
      %v5930 = vsel %vm1703, %v5858, 0
      %v5933 = vsel %vm1703, %v5866, 0
      %v5936 = vsel %vm1703, %v5874, 0
      %v5939 = vsel %vm1703, %v5882, 0
      %v5942 = vsel %vm1703, %v5890, 0
      %v5945 = vsel %vm1703, %v5898, 0
      %v5948 = vsel %vm1752, %v5683, 0
      %5950 = vmatprep.subr.bf16.mxu0 0
      %5951 = vmatpush1.bf16.msra.mxu0 %v5948
      %5952 = vmatprep.subr.bf16.mxu0 0
      %5953 = vmatpush1.bf16.msra.mxu0 0
      %5954 = vmatprep.subr.bf16.mxu0 0
      %5955 = vmatpush1.bf16.msra.mxu0 0
      %5956 = vmatprep.subr.bf16.mxu0 0
      %5957 = vmatpush1.bf16.msra.mxu0 0
      %5958 = vmatprep.subr.bf16.mxu0 0
      %5959 = vmatpush1.bf16.msra.mxu0 0
      %5960 = vmatprep.subr.bf16.mxu0 0
      %5961 = vmatpush1.bf16.msra.mxu0 0
      %5962 = vmatprep.subr.bf16.mxu0 0
      %5963 = vmatpush1.bf16.msra.mxu0 0
      %5964 = vmatprep.subr.bf16.mxu0 0
      %5965 = vmatpush1.bf16.msra.mxu0 0
      %5966 = vmatprep.subr.bf16.mxu0 0
      %5967 = vmatpush1.bf16.msra.mxu0 0
      %5968 = vmatprep.subr.bf16.mxu0 0
      %5969 = vmatpush1.bf16.msra.mxu0 0
      %5970 = vmatprep.subr.bf16.mxu0 0
      %5971 = vmatpush1.bf16.msra.mxu0 0
      %5972 = vmatprep.subr.bf16.mxu0 0
      %5973 = vmatpush1.bf16.msra.mxu0 0
      %5974 = vmatprep.subr.bf16.mxu0 0
      %5975 = vmatpush1.bf16.msra.mxu0 0
      %5976 = vmatprep.subr.bf16.mxu0 0
      %5977 = vmatpush1.bf16.msra.mxu0 0
      %5978 = vmatprep.subr.bf16.mxu0 0
      %5979 = vmatpush1.bf16.msra.mxu0 0
      %5980 = vmatprep.subr.bf16.mxu0 0
      %5981 = vmatpush1.bf16.msra.mxu0 0
      %5982 = vmatprep.mubr.bf16.mxu0 0
      %5983 = vmatmul.mubr.bf16.gmra.mrb[0].mxu0 %v5900
      %v5984 = vpop.f32.mrb[0].mxu0
      %v5985 = vadd.f32 0.0, %v5984
      %v5986 = vpop.f32.mrb[0].mxu0
      %v5987 = vpop.f32.mrb[0].mxu0
      %v5988 = vadd.f32 0.0, %v5987
      %v5989 = vpop.f32.mrb[0].mxu0
      %5990 = vmatprep.mubr.bf16.mxu0 0
      %5991 = vmatmul.mubr.bf16.gmra.mrb[0].mxu0 %v5903
      %v5992 = vpop.f32.mrb[0].mxu0
      %v5993 = vadd.f32 0.0, %v5992
      %v5994 = vpop.f32.mrb[0].mxu0
      %v5995 = vpop.f32.mrb[0].mxu0
      %v5996 = vadd.f32 0.0, %v5995
      %v5997 = vpop.f32.mrb[0].mxu0
      %5998 = vmatprep.mubr.bf16.mxu0 0
      %5999 = vmatmul.mubr.bf16.gmra.mrb[0].mxu0 %v5906
      %v6000 = vpop.f32.mrb[0].mxu0
      %v6001 = vadd.f32 0.0, %v6000
      %v6002 = vpop.f32.mrb[0].mxu0
      %v6003 = vpop.f32.mrb[0].mxu0
      %v6004 = vadd.f32 0.0, %v6003
      %v6005 = vpop.f32.mrb[0].mxu0
      %6006 = vmatprep.mubr.bf16.mxu0 0
      %6007 = vmatmul.mubr.bf16.gmra.mrb[0].mxu0 %v5909
      %v6008 = vpop.f32.mrb[0].mxu0
      %v6009 = vadd.f32 0.0, %v6008
      %v6010 = vpop.f32.mrb[0].mxu0
      %v6011 = vpop.f32.mrb[0].mxu0
      %v6012 = vadd.f32 0.0, %v6011
      %v6013 = vpop.f32.mrb[0].mxu0
      %6014 = vmatprep.mubr.bf16.mxu0 0
      %6015 = vmatmul.mubr.bf16.gmra.mrb[0].mxu0 %v5912
      %v6016 = vpop.f32.mrb[0].mxu0
      %v6017 = vadd.f32 0.0, %v6016
      %v6018 = vpop.f32.mrb[0].mxu0
      %v6019 = vpop.f32.mrb[0].mxu0
      %v6020 = vadd.f32 0.0, %v6019
      %v6021 = vpop.f32.mrb[0].mxu0
      %6022 = vmatprep.mubr.bf16.mxu0 0
      %6023 = vmatmul.mubr.bf16.gmra.mrb[0].mxu0 %v5915
      %v6024 = vpop.f32.mrb[0].mxu0
      %v6025 = vadd.f32 0.0, %v6024
      %v6026 = vpop.f32.mrb[0].mxu0
      %v6027 = vpop.f32.mrb[0].mxu0
      %v6028 = vadd.f32 0.0, %v6027
      %v6029 = vpop.f32.mrb[0].mxu0
      %6030 = vmatprep.mubr.bf16.mxu0 0
      %6031 = vmatmul.mubr.bf16.gmra.mrb[0].mxu0 %v5918
      %v6032 = vpop.f32.mrb[0].mxu0
      %v6033 = vadd.f32 0.0, %v6032
      %v6034 = vpop.f32.mrb[0].mxu0
      %v6035 = vpop.f32.mrb[0].mxu0
      %v6036 = vadd.f32 0.0, %v6035
      %v6037 = vpop.f32.mrb[0].mxu0
      %6038 = vmatprep.mubr.bf16.mxu0 0
      %6039 = vmatmul.mubr.bf16.gmra.mrb[0].mxu0 %v5921
      %v6040 = vpop.f32.mrb[0].mxu0
      %v6041 = vadd.f32 0.0, %v6040
      %v6042 = vpop.f32.mrb[0].mxu0
      %v6043 = vpop.f32.mrb[0].mxu0
      %v6044 = vadd.f32 0.0, %v6043
      %v6045 = vpop.f32.mrb[0].mxu0
      %6046 = vmatprep.mubr.bf16.mxu0 0
      %6047 = vmatmul.mubr.bf16.gmra.mrb[0].mxu0 %v5924
      %v6048 = vpop.f32.mrb[0].mxu0
      %v6049 = vadd.f32 0.0, %v6048
      %v6050 = vpop.f32.mrb[0].mxu0
      %v6051 = vpop.f32.mrb[0].mxu0
      %v6052 = vadd.f32 0.0, %v6051
      %v6053 = vpop.f32.mrb[0].mxu0
      %6054 = vmatprep.mubr.bf16.mxu0 0
      %6055 = vmatmul.mubr.bf16.gmra.mrb[0].mxu0 %v5927
      %v6056 = vpop.f32.mrb[0].mxu0
      %v6057 = vadd.f32 0.0, %v6056
      %v6058 = vpop.f32.mrb[0].mxu0
      %v6059 = vpop.f32.mrb[0].mxu0
      %v6060 = vadd.f32 0.0, %v6059
      %v6061 = vpop.f32.mrb[0].mxu0
      %6062 = vmatprep.mubr.bf16.mxu0 0
      %6063 = vmatmul.mubr.bf16.gmra.mrb[0].mxu0 %v5930
      %v6064 = vpop.f32.mrb[0].mxu0
      %v6065 = vadd.f32 0.0, %v6064
      %v6066 = vpop.f32.mrb[0].mxu0
      %v6067 = vpop.f32.mrb[0].mxu0
      %v6068 = vadd.f32 0.0, %v6067
      %v6069 = vpop.f32.mrb[0].mxu0
      %6070 = vmatprep.mubr.bf16.mxu0 0
      %6071 = vmatmul.mubr.bf16.gmra.mrb[0].mxu0 %v5933
      %v6072 = vpop.f32.mrb[0].mxu0
      %v6073 = vadd.f32 0.0, %v6072
      %v6074 = vpop.f32.mrb[0].mxu0
      %v6075 = vpop.f32.mrb[0].mxu0
      %v6076 = vadd.f32 0.0, %v6075
      %v6077 = vpop.f32.mrb[0].mxu0
      %6078 = vmatprep.mubr.bf16.mxu0 0
      %6079 = vmatmul.mubr.bf16.gmra.mrb[0].mxu0 %v5936
      %v6080 = vpop.f32.mrb[0].mxu0
      %v6081 = vadd.f32 0.0, %v6080
      %v6082 = vpop.f32.mrb[0].mxu0
      %v6083 = vpop.f32.mrb[0].mxu0
      %v6084 = vadd.f32 0.0, %v6083
      %v6085 = vpop.f32.mrb[0].mxu0
      %6086 = vmatprep.mubr.bf16.mxu0 0
      %6087 = vmatmul.mubr.bf16.gmra.mrb[0].mxu0 %v5939
      %v6088 = vpop.f32.mrb[0].mxu0
      %v6089 = vadd.f32 0.0, %v6088
      %v6090 = vpop.f32.mrb[0].mxu0
      %v6091 = vpop.f32.mrb[0].mxu0
      %v6092 = vadd.f32 0.0, %v6091
      %v6093 = vpop.f32.mrb[0].mxu0
      %6094 = vmatprep.mubr.bf16.mxu0 0
      %6095 = vmatmul.mubr.bf16.gmra.mrb[0].mxu0 %v5942
      %v6096 = vpop.f32.mrb[0].mxu0
      %v6097 = vadd.f32 0.0, %v6096
      %v6098 = vpop.f32.mrb[0].mxu0
      %v6099 = vpop.f32.mrb[0].mxu0
      %v6100 = vadd.f32 0.0, %v6099
      %v6101 = vpop.f32.mrb[0].mxu0
      %6102 = vmatprep.mubr.bf16.mxu0 0
      %6103 = vmatmul.mubr.bf16.gmra.mrb[0].mxu0 %v5945
      %v6104 = vpop.f32.mrb[0].mxu0
      %v6105 = vadd.f32 0.0, %v6104
      %v6106 = vpop.f32.mrb[0].mxu0
      %v6107 = vpop.f32.mrb[0].mxu0
      %v6108 = vadd.f32 0.0, %v6107
      %v6109 = vpop.f32.mrb[0].mxu0
      %6110 = vdwg.mxu0
      %v6111 = vadd.f32 %v5584, %v5985
      %v6112 = vadd.f32 %v5585, %v5988
      %v6113 = vadd.f32 %v5586, %v5993
      %v6114 = vadd.f32 %v5587, %v5996
      %v6115 = vadd.f32 %v5588, %v6001
      %v6116 = vadd.f32 %v5589, %v6004
      %v6117 = vadd.f32 %v5590, %v6009
      %v6118 = vadd.f32 %v5591, %v6012
      %v6119 = vadd.f32 %v5592, %v6017
      %v6120 = vadd.f32 %v5593, %v6020
      %v6121 = vadd.f32 %v5594, %v6025
      %v6122 = vadd.f32 %v5595, %v6028
      %v6123 = vadd.f32 %v5596, %v6033
      %v6124 = vadd.f32 %v5597, %v6036
      %v6125 = vadd.f32 %v5598, %v6041
      %v6126 = vadd.f32 %v5599, %v6044
      %v6127 = vadd.f32 %v5600, %v6049
      %v6128 = vadd.f32 %v5601, %v6052
      %v6129 = vadd.f32 %v5602, %v6057
      %v6130 = vadd.f32 %v5603, %v6060
      %v6131 = vadd.f32 %v5604, %v6065
      %v6132 = vadd.f32 %v5605, %v6068
      %v6133 = vadd.f32 %v5606, %v6073
      %v6134 = vadd.f32 %v5607, %v6076
      %v6135 = vadd.f32 %v5608, %v6081
      %v6136 = vadd.f32 %v5609, %v6084
      %v6137 = vadd.f32 %v5610, %v6089
      %v6138 = vadd.f32 %v5611, %v6092
      %v6139 = vadd.f32 %v5612, %v6097
      %v6140 = vadd.f32 %v5613, %v6100
      %v6141 = vadd.f32 %v5614, %v6105
      %v6142 = vadd.f32 %v5615, %v6108
      %v6143 = vpack.c.bf16 %v6112, %v6111
      %v6144 = vpack.c.bf16 %v6114, %v6113
      %v6145 = vpack.c.bf16 %v6116, %v6115
      %v6146 = vpack.c.bf16 %v6118, %v6117
      %v6147 = vpack.c.bf16 %v6120, %v6119
      %v6148 = vpack.c.bf16 %v6122, %v6121
      %v6149 = vpack.c.bf16 %v6124, %v6123
      %v6150 = vpack.c.bf16 %v6126, %v6125
      %v6151 = vpack.c.bf16 %v6128, %v6127
      %v6152 = vpack.c.bf16 %v6130, %v6129
      %v6153 = vpack.c.bf16 %v6132, %v6131
      %v6154 = vpack.c.bf16 %v6134, %v6133
      %v6155 = vpack.c.bf16 %v6136, %v6135
      %v6156 = vpack.c.bf16 %v6138, %v6137
      %v6157 = vpack.c.bf16 %v6140, %v6139
      %v6158 = vpack.c.bf16 %v6142, %v6141
      %v6175 = vunpack.c.l.b16 %v6143
      %v6176 = vunpack.c.h.b16 %v6143
      %v6177 = vunpack.c.l.b16 %v6144
      %v6178 = vunpack.c.h.b16 %v6144
      %v6179 = vunpack.c.l.b16 %v6145
      %v6180 = vunpack.c.h.b16 %v6145
      %v6181 = vunpack.c.l.b16 %v6146
      %v6182 = vunpack.c.h.b16 %v6146
      %v6183 = vunpack.c.l.b16 %v6147
      %v6184 = vunpack.c.h.b16 %v6147
      %v6185 = vunpack.c.l.b16 %v6148
      %v6186 = vunpack.c.h.b16 %v6148
      %v6187 = vunpack.c.l.b16 %v6149
      %v6188 = vunpack.c.h.b16 %v6149
      %v6189 = vunpack.c.l.b16 %v6150
      %v6190 = vunpack.c.h.b16 %v6150
      %v6191 = vunpack.c.l.b16 %v6151
      %v6192 = vunpack.c.h.b16 %v6151
      %v6193 = vunpack.c.l.b16 %v6152
      %v6194 = vunpack.c.h.b16 %v6152
      %v6195 = vunpack.c.l.b16 %v6153
      %v6196 = vunpack.c.h.b16 %v6153
      %v6197 = vunpack.c.l.b16 %v6154
      %v6198 = vunpack.c.h.b16 %v6154
      %v6199 = vunpack.c.l.b16 %v6155
      %v6200 = vunpack.c.h.b16 %v6155
      %v6201 = vunpack.c.l.b16 %v6156
      %v6202 = vunpack.c.h.b16 %v6156
      %v6203 = vunpack.c.l.b16 %v6157
      %v6204 = vunpack.c.h.b16 %v6157
      %v6205 = vunpack.c.l.b16 %v6158
      %v6206 = vunpack.c.h.b16 %v6158
      %v6207 = vpack.c.b16 %v6175, %v6175
      %v6208 = vpack.c.b16 %v6176, %v6176
      %v6209 = vpack.c.b16 %v6177, %v6177
      %v6210 = vpack.c.b16 %v6178, %v6178
      %v6211 = vpack.c.b16 %v6179, %v6179
      %v6212 = vpack.c.b16 %v6180, %v6180
      %v6213 = vpack.c.b16 %v6181, %v6181
      %v6214 = vpack.c.b16 %v6182, %v6182
      %v6215 = vpack.c.b16 %v6183, %v6183
      %v6216 = vpack.c.b16 %v6184, %v6184
      %v6217 = vpack.c.b16 %v6185, %v6185
      %v6218 = vpack.c.b16 %v6186, %v6186
      %v6219 = vpack.c.b16 %v6187, %v6187
      %v6220 = vpack.c.b16 %v6188, %v6188
      %v6221 = vpack.c.b16 %v6189, %v6189
      %v6222 = vpack.c.b16 %v6190, %v6190
      %v6223 = vpack.c.b16 %v6191, %v6191
      %v6224 = vpack.c.b16 %v6192, %v6192
      %v6225 = vpack.c.b16 %v6193, %v6193
      %v6226 = vpack.c.b16 %v6194, %v6194
      %v6227 = vpack.c.b16 %v6195, %v6195
      %v6228 = vpack.c.b16 %v6196, %v6196
      %v6229 = vpack.c.b16 %v6197, %v6197
      %v6230 = vpack.c.b16 %v6198, %v6198
      %v6231 = vpack.c.b16 %v6199, %v6199
      %v6232 = vpack.c.b16 %v6200, %v6200
      %v6233 = vpack.c.b16 %v6201, %v6201
      %v6234 = vpack.c.b16 %v6202, %v6202
      %v6235 = vpack.c.b16 %v6203, %v6203
      %v6236 = vpack.c.b16 %v6204, %v6204
      %v6237 = vpack.c.b16 %v6205, %v6205
      %v6238 = vpack.c.b16 %v6206, %v6206
      %6271 = vst.msk [vmem:[%s231] sm:$0xf] %vm435, %v6207
      %6272 = vst.msk [vmem:[%s231 + $0x4] sm:$0xf] %vm435, %v6208
      %6273 = vst.msk [vmem:[%s231 + $0x8] sm:$0xf] %vm435, %v6209
      %6274 = vst.msk [vmem:[%s231 + $0xc] sm:$0xf] %vm435, %v6210
      %6275 = vst.msk [vmem:[%s231 + $0x10] sm:$0xf] %vm435, %v6211
      %6276 = vst.msk [vmem:[%s231 + $0x14] sm:$0xf] %vm435, %v6212
      %6277 = vst.msk [vmem:[%s231 + $0x18] sm:$0xf] %vm435, %v6213
      %6278 = vst.msk [vmem:[%s231 + $0x1c] sm:$0xf] %vm435, %v6214
      %6279 = vst.msk [vmem:[%s231 + $0x20] sm:$0xf] %vm435, %v6215
      %6280 = vst.msk [vmem:[%s231 + $0x24] sm:$0xf] %vm435, %v6216
      %6281 = vst.msk [vmem:[%s231 + $0x28] sm:$0xf] %vm435, %v6217
      %6282 = vst.msk [vmem:[%s231 + $0x2c] sm:$0xf] %vm435, %v6218
      %6283 = vst.msk [vmem:[%s231 + $0x30] sm:$0xf] %vm435, %v6219
      %6284 = vst.msk [vmem:[%s231 + $0x34] sm:$0xf] %vm435, %v6220
      %6285 = vst.msk [vmem:[%s231 + $0x38] sm:$0xf] %vm435, %v6221
      %6286 = vst.msk [vmem:[%s231 + $0x3c] sm:$0xf] %vm435, %v6222
      %6287 = vst.msk [vmem:[%s231 + $0x40] sm:$0xf] %vm435, %v6223
      %6288 = vst.msk [vmem:[%s231 + $0x44] sm:$0xf] %vm435, %v6224
      %6289 = vst.msk [vmem:[%s231 + $0x48] sm:$0xf] %vm435, %v6225
      %6290 = vst.msk [vmem:[%s231 + $0x4c] sm:$0xf] %vm435, %v6226
      %6291 = vst.msk [vmem:[%s231 + $0x50] sm:$0xf] %vm435, %v6227
      %6292 = vst.msk [vmem:[%s231 + $0x54] sm:$0xf] %vm435, %v6228
      %6293 = vst.msk [vmem:[%s231 + $0x58] sm:$0xf] %vm435, %v6229
      %6294 = vst.msk [vmem:[%s231 + $0x5c] sm:$0xf] %vm435, %v6230
      %6295 = vst.msk [vmem:[%s231 + $0x60] sm:$0xf] %vm435, %v6231
      %6296 = vst.msk [vmem:[%s231 + $0x64] sm:$0xf] %vm435, %v6232
      %6297 = vst.msk [vmem:[%s231 + $0x68] sm:$0xf] %vm435, %v6233
      %6298 = vst.msk [vmem:[%s231 + $0x6c] sm:$0xf] %vm435, %v6234
      %6299 = vst.msk [vmem:[%s231 + $0x70] sm:$0xf] %vm435, %v6235
      %6300 = vst.msk [vmem:[%s231 + $0x74] sm:$0xf] %vm435, %v6236
      %6301 = vst.msk [vmem:[%s231 + $0x78] sm:$0xf] %vm435, %v6237
      %6302 = vst.msk [vmem:[%s231 + $0x7c] sm:$0xf] %vm435, %v6238
      %v6303 = vsel %vm1703, %v6111, 0.0
      %v6304 = vsel %vm1703, %v6112, 0.0
      %v6305 = vadd.f32 %v6303, %v6304
      %v6306 = vsel %vm1703, %v6113, 0.0
      %v6307 = vadd.f32 %v6305, %v6306
      %v6308 = vsel %vm1703, %v6114, 0.0
      %v6309 = vadd.f32 %v6307, %v6308
      %v6310 = vsel %vm1703, %v6115, 0.0
      %v6311 = vadd.f32 %v6309, %v6310
      %v6312 = vsel %vm1703, %v6116, 0.0
      %v6313 = vadd.f32 %v6311, %v6312
      %v6314 = vsel %vm1703, %v6117, 0.0
      %v6315 = vadd.f32 %v6313, %v6314
      %v6316 = vsel %vm1703, %v6118, 0.0
      %v6317 = vadd.f32 %v6315, %v6316
      %v6318 = vsel %vm1703, %v6119, 0.0
      %v6319 = vadd.f32 %v6317, %v6318
      %v6320 = vsel %vm1703, %v6120, 0.0
      %v6321 = vadd.f32 %v6319, %v6320
      %v6322 = vsel %vm1703, %v6121, 0.0
      %v6323 = vadd.f32 %v6321, %v6322
      %v6324 = vsel %vm1703, %v6122, 0.0
      %v6325 = vadd.f32 %v6323, %v6324
      %v6326 = vsel %vm1703, %v6123, 0.0
      %v6327 = vadd.f32 %v6325, %v6326
      %v6328 = vsel %vm1703, %v6124, 0.0
      %v6329 = vadd.f32 %v6327, %v6328
      %v6330 = vsel %vm1703, %v6125, 0.0
      %v6331 = vadd.f32 %v6329, %v6330
      %v6332 = vsel %vm1703, %v6126, 0.0
      %v6333 = vadd.f32 %v6331, %v6332
      %v6334 = vsel %vm1703, %v6127, 0.0
      %v6335 = vadd.f32 %v6333, %v6334
      %v6336 = vsel %vm1703, %v6128, 0.0
      %v6337 = vadd.f32 %v6335, %v6336
      %v6338 = vsel %vm1703, %v6129, 0.0
      %v6339 = vadd.f32 %v6337, %v6338
      %v6340 = vsel %vm1703, %v6130, 0.0
      %v6341 = vadd.f32 %v6339, %v6340
      %v6342 = vsel %vm1703, %v6131, 0.0
      %v6343 = vadd.f32 %v6341, %v6342
      %v6344 = vsel %vm1703, %v6132, 0.0
      %v6345 = vadd.f32 %v6343, %v6344
      %v6346 = vsel %vm1703, %v6133, 0.0
      %v6347 = vadd.f32 %v6345, %v6346
      %v6348 = vsel %vm1703, %v6134, 0.0
      %v6349 = vadd.f32 %v6347, %v6348
      %v6350 = vsel %vm1703, %v6135, 0.0
      %v6351 = vadd.f32 %v6349, %v6350
      %v6352 = vsel %vm1703, %v6136, 0.0
      %v6353 = vadd.f32 %v6351, %v6352
      %v6354 = vsel %vm1703, %v6137, 0.0
      %v6355 = vadd.f32 %v6353, %v6354
      %v6356 = vsel %vm1703, %v6138, 0.0
      %v6357 = vadd.f32 %v6355, %v6356
      %v6358 = vsel %vm1703, %v6139, 0.0
      %v6359 = vadd.f32 %v6357, %v6358
      %v6360 = vsel %vm1703, %v6140, 0.0
      %v6361 = vadd.f32 %v6359, %v6360
      %v6362 = vsel %vm1703, %v6141, 0.0
      %v6363 = vadd.f32 %v6361, %v6362
      %v6364 = vsel %vm1703, %v6142, 0.0
      %v6365 = vadd.f32 %v6363, %v6364
      %v6366 = vrot.slane %v6365, 4
      %v6367 = vadd.f32 %v6365, %v6366
      %v6368 = vrot.slane %v6367, 2
      %v6369 = vadd.f32 %v6367, %v6368
      %v6370 = vrot.slane %v6369, 1
      %v6371 = vadd.f32 %v6369, %v6370
      %vm6372 = vcmask 57344
      %6373 = vst.msk [vmem:[%s235] sm:$0x1] %vm6372, %v6371
      %v6374 = vmul.f32 %v6111, %v6111
      %v6375 = vmul.f32 %v6112, %v6112
      %v6376 = vmul.f32 %v6113, %v6113
      %v6377 = vmul.f32 %v6114, %v6114
      %v6378 = vmul.f32 %v6115, %v6115
      %v6379 = vmul.f32 %v6116, %v6116
      %v6380 = vmul.f32 %v6117, %v6117
      %v6381 = vmul.f32 %v6118, %v6118
      %v6382 = vmul.f32 %v6119, %v6119
      %v6383 = vmul.f32 %v6120, %v6120
      %v6384 = vmul.f32 %v6121, %v6121
      %v6385 = vmul.f32 %v6122, %v6122
      %v6386 = vmul.f32 %v6123, %v6123
      %v6387 = vmul.f32 %v6124, %v6124
      %v6388 = vmul.f32 %v6125, %v6125
      %v6389 = vmul.f32 %v6126, %v6126
      %v6390 = vmul.f32 %v6127, %v6127
      %v6391 = vmul.f32 %v6128, %v6128
      %v6392 = vmul.f32 %v6129, %v6129
      %v6393 = vmul.f32 %v6130, %v6130
      %v6394 = vmul.f32 %v6131, %v6131
      %v6395 = vmul.f32 %v6132, %v6132
      %v6396 = vmul.f32 %v6133, %v6133
      %v6397 = vmul.f32 %v6134, %v6134
      %v6398 = vmul.f32 %v6135, %v6135
      %v6399 = vmul.f32 %v6136, %v6136
      %v6400 = vmul.f32 %v6137, %v6137
      %v6401 = vmul.f32 %v6138, %v6138
      %v6402 = vmul.f32 %v6139, %v6139
      %v6403 = vmul.f32 %v6140, %v6140
      %v6404 = vmul.f32 %v6141, %v6141
      %v6405 = vmul.f32 %v6142, %v6142
      %v6406 = vsel %vm1703, %v6374, 0.0
      %v6407 = vsel %vm1703, %v6375, 0.0
      %v6408 = vadd.f32 %v6406, %v6407
      %v6409 = vsel %vm1703, %v6376, 0.0
      %v6410 = vadd.f32 %v6408, %v6409
      %v6411 = vsel %vm1703, %v6377, 0.0
      %v6412 = vadd.f32 %v6410, %v6411
      %v6413 = vsel %vm1703, %v6378, 0.0
      %v6414 = vadd.f32 %v6412, %v6413
      %v6415 = vsel %vm1703, %v6379, 0.0
      %v6416 = vadd.f32 %v6414, %v6415
      %v6417 = vsel %vm1703, %v6380, 0.0
      %v6418 = vadd.f32 %v6416, %v6417
      %v6419 = vsel %vm1703, %v6381, 0.0
      %v6420 = vadd.f32 %v6418, %v6419
      %v6421 = vsel %vm1703, %v6382, 0.0
      %v6422 = vadd.f32 %v6420, %v6421
      %v6423 = vsel %vm1703, %v6383, 0.0
      %v6424 = vadd.f32 %v6422, %v6423
      %v6425 = vsel %vm1703, %v6384, 0.0
      %v6426 = vadd.f32 %v6424, %v6425
      %v6427 = vsel %vm1703, %v6385, 0.0
      %v6428 = vadd.f32 %v6426, %v6427
      %v6429 = vsel %vm1703, %v6386, 0.0
      %v6430 = vadd.f32 %v6428, %v6429
      %v6431 = vsel %vm1703, %v6387, 0.0
      %v6432 = vadd.f32 %v6430, %v6431
      %v6433 = vsel %vm1703, %v6388, 0.0
      %v6434 = vadd.f32 %v6432, %v6433
      %v6435 = vsel %vm1703, %v6389, 0.0
      %v6436 = vadd.f32 %v6434, %v6435
      %v6437 = vsel %vm1703, %v6390, 0.0
      %v6438 = vadd.f32 %v6436, %v6437
      %v6439 = vsel %vm1703, %v6391, 0.0
      %v6440 = vadd.f32 %v6438, %v6439
      %v6441 = vsel %vm1703, %v6392, 0.0
      %v6442 = vadd.f32 %v6440, %v6441
      %v6443 = vsel %vm1703, %v6393, 0.0
      %v6444 = vadd.f32 %v6442, %v6443
      %v6445 = vsel %vm1703, %v6394, 0.0
      %v6446 = vadd.f32 %v6444, %v6445
      %v6447 = vsel %vm1703, %v6395, 0.0
      %v6448 = vadd.f32 %v6446, %v6447
      %v6449 = vsel %vm1703, %v6396, 0.0
      %v6450 = vadd.f32 %v6448, %v6449
      %v6451 = vsel %vm1703, %v6397, 0.0
      %v6452 = vadd.f32 %v6450, %v6451
      %v6453 = vsel %vm1703, %v6398, 0.0
      %v6454 = vadd.f32 %v6452, %v6453
      %v6455 = vsel %vm1703, %v6399, 0.0
      %v6456 = vadd.f32 %v6454, %v6455
      %v6457 = vsel %vm1703, %v6400, 0.0
      %v6458 = vadd.f32 %v6456, %v6457
      %v6459 = vsel %vm1703, %v6401, 0.0
      %v6460 = vadd.f32 %v6458, %v6459
      %v6461 = vsel %vm1703, %v6402, 0.0
      %v6462 = vadd.f32 %v6460, %v6461
      %v6463 = vsel %vm1703, %v6403, 0.0
      %v6464 = vadd.f32 %v6462, %v6463
      %v6465 = vsel %vm1703, %v6404, 0.0
      %v6466 = vadd.f32 %v6464, %v6465
      %v6467 = vsel %vm1703, %v6405, 0.0
      %v6468 = vadd.f32 %v6466, %v6467
      %v6469 = vrot.slane %v6468, 4
      %v6470 = vadd.f32 %v6468, %v6469
      %v6471 = vrot.slane %v6470, 2
      %v6472 = vadd.f32 %v6470, %v6471
      %v6473 = vrot.slane %v6472, 1
      %v6474 = vadd.f32 %v6472, %v6473
      %6475 = vst.msk [vmem:[%s235 + $0x1] sm:$0x1] %vm6372, %v6474
      %p6476 = scmp.lt.s32.totalorder %s17, 1
      %s6477 = scalar_select %p6476, %s17, 1
      %s6478 = smul.addr %s6477, 32
      %s6479 = smul.addr %s6478, 4
      %s6480 = scalar_lea.vmem %s4, %s6479
      %p6481 = scmp.lt.s32.totalorder %s17, 1
      %s6482 = scalar_select %p6481, %s17, 1
      %s6483 = smul.addr %s6482, 2
      %s6484 = scalar_lea.vmem %s5, %s6483
      // Predicated region
      $region37: #{double_conv.4} parent=35 // pred_check
        %p6485 = pneg %p124
      $region38: #{double_conv.4} parent=35 // pred_check_branch
        %6487 = sbr.rel (%p6485) target = $region40
      $region39: #{double_conv.4} parent=35 // pred_region
        _
      $region40: #{double_conv.4} parent=35 // pred_fallthru
        _
      // Predicated region
      $region41: #{double_conv.4} parent=35 // pred_check
        %p6488 = pneg %p150
      $region42: #{double_conv.4} parent=35 // pred_check_branch
        %6490 = sbr.rel (%p6488) target = $region44
      $region43: #{double_conv.4} parent=35 // pred_region
        _
      $region44: #{double_conv.4} parent=35 // pred_fallthru
        _
    $region36: #{double_conv.4} parent=5 // pred_fallthru
      _
    %p6491 = scmp.le.s32.totalorder 2, %s12
    // Predicated region
    $region45: #{double_conv.4} parent=5 // pred_check
      %p6492 = pneg %p6491
    $region46: #{double_conv.4} parent=5 // pred_check_branch
      %6494 = sbr.rel (%p6492) target = $region48
    $region47: #{double_conv.4} parent=5 // pred_region
      %s6495 = ssub.s32 %s12, 2
      // Predicated region
      $region49: #{double_conv.4} parent=47 // pred_check
        %p6496 = pneg %p130
      $region50: #{double_conv.4} parent=47 // pred_check_branch
        %6498 = sbr.rel (%p6496) target = $region52
      $region51: #{double_conv.4} parent=47 // pred_region
        %p6499 = scmp.lt.s32.totalorder %s18, 1
        %s6500 = scalar_select %p6499, %s18, 1
        %s6501 = smul.addr %s6500, 32
        %s6502 = smul.addr %s6501, 4
        %s6503 = scalar_lea.vmem %s4, %s6502
      $region52: #{double_conv.4} parent=47 // pred_fallthru
        _
      // Predicated region
      $region53: #{double_conv.4} parent=47 // pred_check
        %p6504 = pneg %p156
      $region54: #{double_conv.4} parent=47 // pred_check_branch
        %6506 = sbr.rel (%p6504) target = $region56
      $region55: #{double_conv.4} parent=47 // pred_region
        %p6507 = scmp.lt.s32.totalorder %s18, 1
        %s6508 = scalar_select %p6507, %s18, 1
        %s6509 = smul.addr %s6508, 2
        %s6510 = scalar_lea.vmem %s5, %s6509
      $region56: #{double_conv.4} parent=47 // pred_fallthru
        _
    $region48: #{double_conv.4} parent=5 // pred_fallthru
      _
  $region6: #{double_conv.4} parent=0 // loop_footer
    %s16 = sadd.s32 1, %s12
  $region7: #{double_conv.4} parent=0 // loop_footer_branch
    %11 = sbr.rel target = $region3
  $region8: #{double_conv.4} parent=0 // loop_exit
    _

</llo_original>
